<compile_context>
chip_gen: v6e
topology: v6e:2x2x1
jax: 0.10.0
libtpu: 0.0.40
codegen_flags: <defaults>
</compile_context>

<pallas_src>
import numpy as np
import jax
import jax.numpy as jnp
from jax.experimental import pallas as pl
from jax.experimental.pallas import tpu as pltpu

BN_EPS = 1e-5
NEG_SLOPE = 0.2
HIDDEN = 1000
HIDDEN_PAD = 1024           # multiple of 256 (v6e/v7x MXU) and of the 128-lane vreg
LANE = 128


def _round_up(n, m):
    return ((n + m - 1) // m) * m


def _cdiv(a, b):
    return -(-a // b)


def _leaky_relu(h):
    return jnp.where(h > 0, h, NEG_SLOPE * h)


def discriminator_kernel(xf_ref, xc_ref,
                         w1a_ref, w1b_ref, b1_ref,
                         w2_ref, b2_ref,
                         w3_ref, b3_ref,
                         w4_ref, b4_ref,
                         out_ref):
    # Block 1: Linear (BN folded) split over [flatten(returns) | condition], LeakyReLU.
    # (Dropout = identity in eval mode.)
    h = jnp.dot(xf_ref[...], w1a_ref[...], preferred_element_type=jnp.float32)
    h = h + jnp.dot(xc_ref[...], w1b_ref[...], preferred_element_type=jnp.float32)
    h = _leaky_relu(h + b1_ref[...])

    # Block 2: Linear (BN folded) -> LeakyReLU -> (Dropout: identity)
    h = jnp.dot(h.astype(jnp.bfloat16), w2_ref[...],
                preferred_element_type=jnp.float32) + b2_ref[...]
    h = _leaky_relu(h)

    # Block 3: Linear -> LeakyReLU -> (Dropout: identity)
    h = jnp.dot(h.astype(jnp.bfloat16), w3_ref[...],
                preferred_element_type=jnp.float32) + b3_ref[...]
    h = _leaky_relu(h)

    # Output head Linear(H, 1): MXU dot against w4 zero-padded to (H, 128) so the
    # store is lane-dense (no XLU reduction, no masked stores). Column 0 is the real
    # result; the wrapper slices it out.
    out_ref[...] = jnp.dot(h.astype(jnp.bfloat16), w4_ref[...],
                           preferred_element_type=jnp.float32) + b4_ref[...]


def init_params(key, input_dim):
    """Raw f32 parameters mimicking nn.Linear init + BatchNorm affine/running stats.

    Linear weights are stored pre-transposed as (in_features, out_features);
    row vectors (biases, BN params) are (1, features).
    """
    def linear(k, fan_in, fan_out):
        kw, kb = jax.random.split(k)
        bound = 1.0 / np.sqrt(fan_in)
        w = jax.random.uniform(kw, (fan_in, fan_out), jnp.float32, -bound, bound)
        b = jax.random.uniform(kb, (1, fan_out), jnp.float32, -bound, bound)
        return w, b

    keys = jax.random.split(key, 12)
    w1, b1 = linear(keys[0], input_dim, HIDDEN)
    w2, b2 = linear(keys[1], HIDDEN, HIDDEN)
    w3, b3 = linear(keys[2], HIDDEN, HIDDEN)
    w4, b4 = linear(keys[3], HIDDEN, 1)

    g1 = 1.0 + 0.1 * jax.random.normal(keys[4], (1, HIDDEN), jnp.float32)
    be1 = 0.1 * jax.random.normal(keys[5], (1, HIDDEN), jnp.float32)
    rm1 = 0.05 * jax.random.normal(keys[6], (1, HIDDEN), jnp.float32)
    rv1 = 1.0 + 0.1 * jnp.abs(jax.random.normal(keys[7], (1, HIDDEN), jnp.float32))

    g2 = 1.0 + 0.1 * jax.random.normal(keys[8], (1, HIDDEN), jnp.float32)
    be2 = 0.1 * jax.random.normal(keys[9], (1, HIDDEN), jnp.float32)
    rm2 = 0.05 * jax.random.normal(keys[10], (1, HIDDEN), jnp.float32)
    rv2 = 1.0 + 0.1 * jnp.abs(jax.random.normal(keys[11], (1, HIDDEN), jnp.float32))

    return dict(
        w1=w1, b1=b1, g1=g1, be1=be1, rm1=rm1, rv1=rv1,
        w2=w2, b2=b2, g2=g2, be2=be2, rm2=rm2, rv2=rv2,
        w3=w3, b3=b3, w4=w4, b4=b4,
    )


def prepare_params(raw, flat_dim, cond_dim):
    """Fold BN into the Linears, split w1 for the two-input first layer, pad to
    lane/MXU-aligned shapes, cast matmul weights to bf16 (biases stay f32)."""
    flat_pad = _round_up(max(flat_dim, LANE), LANE)
    cond_pad = _round_up(max(cond_dim, LANE), LANE)

    def pad2(a, rows, cols):
        return jnp.pad(a, ((0, rows - a.shape[0]), (0, cols - a.shape[1])))

    s1 = raw["g1"] * jax.lax.rsqrt(raw["rv1"] + BN_EPS)          # (1, HIDDEN)
    w1f = raw["w1"] * s1
    b1f = (raw["b1"] - raw["rm1"]) * s1 + raw["be1"]

    s2 = raw["g2"] * jax.lax.rsqrt(raw["rv2"] + BN_EPS)
    w2f = raw["w2"] * s2
    b2f = (raw["b2"] - raw["rm2"]) * s2 + raw["be2"]

    # Head weight as an (H, 128) column block so it can be an MXU dot; real data in col 0.
    w4_col = jnp.zeros((HIDDEN, LANE), jnp.float32).at[:, 0].set(raw["w4"][:, 0])
    b4_row = jnp.zeros((1, LANE), jnp.float32).at[0, 0].set(raw["b4"][0, 0])

    return dict(
        w1a=pad2(w1f[:flat_dim], flat_pad, HIDDEN_PAD).astype(jnp.bfloat16),
        w1b=pad2(w1f[flat_dim:flat_dim + cond_dim], cond_pad, HIDDEN_PAD).astype(jnp.bfloat16),
        b1=pad2(b1f, 1, HIDDEN_PAD),
        w2=pad2(w2f, HIDDEN_PAD, HIDDEN_PAD).astype(jnp.bfloat16),
        b2=pad2(b2f, 1, HIDDEN_PAD),
        w3=pad2(raw["w3"], HIDDEN_PAD, HIDDEN_PAD).astype(jnp.bfloat16),
        b3=pad2(raw["b3"], 1, HIDDEN_PAD),
        w4=pad2(w4_col, HIDDEN_PAD, LANE).astype(jnp.bfloat16),
        b4=b4_row,
    )


def discriminator_forward(returns, condition, prep, *, tile_b=512):
    """returns: (B, *input_shape), condition: (B, cond_dim) -> validity (B, 1)."""
    B = returns.shape[0]
    # bf16 cast in the wrapper (halves activation DMA); the two inputs are passed
    # separately so no full-width f32 concat of x is ever materialized in HBM.
    xf = returns.reshape(B, -1).astype(jnp.bfloat16)
    xc = condition.astype(jnp.bfloat16)

    flat_pad = prep["w1a"].shape[0]
    cond_pad = prep["w1b"].shape[0]
    hdim = HIDDEN_PAD

    # Batch tiling: always >= 2 grid steps so v7x's two TensorCores both get work;
    # tiles are 128-row aligned when large, 16-row aligned when small (bf16 packing).
    num_steps = max(2, _cdiv(B, tile_b))
    rows = _cdiv(B, num_steps)
    if rows >= 128:
        tile_b = min(tile_b, _round_up(rows, 128))
    else:
        tile_b = _round_up(rows, 16)
    b_pad = num_steps * tile_b

    xf = jnp.pad(xf, ((0, b_pad - B), (0, flat_pad - xf.shape[1])))
    xc = jnp.pad(xc, ((0, b_pad - B), (0, cond_pad - xc.shape[1])))

    def act_spec(cols):
        # Activations: batch-tiled, new block every grid step (default double-buffer).
        return pl.BlockSpec((tile_b, cols), lambda i: (i, 0))

    def const_spec(shape):
        # Weights/biases: same block every grid step -> VMEM-resident, no re-DMA.
        # Single-buffered: double-buffering a constant block is pure VMEM waste.
        return pl.BlockSpec(shape, lambda i: (0, 0), pipeline_mode=pl.Buffered(1))

    in_specs = [
        act_spec(flat_pad), act_spec(cond_pad),
        const_spec((flat_pad, hdim)), const_spec((cond_pad, hdim)), const_spec((1, hdim)),
        const_spec((hdim, hdim)), const_spec((1, hdim)),
        const_spec((hdim, hdim)), const_spec((1, hdim)),
        const_spec((hdim, LANE)), const_spec((1, LANE)),
    ]
    out_specs = pl.BlockSpec((tile_b, LANE), lambda i: (i, 0))

    weight_bytes = 2 * (prep["w1a"].size + prep["w1b"].size + prep["w2"].size
                        + prep["w3"].size + prep["w4"].size) \
        + 4 * (prep["b1"].size + prep["b2"].size + prep["b3"].size + prep["b4"].size)
    act_bytes = 2 * (xf.size + xc.size) + 4 * b_pad * LANE
    cost = pl.CostEstimate(
        flops=2 * b_pad * (flat_pad * hdim + cond_pad * hdim + 2 * hdim * hdim + hdim * LANE),
        transcendentals=0,
        bytes_accessed=int(weight_bytes + act_bytes),
    )

    out = pl.pallas_call(
        discriminator_kernel,
        out_shape=jax.ShapeDtypeStruct((b_pad, LANE), jnp.float32),
        grid=(num_steps,),
        in_specs=in_specs,
        out_specs=out_specs,
        compiler_params=pltpu.CompilerParams(
            dimension_semantics=("parallel",),   # megacore batch split on v7x
            vmem_limit_bytes=32 * 1024 * 1024,   # ~10-20 MiB actual; safe on v7x's 64 MiB
        ),
        cost_estimate=cost,
    )(xf, xc,
      prep["w1a"], prep["w1b"], prep["b1"],
      prep["w2"], prep["b2"],
      prep["w3"], prep["b3"],
      prep["w4"], prep["b4"])

    return out[:B, :1]


def reference_forward_f32(returns, condition, raw):
    """Pure-JAX f32 reference matching the PyTorch module's eval-mode math."""
    B = returns.shape[0]
    x = jnp.concatenate([returns.reshape(B, -1), condition], axis=1).astype(jnp.float32)

    h = x @ raw["w1"] + raw["b1"]
    h = (h - raw["rm1"]) / jnp.sqrt(raw["rv1"] + BN_EPS) * raw["g1"] + raw["be1"]
    h = _leaky_relu(h)

    h = h @ raw["w2"] + raw["b2"]
    h = (h - raw["rm2"]) / jnp.sqrt(raw["rv2"] + BN_EPS) * raw["g2"] + raw["be2"]
    h = _leaky_relu(h)

    h = h @ raw["w3"] + raw["b3"]
    h = _leaky_relu(h)

    return h @ raw["w4"] + raw["b4"]


def reference_forward_bf16(returns, condition, prep):
    """Pure-JAX reference mirroring the kernel's bf16 weights / f32 accumulation."""
    B = returns.shape[0]
    xf = returns.reshape(B, -1).astype(jnp.bfloat16)
    xc = condition.astype(jnp.bfloat16)
    xf = jnp.pad(xf, ((0, 0), (0, prep["w1a"].shape[0] - xf.shape[1])))
    xc = jnp.pad(xc, ((0, 0), (0, prep["w1b"].shape[0] - xc.shape[1])))

    h = (jnp.dot(xf, prep["w1a"], preferred_element_type=jnp.float32)
         + jnp.dot(xc, prep["w1b"], preferred_element_type=jnp.float32) + prep["b1"])
    h = _leaky_relu(h)
    h = jnp.dot(h.astype(jnp.bfloat16), prep["w2"],
                preferred_element_type=jnp.float32) + prep["b2"]
    h = _leaky_relu(h)
    h = jnp.dot(h.astype(jnp.bfloat16), prep["w3"],
                preferred_element_type=jnp.float32) + prep["b3"]
    h = _leaky_relu(h)
    out = jnp.dot(h.astype(jnp.bfloat16), prep["w4"],
                  preferred_element_type=jnp.float32) + prep["b4"]
    return out[:, :1]


if __name__ == "__main__":
    # Small shapes consistent with the module: returns (B, *input_shape), condition (B, cond_dim)
    input_shape = (4, 16)        # prod = 64
    cond_dim = 8
    batch = 8
    flat_dim = int(np.prod(input_shape))
    input_dim = flat_dim + cond_dim   # 72

    key = jax.random.PRNGKey(0)
    k_ret, k_cond, k_params = jax.random.split(key, 3)

    returns = jax.random.normal(k_ret, (batch,) + input_shape, jnp.float32)
    condition = jax.random.normal(k_cond, (batch, cond_dim), jnp.float32)

    raw = init_params(k_params, input_dim)
    prep = prepare_params(raw, flat_dim, cond_dim)

    validity = discriminator_forward(returns, condition, prep)
    validity = jax.block_until_ready(validity)
    assert validity.shape == (batch, 1)

    # Tight check: kernel vs a pure-JAX mirror of the same bf16/f32-acc math.
    ref_bf16 = reference_forward_bf16(returns, condition, prep)
    np.testing.assert_allclose(np.asarray(validity), np.asarray(ref_bf16),
                               rtol=1e-3, atol=1e-3)

    # Loose semantic check: kernel vs the exact f32 module math (bf16 rounding only).
    ref_f32 = reference_forward_f32(returns, condition, raw)
    np.testing.assert_allclose(np.asarray(validity), np.asarray(ref_f32),
                               rtol=1.5e-1, atol=1.5e-1)

    print("KERNEL_OK")
</pallas_src>

<mosaic_0001>
module attributes {stable_mosaic.version = 11 : i64} {
  func.func @discriminator_kernel(%arg0: i32, %arg1: memref<16x128xbf16, #tpu.memory_space<vmem>>, %arg2: memref<16x128xbf16, #tpu.memory_space<vmem>>, %arg3: memref<128x1024xbf16, #tpu.memory_space<vmem>>, %arg4: memref<128x1024xbf16, #tpu.memory_space<vmem>>, %arg5: memref<1x1024xf32, #tpu.memory_space<vmem>>, %arg6: memref<1024x1024xbf16, #tpu.memory_space<vmem>>, %arg7: memref<1x1024xf32, #tpu.memory_space<vmem>>, %arg8: memref<1024x1024xbf16, #tpu.memory_space<vmem>>, %arg9: memref<1x1024xf32, #tpu.memory_space<vmem>>, %arg10: memref<1024x128xbf16, #tpu.memory_space<vmem>>, %arg11: memref<1x128xf32, #tpu.memory_space<vmem>>, %arg12: memref<16x128xf32, #tpu.memory_space<vmem>>) attributes {dimension_semantics = [#tpu.dimension_semantics<parallel>], iteration_bounds = array<i64: 2>, scalar_prefetch = 0 : i64, scratch_operands = 0 : i64, tpu.core_type = #tpu.core_type<tc>, window_params = [{transform_indices = @transform_0, window_bounds = array<i64: 16, 128>}, {transform_indices = @transform_1, window_bounds = array<i64: 16, 128>}, {pipeline_mode = #tpu.pipeline_mode<synchronous>, transform_indices = @transform_2, window_bounds = array<i64: 128, 1024>}, {pipeline_mode = #tpu.pipeline_mode<synchronous>, transform_indices = @transform_3, window_bounds = array<i64: 128, 1024>}, {pipeline_mode = #tpu.pipeline_mode<synchronous>, transform_indices = @transform_4, window_bounds = array<i64: 1, 1024>}, {pipeline_mode = #tpu.pipeline_mode<synchronous>, transform_indices = @transform_5, window_bounds = array<i64: 1024, 1024>}, {pipeline_mode = #tpu.pipeline_mode<synchronous>, transform_indices = @transform_6, window_bounds = array<i64: 1, 1024>}, {pipeline_mode = #tpu.pipeline_mode<synchronous>, transform_indices = @transform_7, window_bounds = array<i64: 1024, 1024>}, {pipeline_mode = #tpu.pipeline_mode<synchronous>, transform_indices = @transform_8, window_bounds = array<i64: 1, 1024>}, {pipeline_mode = #tpu.pipeline_mode<synchronous>, transform_indices = @transform_9, window_bounds = array<i64: 1024, 128>}, {pipeline_mode = #tpu.pipeline_mode<synchronous>, transform_indices = @transform_10, window_bounds = array<i64: 1, 128>}, {transform_indices = @transform_11, window_bounds = array<i64: 16, 128>}]} {
    %c0 = arith.constant 0 : index
    %c0_0 = arith.constant 0 : index
    %0 = vector.load %arg1[%c0, %c0_0] : memref<16x128xbf16, #tpu.memory_space<vmem>>, vector<16x128xbf16>
    %c0_1 = arith.constant 0 : index
    %c0_2 = arith.constant 0 : index
    %1 = vector.load %arg3[%c0_1, %c0_2] : memref<128x1024xbf16, #tpu.memory_space<vmem>>, vector<128x1024xbf16>
    %cst = arith.constant dense<0.000000e+00> : vector<16x1024xf32>
    %2 = tpu.matmul %0, %1, %cst {dimension_numbers = #tpu.dot_dimension_numbers<[1], [0], [0], [1], [0, 0, 1, 1], [], []>} : vector<16x128xbf16>, vector<128x1024xbf16>, vector<16x1024xf32> -> vector<16x1024xf32>
    %c0_3 = arith.constant 0 : index
    %c0_4 = arith.constant 0 : index
    %3 = vector.load %arg2[%c0_3, %c0_4] : memref<16x128xbf16, #tpu.memory_space<vmem>>, vector<16x128xbf16>
    %c0_5 = arith.constant 0 : index
    %c0_6 = arith.constant 0 : index
    %4 = vector.load %arg4[%c0_5, %c0_6] : memref<128x1024xbf16, #tpu.memory_space<vmem>>, vector<128x1024xbf16>
    %cst_7 = arith.constant dense<0.000000e+00> : vector<16x1024xf32>
    %5 = tpu.matmul %3, %4, %cst_7 {dimension_numbers = #tpu.dot_dimension_numbers<[1], [0], [0], [1], [0, 0, 1, 1], [], []>} : vector<16x128xbf16>, vector<128x1024xbf16>, vector<16x1024xf32> -> vector<16x1024xf32>
    %6 = arith.addf %2, %5 : vector<16x1024xf32>
    %c0_8 = arith.constant 0 : index
    %c0_9 = arith.constant 0 : index
    %7 = vector.load %arg5[%c0_8, %c0_9] : memref<1x1024xf32, #tpu.memory_space<vmem>>, vector<1x1024xf32>
    %8 = vector.broadcast %7 : vector<1x1024xf32> to vector<16x1024xf32>
    %9 = arith.addf %6, %8 : vector<16x1024xf32>
    %cst_10 = arith.constant 0.000000e+00 : f32
    %10 = vector.broadcast %cst_10 : f32 to vector<16x1024xf32>
    %11 = arith.cmpf ogt, %9, %10 : vector<16x1024xf32>
    %cst_11 = arith.constant 2.000000e-01 : f32
    %12 = vector.broadcast %cst_11 : f32 to vector<16x1024xf32>
    %13 = arith.mulf %12, %9 : vector<16x1024xf32>
    %14 = arith.select %11, %9, %13 : vector<16x1024xi1>, vector<16x1024xf32>
    %15 = arith.truncf %14 : vector<16x1024xf32> to vector<16x1024xbf16>
    %c0_12 = arith.constant 0 : index
    %c0_13 = arith.constant 0 : index
    %16 = vector.load %arg6[%c0_12, %c0_13] : memref<1024x1024xbf16, #tpu.memory_space<vmem>>, vector<1024x1024xbf16>
    %cst_14 = arith.constant dense<0.000000e+00> : vector<16x1024xf32>
    %17 = tpu.matmul %15, %16, %cst_14 {dimension_numbers = #tpu.dot_dimension_numbers<[1], [0], [0], [1], [0, 0, 1, 1], [], []>} : vector<16x1024xbf16>, vector<1024x1024xbf16>, vector<16x1024xf32> -> vector<16x1024xf32>
    %c0_15 = arith.constant 0 : index
    %c0_16 = arith.constant 0 : index
    %18 = vector.load %arg7[%c0_15, %c0_16] : memref<1x1024xf32, #tpu.memory_space<vmem>>, vector<1x1024xf32>
    %19 = vector.broadcast %18 : vector<1x1024xf32> to vector<16x1024xf32>
    %20 = arith.addf %17, %19 : vector<16x1024xf32>
    %cst_17 = arith.constant 0.000000e+00 : f32
    %21 = vector.broadcast %cst_17 : f32 to vector<16x1024xf32>
    %22 = arith.cmpf ogt, %20, %21 : vector<16x1024xf32>
    %cst_18 = arith.constant 2.000000e-01 : f32
    %23 = vector.broadcast %cst_18 : f32 to vector<16x1024xf32>
    %24 = arith.mulf %23, %20 : vector<16x1024xf32>
    %25 = arith.select %22, %20, %24 : vector<16x1024xi1>, vector<16x1024xf32>
    %26 = arith.truncf %25 : vector<16x1024xf32> to vector<16x1024xbf16>
    %c0_19 = arith.constant 0 : index
    %c0_20 = arith.constant 0 : index
    %27 = vector.load %arg8[%c0_19, %c0_20] : memref<1024x1024xbf16, #tpu.memory_space<vmem>>, vector<1024x1024xbf16>
    %cst_21 = arith.constant dense<0.000000e+00> : vector<16x1024xf32>
    %28 = tpu.matmul %26, %27, %cst_21 {dimension_numbers = #tpu.dot_dimension_numbers<[1], [0], [0], [1], [0, 0, 1, 1], [], []>} : vector<16x1024xbf16>, vector<1024x1024xbf16>, vector<16x1024xf32> -> vector<16x1024xf32>
    %c0_22 = arith.constant 0 : index
    %c0_23 = arith.constant 0 : index
    %29 = vector.load %arg9[%c0_22, %c0_23] : memref<1x1024xf32, #tpu.memory_space<vmem>>, vector<1x1024xf32>
    %30 = vector.broadcast %29 : vector<1x1024xf32> to vector<16x1024xf32>
    %31 = arith.addf %28, %30 : vector<16x1024xf32>
    %cst_24 = arith.constant 0.000000e+00 : f32
    %32 = vector.broadcast %cst_24 : f32 to vector<16x1024xf32>
    %33 = arith.cmpf ogt, %31, %32 : vector<16x1024xf32>
    %cst_25 = arith.constant 2.000000e-01 : f32
    %34 = vector.broadcast %cst_25 : f32 to vector<16x1024xf32>
    %35 = arith.mulf %34, %31 : vector<16x1024xf32>
    %36 = arith.select %33, %31, %35 : vector<16x1024xi1>, vector<16x1024xf32>
    %37 = arith.truncf %36 : vector<16x1024xf32> to vector<16x1024xbf16>
    %c0_26 = arith.constant 0 : index
    %c0_27 = arith.constant 0 : index
    %38 = vector.load %arg10[%c0_26, %c0_27] : memref<1024x128xbf16, #tpu.memory_space<vmem>>, vector<1024x128xbf16>
    %cst_28 = arith.constant dense<0.000000e+00> : vector<16x128xf32>
    %39 = tpu.matmul %37, %38, %cst_28 {dimension_numbers = #tpu.dot_dimension_numbers<[1], [0], [0], [1], [0, 0, 1, 1], [], []>} : vector<16x1024xbf16>, vector<1024x128xbf16>, vector<16x128xf32> -> vector<16x128xf32>
    %c0_29 = arith.constant 0 : index
    %c0_30 = arith.constant 0 : index
    %40 = vector.load %arg11[%c0_29, %c0_30] : memref<1x128xf32, #tpu.memory_space<vmem>>, vector<1x128xf32>
    %41 = vector.broadcast %40 : vector<1x128xf32> to vector<16x128xf32>
    %42 = arith.addf %39, %41 : vector<16x128xf32>
    %c0_31 = arith.constant 0 : index
    %c0_32 = arith.constant 0 : index
    %43 = vector.load %arg12[%c0_31, %c0_32] : memref<16x128xf32, #tpu.memory_space<vmem>>, vector<16x128xf32>
    tpu.vector_store %arg12[%c0_31, %c0_32], %42 {strides = array<i32>} : memref<16x128xf32, #tpu.memory_space<vmem>>, vector<16x128xf32>,
    return
  }
  func.func @transform_0(%arg0: i32) -> (i32, i32) {
    %c0_i32 = arith.constant 0 : i32
    %c0_i32_0 = arith.constant 0 : i32
    return %arg0, %c0_i32 : i32, i32
  }
  func.func @transform_1(%arg0: i32) -> (i32, i32) {
    %c0_i32 = arith.constant 0 : i32
    %c0_i32_0 = arith.constant 0 : i32
    return %arg0, %c0_i32 : i32, i32
  }
  func.func @transform_2(%arg0: i32) -> (i32, i32) {
    %c0_i32 = arith.constant 0 : i32
    %c0_i32_0 = arith.constant 0 : i32
    %c0_i32_1 = arith.constant 0 : i32
    return %c0_i32, %c0_i32_0 : i32, i32
  }
  func.func @transform_3(%arg0: i32) -> (i32, i32) {
    %c0_i32 = arith.constant 0 : i32
    %c0_i32_0 = arith.constant 0 : i32
    %c0_i32_1 = arith.constant 0 : i32
    return %c0_i32, %c0_i32_0 : i32, i32
  }
  func.func @transform_4(%arg0: i32) -> (i32, i32) {
    %c0_i32 = arith.constant 0 : i32
    %c0_i32_0 = arith.constant 0 : i32
    %c0_i32_1 = arith.constant 0 : i32
    return %c0_i32, %c0_i32_0 : i32, i32
  }
  func.func @transform_5(%arg0: i32) -> (i32, i32) {
    %c0_i32 = arith.constant 0 : i32
    %c0_i32_0 = arith.constant 0 : i32
    %c0_i32_1 = arith.constant 0 : i32
    return %c0_i32, %c0_i32_0 : i32, i32
  }
  func.func @transform_6(%arg0: i32) -> (i32, i32) {
    %c0_i32 = arith.constant 0 : i32
    %c0_i32_0 = arith.constant 0 : i32
    %c0_i32_1 = arith.constant 0 : i32
    return %c0_i32, %c0_i32_0 : i32, i32
  }
  func.func @transform_7(%arg0: i32) -> (i32, i32) {
    %c0_i32 = arith.constant 0 : i32
    %c0_i32_0 = arith.constant 0 : i32
    %c0_i32_1 = arith.constant 0 : i32
    return %c0_i32, %c0_i32_0 : i32, i32
  }
  func.func @transform_8(%arg0: i32) -> (i32, i32) {
    %c0_i32 = arith.constant 0 : i32
    %c0_i32_0 = arith.constant 0 : i32
    %c0_i32_1 = arith.constant 0 : i32
    return %c0_i32, %c0_i32_0 : i32, i32
  }
  func.func @transform_9(%arg0: i32) -> (i32, i32) {
    %c0_i32 = arith.constant 0 : i32
    %c0_i32_0 = arith.constant 0 : i32
    %c0_i32_1 = arith.constant 0 : i32
    return %c0_i32, %c0_i32_0 : i32, i32
  }
  func.func @transform_10(%arg0: i32) -> (i32, i32) {
    %c0_i32 = arith.constant 0 : i32
    %c0_i32_0 = arith.constant 0 : i32
    %c0_i32_1 = arith.constant 0 : i32
    return %c0_i32, %c0_i32_0 : i32, i32
  }
  func.func @transform_11(%arg0: i32) -> (i32, i32) {
    %c0_i32 = arith.constant 0 : i32
    %c0_i32_0 = arith.constant 0 : i32
    return %arg0, %c0_i32 : i32, i32
  }
}

</mosaic_0001>

<llo_original>
// kernel: tpu_custom_call.1
$region0: #{tpu_custom_call.1}
  #allocation0 [shape = 'u32[]', space=smem, size = 0x4, offset = 0x4, fixed_abs, tag = 'smem constant byte address 0x4 - core index']
  #allocation1 [shape = 'u32[144,128]{1,0:T(1,128)}', space=vmem, size = 0x12000, scoped, tag = 'internal scratch']
  %s0 = inlined_call_operand.hbm [shape: bf16[32,128], index: 0, kind: input, shape index: {}]
  %s1 = inlined_call_operand.hbm [shape: bf16[32,128], index: 1, kind: input, shape index: {}]
  %s2 = inlined_call_operand.hbm [shape: bf16[128,1024], index: 2, kind: input, shape index: {}]
  %s3 = inlined_call_operand.hbm [shape: bf16[128,1024], index: 3, kind: input, shape index: {}]
  %s4 = inlined_call_operand.hbm [shape: f32[1,1024], index: 4, kind: input, shape index: {}]
  %s5 = inlined_call_operand.hbm [shape: bf16[1024,1024], index: 5, kind: input, shape index: {}]
  %s6 = inlined_call_operand.hbm [shape: f32[1,1024], index: 6, kind: input, shape index: {}]
  %s7 = inlined_call_operand.hbm [shape: bf16[1024,1024], index: 7, kind: input, shape index: {}]
  %s8 = inlined_call_operand.hbm [shape: f32[1,1024], index: 8, kind: input, shape index: {}]
  %s9 = inlined_call_operand.hbm [shape: bf16[1024,128], index: 9, kind: input, shape index: {}]
  %s10 = inlined_call_operand.hbm [shape: f32[1,128], index: 10, kind: input, shape index: {}]
  %s11 = inlined_call_operand.hbm [shape: f32[32,128], index: 11, kind: output, shape index: {}]
  %s12 = sld [smem:[#allocation0]]
  $region121: #{tpu_custom_call.1} parent=0
    _
  %s14 = ssub.s32 1, %s12
  %s15 = scalar_select 0, %s14, %s12
  $region1: #{tpu_custom_call.1} parent=0
    #allocation2 [shape = 'u8[8192]{0}', space=vmem, size = 0x2000, scoped, tag = 'input window, operand 0']
    #allocation3 [shape = 's32[2]{0}', space=sflag, size = 0x8, scoped, tag = 'scoped memory for tpu_custom_call.1']
    #allocation4 [shape = 's32[2]{0}', space=sflag, size = 0x8, scoped, tag = 'scoped memory for tpu_custom_call.1']
    #allocation5 [shape = 'u8[8192]{0}', space=vmem, size = 0x2000, scoped, tag = 'input window, operand 1']
    #allocation6 [shape = 's32[2]{0}', space=sflag, size = 0x8, scoped, tag = 'scoped memory for tpu_custom_call.1']
    #allocation7 [shape = 'u8[262144]{0}', space=vmem, size = 0x40000, scoped, tag = 'input window, operand 2, single buffered']
    #allocation8 [shape = 'u8[262144]{0}', space=vmem, size = 0x40000, scoped, tag = 'input window, operand 3, single buffered']
    #allocation9 [shape = 's32[1]{0}', space=sflag, size = 0x4, scoped, tag = 'scoped memory for tpu_custom_call.1']
    #allocation10 [shape = 'u8[4096]{0}', space=vmem, size = 0x1000, scoped, tag = 'input window, operand 4, single buffered']
    #allocation11 [shape = 'u8[2097152]{0}', space=vmem, size = 0x200000, scoped, tag = 'input window, operand 5, single buffered']
    #allocation12 [shape = 's32[1]{0}', space=sflag, size = 0x4, scoped, tag = 'scoped memory for tpu_custom_call.1']
    #allocation13 [shape = 'u8[4096]{0}', space=vmem, size = 0x1000, scoped, tag = 'input window, operand 6, single buffered']
    #allocation14 [shape = 'u8[2097152]{0}', space=vmem, size = 0x200000, scoped, tag = 'input window, operand 7, single buffered']
    #allocation15 [shape = 's32[1]{0}', space=sflag, size = 0x4, scoped, tag = 'scoped memory for tpu_custom_call.1']
    #allocation16 [shape = 'u8[4096]{0}', space=vmem, size = 0x1000, scoped, tag = 'input window, operand 8, single buffered']
    #allocation17 [shape = 'u8[262144]{0}', space=vmem, size = 0x40000, scoped, tag = 'input window, operand 9, single buffered']
    #allocation18 [shape = 's32[1]{0}', space=sflag, size = 0x4, scoped, tag = 'scoped memory for tpu_custom_call.1']
    #allocation19 [shape = 'u8[512]{0}', space=vmem, size = 0x400, scoped, tag = 'input window, operand 10, single buffered']
    #allocation20 [shape = 'u8[16384]{0}', space=vmem, size = 0x4000, scoped, tag = 'output window, operand 0']
    %16 = vsyncpa [#allocation3], 0
    %s17 = scalar_lea.sflag [#allocation3], 1
    %18 = vsyncpa %s17, 0
    %19 = vsyncpa [#allocation6], 0
    %s20 = scalar_lea.sflag [#allocation6], 1
    %21 = vsyncpa %s20, 0
    %22 = vsyncpa [#allocation9], 0
    %23 = vsyncpa [#allocation12], 0
    %24 = vsyncpa [#allocation15], 0
    %25 = vsyncpa [#allocation18], 0
    %26 = vsyncpa [#allocation4], 0
    %s27 = scalar_lea.sflag [#allocation4], 1
    %28 = vsyncpa %s27, 0
    loop: start=0, step=1, limit=4
    $region2: #{tpu_custom_call.1} parent=1 // loop_pre_header
      _
    $region3: #{tpu_custom_call.1} parent=1 // loop_header
      %s30 = sphi 0, %s34
      %p31 = scmp.ge.s32.totalorder %s30, 4
      %s40 = sphi 0, %s42
      %s43 = sphi 0, %s40
      %s44 = sphi 0, %s43
      %s60 = sphi 0, %s44
      %s66 = sphi 0, %s68
      %s69 = sphi 0, %s66
      %s70 = sphi 0, %s69
      %s86 = sphi 0, %s70
      %s90 = sphi 0, %s90
      %s92 = sphi 0, %s90
      %s93 = sphi 0, %s92
      %s107 = sphi 0, %s93
      %s111 = sphi 0, %s111
      %s113 = sphi 0, %s111
      %s114 = sphi 0, %s113
      %s128 = sphi 0, %s114
      %s132 = sphi 0, %s132
      %s134 = sphi 0, %s132
      %s135 = sphi 0, %s134
      %s149 = sphi 0, %s135
      %s153 = sphi 0, %s153
      %s155 = sphi 0, %s153
      %s156 = sphi 0, %s155
      %s170 = sphi 0, %s156
      %s174 = sphi 0, %s174
      %s176 = sphi 0, %s174
      %s177 = sphi 0, %s176
      %s191 = sphi 0, %s177
      %s195 = sphi 0, %s195
      %s197 = sphi 0, %s195
      %s198 = sphi 0, %s197
      %s212 = sphi 0, %s198
      %s216 = sphi 0, %s216
      %s218 = sphi 0, %s216
      %s219 = sphi 0, %s218
      %s233 = sphi 0, %s219
      %s237 = sphi 0, %s237
      %s239 = sphi 0, %s237
      %s240 = sphi 0, %s239
      %s254 = sphi 0, %s240
      %s258 = sphi 0, %s258
      %s260 = sphi 0, %s258
      %s261 = sphi 0, %s260
      %s275 = sphi 0, %s261
      %s281 = sphi 0, %s283
      %s284 = sphi 0, %s281
      %s285 = sphi 0, %s284
      %s301 = sphi 0, %s285
    $region4: #{tpu_custom_call.1} parent=1 // loop_header_branch
      %33 = sbr.rel (%p31) target = $region8
    $region5: #{tpu_custom_call.1} parent=1 // loop_body
      %s35 = ssub.s32 %s30, 1
      %s36 = ssub.s32 %s30, 2
      %s37 = sadd.s32 %s30, 1
      %s38 = ssub.s32 %s30, %s37
      %p39 = scmp.eq.s32.totalorder %s38, 0
      %s41 = sadd.s32 %s40, 1
      %s42 = scalar_select %p39, %s40, %s41
      %p45 = pneg %p39
      %p46 = scmp.eq.s32.totalorder %s30, 1
      %p47 = por %p45, %p46
      %p48 = scmp.ne.s32.totalorder %s40, %s43
      %p49 = scmp.eq.s32.totalorder %s30, 0
      %p50 = por %p48, %p49
      %p51 = scmp.ne.s32.totalorder %s40, %s43
      %p52 = scmp.eq.s32.totalorder %s35, 1
      %p53 = por %p51, %p52
      %p54 = scmp.ne.s32.totalorder %s43, %s44
      %p55 = scmp.eq.s32.totalorder %s35, 0
      %p56 = por %p54, %p55
      %p57 = scmp.ne.s32.totalorder %s43, %s44
      %p58 = scmp.eq.s32.totalorder %s36, 1
      %p59 = por %p57, %p58
      %p61 = scmp.ne.s32.totalorder %s44, %s60
      %p62 = scmp.eq.s32.totalorder %s36, 0
      %p63 = por %p61, %p62
      %s64 = ssub.s32 %s30, %s37
      %p65 = scmp.eq.s32.totalorder %s64, 0
      %s67 = sadd.s32 %s66, 1
      %s68 = scalar_select %p65, %s66, %s67
      %p71 = pneg %p65
      %p72 = scmp.eq.s32.totalorder %s30, 1
      %p73 = por %p71, %p72
      %p74 = scmp.ne.s32.totalorder %s66, %s69
      %p75 = scmp.eq.s32.totalorder %s30, 0
      %p76 = por %p74, %p75
      %p77 = scmp.ne.s32.totalorder %s66, %s69
      %p78 = scmp.eq.s32.totalorder %s35, 1
      %p79 = por %p77, %p78
      %p80 = scmp.ne.s32.totalorder %s69, %s70
      %p81 = scmp.eq.s32.totalorder %s35, 0
      %p82 = por %p80, %p81
      %p83 = scmp.ne.s32.totalorder %s69, %s70
      %p84 = scmp.eq.s32.totalorder %s36, 1
      %p85 = por %p83, %p84
      %p87 = scmp.ne.s32.totalorder %s70, %s86
      %p88 = scmp.eq.s32.totalorder %s36, 0
      %p89 = por %p87, %p88
      %s91 = sadd.s32 %s90, 1
      %p94 = scmp.eq.s32.totalorder %s30, 1
      %p95 = scmp.ne.s32.totalorder %s90, %s92
      %p96 = scmp.eq.s32.totalorder %s30, 0
      %p97 = por %p95, %p96
      %p98 = scmp.ne.s32.totalorder %s90, %s92
      %p99 = scmp.eq.s32.totalorder %s35, 1
      %p100 = por %p98, %p99
      %p101 = scmp.ne.s32.totalorder %s92, %s93
      %p102 = scmp.eq.s32.totalorder %s35, 0
      %p103 = por %p101, %p102
      %p104 = scmp.ne.s32.totalorder %s92, %s93
      %p105 = scmp.eq.s32.totalorder %s36, 1
      %p106 = por %p104, %p105
      %p108 = scmp.ne.s32.totalorder %s93, %s107
      %p109 = scmp.eq.s32.totalorder %s36, 0
      %p110 = por %p108, %p109
      %s112 = sadd.s32 %s111, 1
      %p115 = scmp.eq.s32.totalorder %s30, 1
      %p116 = scmp.ne.s32.totalorder %s111, %s113
      %p117 = scmp.eq.s32.totalorder %s30, 0
      %p118 = por %p116, %p117
      %p119 = scmp.ne.s32.totalorder %s111, %s113
      %p120 = scmp.eq.s32.totalorder %s35, 1
      %p121 = por %p119, %p120
      %p122 = scmp.ne.s32.totalorder %s113, %s114
      %p123 = scmp.eq.s32.totalorder %s35, 0
      %p124 = por %p122, %p123
      %p125 = scmp.ne.s32.totalorder %s113, %s114
      %p126 = scmp.eq.s32.totalorder %s36, 1
      %p127 = por %p125, %p126
      %p129 = scmp.ne.s32.totalorder %s114, %s128
      %p130 = scmp.eq.s32.totalorder %s36, 0
      %p131 = por %p129, %p130
      %s133 = sadd.s32 %s132, 1
      %p136 = scmp.eq.s32.totalorder %s30, 1
      %p137 = scmp.ne.s32.totalorder %s132, %s134
      %p138 = scmp.eq.s32.totalorder %s30, 0
      %p139 = por %p137, %p138
      %p140 = scmp.ne.s32.totalorder %s132, %s134
      %p141 = scmp.eq.s32.totalorder %s35, 1
      %p142 = por %p140, %p141
      %p143 = scmp.ne.s32.totalorder %s134, %s135
      %p144 = scmp.eq.s32.totalorder %s35, 0
      %p145 = por %p143, %p144
      %p146 = scmp.ne.s32.totalorder %s134, %s135
      %p147 = scmp.eq.s32.totalorder %s36, 1
      %p148 = por %p146, %p147
      %p150 = scmp.ne.s32.totalorder %s135, %s149
      %p151 = scmp.eq.s32.totalorder %s36, 0
      %p152 = por %p150, %p151
      %s154 = sadd.s32 %s153, 1
      %p157 = scmp.eq.s32.totalorder %s30, 1
      %p158 = scmp.ne.s32.totalorder %s153, %s155
      %p159 = scmp.eq.s32.totalorder %s30, 0
      %p160 = por %p158, %p159
      %p161 = scmp.ne.s32.totalorder %s153, %s155
      %p162 = scmp.eq.s32.totalorder %s35, 1
      %p163 = por %p161, %p162
      %p164 = scmp.ne.s32.totalorder %s155, %s156
      %p165 = scmp.eq.s32.totalorder %s35, 0
      %p166 = por %p164, %p165
      %p167 = scmp.ne.s32.totalorder %s155, %s156
      %p168 = scmp.eq.s32.totalorder %s36, 1
      %p169 = por %p167, %p168
      %p171 = scmp.ne.s32.totalorder %s156, %s170
      %p172 = scmp.eq.s32.totalorder %s36, 0
      %p173 = por %p171, %p172
      %s175 = sadd.s32 %s174, 1
      %p178 = scmp.eq.s32.totalorder %s30, 1
      %p179 = scmp.ne.s32.totalorder %s174, %s176
      %p180 = scmp.eq.s32.totalorder %s30, 0
      %p181 = por %p179, %p180
      %p182 = scmp.ne.s32.totalorder %s174, %s176
      %p183 = scmp.eq.s32.totalorder %s35, 1
      %p184 = por %p182, %p183
      %p185 = scmp.ne.s32.totalorder %s176, %s177
      %p186 = scmp.eq.s32.totalorder %s35, 0
      %p187 = por %p185, %p186
      %p188 = scmp.ne.s32.totalorder %s176, %s177
      %p189 = scmp.eq.s32.totalorder %s36, 1
      %p190 = por %p188, %p189
      %p192 = scmp.ne.s32.totalorder %s177, %s191
      %p193 = scmp.eq.s32.totalorder %s36, 0
      %p194 = por %p192, %p193
      %s196 = sadd.s32 %s195, 1
      %p199 = scmp.eq.s32.totalorder %s30, 1
      %p200 = scmp.ne.s32.totalorder %s195, %s197
      %p201 = scmp.eq.s32.totalorder %s30, 0
      %p202 = por %p200, %p201
      %p203 = scmp.ne.s32.totalorder %s195, %s197
      %p204 = scmp.eq.s32.totalorder %s35, 1
      %p205 = por %p203, %p204
      %p206 = scmp.ne.s32.totalorder %s197, %s198
      %p207 = scmp.eq.s32.totalorder %s35, 0
      %p208 = por %p206, %p207
      %p209 = scmp.ne.s32.totalorder %s197, %s198
      %p210 = scmp.eq.s32.totalorder %s36, 1
      %p211 = por %p209, %p210
      %p213 = scmp.ne.s32.totalorder %s198, %s212
      %p214 = scmp.eq.s32.totalorder %s36, 0
      %p215 = por %p213, %p214
      %s217 = sadd.s32 %s216, 1
      %p220 = scmp.eq.s32.totalorder %s30, 1
      %p221 = scmp.ne.s32.totalorder %s216, %s218
      %p222 = scmp.eq.s32.totalorder %s30, 0
      %p223 = por %p221, %p222
      %p224 = scmp.ne.s32.totalorder %s216, %s218
      %p225 = scmp.eq.s32.totalorder %s35, 1
      %p226 = por %p224, %p225
      %p227 = scmp.ne.s32.totalorder %s218, %s219
      %p228 = scmp.eq.s32.totalorder %s35, 0
      %p229 = por %p227, %p228
      %p230 = scmp.ne.s32.totalorder %s218, %s219
      %p231 = scmp.eq.s32.totalorder %s36, 1
      %p232 = por %p230, %p231
      %p234 = scmp.ne.s32.totalorder %s219, %s233
      %p235 = scmp.eq.s32.totalorder %s36, 0
      %p236 = por %p234, %p235
      %s238 = sadd.s32 %s237, 1
      %p241 = scmp.eq.s32.totalorder %s30, 1
      %p242 = scmp.ne.s32.totalorder %s237, %s239
      %p243 = scmp.eq.s32.totalorder %s30, 0
      %p244 = por %p242, %p243
      %p245 = scmp.ne.s32.totalorder %s237, %s239
      %p246 = scmp.eq.s32.totalorder %s35, 1
      %p247 = por %p245, %p246
      %p248 = scmp.ne.s32.totalorder %s239, %s240
      %p249 = scmp.eq.s32.totalorder %s35, 0
      %p250 = por %p248, %p249
      %p251 = scmp.ne.s32.totalorder %s239, %s240
      %p252 = scmp.eq.s32.totalorder %s36, 1
      %p253 = por %p251, %p252
      %p255 = scmp.ne.s32.totalorder %s240, %s254
      %p256 = scmp.eq.s32.totalorder %s36, 0
      %p257 = por %p255, %p256
      %s259 = sadd.s32 %s258, 1
      %p262 = scmp.eq.s32.totalorder %s30, 1
      %p263 = scmp.ne.s32.totalorder %s258, %s260
      %p264 = scmp.eq.s32.totalorder %s30, 0
      %p265 = por %p263, %p264
      %p266 = scmp.ne.s32.totalorder %s258, %s260
      %p267 = scmp.eq.s32.totalorder %s35, 1
      %p268 = por %p266, %p267
      %p269 = scmp.ne.s32.totalorder %s260, %s261
      %p270 = scmp.eq.s32.totalorder %s35, 0
      %p271 = por %p269, %p270
      %p272 = scmp.ne.s32.totalorder %s260, %s261
      %p273 = scmp.eq.s32.totalorder %s36, 1
      %p274 = por %p272, %p273
      %p276 = scmp.ne.s32.totalorder %s261, %s275
      %p277 = scmp.eq.s32.totalorder %s36, 0
      %p278 = por %p276, %p277
      %s279 = ssub.s32 %s30, %s37
      %p280 = scmp.eq.s32.totalorder %s279, 0
      %s282 = sadd.s32 %s281, 1
      %s283 = scalar_select %p280, %s281, %s282
      %p286 = pneg %p280
      %p287 = scmp.eq.s32.totalorder %s30, 1
      %p288 = por %p286, %p287
      %p289 = scmp.ne.s32.totalorder %s281, %s284
      %p290 = scmp.eq.s32.totalorder %s30, 0
      %p291 = por %p289, %p290
      %p292 = scmp.ne.s32.totalorder %s281, %s284
      %p293 = scmp.eq.s32.totalorder %s35, 1
      %p294 = por %p292, %p293
      %p295 = scmp.ne.s32.totalorder %s284, %s285
      %p296 = scmp.eq.s32.totalorder %s35, 0
      %p297 = por %p295, %p296
      %p298 = scmp.ne.s32.totalorder %s284, %s285
      %p299 = scmp.eq.s32.totalorder %s36, 1
      %p300 = por %p298, %p299
      %p302 = scmp.ne.s32.totalorder %s285, %s301
      %p303 = scmp.eq.s32.totalorder %s36, 0
      %p304 = por %p302, %p303
      %p305 = scmp.le.s32.totalorder 1, %s30
      %p306 = scmp.lt.s32.totalorder %s30, 3
      %p307 = pnand %p305, %p306
      %p308 = pneg %p307
      // Predicated region
      $region9: #{tpu_custom_call.1} parent=5 // pred_check
        _
      $region10: #{tpu_custom_call.1} parent=5 // pred_check_branch
        %310 = sbr.rel (%p307) target = $region12
      $region11: #{tpu_custom_call.1} parent=5 // pred_region
        %s311 = ssub.s32 %s30, 1
        // Predicated region
        $region13: #{tpu_custom_call.1} parent=11 // pred_check
          %p312 = pneg %p103
        $region14: #{tpu_custom_call.1} parent=11 // pred_check_branch
          %314 = sbr.rel (%p312) target = $region16
        $region15: #{tpu_custom_call.1} parent=11 // pred_region
          %s316 = ssub.s32 8192, 8192
          %317 = vsyncadd [#allocation6], %s316
          %s318 = sshll.u32 [#allocation7], 4
          %s319 = int_to_ptr.vmem [resolvable:$true] %s318
          %324 = dma.hbm_to_vmem [thread:$0]  %s2, 8192, %s319, [#allocation6], 512, 512, 32
        $region16: #{tpu_custom_call.1} parent=11 // pred_fallthru
          _
        // Predicated region
        $region17: #{tpu_custom_call.1} parent=11 // pred_check
          %p325 = pneg %p124
        $region18: #{tpu_custom_call.1} parent=11 // pred_check_branch
          %327 = sbr.rel (%p325) target = $region20
        $region19: #{tpu_custom_call.1} parent=11 // pred_region
          %s329 = ssub.s32 8192, 8192
          %330 = vsyncadd [#allocation9], %s329
          %s331 = sshll.u32 [#allocation8], 4
          %s332 = int_to_ptr.vmem [resolvable:$true] %s331
          %337 = dma.hbm_to_vmem [thread:$0]  %s3, 8192, %s332, [#allocation9], 512, 512, 32
        $region20: #{tpu_custom_call.1} parent=11 // pred_fallthru
          _
        // Predicated region
        $region21: #{tpu_custom_call.1} parent=11 // pred_check
          %p338 = pneg %p145
        $region22: #{tpu_custom_call.1} parent=11 // pred_check_branch
          %340 = sbr.rel (%p338) target = $region24
        $region23: #{tpu_custom_call.1} parent=11 // pred_region
          %s342 = ssub.s32 128, 128
          %343 = vsyncadd [#allocation9], %s342
          %s345 = sshll.u32 [#allocation10], 4
          %s346 = int_to_ptr.vmem [resolvable:$true] %s345
          %348 = dma.hbm_to_vmem [thread:$0]  %s4, 128, %s346, [#allocation9]
        $region24: #{tpu_custom_call.1} parent=11 // pred_fallthru
          _
        // Predicated region
        $region25: #{tpu_custom_call.1} parent=11 // pred_check
          %p349 = pneg %p166
        $region26: #{tpu_custom_call.1} parent=11 // pred_check_branch
          %351 = sbr.rel (%p349) target = $region28
        $region27: #{tpu_custom_call.1} parent=11 // pred_region
          %s353 = ssub.s32 65536, 65536
          %354 = vsyncadd [#allocation12], %s353
          %s355 = sshll.u32 [#allocation11], 4
          %s356 = int_to_ptr.vmem [resolvable:$true] %s355
          %361 = dma.hbm_to_vmem [thread:$0]  %s5, 65536, %s356, [#allocation12], 512, 512, 32
        $region28: #{tpu_custom_call.1} parent=11 // pred_fallthru
          _
        // Predicated region
        $region29: #{tpu_custom_call.1} parent=11 // pred_check
          %p362 = pneg %p187
        $region30: #{tpu_custom_call.1} parent=11 // pred_check_branch
          %364 = sbr.rel (%p362) target = $region32
        $region31: #{tpu_custom_call.1} parent=11 // pred_region
          %s366 = ssub.s32 128, 128
          %367 = vsyncadd [#allocation12], %s366
          %s369 = sshll.u32 [#allocation13], 4
          %s370 = int_to_ptr.vmem [resolvable:$true] %s369
          %372 = dma.hbm_to_vmem [thread:$0]  %s6, 128, %s370, [#allocation12]
        $region32: #{tpu_custom_call.1} parent=11 // pred_fallthru
          _
        // Predicated region
        $region33: #{tpu_custom_call.1} parent=11 // pred_check
          %p373 = pneg %p208
        $region34: #{tpu_custom_call.1} parent=11 // pred_check_branch
          %375 = sbr.rel (%p373) target = $region36
        $region35: #{tpu_custom_call.1} parent=11 // pred_region
          %s377 = ssub.s32 65536, 65536
          %378 = vsyncadd [#allocation15], %s377
          %s379 = sshll.u32 [#allocation14], 4
          %s380 = int_to_ptr.vmem [resolvable:$true] %s379
          %385 = dma.hbm_to_vmem [thread:$0]  %s7, 65536, %s380, [#allocation15], 512, 512, 32
        $region36: #{tpu_custom_call.1} parent=11 // pred_fallthru
          _
        // Predicated region
        $region37: #{tpu_custom_call.1} parent=11 // pred_check
          %p386 = pneg %p229
        $region38: #{tpu_custom_call.1} parent=11 // pred_check_branch
          %388 = sbr.rel (%p386) target = $region40
        $region39: #{tpu_custom_call.1} parent=11 // pred_region
          %s390 = ssub.s32 128, 128
          %391 = vsyncadd [#allocation15], %s390
          %s393 = sshll.u32 [#allocation16], 4
          %s394 = int_to_ptr.vmem [resolvable:$true] %s393
          %396 = dma.hbm_to_vmem [thread:$0]  %s8, 128, %s394, [#allocation15]
        $region40: #{tpu_custom_call.1} parent=11 // pred_fallthru
          _
        // Predicated region
        $region41: #{tpu_custom_call.1} parent=11 // pred_check
          %p397 = pneg %p250
        $region42: #{tpu_custom_call.1} parent=11 // pred_check_branch
          %399 = sbr.rel (%p397) target = $region44
        $region43: #{tpu_custom_call.1} parent=11 // pred_region
          %s401 = ssub.s32 8192, 8192
          %402 = vsyncadd [#allocation18], %s401
          %s403 = sshll.u32 [#allocation17], 4
          %s404 = int_to_ptr.vmem [resolvable:$true] %s403
          %409 = dma.hbm_to_vmem [thread:$0]  %s9, 8192, %s404, [#allocation18], 64, 64, 4
        $region44: #{tpu_custom_call.1} parent=11 // pred_fallthru
          _
        // Predicated region
        $region45: #{tpu_custom_call.1} parent=11 // pred_check
          %p410 = pneg %p271
        $region46: #{tpu_custom_call.1} parent=11 // pred_check_branch
          %412 = sbr.rel (%p410) target = $region48
        $region47: #{tpu_custom_call.1} parent=11 // pred_region
          %s414 = ssub.s32 16, 16
          %415 = vsyncadd [#allocation18], %s414
          %s417 = sshll.u32 [#allocation19], 4
          %s418 = int_to_ptr.vmem [resolvable:$true] %s417
          %420 = dma.hbm_to_vmem [thread:$0]  %s10, 16, %s418, [#allocation18]
        $region48: #{tpu_custom_call.1} parent=11 // pred_fallthru
          _
      $region12: #{tpu_custom_call.1} parent=5 // pred_fallthru
        _
      %p421 = scmp.lt.s32.totalorder %s30, 2
      // Predicated region
      $region49: #{tpu_custom_call.1} parent=5 // pred_check
        %p422 = pneg %p421
      $region50: #{tpu_custom_call.1} parent=5 // pred_check_branch
        %424 = sbr.rel (%p422) target = $region52
      $region51: #{tpu_custom_call.1} parent=5 // pred_region
        // Predicated region
        $region53: #{tpu_custom_call.1} parent=51 // pred_check
          %p425 = pneg %p50
        $region54: #{tpu_custom_call.1} parent=51 // pred_check_branch
          %427 = sbr.rel (%p425) target = $region56
        $region55: #{tpu_custom_call.1} parent=51 // pred_region
          %s428 = sand.u32 %s40, 1
          %s429 = scalar_lea.sflag [#allocation3], %s428
          %s430 = sand.u32 %s40, 1
          %s431 = smul.addr %s430, 8
          %s432 = scalar_lea.vmem [#allocation2], %s431
          %s433 = smul.u32 2, %s30
          %s435 = ssub.s32 128, 128
          %436 = vsyncadd %s429, %s435
          %s437 = smul.addr %s433, 64
          %s438 = scalar_lea.hbm %s0, %s437
          %s439 = sshll.u32 %s432, 4
          %s440 = int_to_ptr.vmem [resolvable:$true] %s439
          %445 = dma.hbm_to_vmem [thread:$0]  %s438, 128, %s440, %s429, 64, 64, 4
        $region56: #{tpu_custom_call.1} parent=51 // pred_fallthru
          _
        // Predicated region
        $region57: #{tpu_custom_call.1} parent=51 // pred_check
          %p446 = pneg %p76
        $region58: #{tpu_custom_call.1} parent=51 // pred_check_branch
          %448 = sbr.rel (%p446) target = $region60
        $region59: #{tpu_custom_call.1} parent=51 // pred_region
          %s449 = sand.u32 %s30, 1
          %s450 = scalar_lea.sflag [#allocation6], %s449
          %s451 = sand.u32 %s66, 1
          %s452 = smul.addr %s451, 8
          %s453 = scalar_lea.vmem [#allocation5], %s452
          %s454 = smul.u32 2, %s30
          %s456 = ssub.s32 128, 128
          %457 = vsyncadd %s450, %s456
          %s458 = smul.addr %s454, 64
          %s459 = scalar_lea.hbm %s1, %s458
          %s460 = sshll.u32 %s453, 4
          %s461 = int_to_ptr.vmem [resolvable:$true] %s460
          %466 = dma.hbm_to_vmem [thread:$0]  %s459, 128, %s461, %s450, 64, 64, 4
        $region60: #{tpu_custom_call.1} parent=51 // pred_fallthru
          _
      $region52: #{tpu_custom_call.1} parent=5 // pred_fallthru
        _
      %p467 = scmp.le.s32.totalorder 1, %s30
      %p468 = scmp.lt.s32.totalorder %s30, 3
      %p469 = pnand %p467, %p468
      %p470 = pneg %p469
      // Predicated region
      $region61: #{tpu_custom_call.1} parent=5 // pred_check
        _
      $region62: #{tpu_custom_call.1} parent=5 // pred_check_branch
        %472 = sbr.rel (%p469) target = $region64
      $region63: #{tpu_custom_call.1} parent=5 // pred_region
        %s473 = ssub.s32 %s30, 1
        %s474 = sand.u32 %s43, 1
        %s475 = scalar_lea.sflag [#allocation3], %s474
        %s476 = sand.u32 %s43, 1
        %s477 = smul.addr %s476, 8
        %s478 = scalar_lea.vmem [#allocation2], %s477
        // Predicated region
        $region65: #{tpu_custom_call.1} parent=63 // pred_check
          %p479 = pneg %p56
        $region66: #{tpu_custom_call.1} parent=63 // pred_check_branch
          %481 = sbr.rel (%p479) target = $region68
        $region67: #{tpu_custom_call.1} parent=63 // pred_region
          %482 = dma.done %s475, 128
        $region68: #{tpu_custom_call.1} parent=63 // pred_fallthru
          _
        %s483 = sand.u32 %s35, 1
        %s484 = scalar_lea.sflag [#allocation6], %s483
        %s485 = sand.u32 %s69, 1
        %s486 = smul.addr %s485, 8
        %s487 = scalar_lea.vmem [#allocation5], %s486
        // Predicated region
        $region69: #{tpu_custom_call.1} parent=63 // pred_check
          %p488 = pneg %p82
        $region70: #{tpu_custom_call.1} parent=63 // pred_check_branch
          %490 = sbr.rel (%p488) target = $region72
        $region71: #{tpu_custom_call.1} parent=63 // pred_region
          %491 = dma.done %s484, 128
        $region72: #{tpu_custom_call.1} parent=63 // pred_fallthru
          _
        // Predicated region
        $region73: #{tpu_custom_call.1} parent=63 // pred_check
          %p492 = pneg %p103
        $region74: #{tpu_custom_call.1} parent=63 // pred_check_branch
          %494 = sbr.rel (%p492) target = $region76
        $region75: #{tpu_custom_call.1} parent=63 // pred_region
          %495 = dma.done [#allocation6], 8192
        $region76: #{tpu_custom_call.1} parent=63 // pred_fallthru
          _
        // Predicated region
        $region77: #{tpu_custom_call.1} parent=63 // pred_check
          %p496 = pneg %p124
        $region78: #{tpu_custom_call.1} parent=63 // pred_check_branch
          %498 = sbr.rel (%p496) target = $region80
        $region79: #{tpu_custom_call.1} parent=63 // pred_region
          %499 = dma.done [#allocation9], 8192
        $region80: #{tpu_custom_call.1} parent=63 // pred_fallthru
          _
        // Predicated region
        $region81: #{tpu_custom_call.1} parent=63 // pred_check
          %p500 = pneg %p145
        $region82: #{tpu_custom_call.1} parent=63 // pred_check_branch
          %502 = sbr.rel (%p500) target = $region84
        $region83: #{tpu_custom_call.1} parent=63 // pred_region
          %503 = dma.done [#allocation9], 128
        $region84: #{tpu_custom_call.1} parent=63 // pred_fallthru
          _
        // Predicated region
        $region85: #{tpu_custom_call.1} parent=63 // pred_check
          %p504 = pneg %p166
        $region86: #{tpu_custom_call.1} parent=63 // pred_check_branch
          %506 = sbr.rel (%p504) target = $region88
        $region87: #{tpu_custom_call.1} parent=63 // pred_region
          %507 = dma.done [#allocation12], 65536
        $region88: #{tpu_custom_call.1} parent=63 // pred_fallthru
          _
        // Predicated region
        $region89: #{tpu_custom_call.1} parent=63 // pred_check
          %p508 = pneg %p187
        $region90: #{tpu_custom_call.1} parent=63 // pred_check_branch
          %510 = sbr.rel (%p508) target = $region92
        $region91: #{tpu_custom_call.1} parent=63 // pred_region
          %511 = dma.done [#allocation12], 128
        $region92: #{tpu_custom_call.1} parent=63 // pred_fallthru
          _
        // Predicated region
        $region93: #{tpu_custom_call.1} parent=63 // pred_check
          %p512 = pneg %p208
        $region94: #{tpu_custom_call.1} parent=63 // pred_check_branch
          %514 = sbr.rel (%p512) target = $region96
        $region95: #{tpu_custom_call.1} parent=63 // pred_region
          %515 = dma.done [#allocation15], 65536
        $region96: #{tpu_custom_call.1} parent=63 // pred_fallthru
          _
        // Predicated region
        $region97: #{tpu_custom_call.1} parent=63 // pred_check
          %p516 = pneg %p229
        $region98: #{tpu_custom_call.1} parent=63 // pred_check_branch
          %518 = sbr.rel (%p516) target = $region100
        $region99: #{tpu_custom_call.1} parent=63 // pred_region
          %519 = dma.done [#allocation15], 128
        $region100: #{tpu_custom_call.1} parent=63 // pred_fallthru
          _
        // Predicated region
        $region101: #{tpu_custom_call.1} parent=63 // pred_check
          %p520 = pneg %p250
        $region102: #{tpu_custom_call.1} parent=63 // pred_check_branch
          %522 = sbr.rel (%p520) target = $region104
        $region103: #{tpu_custom_call.1} parent=63 // pred_region
          %523 = dma.done [#allocation18], 8192
        $region104: #{tpu_custom_call.1} parent=63 // pred_fallthru
          _
        // Predicated region
        $region105: #{tpu_custom_call.1} parent=63 // pred_check
          %p524 = pneg %p271
        $region106: #{tpu_custom_call.1} parent=63 // pred_check_branch
          %526 = sbr.rel (%p524) target = $region108
        $region107: #{tpu_custom_call.1} parent=63 // pred_region
          %527 = dma.done [#allocation18], 16
        $region108: #{tpu_custom_call.1} parent=63 // pred_fallthru
          _
        %s528 = sand.u32 %s43, 1
        %s529 = scalar_lea.sflag [#allocation3], %s528
        %s530 = sand.u32 %s43, 1
        %s531 = smul.addr %s530, 8
        %s532 = scalar_lea.vmem [#allocation2], %s531
        %p533 = pneg %p56
        %p534 = pneg %p53
        %s535 = sand.u32 %s35, 1
        %s536 = scalar_lea.sflag [#allocation6], %s535
        %s537 = sand.u32 %s69, 1
        %s538 = smul.addr %s537, 8
        %s539 = scalar_lea.vmem [#allocation5], %s538
        %p540 = pneg %p82
        %p541 = pneg %p79
        %p542 = pneg %p103
        %p543 = pneg %p100
        %p544 = pneg %p124
        %p545 = pneg %p121
        %p546 = pneg %p145
        %p547 = pneg %p142
        %p548 = pneg %p166
        %p549 = pneg %p163
        %p550 = pneg %p187
        %p551 = pneg %p184
        %p552 = pneg %p208
        %p553 = pneg %p205
        %p554 = pneg %p229
        %p555 = pneg %p226
        %p556 = pneg %p250
        %p557 = pneg %p247
        %p558 = pneg %p271
        %p559 = pneg %p268
        %p560 = pneg %p297
        %p561 = pneg %p294
        %s562 = sand.u32 %s284, 1
        %s563 = scalar_lea.sflag [#allocation4], %s562
        %s564 = sand.u32 %s284, 1
        %s565 = smul.addr %s564, 16
        %s566 = scalar_lea.vmem [#allocation20], %s565
        %s567 = smul.u32 2, %s35
        %s568 = smul.u32 2, %s35
        %s569 = smul.u32 2, %s35
        %v571 = vld [vmem:[%s478] sm:$0xf]
        %v572 = vld [vmem:[%s478 + $0x4] sm:$0xf]
        %v573 = vld [vmem:[#allocation7] sm:$0xff]
        %v574 = vld [vmem:[#allocation7 + $0x8] sm:$0xff]
        %v575 = vld [vmem:[#allocation7 + $0x10] sm:$0xff]
        %v576 = vld [vmem:[#allocation7 + $0x18] sm:$0xff]
        %v577 = vld [vmem:[#allocation7 + $0x20] sm:$0xff]
        %v578 = vld [vmem:[#allocation7 + $0x28] sm:$0xff]
        %v579 = vld [vmem:[#allocation7 + $0x30] sm:$0xff]
        %v580 = vld [vmem:[#allocation7 + $0x38] sm:$0xff]
        %v581 = vld [vmem:[#allocation7 + $0x40] sm:$0xff]
        %v582 = vld [vmem:[#allocation7 + $0x48] sm:$0xff]
        %v583 = vld [vmem:[#allocation7 + $0x50] sm:$0xff]
        %v584 = vld [vmem:[#allocation7 + $0x58] sm:$0xff]
        %v585 = vld [vmem:[#allocation7 + $0x60] sm:$0xff]
        %v586 = vld [vmem:[#allocation7 + $0x68] sm:$0xff]
        %v587 = vld [vmem:[#allocation7 + $0x70] sm:$0xff]
        %v588 = vld [vmem:[#allocation7 + $0x78] sm:$0xff]
        %v589 = vld [vmem:[#allocation7 + $0x80] sm:$0xff]
        %v590 = vld [vmem:[#allocation7 + $0x88] sm:$0xff]
        %v591 = vld [vmem:[#allocation7 + $0x90] sm:$0xff]
        %v592 = vld [vmem:[#allocation7 + $0x98] sm:$0xff]
        %v593 = vld [vmem:[#allocation7 + $0xa0] sm:$0xff]
        %v594 = vld [vmem:[#allocation7 + $0xa8] sm:$0xff]
        %v595 = vld [vmem:[#allocation7 + $0xb0] sm:$0xff]
        %v596 = vld [vmem:[#allocation7 + $0xb8] sm:$0xff]
        %v597 = vld [vmem:[#allocation7 + $0xc0] sm:$0xff]
        %v598 = vld [vmem:[#allocation7 + $0xc8] sm:$0xff]
        %v599 = vld [vmem:[#allocation7 + $0xd0] sm:$0xff]
        %v600 = vld [vmem:[#allocation7 + $0xd8] sm:$0xff]
        %v601 = vld [vmem:[#allocation7 + $0xe0] sm:$0xff]
        %v602 = vld [vmem:[#allocation7 + $0xe8] sm:$0xff]
        %v603 = vld [vmem:[#allocation7 + $0xf0] sm:$0xff]
        %v604 = vld [vmem:[#allocation7 + $0xf8] sm:$0xff]
        %v605 = vld [vmem:[#allocation7 + $0x100] sm:$0xff]
        %v606 = vld [vmem:[#allocation7 + $0x108] sm:$0xff]
        %v607 = vld [vmem:[#allocation7 + $0x110] sm:$0xff]
        %v608 = vld [vmem:[#allocation7 + $0x118] sm:$0xff]
        %v609 = vld [vmem:[#allocation7 + $0x120] sm:$0xff]
        %v610 = vld [vmem:[#allocation7 + $0x128] sm:$0xff]
        %v611 = vld [vmem:[#allocation7 + $0x130] sm:$0xff]
        %v612 = vld [vmem:[#allocation7 + $0x138] sm:$0xff]
        %v613 = vld [vmem:[#allocation7 + $0x140] sm:$0xff]
        %v614 = vld [vmem:[#allocation7 + $0x148] sm:$0xff]
        %v615 = vld [vmem:[#allocation7 + $0x150] sm:$0xff]
        %v616 = vld [vmem:[#allocation7 + $0x158] sm:$0xff]
        %v617 = vld [vmem:[#allocation7 + $0x160] sm:$0xff]
        %v618 = vld [vmem:[#allocation7 + $0x168] sm:$0xff]
        %v619 = vld [vmem:[#allocation7 + $0x170] sm:$0xff]
        %v620 = vld [vmem:[#allocation7 + $0x178] sm:$0xff]
        %v621 = vld [vmem:[#allocation7 + $0x180] sm:$0xff]
        %v622 = vld [vmem:[#allocation7 + $0x188] sm:$0xff]
        %v623 = vld [vmem:[#allocation7 + $0x190] sm:$0xff]
        %v624 = vld [vmem:[#allocation7 + $0x198] sm:$0xff]
        %v625 = vld [vmem:[#allocation7 + $0x1a0] sm:$0xff]
        %v626 = vld [vmem:[#allocation7 + $0x1a8] sm:$0xff]
        %v627 = vld [vmem:[#allocation7 + $0x1b0] sm:$0xff]
        %v628 = vld [vmem:[#allocation7 + $0x1b8] sm:$0xff]
        %v629 = vld [vmem:[#allocation7 + $0x1c0] sm:$0xff]
        %v630 = vld [vmem:[#allocation7 + $0x1c8] sm:$0xff]
        %v631 = vld [vmem:[#allocation7 + $0x1d0] sm:$0xff]
        %v632 = vld [vmem:[#allocation7 + $0x1d8] sm:$0xff]
        %v633 = vld [vmem:[#allocation7 + $0x1e0] sm:$0xff]
        %v634 = vld [vmem:[#allocation7 + $0x1e8] sm:$0xff]
        %v635 = vld [vmem:[#allocation7 + $0x1f0] sm:$0xff]
        %v636 = vld [vmem:[#allocation7 + $0x1f8] sm:$0xff]
        %v637 = vld [vmem:[%s487] sm:$0xf]
        %v638 = vld [vmem:[%s487 + $0x4] sm:$0xf]
        %v639 = vld [vmem:[#allocation8] sm:$0xff]
        %v640 = vld [vmem:[#allocation8 + $0x8] sm:$0xff]
        %v641 = vld [vmem:[#allocation8 + $0x10] sm:$0xff]
        %v642 = vld [vmem:[#allocation8 + $0x18] sm:$0xff]
        %v643 = vld [vmem:[#allocation8 + $0x20] sm:$0xff]
        %v644 = vld [vmem:[#allocation8 + $0x28] sm:$0xff]
        %v645 = vld [vmem:[#allocation8 + $0x30] sm:$0xff]
        %v646 = vld [vmem:[#allocation8 + $0x38] sm:$0xff]
        %v647 = vld [vmem:[#allocation8 + $0x40] sm:$0xff]
        %v648 = vld [vmem:[#allocation8 + $0x48] sm:$0xff]
        %v649 = vld [vmem:[#allocation8 + $0x50] sm:$0xff]
        %v650 = vld [vmem:[#allocation8 + $0x58] sm:$0xff]
        %v651 = vld [vmem:[#allocation8 + $0x60] sm:$0xff]
        %v652 = vld [vmem:[#allocation8 + $0x68] sm:$0xff]
        %v653 = vld [vmem:[#allocation8 + $0x70] sm:$0xff]
        %v654 = vld [vmem:[#allocation8 + $0x78] sm:$0xff]
        %v655 = vld [vmem:[#allocation8 + $0x80] sm:$0xff]
        %v656 = vld [vmem:[#allocation8 + $0x88] sm:$0xff]
        %v657 = vld [vmem:[#allocation8 + $0x90] sm:$0xff]
        %v658 = vld [vmem:[#allocation8 + $0x98] sm:$0xff]
        %v659 = vld [vmem:[#allocation8 + $0xa0] sm:$0xff]
        %v660 = vld [vmem:[#allocation8 + $0xa8] sm:$0xff]
        %v661 = vld [vmem:[#allocation8 + $0xb0] sm:$0xff]
        %v662 = vld [vmem:[#allocation8 + $0xb8] sm:$0xff]
        %v663 = vld [vmem:[#allocation8 + $0xc0] sm:$0xff]
        %v664 = vld [vmem:[#allocation8 + $0xc8] sm:$0xff]
        %v665 = vld [vmem:[#allocation8 + $0xd0] sm:$0xff]
        %v666 = vld [vmem:[#allocation8 + $0xd8] sm:$0xff]
        %v667 = vld [vmem:[#allocation8 + $0xe0] sm:$0xff]
        %v668 = vld [vmem:[#allocation8 + $0xe8] sm:$0xff]
        %v669 = vld [vmem:[#allocation8 + $0xf0] sm:$0xff]
        %v670 = vld [vmem:[#allocation8 + $0xf8] sm:$0xff]
        %v671 = vld [vmem:[#allocation8 + $0x100] sm:$0xff]
        %v672 = vld [vmem:[#allocation8 + $0x108] sm:$0xff]
        %v673 = vld [vmem:[#allocation8 + $0x110] sm:$0xff]
        %v674 = vld [vmem:[#allocation8 + $0x118] sm:$0xff]
        %v675 = vld [vmem:[#allocation8 + $0x120] sm:$0xff]
        %v676 = vld [vmem:[#allocation8 + $0x128] sm:$0xff]
        %v677 = vld [vmem:[#allocation8 + $0x130] sm:$0xff]
        %v678 = vld [vmem:[#allocation8 + $0x138] sm:$0xff]
        %v679 = vld [vmem:[#allocation8 + $0x140] sm:$0xff]
        %v680 = vld [vmem:[#allocation8 + $0x148] sm:$0xff]
        %v681 = vld [vmem:[#allocation8 + $0x150] sm:$0xff]
        %v682 = vld [vmem:[#allocation8 + $0x158] sm:$0xff]
        %v683 = vld [vmem:[#allocation8 + $0x160] sm:$0xff]
        %v684 = vld [vmem:[#allocation8 + $0x168] sm:$0xff]
        %v685 = vld [vmem:[#allocation8 + $0x170] sm:$0xff]
        %v686 = vld [vmem:[#allocation8 + $0x178] sm:$0xff]
        %v687 = vld [vmem:[#allocation8 + $0x180] sm:$0xff]
        %v688 = vld [vmem:[#allocation8 + $0x188] sm:$0xff]
        %v689 = vld [vmem:[#allocation8 + $0x190] sm:$0xff]
        %v690 = vld [vmem:[#allocation8 + $0x198] sm:$0xff]
        %v691 = vld [vmem:[#allocation8 + $0x1a0] sm:$0xff]
        %v692 = vld [vmem:[#allocation8 + $0x1a8] sm:$0xff]
        %v693 = vld [vmem:[#allocation8 + $0x1b0] sm:$0xff]
        %v694 = vld [vmem:[#allocation8 + $0x1b8] sm:$0xff]
        %v695 = vld [vmem:[#allocation8 + $0x1c0] sm:$0xff]
        %v696 = vld [vmem:[#allocation8 + $0x1c8] sm:$0xff]
        %v697 = vld [vmem:[#allocation8 + $0x1d0] sm:$0xff]
        %v698 = vld [vmem:[#allocation8 + $0x1d8] sm:$0xff]
        %v699 = vld [vmem:[#allocation8 + $0x1e0] sm:$0xff]
        %v700 = vld [vmem:[#allocation8 + $0x1e8] sm:$0xff]
        %v701 = vld [vmem:[#allocation8 + $0x1f0] sm:$0xff]
        %v702 = vld [vmem:[#allocation8 + $0x1f8] sm:$0xff]
        %v705 = vunpack.c.l.b16 %v637
        %v706 = vunpack.c.l.b16 %v638
        %v707 = vpack.c.b16 %v706, %v705
        %v773 = vunpack.c.l.b16 %v639
        %v774 = vunpack.c.h.b16 %v639
        %v775 = vunpack.c.l.b16 %v640
        %v776 = vunpack.c.h.b16 %v640
        %v777 = vunpack.c.l.b16 %v641
        %v778 = vunpack.c.h.b16 %v641
        %v779 = vunpack.c.l.b16 %v642
        %v780 = vunpack.c.h.b16 %v642
        %v781 = vunpack.c.l.b16 %v643
        %v782 = vunpack.c.h.b16 %v643
        %v783 = vunpack.c.l.b16 %v644
        %v784 = vunpack.c.h.b16 %v644
        %v785 = vunpack.c.l.b16 %v645
        %v786 = vunpack.c.h.b16 %v645
        %v787 = vunpack.c.l.b16 %v646
        %v788 = vunpack.c.h.b16 %v646
        %v789 = vunpack.c.l.b16 %v647
        %v790 = vunpack.c.h.b16 %v647
        %v791 = vunpack.c.l.b16 %v648
        %v792 = vunpack.c.h.b16 %v648
        %v793 = vunpack.c.l.b16 %v649
        %v794 = vunpack.c.h.b16 %v649
        %v795 = vunpack.c.l.b16 %v650
        %v796 = vunpack.c.h.b16 %v650
        %v797 = vunpack.c.l.b16 %v651
        %v798 = vunpack.c.h.b16 %v651
        %v799 = vunpack.c.l.b16 %v652
        %v800 = vunpack.c.h.b16 %v652
        %v801 = vunpack.c.l.b16 %v653
        %v802 = vunpack.c.h.b16 %v653
        %v803 = vunpack.c.l.b16 %v654
        %v804 = vunpack.c.h.b16 %v654
        %v805 = vunpack.c.l.b16 %v655
        %v806 = vunpack.c.h.b16 %v655
        %v807 = vunpack.c.l.b16 %v656
        %v808 = vunpack.c.h.b16 %v656
        %v809 = vunpack.c.l.b16 %v657
        %v810 = vunpack.c.h.b16 %v657
        %v811 = vunpack.c.l.b16 %v658
        %v812 = vunpack.c.h.b16 %v658
        %v813 = vunpack.c.l.b16 %v659
        %v814 = vunpack.c.h.b16 %v659
        %v815 = vunpack.c.l.b16 %v660
        %v816 = vunpack.c.h.b16 %v660
        %v817 = vunpack.c.l.b16 %v661
        %v818 = vunpack.c.h.b16 %v661
        %v819 = vunpack.c.l.b16 %v662
        %v820 = vunpack.c.h.b16 %v662
        %v821 = vunpack.c.l.b16 %v663
        %v822 = vunpack.c.h.b16 %v663
        %v823 = vunpack.c.l.b16 %v664
        %v824 = vunpack.c.h.b16 %v664
        %v825 = vunpack.c.l.b16 %v665
        %v826 = vunpack.c.h.b16 %v665
        %v827 = vunpack.c.l.b16 %v666
        %v828 = vunpack.c.h.b16 %v666
        %v829 = vunpack.c.l.b16 %v667
        %v830 = vunpack.c.h.b16 %v667
        %v831 = vunpack.c.l.b16 %v668
        %v832 = vunpack.c.h.b16 %v668
        %v833 = vunpack.c.l.b16 %v669
        %v834 = vunpack.c.h.b16 %v669
        %v835 = vunpack.c.l.b16 %v670
        %v836 = vunpack.c.h.b16 %v670
        %v837 = vunpack.c.l.b16 %v671
        %v838 = vunpack.c.h.b16 %v671
        %v839 = vunpack.c.l.b16 %v672
        %v840 = vunpack.c.h.b16 %v672
        %v841 = vunpack.c.l.b16 %v673
        %v842 = vunpack.c.h.b16 %v673
        %v843 = vunpack.c.l.b16 %v674
        %v844 = vunpack.c.h.b16 %v674
        %v845 = vunpack.c.l.b16 %v675
        %v846 = vunpack.c.h.b16 %v675
        %v847 = vunpack.c.l.b16 %v676
        %v848 = vunpack.c.h.b16 %v676
        %v849 = vunpack.c.l.b16 %v677
        %v850 = vunpack.c.h.b16 %v677
        %v851 = vunpack.c.l.b16 %v678
        %v852 = vunpack.c.h.b16 %v678
        %v853 = vunpack.c.l.b16 %v679
        %v854 = vunpack.c.h.b16 %v679
        %v855 = vunpack.c.l.b16 %v680
        %v856 = vunpack.c.h.b16 %v680
        %v857 = vunpack.c.l.b16 %v681
        %v858 = vunpack.c.h.b16 %v681
        %v859 = vunpack.c.l.b16 %v682
        %v860 = vunpack.c.h.b16 %v682
        %v861 = vunpack.c.l.b16 %v683
        %v862 = vunpack.c.h.b16 %v683
        %v863 = vunpack.c.l.b16 %v684
        %v864 = vunpack.c.h.b16 %v684
        %v865 = vunpack.c.l.b16 %v685
        %v866 = vunpack.c.h.b16 %v685
        %v867 = vunpack.c.l.b16 %v686
        %v868 = vunpack.c.h.b16 %v686
        %v869 = vunpack.c.l.b16 %v687
        %v870 = vunpack.c.h.b16 %v687
        %v871 = vunpack.c.l.b16 %v688
        %v872 = vunpack.c.h.b16 %v688
        %v873 = vunpack.c.l.b16 %v689
        %v874 = vunpack.c.h.b16 %v689
        %v875 = vunpack.c.l.b16 %v690
        %v876 = vunpack.c.h.b16 %v690
        %v877 = vunpack.c.l.b16 %v691
        %v878 = vunpack.c.h.b16 %v691
        %v879 = vunpack.c.l.b16 %v692
        %v880 = vunpack.c.h.b16 %v692
        %v881 = vunpack.c.l.b16 %v693
        %v882 = vunpack.c.h.b16 %v693
        %v883 = vunpack.c.l.b16 %v694
        %v884 = vunpack.c.h.b16 %v694
        %v885 = vunpack.c.l.b16 %v695
        %v886 = vunpack.c.h.b16 %v695
        %v887 = vunpack.c.l.b16 %v696
        %v888 = vunpack.c.h.b16 %v696
        %v889 = vunpack.c.l.b16 %v697
        %v890 = vunpack.c.h.b16 %v697
        %v891 = vunpack.c.l.b16 %v698
        %v892 = vunpack.c.h.b16 %v698
        %v893 = vunpack.c.l.b16 %v699
        %v894 = vunpack.c.h.b16 %v699
        %v895 = vunpack.c.l.b16 %v700
        %v896 = vunpack.c.h.b16 %v700
        %v897 = vunpack.c.l.b16 %v701
        %v898 = vunpack.c.h.b16 %v701
        %v899 = vunpack.c.l.b16 %v702
        %v900 = vunpack.c.h.b16 %v702
        %v901 = vpack.c.b16 %v781, %v773
        %v902 = vpack.c.b16 %v782, %v774
        %v903 = vpack.c.b16 %v783, %v775
        %v904 = vpack.c.b16 %v784, %v776
        %v905 = vpack.c.b16 %v785, %v777
        %v906 = vpack.c.b16 %v786, %v778
        %v907 = vpack.c.b16 %v787, %v779
        %v908 = vpack.c.b16 %v788, %v780
        %v909 = vpack.c.b16 %v797, %v789
        %v910 = vpack.c.b16 %v798, %v790
        %v911 = vpack.c.b16 %v799, %v791
        %v912 = vpack.c.b16 %v800, %v792
        %v913 = vpack.c.b16 %v801, %v793
        %v914 = vpack.c.b16 %v802, %v794
        %v915 = vpack.c.b16 %v803, %v795
        %v916 = vpack.c.b16 %v804, %v796
        %v917 = vpack.c.b16 %v813, %v805
        %v918 = vpack.c.b16 %v814, %v806
        %v919 = vpack.c.b16 %v815, %v807
        %v920 = vpack.c.b16 %v816, %v808
        %v921 = vpack.c.b16 %v817, %v809
        %v922 = vpack.c.b16 %v818, %v810
        %v923 = vpack.c.b16 %v819, %v811
        %v924 = vpack.c.b16 %v820, %v812
        %v925 = vpack.c.b16 %v829, %v821
        %v926 = vpack.c.b16 %v830, %v822
        %v927 = vpack.c.b16 %v831, %v823
        %v928 = vpack.c.b16 %v832, %v824
        %v929 = vpack.c.b16 %v833, %v825
        %v930 = vpack.c.b16 %v834, %v826
        %v931 = vpack.c.b16 %v835, %v827
        %v932 = vpack.c.b16 %v836, %v828
        %v933 = vpack.c.b16 %v845, %v837
        %v934 = vpack.c.b16 %v846, %v838
        %v935 = vpack.c.b16 %v847, %v839
        %v936 = vpack.c.b16 %v848, %v840
        %v937 = vpack.c.b16 %v849, %v841
        %v938 = vpack.c.b16 %v850, %v842
        %v939 = vpack.c.b16 %v851, %v843
        %v940 = vpack.c.b16 %v852, %v844
        %v941 = vpack.c.b16 %v861, %v853
        %v942 = vpack.c.b16 %v862, %v854
        %v943 = vpack.c.b16 %v863, %v855
        %v944 = vpack.c.b16 %v864, %v856
        %v945 = vpack.c.b16 %v865, %v857
        %v946 = vpack.c.b16 %v866, %v858
        %v947 = vpack.c.b16 %v867, %v859
        %v948 = vpack.c.b16 %v868, %v860
        %v949 = vpack.c.b16 %v877, %v869
        %v950 = vpack.c.b16 %v878, %v870
        %v951 = vpack.c.b16 %v879, %v871
        %v952 = vpack.c.b16 %v880, %v872
        %v953 = vpack.c.b16 %v881, %v873
        %v954 = vpack.c.b16 %v882, %v874
        %v955 = vpack.c.b16 %v883, %v875
        %v956 = vpack.c.b16 %v884, %v876
        %v957 = vpack.c.b16 %v893, %v885
        %v958 = vpack.c.b16 %v894, %v886
        %v959 = vpack.c.b16 %v895, %v887
        %v960 = vpack.c.b16 %v896, %v888
        %v961 = vpack.c.b16 %v897, %v889
        %v962 = vpack.c.b16 %v898, %v890
        %v963 = vpack.c.b16 %v899, %v891
        %v964 = vpack.c.b16 %v900, %v892
        %1029 = vmatprep.subr.bf16.mxu0 %v958
        %1030 = vmatpush1.bf16.msra.mxu0 %v957
        %1031 = vmatprep.subr.bf16.mxu0 %v950
        %1032 = vmatpush1.bf16.msra.mxu0 %v949
        %1033 = vmatprep.subr.bf16.mxu0 %v942
        %1034 = vmatpush1.bf16.msra.mxu0 %v941
        %1035 = vmatprep.subr.bf16.mxu0 %v934
        %1036 = vmatpush1.bf16.msra.mxu0 %v933
        %1037 = vmatprep.subr.bf16.mxu0 %v926
        %1038 = vmatpush1.bf16.msra.mxu0 %v925
        %1039 = vmatprep.subr.bf16.mxu0 %v918
        %1040 = vmatpush1.bf16.msra.mxu0 %v917
        %1041 = vmatprep.subr.bf16.mxu0 %v910
        %1042 = vmatpush1.bf16.msra.mxu0 %v909
        %1043 = vmatprep.subr.bf16.mxu0 %v902
        %1044 = vmatpush1.bf16.msra.mxu0 %v901
        %1045 = vmatprep.subr.bf16.mxu0 0
        %1046 = vmatpush2.bf16.msra.mxu0 0
        %1047 = vmatprep.subr.bf16.mxu0 0
        %1048 = vmatpush2.bf16.msra.mxu0 0
        %1049 = vmatprep.subr.bf16.mxu0 0
        %1050 = vmatpush2.bf16.msra.mxu0 0
        %1051 = vmatprep.subr.bf16.mxu0 0
        %1052 = vmatpush2.bf16.msra.mxu0 0
        %1053 = vmatprep.subr.bf16.mxu0 0
        %1054 = vmatpush2.bf16.msra.mxu0 0
        %1055 = vmatprep.subr.bf16.mxu0 0
        %1056 = vmatpush2.bf16.msra.mxu0 0
        %1057 = vmatprep.subr.bf16.mxu0 0
        %1058 = vmatpush2.bf16.msra.mxu0 0
        %1059 = vmatprep.subr.bf16.mxu0 0
        %1060 = vmatpush2.bf16.msra.mxu0 0
        %1061 = vmatprep.mubr.bf16.mxu0 0
        %1062 = vmatmul.mubr.bf16.gmra.mxu0 %v707
        %v1063 = vpop.f32.mrf.mxu0
        %v1064 = vadd.f32 0.0, %v1063
        %v1065 = vpop.f32.mrf.mxu0
        %v1066 = vadd.f32 0.0, %v1065
        %v1067 = vpop.f32.mrf.mxu0
        %v1068 = vadd.f32 0.0, %v1067
        %v1069 = vpop.f32.mrf.mxu0
        %v1070 = vadd.f32 0.0, %v1069
        %1071 = vdwg.mxu0
        %1072 = vmatprep.subr.bf16.mxu0 %v960
        %1073 = vmatpush1.bf16.msra.mxu0 %v959
        %1074 = vmatprep.subr.bf16.mxu0 %v952
        %1075 = vmatpush1.bf16.msra.mxu0 %v951
        %1076 = vmatprep.subr.bf16.mxu0 %v944
        %1077 = vmatpush1.bf16.msra.mxu0 %v943
        %1078 = vmatprep.subr.bf16.mxu0 %v936
        %1079 = vmatpush1.bf16.msra.mxu0 %v935
        %1080 = vmatprep.subr.bf16.mxu0 %v928
        %1081 = vmatpush1.bf16.msra.mxu0 %v927
        %1082 = vmatprep.subr.bf16.mxu0 %v920
        %1083 = vmatpush1.bf16.msra.mxu0 %v919
        %1084 = vmatprep.subr.bf16.mxu0 %v912
        %1085 = vmatpush1.bf16.msra.mxu0 %v911
        %1086 = vmatprep.subr.bf16.mxu0 %v904
        %1087 = vmatpush1.bf16.msra.mxu0 %v903
        %1088 = vmatprep.subr.bf16.mxu0 0
        %1089 = vmatpush2.bf16.msra.mxu0 0
        %1090 = vmatprep.subr.bf16.mxu0 0
        %1091 = vmatpush2.bf16.msra.mxu0 0
        %1092 = vmatprep.subr.bf16.mxu0 0
        %1093 = vmatpush2.bf16.msra.mxu0 0
        %1094 = vmatprep.subr.bf16.mxu0 0
        %1095 = vmatpush2.bf16.msra.mxu0 0
        %1096 = vmatprep.subr.bf16.mxu0 0
        %1097 = vmatpush2.bf16.msra.mxu0 0
        %1098 = vmatprep.subr.bf16.mxu0 0
        %1099 = vmatpush2.bf16.msra.mxu0 0
        %1100 = vmatprep.subr.bf16.mxu0 0
        %1101 = vmatpush2.bf16.msra.mxu0 0
        %1102 = vmatprep.subr.bf16.mxu0 0
        %1103 = vmatpush2.bf16.msra.mxu0 0
        %1104 = vmatprep.mubr.bf16.mxu0 0
        %1105 = vmatmul.mubr.bf16.gmra.mxu0 %v707
        %v1106 = vpop.f32.mrf.mxu0
        %v1107 = vadd.f32 0.0, %v1106
        %v1108 = vpop.f32.mrf.mxu0
        %v1109 = vadd.f32 0.0, %v1108
        %v1110 = vpop.f32.mrf.mxu0
        %v1111 = vadd.f32 0.0, %v1110
        %v1112 = vpop.f32.mrf.mxu0
        %v1113 = vadd.f32 0.0, %v1112
        %1114 = vdwg.mxu0
        %1115 = vmatprep.subr.bf16.mxu0 %v962
        %1116 = vmatpush1.bf16.msra.mxu0 %v961
        %1117 = vmatprep.subr.bf16.mxu0 %v954
        %1118 = vmatpush1.bf16.msra.mxu0 %v953
        %1119 = vmatprep.subr.bf16.mxu0 %v946
        %1120 = vmatpush1.bf16.msra.mxu0 %v945
        %1121 = vmatprep.subr.bf16.mxu0 %v938
        %1122 = vmatpush1.bf16.msra.mxu0 %v937
        %1123 = vmatprep.subr.bf16.mxu0 %v930
        %1124 = vmatpush1.bf16.msra.mxu0 %v929
        %1125 = vmatprep.subr.bf16.mxu0 %v922
        %1126 = vmatpush1.bf16.msra.mxu0 %v921
        %1127 = vmatprep.subr.bf16.mxu0 %v914
        %1128 = vmatpush1.bf16.msra.mxu0 %v913
        %1129 = vmatprep.subr.bf16.mxu0 %v906
        %1130 = vmatpush1.bf16.msra.mxu0 %v905
        %1131 = vmatprep.subr.bf16.mxu0 0
        %1132 = vmatpush2.bf16.msra.mxu0 0
        %1133 = vmatprep.subr.bf16.mxu0 0
        %1134 = vmatpush2.bf16.msra.mxu0 0
        %1135 = vmatprep.subr.bf16.mxu0 0
        %1136 = vmatpush2.bf16.msra.mxu0 0
        %1137 = vmatprep.subr.bf16.mxu0 0
        %1138 = vmatpush2.bf16.msra.mxu0 0
        %1139 = vmatprep.subr.bf16.mxu0 0
        %1140 = vmatpush2.bf16.msra.mxu0 0
        %1141 = vmatprep.subr.bf16.mxu0 0
        %1142 = vmatpush2.bf16.msra.mxu0 0
        %1143 = vmatprep.subr.bf16.mxu0 0
        %1144 = vmatpush2.bf16.msra.mxu0 0
        %1145 = vmatprep.subr.bf16.mxu0 0
        %1146 = vmatpush2.bf16.msra.mxu0 0
        %1147 = vmatprep.mubr.bf16.mxu0 0
        %1148 = vmatmul.mubr.bf16.gmra.mxu0 %v707
        %v1149 = vpop.f32.mrf.mxu0
        %v1150 = vadd.f32 0.0, %v1149
        %v1151 = vpop.f32.mrf.mxu0
        %v1152 = vadd.f32 0.0, %v1151
        %v1153 = vpop.f32.mrf.mxu0
        %v1154 = vadd.f32 0.0, %v1153
        %v1155 = vpop.f32.mrf.mxu0
        %v1156 = vadd.f32 0.0, %v1155
        %1157 = vdwg.mxu0
        %1158 = vmatprep.subr.bf16.mxu0 %v964
        %1159 = vmatpush1.bf16.msra.mxu0 %v963
        %1160 = vmatprep.subr.bf16.mxu0 %v956
        %1161 = vmatpush1.bf16.msra.mxu0 %v955
        %1162 = vmatprep.subr.bf16.mxu0 %v948
        %1163 = vmatpush1.bf16.msra.mxu0 %v947
        %1164 = vmatprep.subr.bf16.mxu0 %v940
        %1165 = vmatpush1.bf16.msra.mxu0 %v939
        %1166 = vmatprep.subr.bf16.mxu0 %v932
        %1167 = vmatpush1.bf16.msra.mxu0 %v931
        %1168 = vmatprep.subr.bf16.mxu0 %v924
        %1169 = vmatpush1.bf16.msra.mxu0 %v923
        %1170 = vmatprep.subr.bf16.mxu0 %v916
        %1171 = vmatpush1.bf16.msra.mxu0 %v915
        %1172 = vmatprep.subr.bf16.mxu0 %v908
        %1173 = vmatpush1.bf16.msra.mxu0 %v907
        %1174 = vmatprep.subr.bf16.mxu0 0
        %1175 = vmatpush2.bf16.msra.mxu0 0
        %1176 = vmatprep.subr.bf16.mxu0 0
        %1177 = vmatpush2.bf16.msra.mxu0 0
        %1178 = vmatprep.subr.bf16.mxu0 0
        %1179 = vmatpush2.bf16.msra.mxu0 0
        %1180 = vmatprep.subr.bf16.mxu0 0
        %1181 = vmatpush2.bf16.msra.mxu0 0
        %1182 = vmatprep.subr.bf16.mxu0 0
        %1183 = vmatpush2.bf16.msra.mxu0 0
        %1184 = vmatprep.subr.bf16.mxu0 0
        %1185 = vmatpush2.bf16.msra.mxu0 0
        %1186 = vmatprep.subr.bf16.mxu0 0
        %1187 = vmatpush2.bf16.msra.mxu0 0
        %1188 = vmatprep.subr.bf16.mxu0 0
        %1189 = vmatpush2.bf16.msra.mxu0 0
        %1190 = vmatprep.mubr.bf16.mxu0 0
        %1191 = vmatmul.mubr.bf16.gmra.mxu0 %v707
        %v1192 = vpop.f32.mrf.mxu0
        %v1193 = vadd.f32 0.0, %v1192
        %v1194 = vpop.f32.mrf.mxu0
        %v1195 = vadd.f32 0.0, %v1194
        %v1196 = vpop.f32.mrf.mxu0
        %v1197 = vadd.f32 0.0, %v1196
        %v1198 = vpop.f32.mrf.mxu0
        %v1199 = vadd.f32 0.0, %v1198
        %1200 = vdwg.mxu0
        %v1203 = vunpack.c.l.b16 %v571
        %v1204 = vunpack.c.l.b16 %v572
        %v1205 = vpack.c.b16 %v1204, %v1203
        %v1271 = vunpack.c.l.b16 %v573
        %v1272 = vunpack.c.h.b16 %v573
        %v1273 = vunpack.c.l.b16 %v574
        %v1274 = vunpack.c.h.b16 %v574
        %v1275 = vunpack.c.l.b16 %v575
        %v1276 = vunpack.c.h.b16 %v575
        %v1277 = vunpack.c.l.b16 %v576
        %v1278 = vunpack.c.h.b16 %v576
        %v1279 = vunpack.c.l.b16 %v577
        %v1280 = vunpack.c.h.b16 %v577
        %v1281 = vunpack.c.l.b16 %v578
        %v1282 = vunpack.c.h.b16 %v578
        %v1283 = vunpack.c.l.b16 %v579
        %v1284 = vunpack.c.h.b16 %v579
        %v1285 = vunpack.c.l.b16 %v580
        %v1286 = vunpack.c.h.b16 %v580
        %v1287 = vunpack.c.l.b16 %v581
        %v1288 = vunpack.c.h.b16 %v581
        %v1289 = vunpack.c.l.b16 %v582
        %v1290 = vunpack.c.h.b16 %v582
        %v1291 = vunpack.c.l.b16 %v583
        %v1292 = vunpack.c.h.b16 %v583
        %v1293 = vunpack.c.l.b16 %v584
        %v1294 = vunpack.c.h.b16 %v584
        %v1295 = vunpack.c.l.b16 %v585
        %v1296 = vunpack.c.h.b16 %v585
        %v1297 = vunpack.c.l.b16 %v586
        %v1298 = vunpack.c.h.b16 %v586
        %v1299 = vunpack.c.l.b16 %v587
        %v1300 = vunpack.c.h.b16 %v587
        %v1301 = vunpack.c.l.b16 %v588
        %v1302 = vunpack.c.h.b16 %v588
        %v1303 = vunpack.c.l.b16 %v589
        %v1304 = vunpack.c.h.b16 %v589
        %v1305 = vunpack.c.l.b16 %v590
        %v1306 = vunpack.c.h.b16 %v590
        %v1307 = vunpack.c.l.b16 %v591
        %v1308 = vunpack.c.h.b16 %v591
        %v1309 = vunpack.c.l.b16 %v592
        %v1310 = vunpack.c.h.b16 %v592
        %v1311 = vunpack.c.l.b16 %v593
        %v1312 = vunpack.c.h.b16 %v593
        %v1313 = vunpack.c.l.b16 %v594
        %v1314 = vunpack.c.h.b16 %v594
        %v1315 = vunpack.c.l.b16 %v595
        %v1316 = vunpack.c.h.b16 %v595
        %v1317 = vunpack.c.l.b16 %v596
        %v1318 = vunpack.c.h.b16 %v596
        %v1319 = vunpack.c.l.b16 %v597
        %v1320 = vunpack.c.h.b16 %v597
        %v1321 = vunpack.c.l.b16 %v598
        %v1322 = vunpack.c.h.b16 %v598
        %v1323 = vunpack.c.l.b16 %v599
        %v1324 = vunpack.c.h.b16 %v599
        %v1325 = vunpack.c.l.b16 %v600
        %v1326 = vunpack.c.h.b16 %v600
        %v1327 = vunpack.c.l.b16 %v601
        %v1328 = vunpack.c.h.b16 %v601
        %v1329 = vunpack.c.l.b16 %v602
        %v1330 = vunpack.c.h.b16 %v602
        %v1331 = vunpack.c.l.b16 %v603
        %v1332 = vunpack.c.h.b16 %v603
        %v1333 = vunpack.c.l.b16 %v604
        %v1334 = vunpack.c.h.b16 %v604
        %v1335 = vunpack.c.l.b16 %v605
        %v1336 = vunpack.c.h.b16 %v605
        %v1337 = vunpack.c.l.b16 %v606
        %v1338 = vunpack.c.h.b16 %v606
        %v1339 = vunpack.c.l.b16 %v607
        %v1340 = vunpack.c.h.b16 %v607
        %v1341 = vunpack.c.l.b16 %v608
        %v1342 = vunpack.c.h.b16 %v608
        %v1343 = vunpack.c.l.b16 %v609
        %v1344 = vunpack.c.h.b16 %v609
        %v1345 = vunpack.c.l.b16 %v610
        %v1346 = vunpack.c.h.b16 %v610
        %v1347 = vunpack.c.l.b16 %v611
        %v1348 = vunpack.c.h.b16 %v611
        %v1349 = vunpack.c.l.b16 %v612
        %v1350 = vunpack.c.h.b16 %v612
        %v1351 = vunpack.c.l.b16 %v613
        %v1352 = vunpack.c.h.b16 %v613
        %v1353 = vunpack.c.l.b16 %v614
        %v1354 = vunpack.c.h.b16 %v614
        %v1355 = vunpack.c.l.b16 %v615
        %v1356 = vunpack.c.h.b16 %v615
        %v1357 = vunpack.c.l.b16 %v616
        %v1358 = vunpack.c.h.b16 %v616
        %v1359 = vunpack.c.l.b16 %v617
        %v1360 = vunpack.c.h.b16 %v617
        %v1361 = vunpack.c.l.b16 %v618
        %v1362 = vunpack.c.h.b16 %v618
        %v1363 = vunpack.c.l.b16 %v619
        %v1364 = vunpack.c.h.b16 %v619
        %v1365 = vunpack.c.l.b16 %v620
        %v1366 = vunpack.c.h.b16 %v620
        %v1367 = vunpack.c.l.b16 %v621
        %v1368 = vunpack.c.h.b16 %v621
        %v1369 = vunpack.c.l.b16 %v622
        %v1370 = vunpack.c.h.b16 %v622
        %v1371 = vunpack.c.l.b16 %v623
        %v1372 = vunpack.c.h.b16 %v623
        %v1373 = vunpack.c.l.b16 %v624
        %v1374 = vunpack.c.h.b16 %v624
        %v1375 = vunpack.c.l.b16 %v625
        %v1376 = vunpack.c.h.b16 %v625
        %v1377 = vunpack.c.l.b16 %v626
        %v1378 = vunpack.c.h.b16 %v626
        %v1379 = vunpack.c.l.b16 %v627
        %v1380 = vunpack.c.h.b16 %v627
        %v1381 = vunpack.c.l.b16 %v628
        %v1382 = vunpack.c.h.b16 %v628
        %v1383 = vunpack.c.l.b16 %v629
        %v1384 = vunpack.c.h.b16 %v629
        %v1385 = vunpack.c.l.b16 %v630
        %v1386 = vunpack.c.h.b16 %v630
        %v1387 = vunpack.c.l.b16 %v631
        %v1388 = vunpack.c.h.b16 %v631
        %v1389 = vunpack.c.l.b16 %v632
        %v1390 = vunpack.c.h.b16 %v632
        %v1391 = vunpack.c.l.b16 %v633
        %v1392 = vunpack.c.h.b16 %v633
        %v1393 = vunpack.c.l.b16 %v634
        %v1394 = vunpack.c.h.b16 %v634
        %v1395 = vunpack.c.l.b16 %v635
        %v1396 = vunpack.c.h.b16 %v635
        %v1397 = vunpack.c.l.b16 %v636
        %v1398 = vunpack.c.h.b16 %v636
        %v1399 = vpack.c.b16 %v1279, %v1271
        %v1400 = vpack.c.b16 %v1280, %v1272
        %v1401 = vpack.c.b16 %v1281, %v1273
        %v1402 = vpack.c.b16 %v1282, %v1274
        %v1403 = vpack.c.b16 %v1283, %v1275
        %v1404 = vpack.c.b16 %v1284, %v1276
        %v1405 = vpack.c.b16 %v1285, %v1277
        %v1406 = vpack.c.b16 %v1286, %v1278
        %v1407 = vpack.c.b16 %v1295, %v1287
        %v1408 = vpack.c.b16 %v1296, %v1288
        %v1409 = vpack.c.b16 %v1297, %v1289
        %v1410 = vpack.c.b16 %v1298, %v1290
        %v1411 = vpack.c.b16 %v1299, %v1291
        %v1412 = vpack.c.b16 %v1300, %v1292
        %v1413 = vpack.c.b16 %v1301, %v1293
        %v1414 = vpack.c.b16 %v1302, %v1294
        %v1415 = vpack.c.b16 %v1311, %v1303
        %v1416 = vpack.c.b16 %v1312, %v1304
        %v1417 = vpack.c.b16 %v1313, %v1305
        %v1418 = vpack.c.b16 %v1314, %v1306
        %v1419 = vpack.c.b16 %v1315, %v1307
        %v1420 = vpack.c.b16 %v1316, %v1308
        %v1421 = vpack.c.b16 %v1317, %v1309
        %v1422 = vpack.c.b16 %v1318, %v1310
        %v1423 = vpack.c.b16 %v1327, %v1319
        %v1424 = vpack.c.b16 %v1328, %v1320
        %v1425 = vpack.c.b16 %v1329, %v1321
        %v1426 = vpack.c.b16 %v1330, %v1322
        %v1427 = vpack.c.b16 %v1331, %v1323
        %v1428 = vpack.c.b16 %v1332, %v1324
        %v1429 = vpack.c.b16 %v1333, %v1325
        %v1430 = vpack.c.b16 %v1334, %v1326
        %v1431 = vpack.c.b16 %v1343, %v1335
        %v1432 = vpack.c.b16 %v1344, %v1336
        %v1433 = vpack.c.b16 %v1345, %v1337
        %v1434 = vpack.c.b16 %v1346, %v1338
        %v1435 = vpack.c.b16 %v1347, %v1339
        %v1436 = vpack.c.b16 %v1348, %v1340
        %v1437 = vpack.c.b16 %v1349, %v1341
        %v1438 = vpack.c.b16 %v1350, %v1342
        %v1439 = vpack.c.b16 %v1359, %v1351
        %v1440 = vpack.c.b16 %v1360, %v1352
        %v1441 = vpack.c.b16 %v1361, %v1353
        %v1442 = vpack.c.b16 %v1362, %v1354
        %v1443 = vpack.c.b16 %v1363, %v1355
        %v1444 = vpack.c.b16 %v1364, %v1356
        %v1445 = vpack.c.b16 %v1365, %v1357
        %v1446 = vpack.c.b16 %v1366, %v1358
        %v1447 = vpack.c.b16 %v1375, %v1367
        %v1448 = vpack.c.b16 %v1376, %v1368
        %v1449 = vpack.c.b16 %v1377, %v1369
        %v1450 = vpack.c.b16 %v1378, %v1370
        %v1451 = vpack.c.b16 %v1379, %v1371
        %v1452 = vpack.c.b16 %v1380, %v1372
        %v1453 = vpack.c.b16 %v1381, %v1373
        %v1454 = vpack.c.b16 %v1382, %v1374
        %v1455 = vpack.c.b16 %v1391, %v1383
        %v1456 = vpack.c.b16 %v1392, %v1384
        %v1457 = vpack.c.b16 %v1393, %v1385
        %v1458 = vpack.c.b16 %v1394, %v1386
        %v1459 = vpack.c.b16 %v1395, %v1387
        %v1460 = vpack.c.b16 %v1396, %v1388
        %v1461 = vpack.c.b16 %v1397, %v1389
        %v1462 = vpack.c.b16 %v1398, %v1390
        %1527 = vmatprep.subr.bf16.mxu0 %v1456
        %1528 = vmatpush1.bf16.msra.mxu0 %v1455
        %1529 = vmatprep.subr.bf16.mxu0 %v1448
        %1530 = vmatpush1.bf16.msra.mxu0 %v1447
        %1531 = vmatprep.subr.bf16.mxu0 %v1440
        %1532 = vmatpush1.bf16.msra.mxu0 %v1439
        %1533 = vmatprep.subr.bf16.mxu0 %v1432
        %1534 = vmatpush1.bf16.msra.mxu0 %v1431
        %1535 = vmatprep.subr.bf16.mxu0 %v1424
        %1536 = vmatpush1.bf16.msra.mxu0 %v1423
        %1537 = vmatprep.subr.bf16.mxu0 %v1416
        %1538 = vmatpush1.bf16.msra.mxu0 %v1415
        %1539 = vmatprep.subr.bf16.mxu0 %v1408
        %1540 = vmatpush1.bf16.msra.mxu0 %v1407
        %1541 = vmatprep.subr.bf16.mxu0 %v1400
        %1542 = vmatpush1.bf16.msra.mxu0 %v1399
        %1543 = vmatprep.subr.bf16.mxu0 0
        %1544 = vmatpush2.bf16.msra.mxu0 0
        %1545 = vmatprep.subr.bf16.mxu0 0
        %1546 = vmatpush2.bf16.msra.mxu0 0
        %1547 = vmatprep.subr.bf16.mxu0 0
        %1548 = vmatpush2.bf16.msra.mxu0 0
        %1549 = vmatprep.subr.bf16.mxu0 0
        %1550 = vmatpush2.bf16.msra.mxu0 0
        %1551 = vmatprep.subr.bf16.mxu0 0
        %1552 = vmatpush2.bf16.msra.mxu0 0
        %1553 = vmatprep.subr.bf16.mxu0 0
        %1554 = vmatpush2.bf16.msra.mxu0 0
        %1555 = vmatprep.subr.bf16.mxu0 0
        %1556 = vmatpush2.bf16.msra.mxu0 0
        %1557 = vmatprep.subr.bf16.mxu0 0
        %1558 = vmatpush2.bf16.msra.mxu0 0
        %1559 = vmatprep.mubr.bf16.mxu0 0
        %1560 = vmatmul.mubr.bf16.gmra.mxu0 %v1205
        %v1561 = vpop.f32.mrf.mxu0
        %v1562 = vadd.f32 %v1064, %v1561
        %v1563 = vpop.f32.mrf.mxu0
        %v1564 = vadd.f32 %v1066, %v1563
        %v1565 = vpop.f32.mrf.mxu0
        %v1566 = vadd.f32 %v1068, %v1565
        %v1567 = vpop.f32.mrf.mxu0
        %v1568 = vadd.f32 %v1070, %v1567
        %1569 = vdwg.mxu0
        %1570 = vmatprep.subr.bf16.mxu0 %v1458
        %1571 = vmatpush1.bf16.msra.mxu0 %v1457
        %1572 = vmatprep.subr.bf16.mxu0 %v1450
        %1573 = vmatpush1.bf16.msra.mxu0 %v1449
        %1574 = vmatprep.subr.bf16.mxu0 %v1442
        %1575 = vmatpush1.bf16.msra.mxu0 %v1441
        %1576 = vmatprep.subr.bf16.mxu0 %v1434
        %1577 = vmatpush1.bf16.msra.mxu0 %v1433
        %1578 = vmatprep.subr.bf16.mxu0 %v1426
        %1579 = vmatpush1.bf16.msra.mxu0 %v1425
        %1580 = vmatprep.subr.bf16.mxu0 %v1418
        %1581 = vmatpush1.bf16.msra.mxu0 %v1417
        %1582 = vmatprep.subr.bf16.mxu0 %v1410
        %1583 = vmatpush1.bf16.msra.mxu0 %v1409
        %1584 = vmatprep.subr.bf16.mxu0 %v1402
        %1585 = vmatpush1.bf16.msra.mxu0 %v1401
        %1586 = vmatprep.subr.bf16.mxu0 0
        %1587 = vmatpush2.bf16.msra.mxu0 0
        %1588 = vmatprep.subr.bf16.mxu0 0
        %1589 = vmatpush2.bf16.msra.mxu0 0
        %1590 = vmatprep.subr.bf16.mxu0 0
        %1591 = vmatpush2.bf16.msra.mxu0 0
        %1592 = vmatprep.subr.bf16.mxu0 0
        %1593 = vmatpush2.bf16.msra.mxu0 0
        %1594 = vmatprep.subr.bf16.mxu0 0
        %1595 = vmatpush2.bf16.msra.mxu0 0
        %1596 = vmatprep.subr.bf16.mxu0 0
        %1597 = vmatpush2.bf16.msra.mxu0 0
        %1598 = vmatprep.subr.bf16.mxu0 0
        %1599 = vmatpush2.bf16.msra.mxu0 0
        %1600 = vmatprep.subr.bf16.mxu0 0
        %1601 = vmatpush2.bf16.msra.mxu0 0
        %1602 = vmatprep.mubr.bf16.mxu0 0
        %1603 = vmatmul.mubr.bf16.gmra.mxu0 %v1205
        %v1604 = vpop.f32.mrf.mxu0
        %v1605 = vadd.f32 %v1107, %v1604
        %v1606 = vpop.f32.mrf.mxu0
        %v1607 = vadd.f32 %v1109, %v1606
        %v1608 = vpop.f32.mrf.mxu0
        %v1609 = vadd.f32 %v1111, %v1608
        %v1610 = vpop.f32.mrf.mxu0
        %v1611 = vadd.f32 %v1113, %v1610
        %1612 = vdwg.mxu0
        %1613 = vmatprep.subr.bf16.mxu0 %v1460
        %1614 = vmatpush1.bf16.msra.mxu0 %v1459
        %1615 = vmatprep.subr.bf16.mxu0 %v1452
        %1616 = vmatpush1.bf16.msra.mxu0 %v1451
        %1617 = vmatprep.subr.bf16.mxu0 %v1444
        %1618 = vmatpush1.bf16.msra.mxu0 %v1443
        %1619 = vmatprep.subr.bf16.mxu0 %v1436
        %1620 = vmatpush1.bf16.msra.mxu0 %v1435
        %1621 = vmatprep.subr.bf16.mxu0 %v1428
        %1622 = vmatpush1.bf16.msra.mxu0 %v1427
        %1623 = vmatprep.subr.bf16.mxu0 %v1420
        %1624 = vmatpush1.bf16.msra.mxu0 %v1419
        %1625 = vmatprep.subr.bf16.mxu0 %v1412
        %1626 = vmatpush1.bf16.msra.mxu0 %v1411
        %1627 = vmatprep.subr.bf16.mxu0 %v1404
        %1628 = vmatpush1.bf16.msra.mxu0 %v1403
        %1629 = vmatprep.subr.bf16.mxu0 0
        %1630 = vmatpush2.bf16.msra.mxu0 0
        %1631 = vmatprep.subr.bf16.mxu0 0
        %1632 = vmatpush2.bf16.msra.mxu0 0
        %1633 = vmatprep.subr.bf16.mxu0 0
        %1634 = vmatpush2.bf16.msra.mxu0 0
        %1635 = vmatprep.subr.bf16.mxu0 0
        %1636 = vmatpush2.bf16.msra.mxu0 0
        %1637 = vmatprep.subr.bf16.mxu0 0
        %1638 = vmatpush2.bf16.msra.mxu0 0
        %1639 = vmatprep.subr.bf16.mxu0 0
        %1640 = vmatpush2.bf16.msra.mxu0 0
        %1641 = vmatprep.subr.bf16.mxu0 0
        %1642 = vmatpush2.bf16.msra.mxu0 0
        %1643 = vmatprep.subr.bf16.mxu0 0
        %1644 = vmatpush2.bf16.msra.mxu0 0
        %1645 = vmatprep.mubr.bf16.mxu0 0
        %1646 = vmatmul.mubr.bf16.gmra.mxu0 %v1205
        %v1647 = vpop.f32.mrf.mxu0
        %v1648 = vadd.f32 %v1150, %v1647
        %v1649 = vpop.f32.mrf.mxu0
        %v1650 = vadd.f32 %v1152, %v1649
        %v1651 = vpop.f32.mrf.mxu0
        %v1652 = vadd.f32 %v1154, %v1651
        %v1653 = vpop.f32.mrf.mxu0
        %v1654 = vadd.f32 %v1156, %v1653
        %1655 = vdwg.mxu0
        %1656 = vmatprep.subr.bf16.mxu0 %v1462
        %1657 = vmatpush1.bf16.msra.mxu0 %v1461
        %1658 = vmatprep.subr.bf16.mxu0 %v1454
        %1659 = vmatpush1.bf16.msra.mxu0 %v1453
        %1660 = vmatprep.subr.bf16.mxu0 %v1446
        %1661 = vmatpush1.bf16.msra.mxu0 %v1445
        %1662 = vmatprep.subr.bf16.mxu0 %v1438
        %1663 = vmatpush1.bf16.msra.mxu0 %v1437
        %1664 = vmatprep.subr.bf16.mxu0 %v1430
        %1665 = vmatpush1.bf16.msra.mxu0 %v1429
        %1666 = vmatprep.subr.bf16.mxu0 %v1422
        %1667 = vmatpush1.bf16.msra.mxu0 %v1421
        %1668 = vmatprep.subr.bf16.mxu0 %v1414
        %1669 = vmatpush1.bf16.msra.mxu0 %v1413
        %1670 = vmatprep.subr.bf16.mxu0 %v1406
        %1671 = vmatpush1.bf16.msra.mxu0 %v1405
        %1672 = vmatprep.subr.bf16.mxu0 0
        %1673 = vmatpush2.bf16.msra.mxu0 0
        %1674 = vmatprep.subr.bf16.mxu0 0
        %1675 = vmatpush2.bf16.msra.mxu0 0
        %1676 = vmatprep.subr.bf16.mxu0 0
        %1677 = vmatpush2.bf16.msra.mxu0 0
        %1678 = vmatprep.subr.bf16.mxu0 0
        %1679 = vmatpush2.bf16.msra.mxu0 0
        %1680 = vmatprep.subr.bf16.mxu0 0
        %1681 = vmatpush2.bf16.msra.mxu0 0
        %1682 = vmatprep.subr.bf16.mxu0 0
        %1683 = vmatpush2.bf16.msra.mxu0 0
        %1684 = vmatprep.subr.bf16.mxu0 0
        %1685 = vmatpush2.bf16.msra.mxu0 0
        %1686 = vmatprep.subr.bf16.mxu0 0
        %1687 = vmatpush2.bf16.msra.mxu0 0
        %1688 = vmatprep.mubr.bf16.mxu0 0
        %1689 = vmatmul.mubr.bf16.gmra.mxu0 %v1205
        %v1690 = vpop.f32.mrf.mxu0
        %v1691 = vadd.f32 %v1193, %v1690
        %v1692 = vpop.f32.mrf.mxu0
        %v1693 = vadd.f32 %v1195, %v1692
        %v1694 = vpop.f32.mrf.mxu0
        %v1695 = vadd.f32 %v1197, %v1694
        %v1696 = vpop.f32.mrf.mxu0
        %v1697 = vadd.f32 %v1199, %v1696
        %1698 = vdwg.mxu0
        %v1699 = vld [vmem:[#allocation10] sm:$0xff]
        %v1701 = vlaneseq
        %v1702 = vshrl.u32 %v1701, 7
        %v1703 = vsub.s32 0, %v1702
        %v1704 = vrot.slane %v1699, %v1703
        %v1705 = vlaneseq
        %v1706 = vshrl.u32 %v1705, 7
        %v1707 = vsub.s32 1, %v1706
        %v1708 = vrot.slane %v1699, %v1707
        %v1709 = vlaneseq
        %v1710 = vshrl.u32 %v1709, 7
        %v1711 = vsub.s32 2, %v1710
        %v1712 = vrot.slane %v1699, %v1711
        %v1713 = vlaneseq
        %v1714 = vshrl.u32 %v1713, 7
        %v1715 = vsub.s32 3, %v1714
        %v1716 = vrot.slane %v1699, %v1715
        %v1717 = vlaneseq
        %v1718 = vshrl.u32 %v1717, 7
        %v1719 = vsub.s32 4, %v1718
        %v1720 = vrot.slane %v1699, %v1719
        %v1721 = vlaneseq
        %v1722 = vshrl.u32 %v1721, 7
        %v1723 = vsub.s32 5, %v1722
        %v1724 = vrot.slane %v1699, %v1723
        %v1725 = vlaneseq
        %v1726 = vshrl.u32 %v1725, 7
        %v1727 = vsub.s32 6, %v1726
        %v1728 = vrot.slane %v1699, %v1727
        %v1729 = vlaneseq
        %v1730 = vshrl.u32 %v1729, 7
        %v1731 = vsub.s32 7, %v1730
        %v1732 = vrot.slane %v1699, %v1731
        %v1741 = vadd.f32 %v1562, %v1704
        %v1742 = vadd.f32 %v1564, %v1708
        %v1743 = vadd.f32 %v1605, %v1712
        %v1744 = vadd.f32 %v1607, %v1716
        %v1745 = vadd.f32 %v1648, %v1720
        %v1746 = vadd.f32 %v1650, %v1724
        %v1747 = vadd.f32 %v1691, %v1728
        %v1748 = vadd.f32 %v1693, %v1732
        %v1749 = vadd.f32 %v1566, %v1704
        %v1750 = vadd.f32 %v1568, %v1708
        %v1751 = vadd.f32 %v1609, %v1712
        %v1752 = vadd.f32 %v1611, %v1716
        %v1753 = vadd.f32 %v1652, %v1720
        %v1754 = vadd.f32 %v1654, %v1724
        %v1755 = vadd.f32 %v1695, %v1728
        %v1756 = vadd.f32 %v1697, %v1732
        %vm1757 = vcmp.gt.f32.partialorder %v1741, 0.0
        %vm1758 = vcmp.gt.f32.partialorder %v1742, 0.0
        %vm1759 = vcmp.gt.f32.partialorder %v1743, 0.0
        %vm1760 = vcmp.gt.f32.partialorder %v1744, 0.0
        %vm1761 = vcmp.gt.f32.partialorder %v1745, 0.0
        %vm1762 = vcmp.gt.f32.partialorder %v1746, 0.0
        %vm1763 = vcmp.gt.f32.partialorder %v1747, 0.0
        %vm1764 = vcmp.gt.f32.partialorder %v1748, 0.0
        %vm1765 = vcmp.gt.f32.partialorder %v1749, 0.0
        %vm1766 = vcmp.gt.f32.partialorder %v1750, 0.0
        %vm1767 = vcmp.gt.f32.partialorder %v1751, 0.0
        %vm1768 = vcmp.gt.f32.partialorder %v1752, 0.0
        %vm1769 = vcmp.gt.f32.partialorder %v1753, 0.0
        %vm1770 = vcmp.gt.f32.partialorder %v1754, 0.0
        %vm1771 = vcmp.gt.f32.partialorder %v1755, 0.0
        %vm1772 = vcmp.gt.f32.partialorder %v1756, 0.0
        %v1773 = vmul.f32 %v1741, 0.2
        %v1774 = vmul.f32 %v1742, 0.2
        %v1775 = vmul.f32 %v1743, 0.2
        %v1776 = vmul.f32 %v1744, 0.2
        %v1777 = vmul.f32 %v1745, 0.2
        %v1778 = vmul.f32 %v1746, 0.2
        %v1779 = vmul.f32 %v1747, 0.2
        %v1780 = vmul.f32 %v1748, 0.2
        %v1781 = vmul.f32 %v1749, 0.2
        %v1782 = vmul.f32 %v1750, 0.2
        %v1783 = vmul.f32 %v1751, 0.2
        %v1784 = vmul.f32 %v1752, 0.2
        %v1785 = vmul.f32 %v1753, 0.2
        %v1786 = vmul.f32 %v1754, 0.2
        %v1787 = vmul.f32 %v1755, 0.2
        %v1788 = vmul.f32 %v1756, 0.2
        %v1789 = vsel %vm1757, %v1741, %v1773
        %v1790 = vsel %vm1758, %v1742, %v1774
        %v1791 = vsel %vm1759, %v1743, %v1775
        %v1792 = vsel %vm1760, %v1744, %v1776
        %v1793 = vsel %vm1761, %v1745, %v1777
        %v1794 = vsel %vm1762, %v1746, %v1778
        %v1795 = vsel %vm1763, %v1747, %v1779
        %v1796 = vsel %vm1764, %v1748, %v1780
        %v1797 = vsel %vm1765, %v1749, %v1781
        %v1798 = vsel %vm1766, %v1750, %v1782
        %v1799 = vsel %vm1767, %v1751, %v1783
        %v1800 = vsel %vm1768, %v1752, %v1784
        %v1801 = vsel %vm1769, %v1753, %v1785
        %v1802 = vsel %vm1770, %v1754, %v1786
        %v1803 = vsel %vm1771, %v1755, %v1787
        %v1804 = vsel %vm1772, %v1756, %v1788
        %v1805 = vpack.c.bf16 %v1797, %v1789
        %v1806 = vpack.c.bf16 %v1798, %v1790
        %v1807 = vpack.c.bf16 %v1799, %v1791
        %v1808 = vpack.c.bf16 %v1800, %v1792
        %v1809 = vpack.c.bf16 %v1801, %v1793
        %v1810 = vpack.c.bf16 %v1802, %v1794
        %v1811 = vpack.c.bf16 %v1803, %v1795
        %v1812 = vpack.c.bf16 %v1804, %v1796
        %v1813 = vld [vmem:[#allocation11] sm:$0xff]
        %v1814 = vld [vmem:[#allocation11 + $0x8] sm:$0xff]
        %v1815 = vld [vmem:[#allocation11 + $0x10] sm:$0xff]
        %v1816 = vld [vmem:[#allocation11 + $0x18] sm:$0xff]
        %v1817 = vld [vmem:[#allocation11 + $0x20] sm:$0xff]
        %v1818 = vld [vmem:[#allocation11 + $0x28] sm:$0xff]
        %v1819 = vld [vmem:[#allocation11 + $0x30] sm:$0xff]
        %v1820 = vld [vmem:[#allocation11 + $0x38] sm:$0xff]
        %v1821 = vld [vmem:[#allocation11 + $0x40] sm:$0xff]
        %v1822 = vld [vmem:[#allocation11 + $0x48] sm:$0xff]
        %v1823 = vld [vmem:[#allocation11 + $0x50] sm:$0xff]
        %v1824 = vld [vmem:[#allocation11 + $0x58] sm:$0xff]
        %v1825 = vld [vmem:[#allocation11 + $0x60] sm:$0xff]
        %v1826 = vld [vmem:[#allocation11 + $0x68] sm:$0xff]
        %v1827 = vld [vmem:[#allocation11 + $0x70] sm:$0xff]
        %v1828 = vld [vmem:[#allocation11 + $0x78] sm:$0xff]
        %v1829 = vld [vmem:[#allocation11 + $0x80] sm:$0xff]
        %v1830 = vld [vmem:[#allocation11 + $0x88] sm:$0xff]
        %v1831 = vld [vmem:[#allocation11 + $0x90] sm:$0xff]
        %v1832 = vld [vmem:[#allocation11 + $0x98] sm:$0xff]
        %v1833 = vld [vmem:[#allocation11 + $0xa0] sm:$0xff]
        %v1834 = vld [vmem:[#allocation11 + $0xa8] sm:$0xff]
        %v1835 = vld [vmem:[#allocation11 + $0xb0] sm:$0xff]
        %v1836 = vld [vmem:[#allocation11 + $0xb8] sm:$0xff]
        %v1837 = vld [vmem:[#allocation11 + $0xc0] sm:$0xff]
        %v1838 = vld [vmem:[#allocation11 + $0xc8] sm:$0xff]
        %v1839 = vld [vmem:[#allocation11 + $0xd0] sm:$0xff]
        %v1840 = vld [vmem:[#allocation11 + $0xd8] sm:$0xff]
        %v1841 = vld [vmem:[#allocation11 + $0xe0] sm:$0xff]
        %v1842 = vld [vmem:[#allocation11 + $0xe8] sm:$0xff]
        %v1843 = vld [vmem:[#allocation11 + $0xf0] sm:$0xff]
        %v1844 = vld [vmem:[#allocation11 + $0xf8] sm:$0xff]
        %v1845 = vld [vmem:[#allocation11 + $0x100] sm:$0xff]
        %v1846 = vld [vmem:[#allocation11 + $0x108] sm:$0xff]
        %v1847 = vld [vmem:[#allocation11 + $0x110] sm:$0xff]
        %v1848 = vld [vmem:[#allocation11 + $0x118] sm:$0xff]
        %v1849 = vld [vmem:[#allocation11 + $0x120] sm:$0xff]
        %v1850 = vld [vmem:[#allocation11 + $0x128] sm:$0xff]
        %v1851 = vld [vmem:[#allocation11 + $0x130] sm:$0xff]
        %v1852 = vld [vmem:[#allocation11 + $0x138] sm:$0xff]
        %v1853 = vld [vmem:[#allocation11 + $0x140] sm:$0xff]
        %v1854 = vld [vmem:[#allocation11 + $0x148] sm:$0xff]
        %v1855 = vld [vmem:[#allocation11 + $0x150] sm:$0xff]
        %v1856 = vld [vmem:[#allocation11 + $0x158] sm:$0xff]
        %v1857 = vld [vmem:[#allocation11 + $0x160] sm:$0xff]
        %v1858 = vld [vmem:[#allocation11 + $0x168] sm:$0xff]
        %v1859 = vld [vmem:[#allocation11 + $0x170] sm:$0xff]
        %v1860 = vld [vmem:[#allocation11 + $0x178] sm:$0xff]
        %v1861 = vld [vmem:[#allocation11 + $0x180] sm:$0xff]
        %v1862 = vld [vmem:[#allocation11 + $0x188] sm:$0xff]
        %v1863 = vld [vmem:[#allocation11 + $0x190] sm:$0xff]
        %v1864 = vld [vmem:[#allocation11 + $0x198] sm:$0xff]
        %v1865 = vld [vmem:[#allocation11 + $0x1a0] sm:$0xff]
        %v1866 = vld [vmem:[#allocation11 + $0x1a8] sm:$0xff]
        %v1867 = vld [vmem:[#allocation11 + $0x1b0] sm:$0xff]
        %v1868 = vld [vmem:[#allocation11 + $0x1b8] sm:$0xff]
        %v1869 = vld [vmem:[#allocation11 + $0x1c0] sm:$0xff]
        %v1870 = vld [vmem:[#allocation11 + $0x1c8] sm:$0xff]
        %v1871 = vld [vmem:[#allocation11 + $0x1d0] sm:$0xff]
        %v1872 = vld [vmem:[#allocation11 + $0x1d8] sm:$0xff]
        %v1873 = vld [vmem:[#allocation11 + $0x1e0] sm:$0xff]
        %v1874 = vld [vmem:[#allocation11 + $0x1e8] sm:$0xff]
        %v1875 = vld [vmem:[#allocation11 + $0x1f0] sm:$0xff]
        %v1876 = vld [vmem:[#allocation11 + $0x1f8] sm:$0xff]
        %v1877 = vld [vmem:[#allocation11 + $0x200] sm:$0xff]
        %v1878 = vld [vmem:[#allocation11 + $0x208] sm:$0xff]
        %v1879 = vld [vmem:[#allocation11 + $0x210] sm:$0xff]
        %v1880 = vld [vmem:[#allocation11 + $0x218] sm:$0xff]
        %v1881 = vld [vmem:[#allocation11 + $0x220] sm:$0xff]
        %v1882 = vld [vmem:[#allocation11 + $0x228] sm:$0xff]
        %v1883 = vld [vmem:[#allocation11 + $0x230] sm:$0xff]
        %v1884 = vld [vmem:[#allocation11 + $0x238] sm:$0xff]
        %v1885 = vld [vmem:[#allocation11 + $0x240] sm:$0xff]
        %v1886 = vld [vmem:[#allocation11 + $0x248] sm:$0xff]
        %v1887 = vld [vmem:[#allocation11 + $0x250] sm:$0xff]
        %v1888 = vld [vmem:[#allocation11 + $0x258] sm:$0xff]
        %v1889 = vld [vmem:[#allocation11 + $0x260] sm:$0xff]
        %v1890 = vld [vmem:[#allocation11 + $0x268] sm:$0xff]
        %v1891 = vld [vmem:[#allocation11 + $0x270] sm:$0xff]
        %v1892 = vld [vmem:[#allocation11 + $0x278] sm:$0xff]
        %v1893 = vld [vmem:[#allocation11 + $0x280] sm:$0xff]
        %v1894 = vld [vmem:[#allocation11 + $0x288] sm:$0xff]
        %v1895 = vld [vmem:[#allocation11 + $0x290] sm:$0xff]
        %v1896 = vld [vmem:[#allocation11 + $0x298] sm:$0xff]
        %v1897 = vld [vmem:[#allocation11 + $0x2a0] sm:$0xff]
        %v1898 = vld [vmem:[#allocation11 + $0x2a8] sm:$0xff]
        %v1899 = vld [vmem:[#allocation11 + $0x2b0] sm:$0xff]
        %v1900 = vld [vmem:[#allocation11 + $0x2b8] sm:$0xff]
        %v1901 = vld [vmem:[#allocation11 + $0x2c0] sm:$0xff]
        %v1902 = vld [vmem:[#allocation11 + $0x2c8] sm:$0xff]
        %v1903 = vld [vmem:[#allocation11 + $0x2d0] sm:$0xff]
        %v1904 = vld [vmem:[#allocation11 + $0x2d8] sm:$0xff]
        %v1905 = vld [vmem:[#allocation11 + $0x2e0] sm:$0xff]
        %v1906 = vld [vmem:[#allocation11 + $0x2e8] sm:$0xff]
        %v1907 = vld [vmem:[#allocation11 + $0x2f0] sm:$0xff]
        %v1908 = vld [vmem:[#allocation11 + $0x2f8] sm:$0xff]
        %v1909 = vld [vmem:[#allocation11 + $0x300] sm:$0xff]
        %v1910 = vld [vmem:[#allocation11 + $0x308] sm:$0xff]
        %v1911 = vld [vmem:[#allocation11 + $0x310] sm:$0xff]
        %v1912 = vld [vmem:[#allocation11 + $0x318] sm:$0xff]
        %v1913 = vld [vmem:[#allocation11 + $0x320] sm:$0xff]
        %v1914 = vld [vmem:[#allocation11 + $0x328] sm:$0xff]
        %v1915 = vld [vmem:[#allocation11 + $0x330] sm:$0xff]
        %v1916 = vld [vmem:[#allocation11 + $0x338] sm:$0xff]
        %v1917 = vld [vmem:[#allocation11 + $0x340] sm:$0xff]
        %v1918 = vld [vmem:[#allocation11 + $0x348] sm:$0xff]
        %v1919 = vld [vmem:[#allocation11 + $0x350] sm:$0xff]
        %v1920 = vld [vmem:[#allocation11 + $0x358] sm:$0xff]
        %v1921 = vld [vmem:[#allocation11 + $0x360] sm:$0xff]
        %v1922 = vld [vmem:[#allocation11 + $0x368] sm:$0xff]
        %v1923 = vld [vmem:[#allocation11 + $0x370] sm:$0xff]
        %v1924 = vld [vmem:[#allocation11 + $0x378] sm:$0xff]
        %v1925 = vld [vmem:[#allocation11 + $0x380] sm:$0xff]
        %v1926 = vld [vmem:[#allocation11 + $0x388] sm:$0xff]
        %v1927 = vld [vmem:[#allocation11 + $0x390] sm:$0xff]
        %v1928 = vld [vmem:[#allocation11 + $0x398] sm:$0xff]
        %v1929 = vld [vmem:[#allocation11 + $0x3a0] sm:$0xff]
        %v1930 = vld [vmem:[#allocation11 + $0x3a8] sm:$0xff]
        %v1931 = vld [vmem:[#allocation11 + $0x3b0] sm:$0xff]
        %v1932 = vld [vmem:[#allocation11 + $0x3b8] sm:$0xff]
        %v1933 = vld [vmem:[#allocation11 + $0x3c0] sm:$0xff]
        %v1934 = vld [vmem:[#allocation11 + $0x3c8] sm:$0xff]
        %v1935 = vld [vmem:[#allocation11 + $0x3d0] sm:$0xff]
        %v1936 = vld [vmem:[#allocation11 + $0x3d8] sm:$0xff]
        %v1937 = vld [vmem:[#allocation11 + $0x3e0] sm:$0xff]
        %v1938 = vld [vmem:[#allocation11 + $0x3e8] sm:$0xff]
        %v1939 = vld [vmem:[#allocation11 + $0x3f0] sm:$0xff]
        %v1940 = vld [vmem:[#allocation11 + $0x3f8] sm:$0xff]
        %v1941 = vld [vmem:[#allocation11 + $0x400] sm:$0xff]
        %v1942 = vld [vmem:[#allocation11 + $0x408] sm:$0xff]
        %v1943 = vld [vmem:[#allocation11 + $0x410] sm:$0xff]
        %v1944 = vld [vmem:[#allocation11 + $0x418] sm:$0xff]
        %v1945 = vld [vmem:[#allocation11 + $0x420] sm:$0xff]
        %v1946 = vld [vmem:[#allocation11 + $0x428] sm:$0xff]
        %v1947 = vld [vmem:[#allocation11 + $0x430] sm:$0xff]
        %v1948 = vld [vmem:[#allocation11 + $0x438] sm:$0xff]
        %v1949 = vld [vmem:[#allocation11 + $0x440] sm:$0xff]
        %v1950 = vld [vmem:[#allocation11 + $0x448] sm:$0xff]
        %v1951 = vld [vmem:[#allocation11 + $0x450] sm:$0xff]
        %v1952 = vld [vmem:[#allocation11 + $0x458] sm:$0xff]
        %v1953 = vld [vmem:[#allocation11 + $0x460] sm:$0xff]
        %v1954 = vld [vmem:[#allocation11 + $0x468] sm:$0xff]
        %v1955 = vld [vmem:[#allocation11 + $0x470] sm:$0xff]
        %v1956 = vld [vmem:[#allocation11 + $0x478] sm:$0xff]
        %v1957 = vld [vmem:[#allocation11 + $0x480] sm:$0xff]
        %v1958 = vld [vmem:[#allocation11 + $0x488] sm:$0xff]
        %v1959 = vld [vmem:[#allocation11 + $0x490] sm:$0xff]
        %v1960 = vld [vmem:[#allocation11 + $0x498] sm:$0xff]
        %v1961 = vld [vmem:[#allocation11 + $0x4a0] sm:$0xff]
        %v1962 = vld [vmem:[#allocation11 + $0x4a8] sm:$0xff]
        %v1963 = vld [vmem:[#allocation11 + $0x4b0] sm:$0xff]
        %v1964 = vld [vmem:[#allocation11 + $0x4b8] sm:$0xff]
        %v1965 = vld [vmem:[#allocation11 + $0x4c0] sm:$0xff]
        %v1966 = vld [vmem:[#allocation11 + $0x4c8] sm:$0xff]
        %v1967 = vld [vmem:[#allocation11 + $0x4d0] sm:$0xff]
        %v1968 = vld [vmem:[#allocation11 + $0x4d8] sm:$0xff]
        %v1969 = vld [vmem:[#allocation11 + $0x4e0] sm:$0xff]
        %v1970 = vld [vmem:[#allocation11 + $0x4e8] sm:$0xff]
        %v1971 = vld [vmem:[#allocation11 + $0x4f0] sm:$0xff]
        %v1972 = vld [vmem:[#allocation11 + $0x4f8] sm:$0xff]
        %v1973 = vld [vmem:[#allocation11 + $0x500] sm:$0xff]
        %v1974 = vld [vmem:[#allocation11 + $0x508] sm:$0xff]
        %v1975 = vld [vmem:[#allocation11 + $0x510] sm:$0xff]
        %v1976 = vld [vmem:[#allocation11 + $0x518] sm:$0xff]
        %v1977 = vld [vmem:[#allocation11 + $0x520] sm:$0xff]
        %v1978 = vld [vmem:[#allocation11 + $0x528] sm:$0xff]
        %v1979 = vld [vmem:[#allocation11 + $0x530] sm:$0xff]
        %v1980 = vld [vmem:[#allocation11 + $0x538] sm:$0xff]
        %v1981 = vld [vmem:[#allocation11 + $0x540] sm:$0xff]
        %v1982 = vld [vmem:[#allocation11 + $0x548] sm:$0xff]
        %v1983 = vld [vmem:[#allocation11 + $0x550] sm:$0xff]
        %v1984 = vld [vmem:[#allocation11 + $0x558] sm:$0xff]
        %v1985 = vld [vmem:[#allocation11 + $0x560] sm:$0xff]
        %v1986 = vld [vmem:[#allocation11 + $0x568] sm:$0xff]
        %v1987 = vld [vmem:[#allocation11 + $0x570] sm:$0xff]
        %v1988 = vld [vmem:[#allocation11 + $0x578] sm:$0xff]
        %v1989 = vld [vmem:[#allocation11 + $0x580] sm:$0xff]
        %v1990 = vld [vmem:[#allocation11 + $0x588] sm:$0xff]
        %v1991 = vld [vmem:[#allocation11 + $0x590] sm:$0xff]
        %v1992 = vld [vmem:[#allocation11 + $0x598] sm:$0xff]
        %v1993 = vld [vmem:[#allocation11 + $0x5a0] sm:$0xff]
        %v1994 = vld [vmem:[#allocation11 + $0x5a8] sm:$0xff]
        %v1995 = vld [vmem:[#allocation11 + $0x5b0] sm:$0xff]
        %v1996 = vld [vmem:[#allocation11 + $0x5b8] sm:$0xff]
        %v1997 = vld [vmem:[#allocation11 + $0x5c0] sm:$0xff]
        %v1998 = vld [vmem:[#allocation11 + $0x5c8] sm:$0xff]
        %v1999 = vld [vmem:[#allocation11 + $0x5d0] sm:$0xff]
        %v2000 = vld [vmem:[#allocation11 + $0x5d8] sm:$0xff]
        %v2001 = vld [vmem:[#allocation11 + $0x5e0] sm:$0xff]
        %v2002 = vld [vmem:[#allocation11 + $0x5e8] sm:$0xff]
        %v2003 = vld [vmem:[#allocation11 + $0x5f0] sm:$0xff]
        %v2004 = vld [vmem:[#allocation11 + $0x5f8] sm:$0xff]
        %v2005 = vld [vmem:[#allocation11 + $0x600] sm:$0xff]
        %v2006 = vld [vmem:[#allocation11 + $0x608] sm:$0xff]
        %v2007 = vld [vmem:[#allocation11 + $0x610] sm:$0xff]
        %v2008 = vld [vmem:[#allocation11 + $0x618] sm:$0xff]
        %v2009 = vld [vmem:[#allocation11 + $0x620] sm:$0xff]
        %v2010 = vld [vmem:[#allocation11 + $0x628] sm:$0xff]
        %v2011 = vld [vmem:[#allocation11 + $0x630] sm:$0xff]
        %v2012 = vld [vmem:[#allocation11 + $0x638] sm:$0xff]
        %v2013 = vld [vmem:[#allocation11 + $0x640] sm:$0xff]
        %v2014 = vld [vmem:[#allocation11 + $0x648] sm:$0xff]
        %v2015 = vld [vmem:[#allocation11 + $0x650] sm:$0xff]
        %v2016 = vld [vmem:[#allocation11 + $0x658] sm:$0xff]
        %v2017 = vld [vmem:[#allocation11 + $0x660] sm:$0xff]
        %v2018 = vld [vmem:[#allocation11 + $0x668] sm:$0xff]
        %v2019 = vld [vmem:[#allocation11 + $0x670] sm:$0xff]
        %v2020 = vld [vmem:[#allocation11 + $0x678] sm:$0xff]
        %v2021 = vld [vmem:[#allocation11 + $0x680] sm:$0xff]
        %v2022 = vld [vmem:[#allocation11 + $0x688] sm:$0xff]
        %v2023 = vld [vmem:[#allocation11 + $0x690] sm:$0xff]
        %v2024 = vld [vmem:[#allocation11 + $0x698] sm:$0xff]
        %v2025 = vld [vmem:[#allocation11 + $0x6a0] sm:$0xff]
        %v2026 = vld [vmem:[#allocation11 + $0x6a8] sm:$0xff]
        %v2027 = vld [vmem:[#allocation11 + $0x6b0] sm:$0xff]
        %v2028 = vld [vmem:[#allocation11 + $0x6b8] sm:$0xff]
        %v2029 = vld [vmem:[#allocation11 + $0x6c0] sm:$0xff]
        %v2030 = vld [vmem:[#allocation11 + $0x6c8] sm:$0xff]
        %v2031 = vld [vmem:[#allocation11 + $0x6d0] sm:$0xff]
        %v2032 = vld [vmem:[#allocation11 + $0x6d8] sm:$0xff]
        %v2033 = vld [vmem:[#allocation11 + $0x6e0] sm:$0xff]
        %v2034 = vld [vmem:[#allocation11 + $0x6e8] sm:$0xff]
        %v2035 = vld [vmem:[#allocation11 + $0x6f0] sm:$0xff]
        %v2036 = vld [vmem:[#allocation11 + $0x6f8] sm:$0xff]
        %v2037 = vld [vmem:[#allocation11 + $0x700] sm:$0xff]
        %v2038 = vld [vmem:[#allocation11 + $0x708] sm:$0xff]
        %v2039 = vld [vmem:[#allocation11 + $0x710] sm:$0xff]
        %v2040 = vld [vmem:[#allocation11 + $0x718] sm:$0xff]
        %v2041 = vld [vmem:[#allocation11 + $0x720] sm:$0xff]
        %v2042 = vld [vmem:[#allocation11 + $0x728] sm:$0xff]
        %v2043 = vld [vmem:[#allocation11 + $0x730] sm:$0xff]
        %v2044 = vld [vmem:[#allocation11 + $0x738] sm:$0xff]
        %v2045 = vld [vmem:[#allocation11 + $0x740] sm:$0xff]
        %v2046 = vld [vmem:[#allocation11 + $0x748] sm:$0xff]
        %v2047 = vld [vmem:[#allocation11 + $0x750] sm:$0xff]
        %v2048 = vld [vmem:[#allocation11 + $0x758] sm:$0xff]
        %v2049 = vld [vmem:[#allocation11 + $0x760] sm:$0xff]
        %v2050 = vld [vmem:[#allocation11 + $0x768] sm:$0xff]
        %v2051 = vld [vmem:[#allocation11 + $0x770] sm:$0xff]
        %v2052 = vld [vmem:[#allocation11 + $0x778] sm:$0xff]
        %v2053 = vld [vmem:[#allocation11 + $0x780] sm:$0xff]
        %v2054 = vld [vmem:[#allocation11 + $0x788] sm:$0xff]
        %v2055 = vld [vmem:[#allocation11 + $0x790] sm:$0xff]
        %v2056 = vld [vmem:[#allocation11 + $0x798] sm:$0xff]
        %v2057 = vld [vmem:[#allocation11 + $0x7a0] sm:$0xff]
        %v2058 = vld [vmem:[#allocation11 + $0x7a8] sm:$0xff]
        %v2059 = vld [vmem:[#allocation11 + $0x7b0] sm:$0xff]
        %v2060 = vld [vmem:[#allocation11 + $0x7b8] sm:$0xff]
        %v2061 = vld [vmem:[#allocation11 + $0x7c0] sm:$0xff]
        %v2062 = vld [vmem:[#allocation11 + $0x7c8] sm:$0xff]
        %v2063 = vld [vmem:[#allocation11 + $0x7d0] sm:$0xff]
        %v2064 = vld [vmem:[#allocation11 + $0x7d8] sm:$0xff]
        %v2065 = vld [vmem:[#allocation11 + $0x7e0] sm:$0xff]
        %v2066 = vld [vmem:[#allocation11 + $0x7e8] sm:$0xff]
        %v2067 = vld [vmem:[#allocation11 + $0x7f0] sm:$0xff]
        %v2068 = vld [vmem:[#allocation11 + $0x7f8] sm:$0xff]
        %v2069 = vld [vmem:[#allocation11 + $0x800] sm:$0xff]
        %v2070 = vld [vmem:[#allocation11 + $0x808] sm:$0xff]
        %v2071 = vld [vmem:[#allocation11 + $0x810] sm:$0xff]
        %v2072 = vld [vmem:[#allocation11 + $0x818] sm:$0xff]
        %v2073 = vld [vmem:[#allocation11 + $0x820] sm:$0xff]
        %v2074 = vld [vmem:[#allocation11 + $0x828] sm:$0xff]
        %v2075 = vld [vmem:[#allocation11 + $0x830] sm:$0xff]
        %v2076 = vld [vmem:[#allocation11 + $0x838] sm:$0xff]
        %v2077 = vld [vmem:[#allocation11 + $0x840] sm:$0xff]
        %v2078 = vld [vmem:[#allocation11 + $0x848] sm:$0xff]
        %v2079 = vld [vmem:[#allocation11 + $0x850] sm:$0xff]
        %v2080 = vld [vmem:[#allocation11 + $0x858] sm:$0xff]
        %v2081 = vld [vmem:[#allocation11 + $0x860] sm:$0xff]
        %v2082 = vld [vmem:[#allocation11 + $0x868] sm:$0xff]
        %v2083 = vld [vmem:[#allocation11 + $0x870] sm:$0xff]
        %v2084 = vld [vmem:[#allocation11 + $0x878] sm:$0xff]
        %v2085 = vld [vmem:[#allocation11 + $0x880] sm:$0xff]
        %v2086 = vld [vmem:[#allocation11 + $0x888] sm:$0xff]
        %v2087 = vld [vmem:[#allocation11 + $0x890] sm:$0xff]
        %v2088 = vld [vmem:[#allocation11 + $0x898] sm:$0xff]
        %v2089 = vld [vmem:[#allocation11 + $0x8a0] sm:$0xff]
        %v2090 = vld [vmem:[#allocation11 + $0x8a8] sm:$0xff]
        %v2091 = vld [vmem:[#allocation11 + $0x8b0] sm:$0xff]
        %v2092 = vld [vmem:[#allocation11 + $0x8b8] sm:$0xff]
        %v2093 = vld [vmem:[#allocation11 + $0x8c0] sm:$0xff]
        %v2094 = vld [vmem:[#allocation11 + $0x8c8] sm:$0xff]
        %v2095 = vld [vmem:[#allocation11 + $0x8d0] sm:$0xff]
        %v2096 = vld [vmem:[#allocation11 + $0x8d8] sm:$0xff]
        %v2097 = vld [vmem:[#allocation11 + $0x8e0] sm:$0xff]
        %v2098 = vld [vmem:[#allocation11 + $0x8e8] sm:$0xff]
        %v2099 = vld [vmem:[#allocation11 + $0x8f0] sm:$0xff]
        %v2100 = vld [vmem:[#allocation11 + $0x8f8] sm:$0xff]
        %v2101 = vld [vmem:[#allocation11 + $0x900] sm:$0xff]
        %v2102 = vld [vmem:[#allocation11 + $0x908] sm:$0xff]
        %v2103 = vld [vmem:[#allocation11 + $0x910] sm:$0xff]
        %v2104 = vld [vmem:[#allocation11 + $0x918] sm:$0xff]
        %v2105 = vld [vmem:[#allocation11 + $0x920] sm:$0xff]
        %v2106 = vld [vmem:[#allocation11 + $0x928] sm:$0xff]
        %v2107 = vld [vmem:[#allocation11 + $0x930] sm:$0xff]
        %v2108 = vld [vmem:[#allocation11 + $0x938] sm:$0xff]
        %v2109 = vld [vmem:[#allocation11 + $0x940] sm:$0xff]
        %v2110 = vld [vmem:[#allocation11 + $0x948] sm:$0xff]
        %v2111 = vld [vmem:[#allocation11 + $0x950] sm:$0xff]
        %v2112 = vld [vmem:[#allocation11 + $0x958] sm:$0xff]
        %v2113 = vld [vmem:[#allocation11 + $0x960] sm:$0xff]
        %v2114 = vld [vmem:[#allocation11 + $0x968] sm:$0xff]
        %v2115 = vld [vmem:[#allocation11 + $0x970] sm:$0xff]
        %v2116 = vld [vmem:[#allocation11 + $0x978] sm:$0xff]
        %v2117 = vld [vmem:[#allocation11 + $0x980] sm:$0xff]
        %v2118 = vld [vmem:[#allocation11 + $0x988] sm:$0xff]
        %v2119 = vld [vmem:[#allocation11 + $0x990] sm:$0xff]
        %v2120 = vld [vmem:[#allocation11 + $0x998] sm:$0xff]
        %v2121 = vld [vmem:[#allocation11 + $0x9a0] sm:$0xff]
        %v2122 = vld [vmem:[#allocation11 + $0x9a8] sm:$0xff]
        %v2123 = vld [vmem:[#allocation11 + $0x9b0] sm:$0xff]
        %v2124 = vld [vmem:[#allocation11 + $0x9b8] sm:$0xff]
        %v2125 = vld [vmem:[#allocation11 + $0x9c0] sm:$0xff]
        %v2126 = vld [vmem:[#allocation11 + $0x9c8] sm:$0xff]
        %v2127 = vld [vmem:[#allocation11 + $0x9d0] sm:$0xff]
        %v2128 = vld [vmem:[#allocation11 + $0x9d8] sm:$0xff]
        %v2129 = vld [vmem:[#allocation11 + $0x9e0] sm:$0xff]
        %v2130 = vld [vmem:[#allocation11 + $0x9e8] sm:$0xff]
        %v2131 = vld [vmem:[#allocation11 + $0x9f0] sm:$0xff]
        %v2132 = vld [vmem:[#allocation11 + $0x9f8] sm:$0xff]
        %v2133 = vld [vmem:[#allocation11 + $0xa00] sm:$0xff]
        %v2134 = vld [vmem:[#allocation11 + $0xa08] sm:$0xff]
        %v2135 = vld [vmem:[#allocation11 + $0xa10] sm:$0xff]
        %v2136 = vld [vmem:[#allocation11 + $0xa18] sm:$0xff]
        %v2137 = vld [vmem:[#allocation11 + $0xa20] sm:$0xff]
        %v2138 = vld [vmem:[#allocation11 + $0xa28] sm:$0xff]
        %v2139 = vld [vmem:[#allocation11 + $0xa30] sm:$0xff]
        %v2140 = vld [vmem:[#allocation11 + $0xa38] sm:$0xff]
        %v2141 = vld [vmem:[#allocation11 + $0xa40] sm:$0xff]
        %v2142 = vld [vmem:[#allocation11 + $0xa48] sm:$0xff]
        %v2143 = vld [vmem:[#allocation11 + $0xa50] sm:$0xff]
        %v2144 = vld [vmem:[#allocation11 + $0xa58] sm:$0xff]
        %v2145 = vld [vmem:[#allocation11 + $0xa60] sm:$0xff]
        %v2146 = vld [vmem:[#allocation11 + $0xa68] sm:$0xff]
        %v2147 = vld [vmem:[#allocation11 + $0xa70] sm:$0xff]
        %v2148 = vld [vmem:[#allocation11 + $0xa78] sm:$0xff]
        %v2149 = vld [vmem:[#allocation11 + $0xa80] sm:$0xff]
        %v2150 = vld [vmem:[#allocation11 + $0xa88] sm:$0xff]
        %v2151 = vld [vmem:[#allocation11 + $0xa90] sm:$0xff]
        %v2152 = vld [vmem:[#allocation11 + $0xa98] sm:$0xff]
        %v2153 = vld [vmem:[#allocation11 + $0xaa0] sm:$0xff]
        %v2154 = vld [vmem:[#allocation11 + $0xaa8] sm:$0xff]
        %v2155 = vld [vmem:[#allocation11 + $0xab0] sm:$0xff]
        %v2156 = vld [vmem:[#allocation11 + $0xab8] sm:$0xff]
        %v2157 = vld [vmem:[#allocation11 + $0xac0] sm:$0xff]
        %v2158 = vld [vmem:[#allocation11 + $0xac8] sm:$0xff]
        %v2159 = vld [vmem:[#allocation11 + $0xad0] sm:$0xff]
        %v2160 = vld [vmem:[#allocation11 + $0xad8] sm:$0xff]
        %v2161 = vld [vmem:[#allocation11 + $0xae0] sm:$0xff]
        %v2162 = vld [vmem:[#allocation11 + $0xae8] sm:$0xff]
        %v2163 = vld [vmem:[#allocation11 + $0xaf0] sm:$0xff]
        %v2164 = vld [vmem:[#allocation11 + $0xaf8] sm:$0xff]
        %v2165 = vld [vmem:[#allocation11 + $0xb00] sm:$0xff]
        %v2166 = vld [vmem:[#allocation11 + $0xb08] sm:$0xff]
        %v2167 = vld [vmem:[#allocation11 + $0xb10] sm:$0xff]
        %v2168 = vld [vmem:[#allocation11 + $0xb18] sm:$0xff]
        %v2169 = vld [vmem:[#allocation11 + $0xb20] sm:$0xff]
        %v2170 = vld [vmem:[#allocation11 + $0xb28] sm:$0xff]
        %v2171 = vld [vmem:[#allocation11 + $0xb30] sm:$0xff]
        %v2172 = vld [vmem:[#allocation11 + $0xb38] sm:$0xff]
        %v2173 = vld [vmem:[#allocation11 + $0xb40] sm:$0xff]
        %v2174 = vld [vmem:[#allocation11 + $0xb48] sm:$0xff]
        %v2175 = vld [vmem:[#allocation11 + $0xb50] sm:$0xff]
        %v2176 = vld [vmem:[#allocation11 + $0xb58] sm:$0xff]
        %v2177 = vld [vmem:[#allocation11 + $0xb60] sm:$0xff]
        %v2178 = vld [vmem:[#allocation11 + $0xb68] sm:$0xff]
        %v2179 = vld [vmem:[#allocation11 + $0xb70] sm:$0xff]
        %v2180 = vld [vmem:[#allocation11 + $0xb78] sm:$0xff]
        %v2181 = vld [vmem:[#allocation11 + $0xb80] sm:$0xff]
        %v2182 = vld [vmem:[#allocation11 + $0xb88] sm:$0xff]
        %v2183 = vld [vmem:[#allocation11 + $0xb90] sm:$0xff]
        %v2184 = vld [vmem:[#allocation11 + $0xb98] sm:$0xff]
        %v2185 = vld [vmem:[#allocation11 + $0xba0] sm:$0xff]
        %v2186 = vld [vmem:[#allocation11 + $0xba8] sm:$0xff]
        %v2187 = vld [vmem:[#allocation11 + $0xbb0] sm:$0xff]
        %v2188 = vld [vmem:[#allocation11 + $0xbb8] sm:$0xff]
        %v2189 = vld [vmem:[#allocation11 + $0xbc0] sm:$0xff]
        %v2190 = vld [vmem:[#allocation11 + $0xbc8] sm:$0xff]
        %v2191 = vld [vmem:[#allocation11 + $0xbd0] sm:$0xff]
        %v2192 = vld [vmem:[#allocation11 + $0xbd8] sm:$0xff]
        %v2193 = vld [vmem:[#allocation11 + $0xbe0] sm:$0xff]
        %v2194 = vld [vmem:[#allocation11 + $0xbe8] sm:$0xff]
        %v2195 = vld [vmem:[#allocation11 + $0xbf0] sm:$0xff]
        %v2196 = vld [vmem:[#allocation11 + $0xbf8] sm:$0xff]
        %v2197 = vld [vmem:[#allocation11 + $0xc00] sm:$0xff]
        %v2198 = vld [vmem:[#allocation11 + $0xc08] sm:$0xff]
        %v2199 = vld [vmem:[#allocation11 + $0xc10] sm:$0xff]
        %v2200 = vld [vmem:[#allocation11 + $0xc18] sm:$0xff]
        %v2201 = vld [vmem:[#allocation11 + $0xc20] sm:$0xff]
        %v2202 = vld [vmem:[#allocation11 + $0xc28] sm:$0xff]
        %v2203 = vld [vmem:[#allocation11 + $0xc30] sm:$0xff]
        %v2204 = vld [vmem:[#allocation11 + $0xc38] sm:$0xff]
        %v2205 = vld [vmem:[#allocation11 + $0xc40] sm:$0xff]
        %v2206 = vld [vmem:[#allocation11 + $0xc48] sm:$0xff]
        %v2207 = vld [vmem:[#allocation11 + $0xc50] sm:$0xff]
        %v2208 = vld [vmem:[#allocation11 + $0xc58] sm:$0xff]
        %v2209 = vld [vmem:[#allocation11 + $0xc60] sm:$0xff]
        %v2210 = vld [vmem:[#allocation11 + $0xc68] sm:$0xff]
        %v2211 = vld [vmem:[#allocation11 + $0xc70] sm:$0xff]
        %v2212 = vld [vmem:[#allocation11 + $0xc78] sm:$0xff]
        %v2213 = vld [vmem:[#allocation11 + $0xc80] sm:$0xff]
        %v2214 = vld [vmem:[#allocation11 + $0xc88] sm:$0xff]
        %v2215 = vld [vmem:[#allocation11 + $0xc90] sm:$0xff]
        %v2216 = vld [vmem:[#allocation11 + $0xc98] sm:$0xff]
        %v2217 = vld [vmem:[#allocation11 + $0xca0] sm:$0xff]
        %v2218 = vld [vmem:[#allocation11 + $0xca8] sm:$0xff]
        %v2219 = vld [vmem:[#allocation11 + $0xcb0] sm:$0xff]
        %v2220 = vld [vmem:[#allocation11 + $0xcb8] sm:$0xff]
        %v2221 = vld [vmem:[#allocation11 + $0xcc0] sm:$0xff]
        %v2222 = vld [vmem:[#allocation11 + $0xcc8] sm:$0xff]
        %v2223 = vld [vmem:[#allocation11 + $0xcd0] sm:$0xff]
        %v2224 = vld [vmem:[#allocation11 + $0xcd8] sm:$0xff]
        %v2225 = vld [vmem:[#allocation11 + $0xce0] sm:$0xff]
        %v2226 = vld [vmem:[#allocation11 + $0xce8] sm:$0xff]
        %v2227 = vld [vmem:[#allocation11 + $0xcf0] sm:$0xff]
        %v2228 = vld [vmem:[#allocation11 + $0xcf8] sm:$0xff]
        %v2229 = vld [vmem:[#allocation11 + $0xd00] sm:$0xff]
        %v2230 = vld [vmem:[#allocation11 + $0xd08] sm:$0xff]
        %v2231 = vld [vmem:[#allocation11 + $0xd10] sm:$0xff]
        %v2232 = vld [vmem:[#allocation11 + $0xd18] sm:$0xff]
        %v2233 = vld [vmem:[#allocation11 + $0xd20] sm:$0xff]
        %v2234 = vld [vmem:[#allocation11 + $0xd28] sm:$0xff]
        %v2235 = vld [vmem:[#allocation11 + $0xd30] sm:$0xff]
        %v2236 = vld [vmem:[#allocation11 + $0xd38] sm:$0xff]
        %v2237 = vld [vmem:[#allocation11 + $0xd40] sm:$0xff]
        %v2238 = vld [vmem:[#allocation11 + $0xd48] sm:$0xff]
        %v2239 = vld [vmem:[#allocation11 + $0xd50] sm:$0xff]
        %v2240 = vld [vmem:[#allocation11 + $0xd58] sm:$0xff]
        %v2241 = vld [vmem:[#allocation11 + $0xd60] sm:$0xff]
        %v2242 = vld [vmem:[#allocation11 + $0xd68] sm:$0xff]
        %v2243 = vld [vmem:[#allocation11 + $0xd70] sm:$0xff]
        %v2244 = vld [vmem:[#allocation11 + $0xd78] sm:$0xff]
        %v2245 = vld [vmem:[#allocation11 + $0xd80] sm:$0xff]
        %v2246 = vld [vmem:[#allocation11 + $0xd88] sm:$0xff]
        %v2247 = vld [vmem:[#allocation11 + $0xd90] sm:$0xff]
        %v2248 = vld [vmem:[#allocation11 + $0xd98] sm:$0xff]
        %v2249 = vld [vmem:[#allocation11 + $0xda0] sm:$0xff]
        %v2250 = vld [vmem:[#allocation11 + $0xda8] sm:$0xff]
        %v2251 = vld [vmem:[#allocation11 + $0xdb0] sm:$0xff]
        %v2252 = vld [vmem:[#allocation11 + $0xdb8] sm:$0xff]
        %v2253 = vld [vmem:[#allocation11 + $0xdc0] sm:$0xff]
        %v2254 = vld [vmem:[#allocation11 + $0xdc8] sm:$0xff]
        %v2255 = vld [vmem:[#allocation11 + $0xdd0] sm:$0xff]
        %v2256 = vld [vmem:[#allocation11 + $0xdd8] sm:$0xff]
        %v2257 = vld [vmem:[#allocation11 + $0xde0] sm:$0xff]
        %v2258 = vld [vmem:[#allocation11 + $0xde8] sm:$0xff]
        %v2259 = vld [vmem:[#allocation11 + $0xdf0] sm:$0xff]
        %v2260 = vld [vmem:[#allocation11 + $0xdf8] sm:$0xff]
        %v2261 = vld [vmem:[#allocation11 + $0xe00] sm:$0xff]
        %v2262 = vld [vmem:[#allocation11 + $0xe08] sm:$0xff]
        %v2263 = vld [vmem:[#allocation11 + $0xe10] sm:$0xff]
        %v2264 = vld [vmem:[#allocation11 + $0xe18] sm:$0xff]
        %v2265 = vld [vmem:[#allocation11 + $0xe20] sm:$0xff]
        %v2266 = vld [vmem:[#allocation11 + $0xe28] sm:$0xff]
        %v2267 = vld [vmem:[#allocation11 + $0xe30] sm:$0xff]
        %v2268 = vld [vmem:[#allocation11 + $0xe38] sm:$0xff]
        %v2269 = vld [vmem:[#allocation11 + $0xe40] sm:$0xff]
        %v2270 = vld [vmem:[#allocation11 + $0xe48] sm:$0xff]
        %v2271 = vld [vmem:[#allocation11 + $0xe50] sm:$0xff]
        %v2272 = vld [vmem:[#allocation11 + $0xe58] sm:$0xff]
        %v2273 = vld [vmem:[#allocation11 + $0xe60] sm:$0xff]
        %v2274 = vld [vmem:[#allocation11 + $0xe68] sm:$0xff]
        %v2275 = vld [vmem:[#allocation11 + $0xe70] sm:$0xff]
        %v2276 = vld [vmem:[#allocation11 + $0xe78] sm:$0xff]
        %v2277 = vld [vmem:[#allocation11 + $0xe80] sm:$0xff]
        %v2278 = vld [vmem:[#allocation11 + $0xe88] sm:$0xff]
        %v2279 = vld [vmem:[#allocation11 + $0xe90] sm:$0xff]
        %v2280 = vld [vmem:[#allocation11 + $0xe98] sm:$0xff]
        %v2281 = vld [vmem:[#allocation11 + $0xea0] sm:$0xff]
        %v2282 = vld [vmem:[#allocation11 + $0xea8] sm:$0xff]
        %v2283 = vld [vmem:[#allocation11 + $0xeb0] sm:$0xff]
        %v2284 = vld [vmem:[#allocation11 + $0xeb8] sm:$0xff]
        %v2285 = vld [vmem:[#allocation11 + $0xec0] sm:$0xff]
        %v2286 = vld [vmem:[#allocation11 + $0xec8] sm:$0xff]
        %v2287 = vld [vmem:[#allocation11 + $0xed0] sm:$0xff]
        %v2288 = vld [vmem:[#allocation11 + $0xed8] sm:$0xff]
        %v2289 = vld [vmem:[#allocation11 + $0xee0] sm:$0xff]
        %v2290 = vld [vmem:[#allocation11 + $0xee8] sm:$0xff]
        %v2291 = vld [vmem:[#allocation11 + $0xef0] sm:$0xff]
        %v2292 = vld [vmem:[#allocation11 + $0xef8] sm:$0xff]
        %v2293 = vld [vmem:[#allocation11 + $0xf00] sm:$0xff]
        %v2294 = vld [vmem:[#allocation11 + $0xf08] sm:$0xff]
        %v2295 = vld [vmem:[#allocation11 + $0xf10] sm:$0xff]
        %v2296 = vld [vmem:[#allocation11 + $0xf18] sm:$0xff]
        %v2297 = vld [vmem:[#allocation11 + $0xf20] sm:$0xff]
        %v2298 = vld [vmem:[#allocation11 + $0xf28] sm:$0xff]
        %v2299 = vld [vmem:[#allocation11 + $0xf30] sm:$0xff]
        %v2300 = vld [vmem:[#allocation11 + $0xf38] sm:$0xff]
        %v2301 = vld [vmem:[#allocation11 + $0xf40] sm:$0xff]
        %v2302 = vld [vmem:[#allocation11 + $0xf48] sm:$0xff]
        %v2303 = vld [vmem:[#allocation11 + $0xf50] sm:$0xff]
        %v2304 = vld [vmem:[#allocation11 + $0xf58] sm:$0xff]
        %v2305 = vld [vmem:[#allocation11 + $0xf60] sm:$0xff]
        %v2306 = vld [vmem:[#allocation11 + $0xf68] sm:$0xff]
        %v2307 = vld [vmem:[#allocation11 + $0xf70] sm:$0xff]
        %v2308 = vld [vmem:[#allocation11 + $0xf78] sm:$0xff]
        %v2309 = vld [vmem:[#allocation11 + $0xf80] sm:$0xff]
        %v2310 = vld [vmem:[#allocation11 + $0xf88] sm:$0xff]
        %v2311 = vld [vmem:[#allocation11 + $0xf90] sm:$0xff]
        %v2312 = vld [vmem:[#allocation11 + $0xf98] sm:$0xff]
        %v2313 = vld [vmem:[#allocation11 + $0xfa0] sm:$0xff]
        %v2314 = vld [vmem:[#allocation11 + $0xfa8] sm:$0xff]
        %v2315 = vld [vmem:[#allocation11 + $0xfb0] sm:$0xff]
        %v2316 = vld [vmem:[#allocation11 + $0xfb8] sm:$0xff]
        %v2317 = vld [vmem:[#allocation11 + $0xfc0] sm:$0xff]
        %v2318 = vld [vmem:[#allocation11 + $0xfc8] sm:$0xff]
        %v2319 = vld [vmem:[#allocation11 + $0xfd0] sm:$0xff]
        %v2320 = vld [vmem:[#allocation11 + $0xfd8] sm:$0xff]
        %v2321 = vld [vmem:[#allocation11 + $0xfe0] sm:$0xff]
        %v2322 = vld [vmem:[#allocation11 + $0xfe8] sm:$0xff]
        %v2323 = vld [vmem:[#allocation11 + $0xff0] sm:$0xff]
        %v2324 = vld [vmem:[#allocation11 + $0xff8] sm:$0xff]
        %v2325 = vld [vmem:[#allocation13] sm:$0xff]
        %v2327 = vlaneseq
        %v2328 = vshrl.u32 %v2327, 7
        %v2329 = vsub.s32 0, %v2328
        %v2330 = vrot.slane %v2325, %v2329
        %v2331 = vlaneseq
        %v2332 = vshrl.u32 %v2331, 7
        %v2333 = vsub.s32 1, %v2332
        %v2334 = vrot.slane %v2325, %v2333
        %v2335 = vlaneseq
        %v2336 = vshrl.u32 %v2335, 7
        %v2337 = vsub.s32 2, %v2336
        %v2338 = vrot.slane %v2325, %v2337
        %v2339 = vlaneseq
        %v2340 = vshrl.u32 %v2339, 7
        %v2341 = vsub.s32 3, %v2340
        %v2342 = vrot.slane %v2325, %v2341
        %v2343 = vlaneseq
        %v2344 = vshrl.u32 %v2343, 7
        %v2345 = vsub.s32 4, %v2344
        %v2346 = vrot.slane %v2325, %v2345
        %v2347 = vlaneseq
        %v2348 = vshrl.u32 %v2347, 7
        %v2349 = vsub.s32 5, %v2348
        %v2350 = vrot.slane %v2325, %v2349
        %v2351 = vlaneseq
        %v2352 = vshrl.u32 %v2351, 7
        %v2353 = vsub.s32 6, %v2352
        %v2354 = vrot.slane %v2325, %v2353
        %v2355 = vlaneseq
        %v2356 = vshrl.u32 %v2355, 7
        %v2357 = vsub.s32 7, %v2356
        %v2358 = vrot.slane %v2325, %v2357
        %v2879 = vunpack.c.l.b16 %v1813
        %v2880 = vunpack.c.h.b16 %v1813
        %v2881 = vunpack.c.l.b16 %v1814
        %v2882 = vunpack.c.h.b16 %v1814
        %v2883 = vunpack.c.l.b16 %v1815
        %v2884 = vunpack.c.h.b16 %v1815
        %v2885 = vunpack.c.l.b16 %v1816
        %v2886 = vunpack.c.h.b16 %v1816
        %v2887 = vunpack.c.l.b16 %v1817
        %v2888 = vunpack.c.h.b16 %v1817
        %v2889 = vunpack.c.l.b16 %v1818
        %v2890 = vunpack.c.h.b16 %v1818
        %v2891 = vunpack.c.l.b16 %v1819
        %v2892 = vunpack.c.h.b16 %v1819
        %v2893 = vunpack.c.l.b16 %v1820
        %v2894 = vunpack.c.h.b16 %v1820
        %v2895 = vunpack.c.l.b16 %v1821
        %v2896 = vunpack.c.h.b16 %v1821
        %v2897 = vunpack.c.l.b16 %v1822
        %v2898 = vunpack.c.h.b16 %v1822
        %v2899 = vunpack.c.l.b16 %v1823
        %v2900 = vunpack.c.h.b16 %v1823
        %v2901 = vunpack.c.l.b16 %v1824
        %v2902 = vunpack.c.h.b16 %v1824
        %v2903 = vunpack.c.l.b16 %v1825
        %v2904 = vunpack.c.h.b16 %v1825
        %v2905 = vunpack.c.l.b16 %v1826
        %v2906 = vunpack.c.h.b16 %v1826
        %v2907 = vunpack.c.l.b16 %v1827
        %v2908 = vunpack.c.h.b16 %v1827
        %v2909 = vunpack.c.l.b16 %v1828
        %v2910 = vunpack.c.h.b16 %v1828
        %v2911 = vunpack.c.l.b16 %v1829
        %v2912 = vunpack.c.h.b16 %v1829
        %v2913 = vunpack.c.l.b16 %v1830
        %v2914 = vunpack.c.h.b16 %v1830
        %v2915 = vunpack.c.l.b16 %v1831
        %v2916 = vunpack.c.h.b16 %v1831
        %v2917 = vunpack.c.l.b16 %v1832
        %v2918 = vunpack.c.h.b16 %v1832
        %v2919 = vunpack.c.l.b16 %v1833
        %v2920 = vunpack.c.h.b16 %v1833
        %v2921 = vunpack.c.l.b16 %v1834
        %v2922 = vunpack.c.h.b16 %v1834
        %v2923 = vunpack.c.l.b16 %v1835
        %v2924 = vunpack.c.h.b16 %v1835
        %v2925 = vunpack.c.l.b16 %v1836
        %v2926 = vunpack.c.h.b16 %v1836
        %v2927 = vunpack.c.l.b16 %v1837
        %v2928 = vunpack.c.h.b16 %v1837
        %v2929 = vunpack.c.l.b16 %v1838
        %v2930 = vunpack.c.h.b16 %v1838
        %v2931 = vunpack.c.l.b16 %v1839
        %v2932 = vunpack.c.h.b16 %v1839
        %v2933 = vunpack.c.l.b16 %v1840
        %v2934 = vunpack.c.h.b16 %v1840
        %v2935 = vunpack.c.l.b16 %v1841
        %v2936 = vunpack.c.h.b16 %v1841
        %v2937 = vunpack.c.l.b16 %v1842
        %v2938 = vunpack.c.h.b16 %v1842
        %v2939 = vunpack.c.l.b16 %v1843
        %v2940 = vunpack.c.h.b16 %v1843
        %v2941 = vunpack.c.l.b16 %v1844
        %v2942 = vunpack.c.h.b16 %v1844
        %v2943 = vunpack.c.l.b16 %v1845
        %v2944 = vunpack.c.h.b16 %v1845
        %v2945 = vunpack.c.l.b16 %v1846
        %v2946 = vunpack.c.h.b16 %v1846
        %v2947 = vunpack.c.l.b16 %v1847
        %v2948 = vunpack.c.h.b16 %v1847
        %v2949 = vunpack.c.l.b16 %v1848
        %v2950 = vunpack.c.h.b16 %v1848
        %v2951 = vunpack.c.l.b16 %v1849
        %v2952 = vunpack.c.h.b16 %v1849
        %v2953 = vunpack.c.l.b16 %v1850
        %v2954 = vunpack.c.h.b16 %v1850
        %v2955 = vunpack.c.l.b16 %v1851
        %v2956 = vunpack.c.h.b16 %v1851
        %v2957 = vunpack.c.l.b16 %v1852
        %v2958 = vunpack.c.h.b16 %v1852
        %v2959 = vunpack.c.l.b16 %v1853
        %v2960 = vunpack.c.h.b16 %v1853
        %v2961 = vunpack.c.l.b16 %v1854
        %v2962 = vunpack.c.h.b16 %v1854
        %v2963 = vunpack.c.l.b16 %v1855
        %v2964 = vunpack.c.h.b16 %v1855
        %v2965 = vunpack.c.l.b16 %v1856
        %v2966 = vunpack.c.h.b16 %v1856
        %v2967 = vunpack.c.l.b16 %v1857
        %v2968 = vunpack.c.h.b16 %v1857
        %v2969 = vunpack.c.l.b16 %v1858
        %v2970 = vunpack.c.h.b16 %v1858
        %v2971 = vunpack.c.l.b16 %v1859
        %v2972 = vunpack.c.h.b16 %v1859
        %v2973 = vunpack.c.l.b16 %v1860
        %v2974 = vunpack.c.h.b16 %v1860
        %v2975 = vunpack.c.l.b16 %v1861
        %v2976 = vunpack.c.h.b16 %v1861
        %v2977 = vunpack.c.l.b16 %v1862
        %v2978 = vunpack.c.h.b16 %v1862
        %v2979 = vunpack.c.l.b16 %v1863
        %v2980 = vunpack.c.h.b16 %v1863
        %v2981 = vunpack.c.l.b16 %v1864
        %v2982 = vunpack.c.h.b16 %v1864
        %v2983 = vunpack.c.l.b16 %v1865
        %v2984 = vunpack.c.h.b16 %v1865
        %v2985 = vunpack.c.l.b16 %v1866
        %v2986 = vunpack.c.h.b16 %v1866
        %v2987 = vunpack.c.l.b16 %v1867
        %v2988 = vunpack.c.h.b16 %v1867
        %v2989 = vunpack.c.l.b16 %v1868
        %v2990 = vunpack.c.h.b16 %v1868
        %v2991 = vunpack.c.l.b16 %v1869
        %v2992 = vunpack.c.h.b16 %v1869
        %v2993 = vunpack.c.l.b16 %v1870
        %v2994 = vunpack.c.h.b16 %v1870
        %v2995 = vunpack.c.l.b16 %v1871
        %v2996 = vunpack.c.h.b16 %v1871
        %v2997 = vunpack.c.l.b16 %v1872
        %v2998 = vunpack.c.h.b16 %v1872
        %v2999 = vunpack.c.l.b16 %v1873
        %v3000 = vunpack.c.h.b16 %v1873
        %v3001 = vunpack.c.l.b16 %v1874
        %v3002 = vunpack.c.h.b16 %v1874
        %v3003 = vunpack.c.l.b16 %v1875
        %v3004 = vunpack.c.h.b16 %v1875
        %v3005 = vunpack.c.l.b16 %v1876
        %v3006 = vunpack.c.h.b16 %v1876
        %v3007 = vunpack.c.l.b16 %v1877
        %v3008 = vunpack.c.h.b16 %v1877
        %v3009 = vunpack.c.l.b16 %v1878
        %v3010 = vunpack.c.h.b16 %v1878
        %v3011 = vunpack.c.l.b16 %v1879
        %v3012 = vunpack.c.h.b16 %v1879
        %v3013 = vunpack.c.l.b16 %v1880
        %v3014 = vunpack.c.h.b16 %v1880
        %v3015 = vunpack.c.l.b16 %v1881
        %v3016 = vunpack.c.h.b16 %v1881
        %v3017 = vunpack.c.l.b16 %v1882
        %v3018 = vunpack.c.h.b16 %v1882
        %v3019 = vunpack.c.l.b16 %v1883
        %v3020 = vunpack.c.h.b16 %v1883
        %v3021 = vunpack.c.l.b16 %v1884
        %v3022 = vunpack.c.h.b16 %v1884
        %v3023 = vunpack.c.l.b16 %v1885
        %v3024 = vunpack.c.h.b16 %v1885
        %v3025 = vunpack.c.l.b16 %v1886
        %v3026 = vunpack.c.h.b16 %v1886
        %v3027 = vunpack.c.l.b16 %v1887
        %v3028 = vunpack.c.h.b16 %v1887
        %v3029 = vunpack.c.l.b16 %v1888
        %v3030 = vunpack.c.h.b16 %v1888
        %v3031 = vunpack.c.l.b16 %v1889
        %v3032 = vunpack.c.h.b16 %v1889
        %v3033 = vunpack.c.l.b16 %v1890
        %v3034 = vunpack.c.h.b16 %v1890
        %v3035 = vunpack.c.l.b16 %v1891
        %v3036 = vunpack.c.h.b16 %v1891
        %v3037 = vunpack.c.l.b16 %v1892
        %v3038 = vunpack.c.h.b16 %v1892
        %v3039 = vunpack.c.l.b16 %v1893
        %v3040 = vunpack.c.h.b16 %v1893
        %v3041 = vunpack.c.l.b16 %v1894
        %v3042 = vunpack.c.h.b16 %v1894
        %v3043 = vunpack.c.l.b16 %v1895
        %v3044 = vunpack.c.h.b16 %v1895
        %v3045 = vunpack.c.l.b16 %v1896
        %v3046 = vunpack.c.h.b16 %v1896
        %v3047 = vunpack.c.l.b16 %v1897
        %v3048 = vunpack.c.h.b16 %v1897
        %v3049 = vunpack.c.l.b16 %v1898
        %v3050 = vunpack.c.h.b16 %v1898
        %v3051 = vunpack.c.l.b16 %v1899
        %v3052 = vunpack.c.h.b16 %v1899
        %v3053 = vunpack.c.l.b16 %v1900
        %v3054 = vunpack.c.h.b16 %v1900
        %v3055 = vunpack.c.l.b16 %v1901
        %v3056 = vunpack.c.h.b16 %v1901
        %v3057 = vunpack.c.l.b16 %v1902
        %v3058 = vunpack.c.h.b16 %v1902
        %v3059 = vunpack.c.l.b16 %v1903
        %v3060 = vunpack.c.h.b16 %v1903
        %v3061 = vunpack.c.l.b16 %v1904
        %v3062 = vunpack.c.h.b16 %v1904
        %v3063 = vunpack.c.l.b16 %v1905
        %v3064 = vunpack.c.h.b16 %v1905
        %v3065 = vunpack.c.l.b16 %v1906
        %v3066 = vunpack.c.h.b16 %v1906
        %v3067 = vunpack.c.l.b16 %v1907
        %v3068 = vunpack.c.h.b16 %v1907
        %v3069 = vunpack.c.l.b16 %v1908
        %v3070 = vunpack.c.h.b16 %v1908
        %v3071 = vunpack.c.l.b16 %v1909
        %v3072 = vunpack.c.h.b16 %v1909
        %v3073 = vunpack.c.l.b16 %v1910
        %v3074 = vunpack.c.h.b16 %v1910
        %v3075 = vunpack.c.l.b16 %v1911
        %v3076 = vunpack.c.h.b16 %v1911
        %v3077 = vunpack.c.l.b16 %v1912
        %v3078 = vunpack.c.h.b16 %v1912
        %v3079 = vunpack.c.l.b16 %v1913
        %v3080 = vunpack.c.h.b16 %v1913
        %v3081 = vunpack.c.l.b16 %v1914
        %v3082 = vunpack.c.h.b16 %v1914
        %v3083 = vunpack.c.l.b16 %v1915
        %v3084 = vunpack.c.h.b16 %v1915
        %v3085 = vunpack.c.l.b16 %v1916
        %v3086 = vunpack.c.h.b16 %v1916
        %v3087 = vunpack.c.l.b16 %v1917
        %v3088 = vunpack.c.h.b16 %v1917
        %v3089 = vunpack.c.l.b16 %v1918
        %v3090 = vunpack.c.h.b16 %v1918
        %v3091 = vunpack.c.l.b16 %v1919
        %v3092 = vunpack.c.h.b16 %v1919
        %v3093 = vunpack.c.l.b16 %v1920
        %v3094 = vunpack.c.h.b16 %v1920
        %v3095 = vunpack.c.l.b16 %v1921
        %v3096 = vunpack.c.h.b16 %v1921
        %v3097 = vunpack.c.l.b16 %v1922
        %v3098 = vunpack.c.h.b16 %v1922
        %v3099 = vunpack.c.l.b16 %v1923
        %v3100 = vunpack.c.h.b16 %v1923
        %v3101 = vunpack.c.l.b16 %v1924
        %v3102 = vunpack.c.h.b16 %v1924
        %v3103 = vunpack.c.l.b16 %v1925
        %v3104 = vunpack.c.h.b16 %v1925
        %v3105 = vunpack.c.l.b16 %v1926
        %v3106 = vunpack.c.h.b16 %v1926
        %v3107 = vunpack.c.l.b16 %v1927
        %v3108 = vunpack.c.h.b16 %v1927
        %v3109 = vunpack.c.l.b16 %v1928
        %v3110 = vunpack.c.h.b16 %v1928
        %v3111 = vunpack.c.l.b16 %v1929
        %v3112 = vunpack.c.h.b16 %v1929
        %v3113 = vunpack.c.l.b16 %v1930
        %v3114 = vunpack.c.h.b16 %v1930
        %v3115 = vunpack.c.l.b16 %v1931
        %v3116 = vunpack.c.h.b16 %v1931
        %v3117 = vunpack.c.l.b16 %v1932
        %v3118 = vunpack.c.h.b16 %v1932
        %v3119 = vunpack.c.l.b16 %v1933
        %v3120 = vunpack.c.h.b16 %v1933
        %v3121 = vunpack.c.l.b16 %v1934
        %v3122 = vunpack.c.h.b16 %v1934
        %v3123 = vunpack.c.l.b16 %v1935
        %v3124 = vunpack.c.h.b16 %v1935
        %v3125 = vunpack.c.l.b16 %v1936
        %v3126 = vunpack.c.h.b16 %v1936
        %v3127 = vunpack.c.l.b16 %v1937
        %v3128 = vunpack.c.h.b16 %v1937
        %v3129 = vunpack.c.l.b16 %v1938
        %v3130 = vunpack.c.h.b16 %v1938
        %v3131 = vunpack.c.l.b16 %v1939
        %v3132 = vunpack.c.h.b16 %v1939
        %v3133 = vunpack.c.l.b16 %v1940
        %v3134 = vunpack.c.h.b16 %v1940
        %v3135 = vunpack.c.l.b16 %v1941
        %v3136 = vunpack.c.h.b16 %v1941
        %v3137 = vunpack.c.l.b16 %v1942
        %v3138 = vunpack.c.h.b16 %v1942
        %v3139 = vunpack.c.l.b16 %v1943
        %v3140 = vunpack.c.h.b16 %v1943
        %v3141 = vunpack.c.l.b16 %v1944
        %v3142 = vunpack.c.h.b16 %v1944
        %v3143 = vunpack.c.l.b16 %v1945
        %v3144 = vunpack.c.h.b16 %v1945
        %v3145 = vunpack.c.l.b16 %v1946
        %v3146 = vunpack.c.h.b16 %v1946
        %v3147 = vunpack.c.l.b16 %v1947
        %v3148 = vunpack.c.h.b16 %v1947
        %v3149 = vunpack.c.l.b16 %v1948
        %v3150 = vunpack.c.h.b16 %v1948
        %v3151 = vunpack.c.l.b16 %v1949
        %v3152 = vunpack.c.h.b16 %v1949
        %v3153 = vunpack.c.l.b16 %v1950
        %v3154 = vunpack.c.h.b16 %v1950
        %v3155 = vunpack.c.l.b16 %v1951
        %v3156 = vunpack.c.h.b16 %v1951
        %v3157 = vunpack.c.l.b16 %v1952
        %v3158 = vunpack.c.h.b16 %v1952
        %v3159 = vunpack.c.l.b16 %v1953
        %v3160 = vunpack.c.h.b16 %v1953
        %v3161 = vunpack.c.l.b16 %v1954
        %v3162 = vunpack.c.h.b16 %v1954
        %v3163 = vunpack.c.l.b16 %v1955
        %v3164 = vunpack.c.h.b16 %v1955
        %v3165 = vunpack.c.l.b16 %v1956
        %v3166 = vunpack.c.h.b16 %v1956
        %v3167 = vunpack.c.l.b16 %v1957
        %v3168 = vunpack.c.h.b16 %v1957
        %v3169 = vunpack.c.l.b16 %v1958
        %v3170 = vunpack.c.h.b16 %v1958
        %v3171 = vunpack.c.l.b16 %v1959
        %v3172 = vunpack.c.h.b16 %v1959
        %v3173 = vunpack.c.l.b16 %v1960
        %v3174 = vunpack.c.h.b16 %v1960
        %v3175 = vunpack.c.l.b16 %v1961
        %v3176 = vunpack.c.h.b16 %v1961
        %v3177 = vunpack.c.l.b16 %v1962
        %v3178 = vunpack.c.h.b16 %v1962
        %v3179 = vunpack.c.l.b16 %v1963
        %v3180 = vunpack.c.h.b16 %v1963
        %v3181 = vunpack.c.l.b16 %v1964
        %v3182 = vunpack.c.h.b16 %v1964
        %v3183 = vunpack.c.l.b16 %v1965
        %v3184 = vunpack.c.h.b16 %v1965
        %v3185 = vunpack.c.l.b16 %v1966
        %v3186 = vunpack.c.h.b16 %v1966
        %v3187 = vunpack.c.l.b16 %v1967
        %v3188 = vunpack.c.h.b16 %v1967
        %v3189 = vunpack.c.l.b16 %v1968
        %v3190 = vunpack.c.h.b16 %v1968
        %v3191 = vunpack.c.l.b16 %v1969
        %v3192 = vunpack.c.h.b16 %v1969
        %v3193 = vunpack.c.l.b16 %v1970
        %v3194 = vunpack.c.h.b16 %v1970
        %v3195 = vunpack.c.l.b16 %v1971
        %v3196 = vunpack.c.h.b16 %v1971
        %v3197 = vunpack.c.l.b16 %v1972
        %v3198 = vunpack.c.h.b16 %v1972
        %v3199 = vunpack.c.l.b16 %v1973
        %v3200 = vunpack.c.h.b16 %v1973
        %v3201 = vunpack.c.l.b16 %v1974
        %v3202 = vunpack.c.h.b16 %v1974
        %v3203 = vunpack.c.l.b16 %v1975
        %v3204 = vunpack.c.h.b16 %v1975
        %v3205 = vunpack.c.l.b16 %v1976
        %v3206 = vunpack.c.h.b16 %v1976
        %v3207 = vunpack.c.l.b16 %v1977
        %v3208 = vunpack.c.h.b16 %v1977
        %v3209 = vunpack.c.l.b16 %v1978
        %v3210 = vunpack.c.h.b16 %v1978
        %v3211 = vunpack.c.l.b16 %v1979
        %v3212 = vunpack.c.h.b16 %v1979
        %v3213 = vunpack.c.l.b16 %v1980
        %v3214 = vunpack.c.h.b16 %v1980
        %v3215 = vunpack.c.l.b16 %v1981
        %v3216 = vunpack.c.h.b16 %v1981
        %v3217 = vunpack.c.l.b16 %v1982
        %v3218 = vunpack.c.h.b16 %v1982
        %v3219 = vunpack.c.l.b16 %v1983
        %v3220 = vunpack.c.h.b16 %v1983
        %v3221 = vunpack.c.l.b16 %v1984
        %v3222 = vunpack.c.h.b16 %v1984
        %v3223 = vunpack.c.l.b16 %v1985
        %v3224 = vunpack.c.h.b16 %v1985
        %v3225 = vunpack.c.l.b16 %v1986
        %v3226 = vunpack.c.h.b16 %v1986
        %v3227 = vunpack.c.l.b16 %v1987
        %v3228 = vunpack.c.h.b16 %v1987
        %v3229 = vunpack.c.l.b16 %v1988
        %v3230 = vunpack.c.h.b16 %v1988
        %v3231 = vunpack.c.l.b16 %v1989
        %v3232 = vunpack.c.h.b16 %v1989
        %v3233 = vunpack.c.l.b16 %v1990
        %v3234 = vunpack.c.h.b16 %v1990
        %v3235 = vunpack.c.l.b16 %v1991
        %v3236 = vunpack.c.h.b16 %v1991
        %v3237 = vunpack.c.l.b16 %v1992
        %v3238 = vunpack.c.h.b16 %v1992
        %v3239 = vunpack.c.l.b16 %v1993
        %v3240 = vunpack.c.h.b16 %v1993
        %v3241 = vunpack.c.l.b16 %v1994
        %v3242 = vunpack.c.h.b16 %v1994
        %v3243 = vunpack.c.l.b16 %v1995
        %v3244 = vunpack.c.h.b16 %v1995
        %v3245 = vunpack.c.l.b16 %v1996
        %v3246 = vunpack.c.h.b16 %v1996
        %v3247 = vunpack.c.l.b16 %v1997
        %v3248 = vunpack.c.h.b16 %v1997
        %v3249 = vunpack.c.l.b16 %v1998
        %v3250 = vunpack.c.h.b16 %v1998
        %v3251 = vunpack.c.l.b16 %v1999
        %v3252 = vunpack.c.h.b16 %v1999
        %v3253 = vunpack.c.l.b16 %v2000
        %v3254 = vunpack.c.h.b16 %v2000
        %v3255 = vunpack.c.l.b16 %v2001
        %v3256 = vunpack.c.h.b16 %v2001
        %v3257 = vunpack.c.l.b16 %v2002
        %v3258 = vunpack.c.h.b16 %v2002
        %v3259 = vunpack.c.l.b16 %v2003
        %v3260 = vunpack.c.h.b16 %v2003
        %v3261 = vunpack.c.l.b16 %v2004
        %v3262 = vunpack.c.h.b16 %v2004
        %v3263 = vunpack.c.l.b16 %v2005
        %v3264 = vunpack.c.h.b16 %v2005
        %v3265 = vunpack.c.l.b16 %v2006
        %v3266 = vunpack.c.h.b16 %v2006
        %v3267 = vunpack.c.l.b16 %v2007
        %v3268 = vunpack.c.h.b16 %v2007
        %v3269 = vunpack.c.l.b16 %v2008
        %v3270 = vunpack.c.h.b16 %v2008
        %v3271 = vunpack.c.l.b16 %v2009
        %v3272 = vunpack.c.h.b16 %v2009
        %v3273 = vunpack.c.l.b16 %v2010
        %v3274 = vunpack.c.h.b16 %v2010
        %v3275 = vunpack.c.l.b16 %v2011
        %v3276 = vunpack.c.h.b16 %v2011
        %v3277 = vunpack.c.l.b16 %v2012
        %v3278 = vunpack.c.h.b16 %v2012
        %v3279 = vunpack.c.l.b16 %v2013
        %v3280 = vunpack.c.h.b16 %v2013
        %v3281 = vunpack.c.l.b16 %v2014
        %v3282 = vunpack.c.h.b16 %v2014
        %v3283 = vunpack.c.l.b16 %v2015
        %v3284 = vunpack.c.h.b16 %v2015
        %v3285 = vunpack.c.l.b16 %v2016
        %v3286 = vunpack.c.h.b16 %v2016
        %v3287 = vunpack.c.l.b16 %v2017
        %v3288 = vunpack.c.h.b16 %v2017
        %v3289 = vunpack.c.l.b16 %v2018
        %v3290 = vunpack.c.h.b16 %v2018
        %v3291 = vunpack.c.l.b16 %v2019
        %v3292 = vunpack.c.h.b16 %v2019
        %v3293 = vunpack.c.l.b16 %v2020
        %v3294 = vunpack.c.h.b16 %v2020
        %v3295 = vunpack.c.l.b16 %v2021
        %v3296 = vunpack.c.h.b16 %v2021
        %v3297 = vunpack.c.l.b16 %v2022
        %v3298 = vunpack.c.h.b16 %v2022
        %v3299 = vunpack.c.l.b16 %v2023
        %v3300 = vunpack.c.h.b16 %v2023
        %v3301 = vunpack.c.l.b16 %v2024
        %v3302 = vunpack.c.h.b16 %v2024
        %v3303 = vunpack.c.l.b16 %v2025
        %v3304 = vunpack.c.h.b16 %v2025
        %v3305 = vunpack.c.l.b16 %v2026
        %v3306 = vunpack.c.h.b16 %v2026
        %v3307 = vunpack.c.l.b16 %v2027
        %v3308 = vunpack.c.h.b16 %v2027
        %v3309 = vunpack.c.l.b16 %v2028
        %v3310 = vunpack.c.h.b16 %v2028
        %v3311 = vunpack.c.l.b16 %v2029
        %v3312 = vunpack.c.h.b16 %v2029
        %v3313 = vunpack.c.l.b16 %v2030
        %v3314 = vunpack.c.h.b16 %v2030
        %v3315 = vunpack.c.l.b16 %v2031
        %v3316 = vunpack.c.h.b16 %v2031
        %v3317 = vunpack.c.l.b16 %v2032
        %v3318 = vunpack.c.h.b16 %v2032
        %v3319 = vunpack.c.l.b16 %v2033
        %v3320 = vunpack.c.h.b16 %v2033
        %v3321 = vunpack.c.l.b16 %v2034
        %v3322 = vunpack.c.h.b16 %v2034
        %v3323 = vunpack.c.l.b16 %v2035
        %v3324 = vunpack.c.h.b16 %v2035
        %v3325 = vunpack.c.l.b16 %v2036
        %v3326 = vunpack.c.h.b16 %v2036
        %v3327 = vunpack.c.l.b16 %v2037
        %v3328 = vunpack.c.h.b16 %v2037
        %v3329 = vunpack.c.l.b16 %v2038
        %v3330 = vunpack.c.h.b16 %v2038
        %v3331 = vunpack.c.l.b16 %v2039
        %v3332 = vunpack.c.h.b16 %v2039
        %v3333 = vunpack.c.l.b16 %v2040
        %v3334 = vunpack.c.h.b16 %v2040
        %v3335 = vunpack.c.l.b16 %v2041
        %v3336 = vunpack.c.h.b16 %v2041
        %v3337 = vunpack.c.l.b16 %v2042
        %v3338 = vunpack.c.h.b16 %v2042
        %v3339 = vunpack.c.l.b16 %v2043
        %v3340 = vunpack.c.h.b16 %v2043
        %v3341 = vunpack.c.l.b16 %v2044
        %v3342 = vunpack.c.h.b16 %v2044
        %v3343 = vunpack.c.l.b16 %v2045
        %v3344 = vunpack.c.h.b16 %v2045
        %v3345 = vunpack.c.l.b16 %v2046
        %v3346 = vunpack.c.h.b16 %v2046
        %v3347 = vunpack.c.l.b16 %v2047
        %v3348 = vunpack.c.h.b16 %v2047
        %v3349 = vunpack.c.l.b16 %v2048
        %v3350 = vunpack.c.h.b16 %v2048
        %v3351 = vunpack.c.l.b16 %v2049
        %v3352 = vunpack.c.h.b16 %v2049
        %v3353 = vunpack.c.l.b16 %v2050
        %v3354 = vunpack.c.h.b16 %v2050
        %v3355 = vunpack.c.l.b16 %v2051
        %v3356 = vunpack.c.h.b16 %v2051
        %v3357 = vunpack.c.l.b16 %v2052
        %v3358 = vunpack.c.h.b16 %v2052
        %v3359 = vunpack.c.l.b16 %v2053
        %v3360 = vunpack.c.h.b16 %v2053
        %v3361 = vunpack.c.l.b16 %v2054
        %v3362 = vunpack.c.h.b16 %v2054
        %v3363 = vunpack.c.l.b16 %v2055
        %v3364 = vunpack.c.h.b16 %v2055
        %v3365 = vunpack.c.l.b16 %v2056
        %v3366 = vunpack.c.h.b16 %v2056
        %v3367 = vunpack.c.l.b16 %v2057
        %v3368 = vunpack.c.h.b16 %v2057
        %v3369 = vunpack.c.l.b16 %v2058
        %v3370 = vunpack.c.h.b16 %v2058
        %v3371 = vunpack.c.l.b16 %v2059
        %v3372 = vunpack.c.h.b16 %v2059
        %v3373 = vunpack.c.l.b16 %v2060
        %v3374 = vunpack.c.h.b16 %v2060
        %v3375 = vunpack.c.l.b16 %v2061
        %v3376 = vunpack.c.h.b16 %v2061
        %v3377 = vunpack.c.l.b16 %v2062
        %v3378 = vunpack.c.h.b16 %v2062
        %v3379 = vunpack.c.l.b16 %v2063
        %v3380 = vunpack.c.h.b16 %v2063
        %v3381 = vunpack.c.l.b16 %v2064
        %v3382 = vunpack.c.h.b16 %v2064
        %v3383 = vunpack.c.l.b16 %v2065
        %v3384 = vunpack.c.h.b16 %v2065
        %v3385 = vunpack.c.l.b16 %v2066
        %v3386 = vunpack.c.h.b16 %v2066
        %v3387 = vunpack.c.l.b16 %v2067
        %v3388 = vunpack.c.h.b16 %v2067
        %v3389 = vunpack.c.l.b16 %v2068
        %v3390 = vunpack.c.h.b16 %v2068
        %v3391 = vunpack.c.l.b16 %v2069
        %v3392 = vunpack.c.h.b16 %v2069
        %v3393 = vunpack.c.l.b16 %v2070
        %v3394 = vunpack.c.h.b16 %v2070
        %v3395 = vunpack.c.l.b16 %v2071
        %v3396 = vunpack.c.h.b16 %v2071
        %v3397 = vunpack.c.l.b16 %v2072
        %v3398 = vunpack.c.h.b16 %v2072
        %v3399 = vunpack.c.l.b16 %v2073
        %v3400 = vunpack.c.h.b16 %v2073
        %v3401 = vunpack.c.l.b16 %v2074
        %v3402 = vunpack.c.h.b16 %v2074
        %v3403 = vunpack.c.l.b16 %v2075
        %v3404 = vunpack.c.h.b16 %v2075
        %v3405 = vunpack.c.l.b16 %v2076
        %v3406 = vunpack.c.h.b16 %v2076
        %v3407 = vunpack.c.l.b16 %v2077
        %v3408 = vunpack.c.h.b16 %v2077
        %v3409 = vunpack.c.l.b16 %v2078
        %v3410 = vunpack.c.h.b16 %v2078
        %v3411 = vunpack.c.l.b16 %v2079
        %v3412 = vunpack.c.h.b16 %v2079
        %v3413 = vunpack.c.l.b16 %v2080
        %v3414 = vunpack.c.h.b16 %v2080
        %v3415 = vunpack.c.l.b16 %v2081
        %v3416 = vunpack.c.h.b16 %v2081
        %v3417 = vunpack.c.l.b16 %v2082
        %v3418 = vunpack.c.h.b16 %v2082
        %v3419 = vunpack.c.l.b16 %v2083
        %v3420 = vunpack.c.h.b16 %v2083
        %v3421 = vunpack.c.l.b16 %v2084
        %v3422 = vunpack.c.h.b16 %v2084
        %v3423 = vunpack.c.l.b16 %v2085
        %v3424 = vunpack.c.h.b16 %v2085
        %v3425 = vunpack.c.l.b16 %v2086
        %v3426 = vunpack.c.h.b16 %v2086
        %v3427 = vunpack.c.l.b16 %v2087
        %v3428 = vunpack.c.h.b16 %v2087
        %v3429 = vunpack.c.l.b16 %v2088
        %v3430 = vunpack.c.h.b16 %v2088
        %v3431 = vunpack.c.l.b16 %v2089
        %v3432 = vunpack.c.h.b16 %v2089
        %v3433 = vunpack.c.l.b16 %v2090
        %v3434 = vunpack.c.h.b16 %v2090
        %v3435 = vunpack.c.l.b16 %v2091
        %v3436 = vunpack.c.h.b16 %v2091
        %v3437 = vunpack.c.l.b16 %v2092
        %v3438 = vunpack.c.h.b16 %v2092
        %v3439 = vunpack.c.l.b16 %v2093
        %v3440 = vunpack.c.h.b16 %v2093
        %v3441 = vunpack.c.l.b16 %v2094
        %v3442 = vunpack.c.h.b16 %v2094
        %v3443 = vunpack.c.l.b16 %v2095
        %v3444 = vunpack.c.h.b16 %v2095
        %v3445 = vunpack.c.l.b16 %v2096
        %v3446 = vunpack.c.h.b16 %v2096
        %v3447 = vunpack.c.l.b16 %v2097
        %v3448 = vunpack.c.h.b16 %v2097
        %v3449 = vunpack.c.l.b16 %v2098
        %v3450 = vunpack.c.h.b16 %v2098
        %v3451 = vunpack.c.l.b16 %v2099
        %v3452 = vunpack.c.h.b16 %v2099
        %v3453 = vunpack.c.l.b16 %v2100
        %v3454 = vunpack.c.h.b16 %v2100
        %v3455 = vunpack.c.l.b16 %v2101
        %v3456 = vunpack.c.h.b16 %v2101
        %v3457 = vunpack.c.l.b16 %v2102
        %v3458 = vunpack.c.h.b16 %v2102
        %v3459 = vunpack.c.l.b16 %v2103
        %v3460 = vunpack.c.h.b16 %v2103
        %v3461 = vunpack.c.l.b16 %v2104
        %v3462 = vunpack.c.h.b16 %v2104
        %v3463 = vunpack.c.l.b16 %v2105
        %v3464 = vunpack.c.h.b16 %v2105
        %v3465 = vunpack.c.l.b16 %v2106
        %v3466 = vunpack.c.h.b16 %v2106
        %v3467 = vunpack.c.l.b16 %v2107
        %v3468 = vunpack.c.h.b16 %v2107
        %v3469 = vunpack.c.l.b16 %v2108
        %v3470 = vunpack.c.h.b16 %v2108
        %v3471 = vunpack.c.l.b16 %v2109
        %v3472 = vunpack.c.h.b16 %v2109
        %v3473 = vunpack.c.l.b16 %v2110
        %v3474 = vunpack.c.h.b16 %v2110
        %v3475 = vunpack.c.l.b16 %v2111
        %v3476 = vunpack.c.h.b16 %v2111
        %v3477 = vunpack.c.l.b16 %v2112
        %v3478 = vunpack.c.h.b16 %v2112
        %v3479 = vunpack.c.l.b16 %v2113
        %v3480 = vunpack.c.h.b16 %v2113
        %v3481 = vunpack.c.l.b16 %v2114
        %v3482 = vunpack.c.h.b16 %v2114
        %v3483 = vunpack.c.l.b16 %v2115
        %v3484 = vunpack.c.h.b16 %v2115
        %v3485 = vunpack.c.l.b16 %v2116
        %v3486 = vunpack.c.h.b16 %v2116
        %v3487 = vunpack.c.l.b16 %v2117
        %v3488 = vunpack.c.h.b16 %v2117
        %v3489 = vunpack.c.l.b16 %v2118
        %v3490 = vunpack.c.h.b16 %v2118
        %v3491 = vunpack.c.l.b16 %v2119
        %v3492 = vunpack.c.h.b16 %v2119
        %v3493 = vunpack.c.l.b16 %v2120
        %v3494 = vunpack.c.h.b16 %v2120
        %v3495 = vunpack.c.l.b16 %v2121
        %v3496 = vunpack.c.h.b16 %v2121
        %v3497 = vunpack.c.l.b16 %v2122
        %v3498 = vunpack.c.h.b16 %v2122
        %v3499 = vunpack.c.l.b16 %v2123
        %v3500 = vunpack.c.h.b16 %v2123
        %v3501 = vunpack.c.l.b16 %v2124
        %v3502 = vunpack.c.h.b16 %v2124
        %v3503 = vunpack.c.l.b16 %v2125
        %v3504 = vunpack.c.h.b16 %v2125
        %v3505 = vunpack.c.l.b16 %v2126
        %v3506 = vunpack.c.h.b16 %v2126
        %v3507 = vunpack.c.l.b16 %v2127
        %v3508 = vunpack.c.h.b16 %v2127
        %v3509 = vunpack.c.l.b16 %v2128
        %v3510 = vunpack.c.h.b16 %v2128
        %v3511 = vunpack.c.l.b16 %v2129
        %v3512 = vunpack.c.h.b16 %v2129
        %v3513 = vunpack.c.l.b16 %v2130
        %v3514 = vunpack.c.h.b16 %v2130
        %v3515 = vunpack.c.l.b16 %v2131
        %v3516 = vunpack.c.h.b16 %v2131
        %v3517 = vunpack.c.l.b16 %v2132
        %v3518 = vunpack.c.h.b16 %v2132
        %v3519 = vunpack.c.l.b16 %v2133
        %v3520 = vunpack.c.h.b16 %v2133
        %v3521 = vunpack.c.l.b16 %v2134
        %v3522 = vunpack.c.h.b16 %v2134
        %v3523 = vunpack.c.l.b16 %v2135
        %v3524 = vunpack.c.h.b16 %v2135
        %v3525 = vunpack.c.l.b16 %v2136
        %v3526 = vunpack.c.h.b16 %v2136
        %v3527 = vunpack.c.l.b16 %v2137
        %v3528 = vunpack.c.h.b16 %v2137
        %v3529 = vunpack.c.l.b16 %v2138
        %v3530 = vunpack.c.h.b16 %v2138
        %v3531 = vunpack.c.l.b16 %v2139
        %v3532 = vunpack.c.h.b16 %v2139
        %v3533 = vunpack.c.l.b16 %v2140
        %v3534 = vunpack.c.h.b16 %v2140
        %v3535 = vunpack.c.l.b16 %v2141
        %v3536 = vunpack.c.h.b16 %v2141
        %v3537 = vunpack.c.l.b16 %v2142
        %v3538 = vunpack.c.h.b16 %v2142
        %v3539 = vunpack.c.l.b16 %v2143
        %v3540 = vunpack.c.h.b16 %v2143
        %v3541 = vunpack.c.l.b16 %v2144
        %v3542 = vunpack.c.h.b16 %v2144
        %v3543 = vunpack.c.l.b16 %v2145
        %v3544 = vunpack.c.h.b16 %v2145
        %v3545 = vunpack.c.l.b16 %v2146
        %v3546 = vunpack.c.h.b16 %v2146
        %v3547 = vunpack.c.l.b16 %v2147
        %v3548 = vunpack.c.h.b16 %v2147
        %v3549 = vunpack.c.l.b16 %v2148
        %v3550 = vunpack.c.h.b16 %v2148
        %v3551 = vunpack.c.l.b16 %v2149
        %v3552 = vunpack.c.h.b16 %v2149
        %v3553 = vunpack.c.l.b16 %v2150
        %v3554 = vunpack.c.h.b16 %v2150
        %v3555 = vunpack.c.l.b16 %v2151
        %v3556 = vunpack.c.h.b16 %v2151
        %v3557 = vunpack.c.l.b16 %v2152
        %v3558 = vunpack.c.h.b16 %v2152
        %v3559 = vunpack.c.l.b16 %v2153
        %v3560 = vunpack.c.h.b16 %v2153
        %v3561 = vunpack.c.l.b16 %v2154
        %v3562 = vunpack.c.h.b16 %v2154
        %v3563 = vunpack.c.l.b16 %v2155
        %v3564 = vunpack.c.h.b16 %v2155
        %v3565 = vunpack.c.l.b16 %v2156
        %v3566 = vunpack.c.h.b16 %v2156
        %v3567 = vunpack.c.l.b16 %v2157
        %v3568 = vunpack.c.h.b16 %v2157
        %v3569 = vunpack.c.l.b16 %v2158
        %v3570 = vunpack.c.h.b16 %v2158
        %v3571 = vunpack.c.l.b16 %v2159
        %v3572 = vunpack.c.h.b16 %v2159
        %v3573 = vunpack.c.l.b16 %v2160
        %v3574 = vunpack.c.h.b16 %v2160
        %v3575 = vunpack.c.l.b16 %v2161
        %v3576 = vunpack.c.h.b16 %v2161
        %v3577 = vunpack.c.l.b16 %v2162
        %v3578 = vunpack.c.h.b16 %v2162
        %v3579 = vunpack.c.l.b16 %v2163
        %v3580 = vunpack.c.h.b16 %v2163
        %v3581 = vunpack.c.l.b16 %v2164
        %v3582 = vunpack.c.h.b16 %v2164
        %v3583 = vunpack.c.l.b16 %v2165
        %v3584 = vunpack.c.h.b16 %v2165
        %v3585 = vunpack.c.l.b16 %v2166
        %v3586 = vunpack.c.h.b16 %v2166
        %v3587 = vunpack.c.l.b16 %v2167
        %v3588 = vunpack.c.h.b16 %v2167
        %v3589 = vunpack.c.l.b16 %v2168
        %v3590 = vunpack.c.h.b16 %v2168
        %v3591 = vunpack.c.l.b16 %v2169
        %v3592 = vunpack.c.h.b16 %v2169
        %v3593 = vunpack.c.l.b16 %v2170
        %v3594 = vunpack.c.h.b16 %v2170
        %v3595 = vunpack.c.l.b16 %v2171
        %v3596 = vunpack.c.h.b16 %v2171
        %v3597 = vunpack.c.l.b16 %v2172
        %v3598 = vunpack.c.h.b16 %v2172
        %v3599 = vunpack.c.l.b16 %v2173
        %v3600 = vunpack.c.h.b16 %v2173
        %v3601 = vunpack.c.l.b16 %v2174
        %v3602 = vunpack.c.h.b16 %v2174
        %v3603 = vunpack.c.l.b16 %v2175
        %v3604 = vunpack.c.h.b16 %v2175
        %v3605 = vunpack.c.l.b16 %v2176
        %v3606 = vunpack.c.h.b16 %v2176
        %v3607 = vunpack.c.l.b16 %v2177
        %v3608 = vunpack.c.h.b16 %v2177
        %v3609 = vunpack.c.l.b16 %v2178
        %v3610 = vunpack.c.h.b16 %v2178
        %v3611 = vunpack.c.l.b16 %v2179
        %v3612 = vunpack.c.h.b16 %v2179
        %v3613 = vunpack.c.l.b16 %v2180
        %v3614 = vunpack.c.h.b16 %v2180
        %v3615 = vunpack.c.l.b16 %v2181
        %v3616 = vunpack.c.h.b16 %v2181
        %v3617 = vunpack.c.l.b16 %v2182
        %v3618 = vunpack.c.h.b16 %v2182
        %v3619 = vunpack.c.l.b16 %v2183
        %v3620 = vunpack.c.h.b16 %v2183
        %v3621 = vunpack.c.l.b16 %v2184
        %v3622 = vunpack.c.h.b16 %v2184
        %v3623 = vunpack.c.l.b16 %v2185
        %v3624 = vunpack.c.h.b16 %v2185
        %v3625 = vunpack.c.l.b16 %v2186
        %v3626 = vunpack.c.h.b16 %v2186
        %v3627 = vunpack.c.l.b16 %v2187
        %v3628 = vunpack.c.h.b16 %v2187
        %v3629 = vunpack.c.l.b16 %v2188
        %v3630 = vunpack.c.h.b16 %v2188
        %v3631 = vunpack.c.l.b16 %v2189
        %v3632 = vunpack.c.h.b16 %v2189
        %v3633 = vunpack.c.l.b16 %v2190
        %v3634 = vunpack.c.h.b16 %v2190
        %v3635 = vunpack.c.l.b16 %v2191
        %v3636 = vunpack.c.h.b16 %v2191
        %v3637 = vunpack.c.l.b16 %v2192
        %v3638 = vunpack.c.h.b16 %v2192
        %v3639 = vunpack.c.l.b16 %v2193
        %v3640 = vunpack.c.h.b16 %v2193
        %v3641 = vunpack.c.l.b16 %v2194
        %v3642 = vunpack.c.h.b16 %v2194
        %v3643 = vunpack.c.l.b16 %v2195
        %v3644 = vunpack.c.h.b16 %v2195
        %v3645 = vunpack.c.l.b16 %v2196
        %v3646 = vunpack.c.h.b16 %v2196
        %v3647 = vunpack.c.l.b16 %v2197
        %v3648 = vunpack.c.h.b16 %v2197
        %v3649 = vunpack.c.l.b16 %v2198
        %v3650 = vunpack.c.h.b16 %v2198
        %v3651 = vunpack.c.l.b16 %v2199
        %v3652 = vunpack.c.h.b16 %v2199
        %v3653 = vunpack.c.l.b16 %v2200
        %v3654 = vunpack.c.h.b16 %v2200
        %v3655 = vunpack.c.l.b16 %v2201
        %v3656 = vunpack.c.h.b16 %v2201
        %v3657 = vunpack.c.l.b16 %v2202
        %v3658 = vunpack.c.h.b16 %v2202
        %v3659 = vunpack.c.l.b16 %v2203
        %v3660 = vunpack.c.h.b16 %v2203
        %v3661 = vunpack.c.l.b16 %v2204
        %v3662 = vunpack.c.h.b16 %v2204
        %v3663 = vunpack.c.l.b16 %v2205
        %v3664 = vunpack.c.h.b16 %v2205
        %v3665 = vunpack.c.l.b16 %v2206
        %v3666 = vunpack.c.h.b16 %v2206
        %v3667 = vunpack.c.l.b16 %v2207
        %v3668 = vunpack.c.h.b16 %v2207
        %v3669 = vunpack.c.l.b16 %v2208
        %v3670 = vunpack.c.h.b16 %v2208
        %v3671 = vunpack.c.l.b16 %v2209
        %v3672 = vunpack.c.h.b16 %v2209
        %v3673 = vunpack.c.l.b16 %v2210
        %v3674 = vunpack.c.h.b16 %v2210
        %v3675 = vunpack.c.l.b16 %v2211
        %v3676 = vunpack.c.h.b16 %v2211
        %v3677 = vunpack.c.l.b16 %v2212
        %v3678 = vunpack.c.h.b16 %v2212
        %v3679 = vunpack.c.l.b16 %v2213
        %v3680 = vunpack.c.h.b16 %v2213
        %v3681 = vunpack.c.l.b16 %v2214
        %v3682 = vunpack.c.h.b16 %v2214
        %v3683 = vunpack.c.l.b16 %v2215
        %v3684 = vunpack.c.h.b16 %v2215
        %v3685 = vunpack.c.l.b16 %v2216
        %v3686 = vunpack.c.h.b16 %v2216
        %v3687 = vunpack.c.l.b16 %v2217
        %v3688 = vunpack.c.h.b16 %v2217
        %v3689 = vunpack.c.l.b16 %v2218
        %v3690 = vunpack.c.h.b16 %v2218
        %v3691 = vunpack.c.l.b16 %v2219
        %v3692 = vunpack.c.h.b16 %v2219
        %v3693 = vunpack.c.l.b16 %v2220
        %v3694 = vunpack.c.h.b16 %v2220
        %v3695 = vunpack.c.l.b16 %v2221
        %v3696 = vunpack.c.h.b16 %v2221
        %v3697 = vunpack.c.l.b16 %v2222
        %v3698 = vunpack.c.h.b16 %v2222
        %v3699 = vunpack.c.l.b16 %v2223
        %v3700 = vunpack.c.h.b16 %v2223
        %v3701 = vunpack.c.l.b16 %v2224
        %v3702 = vunpack.c.h.b16 %v2224
        %v3703 = vunpack.c.l.b16 %v2225
        %v3704 = vunpack.c.h.b16 %v2225
        %v3705 = vunpack.c.l.b16 %v2226
        %v3706 = vunpack.c.h.b16 %v2226
        %v3707 = vunpack.c.l.b16 %v2227
        %v3708 = vunpack.c.h.b16 %v2227
        %v3709 = vunpack.c.l.b16 %v2228
        %v3710 = vunpack.c.h.b16 %v2228
        %v3711 = vunpack.c.l.b16 %v2229
        %v3712 = vunpack.c.h.b16 %v2229
        %v3713 = vunpack.c.l.b16 %v2230
        %v3714 = vunpack.c.h.b16 %v2230
        %v3715 = vunpack.c.l.b16 %v2231
        %v3716 = vunpack.c.h.b16 %v2231
        %v3717 = vunpack.c.l.b16 %v2232
        %v3718 = vunpack.c.h.b16 %v2232
        %v3719 = vunpack.c.l.b16 %v2233
        %v3720 = vunpack.c.h.b16 %v2233
        %v3721 = vunpack.c.l.b16 %v2234
        %v3722 = vunpack.c.h.b16 %v2234
        %v3723 = vunpack.c.l.b16 %v2235
        %v3724 = vunpack.c.h.b16 %v2235
        %v3725 = vunpack.c.l.b16 %v2236
        %v3726 = vunpack.c.h.b16 %v2236
        %v3727 = vunpack.c.l.b16 %v2237
        %v3728 = vunpack.c.h.b16 %v2237
        %v3729 = vunpack.c.l.b16 %v2238
        %v3730 = vunpack.c.h.b16 %v2238
        %v3731 = vunpack.c.l.b16 %v2239
        %v3732 = vunpack.c.h.b16 %v2239
        %v3733 = vunpack.c.l.b16 %v2240
        %v3734 = vunpack.c.h.b16 %v2240
        %v3735 = vunpack.c.l.b16 %v2241
        %v3736 = vunpack.c.h.b16 %v2241
        %v3737 = vunpack.c.l.b16 %v2242
        %v3738 = vunpack.c.h.b16 %v2242
        %v3739 = vunpack.c.l.b16 %v2243
        %v3740 = vunpack.c.h.b16 %v2243
        %v3741 = vunpack.c.l.b16 %v2244
        %v3742 = vunpack.c.h.b16 %v2244
        %v3743 = vunpack.c.l.b16 %v2245
        %v3744 = vunpack.c.h.b16 %v2245
        %v3745 = vunpack.c.l.b16 %v2246
        %v3746 = vunpack.c.h.b16 %v2246
        %v3747 = vunpack.c.l.b16 %v2247
        %v3748 = vunpack.c.h.b16 %v2247
        %v3749 = vunpack.c.l.b16 %v2248
        %v3750 = vunpack.c.h.b16 %v2248
        %v3751 = vunpack.c.l.b16 %v2249
        %v3752 = vunpack.c.h.b16 %v2249
        %v3753 = vunpack.c.l.b16 %v2250
        %v3754 = vunpack.c.h.b16 %v2250
        %v3755 = vunpack.c.l.b16 %v2251
        %v3756 = vunpack.c.h.b16 %v2251
        %v3757 = vunpack.c.l.b16 %v2252
        %v3758 = vunpack.c.h.b16 %v2252
        %v3759 = vunpack.c.l.b16 %v2253
        %v3760 = vunpack.c.h.b16 %v2253
        %v3761 = vunpack.c.l.b16 %v2254
        %v3762 = vunpack.c.h.b16 %v2254
        %v3763 = vunpack.c.l.b16 %v2255
        %v3764 = vunpack.c.h.b16 %v2255
        %v3765 = vunpack.c.l.b16 %v2256
        %v3766 = vunpack.c.h.b16 %v2256
        %v3767 = vunpack.c.l.b16 %v2257
        %v3768 = vunpack.c.h.b16 %v2257
        %v3769 = vunpack.c.l.b16 %v2258
        %v3770 = vunpack.c.h.b16 %v2258
        %v3771 = vunpack.c.l.b16 %v2259
        %v3772 = vunpack.c.h.b16 %v2259
        %v3773 = vunpack.c.l.b16 %v2260
        %v3774 = vunpack.c.h.b16 %v2260
        %v3775 = vunpack.c.l.b16 %v2261
        %v3776 = vunpack.c.h.b16 %v2261
        %v3777 = vunpack.c.l.b16 %v2262
        %v3778 = vunpack.c.h.b16 %v2262
        %v3779 = vunpack.c.l.b16 %v2263
        %v3780 = vunpack.c.h.b16 %v2263
        %v3781 = vunpack.c.l.b16 %v2264
        %v3782 = vunpack.c.h.b16 %v2264
        %v3783 = vunpack.c.l.b16 %v2265
        %v3784 = vunpack.c.h.b16 %v2265
        %v3785 = vunpack.c.l.b16 %v2266
        %v3786 = vunpack.c.h.b16 %v2266
        %v3787 = vunpack.c.l.b16 %v2267
        %v3788 = vunpack.c.h.b16 %v2267
        %v3789 = vunpack.c.l.b16 %v2268
        %v3790 = vunpack.c.h.b16 %v2268
        %v3791 = vunpack.c.l.b16 %v2269
        %v3792 = vunpack.c.h.b16 %v2269
        %v3793 = vunpack.c.l.b16 %v2270
        %v3794 = vunpack.c.h.b16 %v2270
        %v3795 = vunpack.c.l.b16 %v2271
        %v3796 = vunpack.c.h.b16 %v2271
        %v3797 = vunpack.c.l.b16 %v2272
        %v3798 = vunpack.c.h.b16 %v2272
        %v3799 = vunpack.c.l.b16 %v2273
        %v3800 = vunpack.c.h.b16 %v2273
        %v3801 = vunpack.c.l.b16 %v2274
        %v3802 = vunpack.c.h.b16 %v2274
        %v3803 = vunpack.c.l.b16 %v2275
        %v3804 = vunpack.c.h.b16 %v2275
        %v3805 = vunpack.c.l.b16 %v2276
        %v3806 = vunpack.c.h.b16 %v2276
        %v3807 = vunpack.c.l.b16 %v2277
        %v3808 = vunpack.c.h.b16 %v2277
        %v3809 = vunpack.c.l.b16 %v2278
        %v3810 = vunpack.c.h.b16 %v2278
        %v3811 = vunpack.c.l.b16 %v2279
        %v3812 = vunpack.c.h.b16 %v2279
        %v3813 = vunpack.c.l.b16 %v2280
        %v3814 = vunpack.c.h.b16 %v2280
        %v3815 = vunpack.c.l.b16 %v2281
        %v3816 = vunpack.c.h.b16 %v2281
        %v3817 = vunpack.c.l.b16 %v2282
        %v3818 = vunpack.c.h.b16 %v2282
        %v3819 = vunpack.c.l.b16 %v2283
        %v3820 = vunpack.c.h.b16 %v2283
        %v3821 = vunpack.c.l.b16 %v2284
        %v3822 = vunpack.c.h.b16 %v2284
        %v3823 = vunpack.c.l.b16 %v2285
        %v3824 = vunpack.c.h.b16 %v2285
        %v3825 = vunpack.c.l.b16 %v2286
        %v3826 = vunpack.c.h.b16 %v2286
        %v3827 = vunpack.c.l.b16 %v2287
        %v3828 = vunpack.c.h.b16 %v2287
        %v3829 = vunpack.c.l.b16 %v2288
        %v3830 = vunpack.c.h.b16 %v2288
        %v3831 = vunpack.c.l.b16 %v2289
        %v3832 = vunpack.c.h.b16 %v2289
        %v3833 = vunpack.c.l.b16 %v2290
        %v3834 = vunpack.c.h.b16 %v2290
        %v3835 = vunpack.c.l.b16 %v2291
        %v3836 = vunpack.c.h.b16 %v2291
        %v3837 = vunpack.c.l.b16 %v2292
        %v3838 = vunpack.c.h.b16 %v2292
        %v3839 = vunpack.c.l.b16 %v2293
        %v3840 = vunpack.c.h.b16 %v2293
        %v3841 = vunpack.c.l.b16 %v2294
        %v3842 = vunpack.c.h.b16 %v2294
        %v3843 = vunpack.c.l.b16 %v2295
        %v3844 = vunpack.c.h.b16 %v2295
        %v3845 = vunpack.c.l.b16 %v2296
        %v3846 = vunpack.c.h.b16 %v2296
        %v3847 = vunpack.c.l.b16 %v2297
        %v3848 = vunpack.c.h.b16 %v2297
        %v3849 = vunpack.c.l.b16 %v2298
        %v3850 = vunpack.c.h.b16 %v2298
        %v3851 = vunpack.c.l.b16 %v2299
        %v3852 = vunpack.c.h.b16 %v2299
        %v3853 = vunpack.c.l.b16 %v2300
        %v3854 = vunpack.c.h.b16 %v2300
        %v3855 = vunpack.c.l.b16 %v2301
        %v3856 = vunpack.c.h.b16 %v2301
        %v3857 = vunpack.c.l.b16 %v2302
        %v3858 = vunpack.c.h.b16 %v2302
        %v3859 = vunpack.c.l.b16 %v2303
        %v3860 = vunpack.c.h.b16 %v2303
        %v3861 = vunpack.c.l.b16 %v2304
        %v3862 = vunpack.c.h.b16 %v2304
        %v3863 = vunpack.c.l.b16 %v2305
        %v3864 = vunpack.c.h.b16 %v2305
        %v3865 = vunpack.c.l.b16 %v2306
        %v3866 = vunpack.c.h.b16 %v2306
        %v3867 = vunpack.c.l.b16 %v2307
        %v3868 = vunpack.c.h.b16 %v2307
        %v3869 = vunpack.c.l.b16 %v2308
        %v3870 = vunpack.c.h.b16 %v2308
        %v3871 = vunpack.c.l.b16 %v2309
        %v3872 = vunpack.c.h.b16 %v2309
        %v3873 = vunpack.c.l.b16 %v2310
        %v3874 = vunpack.c.h.b16 %v2310
        %v3875 = vunpack.c.l.b16 %v2311
        %v3876 = vunpack.c.h.b16 %v2311
        %v3877 = vunpack.c.l.b16 %v2312
        %v3878 = vunpack.c.h.b16 %v2312
        %v3879 = vunpack.c.l.b16 %v2313
        %v3880 = vunpack.c.h.b16 %v2313
        %v3881 = vunpack.c.l.b16 %v2314
        %v3882 = vunpack.c.h.b16 %v2314
        %v3883 = vunpack.c.l.b16 %v2315
        %v3884 = vunpack.c.h.b16 %v2315
        %v3885 = vunpack.c.l.b16 %v2316
        %v3886 = vunpack.c.h.b16 %v2316
        %v3887 = vunpack.c.l.b16 %v2317
        %v3888 = vunpack.c.h.b16 %v2317
        %v3889 = vunpack.c.l.b16 %v2318
        %v3890 = vunpack.c.h.b16 %v2318
        %v3891 = vunpack.c.l.b16 %v2319
        %v3892 = vunpack.c.h.b16 %v2319
        %v3893 = vunpack.c.l.b16 %v2320
        %v3894 = vunpack.c.h.b16 %v2320
        %v3895 = vunpack.c.l.b16 %v2321
        %v3896 = vunpack.c.h.b16 %v2321
        %v3897 = vunpack.c.l.b16 %v2322
        %v3898 = vunpack.c.h.b16 %v2322
        %v3899 = vunpack.c.l.b16 %v2323
        %v3900 = vunpack.c.h.b16 %v2323
        %v3901 = vunpack.c.l.b16 %v2324
        %v3902 = vunpack.c.h.b16 %v2324
        %v3903 = vpack.c.b16 %v2887, %v2879
        %v3904 = vpack.c.b16 %v2888, %v2880
        %v3905 = vpack.c.b16 %v2889, %v2881
        %v3906 = vpack.c.b16 %v2890, %v2882
        %v3907 = vpack.c.b16 %v2891, %v2883
        %v3908 = vpack.c.b16 %v2892, %v2884
        %v3909 = vpack.c.b16 %v2893, %v2885
        %v3910 = vpack.c.b16 %v2894, %v2886
        %v3911 = vpack.c.b16 %v2903, %v2895
        %v3912 = vpack.c.b16 %v2904, %v2896
        %v3913 = vpack.c.b16 %v2905, %v2897
        %v3914 = vpack.c.b16 %v2906, %v2898
        %v3915 = vpack.c.b16 %v2907, %v2899
        %v3916 = vpack.c.b16 %v2908, %v2900
        %v3917 = vpack.c.b16 %v2909, %v2901
        %v3918 = vpack.c.b16 %v2910, %v2902
        %v3919 = vpack.c.b16 %v2919, %v2911
        %v3920 = vpack.c.b16 %v2920, %v2912
        %v3921 = vpack.c.b16 %v2921, %v2913
        %v3922 = vpack.c.b16 %v2922, %v2914
        %v3923 = vpack.c.b16 %v2923, %v2915
        %v3924 = vpack.c.b16 %v2924, %v2916
        %v3925 = vpack.c.b16 %v2925, %v2917
        %v3926 = vpack.c.b16 %v2926, %v2918
        %v3927 = vpack.c.b16 %v2935, %v2927
        %v3928 = vpack.c.b16 %v2936, %v2928
        %v3929 = vpack.c.b16 %v2937, %v2929
        %v3930 = vpack.c.b16 %v2938, %v2930
        %v3931 = vpack.c.b16 %v2939, %v2931
        %v3932 = vpack.c.b16 %v2940, %v2932
        %v3933 = vpack.c.b16 %v2941, %v2933
        %v3934 = vpack.c.b16 %v2942, %v2934
        %v3935 = vpack.c.b16 %v2951, %v2943
        %v3936 = vpack.c.b16 %v2952, %v2944
        %v3937 = vpack.c.b16 %v2953, %v2945
        %v3938 = vpack.c.b16 %v2954, %v2946
        %v3939 = vpack.c.b16 %v2955, %v2947
        %v3940 = vpack.c.b16 %v2956, %v2948
        %v3941 = vpack.c.b16 %v2957, %v2949
        %v3942 = vpack.c.b16 %v2958, %v2950
        %v3943 = vpack.c.b16 %v2967, %v2959
        %v3944 = vpack.c.b16 %v2968, %v2960
        %v3945 = vpack.c.b16 %v2969, %v2961
        %v3946 = vpack.c.b16 %v2970, %v2962
        %v3947 = vpack.c.b16 %v2971, %v2963
        %v3948 = vpack.c.b16 %v2972, %v2964
        %v3949 = vpack.c.b16 %v2973, %v2965
        %v3950 = vpack.c.b16 %v2974, %v2966
        %v3951 = vpack.c.b16 %v2983, %v2975
        %v3952 = vpack.c.b16 %v2984, %v2976
        %v3953 = vpack.c.b16 %v2985, %v2977
        %v3954 = vpack.c.b16 %v2986, %v2978
        %v3955 = vpack.c.b16 %v2987, %v2979
        %v3956 = vpack.c.b16 %v2988, %v2980
        %v3957 = vpack.c.b16 %v2989, %v2981
        %v3958 = vpack.c.b16 %v2990, %v2982
        %v3959 = vpack.c.b16 %v2999, %v2991
        %v3960 = vpack.c.b16 %v3000, %v2992
        %v3961 = vpack.c.b16 %v3001, %v2993
        %v3962 = vpack.c.b16 %v3002, %v2994
        %v3963 = vpack.c.b16 %v3003, %v2995
        %v3964 = vpack.c.b16 %v3004, %v2996
        %v3965 = vpack.c.b16 %v3005, %v2997
        %v3966 = vpack.c.b16 %v3006, %v2998
        %v3967 = vpack.c.b16 %v3015, %v3007
        %v3968 = vpack.c.b16 %v3016, %v3008
        %v3969 = vpack.c.b16 %v3017, %v3009
        %v3970 = vpack.c.b16 %v3018, %v3010
        %v3971 = vpack.c.b16 %v3019, %v3011
        %v3972 = vpack.c.b16 %v3020, %v3012
        %v3973 = vpack.c.b16 %v3021, %v3013
        %v3974 = vpack.c.b16 %v3022, %v3014
        %v3975 = vpack.c.b16 %v3031, %v3023
        %v3976 = vpack.c.b16 %v3032, %v3024
        %v3977 = vpack.c.b16 %v3033, %v3025
        %v3978 = vpack.c.b16 %v3034, %v3026
        %v3979 = vpack.c.b16 %v3035, %v3027
        %v3980 = vpack.c.b16 %v3036, %v3028
        %v3981 = vpack.c.b16 %v3037, %v3029
        %v3982 = vpack.c.b16 %v3038, %v3030
        %v3983 = vpack.c.b16 %v3047, %v3039
        %v3984 = vpack.c.b16 %v3048, %v3040
        %v3985 = vpack.c.b16 %v3049, %v3041
        %v3986 = vpack.c.b16 %v3050, %v3042
        %v3987 = vpack.c.b16 %v3051, %v3043
        %v3988 = vpack.c.b16 %v3052, %v3044
        %v3989 = vpack.c.b16 %v3053, %v3045
        %v3990 = vpack.c.b16 %v3054, %v3046
        %v3991 = vpack.c.b16 %v3063, %v3055
        %v3992 = vpack.c.b16 %v3064, %v3056
        %v3993 = vpack.c.b16 %v3065, %v3057
        %v3994 = vpack.c.b16 %v3066, %v3058
        %v3995 = vpack.c.b16 %v3067, %v3059
        %v3996 = vpack.c.b16 %v3068, %v3060
        %v3997 = vpack.c.b16 %v3069, %v3061
        %v3998 = vpack.c.b16 %v3070, %v3062
        %v3999 = vpack.c.b16 %v3079, %v3071
        %v4000 = vpack.c.b16 %v3080, %v3072
        %v4001 = vpack.c.b16 %v3081, %v3073
        %v4002 = vpack.c.b16 %v3082, %v3074
        %v4003 = vpack.c.b16 %v3083, %v3075
        %v4004 = vpack.c.b16 %v3084, %v3076
        %v4005 = vpack.c.b16 %v3085, %v3077
        %v4006 = vpack.c.b16 %v3086, %v3078
        %v4007 = vpack.c.b16 %v3095, %v3087
        %v4008 = vpack.c.b16 %v3096, %v3088
        %v4009 = vpack.c.b16 %v3097, %v3089
        %v4010 = vpack.c.b16 %v3098, %v3090
        %v4011 = vpack.c.b16 %v3099, %v3091
        %v4012 = vpack.c.b16 %v3100, %v3092
        %v4013 = vpack.c.b16 %v3101, %v3093
        %v4014 = vpack.c.b16 %v3102, %v3094
        %v4015 = vpack.c.b16 %v3111, %v3103
        %v4016 = vpack.c.b16 %v3112, %v3104
        %v4017 = vpack.c.b16 %v3113, %v3105
        %v4018 = vpack.c.b16 %v3114, %v3106
        %v4019 = vpack.c.b16 %v3115, %v3107
        %v4020 = vpack.c.b16 %v3116, %v3108
        %v4021 = vpack.c.b16 %v3117, %v3109
        %v4022 = vpack.c.b16 %v3118, %v3110
        %v4023 = vpack.c.b16 %v3127, %v3119
        %v4024 = vpack.c.b16 %v3128, %v3120
        %v4025 = vpack.c.b16 %v3129, %v3121
        %v4026 = vpack.c.b16 %v3130, %v3122
        %v4027 = vpack.c.b16 %v3131, %v3123
        %v4028 = vpack.c.b16 %v3132, %v3124
        %v4029 = vpack.c.b16 %v3133, %v3125
        %v4030 = vpack.c.b16 %v3134, %v3126
        %v4031 = vpack.c.b16 %v3143, %v3135
        %v4032 = vpack.c.b16 %v3144, %v3136
        %v4033 = vpack.c.b16 %v3145, %v3137
        %v4034 = vpack.c.b16 %v3146, %v3138
        %v4035 = vpack.c.b16 %v3147, %v3139
        %v4036 = vpack.c.b16 %v3148, %v3140
        %v4037 = vpack.c.b16 %v3149, %v3141
        %v4038 = vpack.c.b16 %v3150, %v3142
        %v4039 = vpack.c.b16 %v3159, %v3151
        %v4040 = vpack.c.b16 %v3160, %v3152
        %v4041 = vpack.c.b16 %v3161, %v3153
        %v4042 = vpack.c.b16 %v3162, %v3154
        %v4043 = vpack.c.b16 %v3163, %v3155
        %v4044 = vpack.c.b16 %v3164, %v3156
        %v4045 = vpack.c.b16 %v3165, %v3157
        %v4046 = vpack.c.b16 %v3166, %v3158
        %v4047 = vpack.c.b16 %v3175, %v3167
        %v4048 = vpack.c.b16 %v3176, %v3168
        %v4049 = vpack.c.b16 %v3177, %v3169
        %v4050 = vpack.c.b16 %v3178, %v3170
        %v4051 = vpack.c.b16 %v3179, %v3171
        %v4052 = vpack.c.b16 %v3180, %v3172
        %v4053 = vpack.c.b16 %v3181, %v3173
        %v4054 = vpack.c.b16 %v3182, %v3174
        %v4055 = vpack.c.b16 %v3191, %v3183
        %v4056 = vpack.c.b16 %v3192, %v3184
        %v4057 = vpack.c.b16 %v3193, %v3185
        %v4058 = vpack.c.b16 %v3194, %v3186
        %v4059 = vpack.c.b16 %v3195, %v3187
        %v4060 = vpack.c.b16 %v3196, %v3188
        %v4061 = vpack.c.b16 %v3197, %v3189
        %v4062 = vpack.c.b16 %v3198, %v3190
        %v4063 = vpack.c.b16 %v3207, %v3199
        %v4064 = vpack.c.b16 %v3208, %v3200
        %v4065 = vpack.c.b16 %v3209, %v3201
        %v4066 = vpack.c.b16 %v3210, %v3202
        %v4067 = vpack.c.b16 %v3211, %v3203
        %v4068 = vpack.c.b16 %v3212, %v3204
        %v4069 = vpack.c.b16 %v3213, %v3205
        %v4070 = vpack.c.b16 %v3214, %v3206
        %v4071 = vpack.c.b16 %v3223, %v3215
        %v4072 = vpack.c.b16 %v3224, %v3216
        %v4073 = vpack.c.b16 %v3225, %v3217
        %v4074 = vpack.c.b16 %v3226, %v3218
        %v4075 = vpack.c.b16 %v3227, %v3219
        %v4076 = vpack.c.b16 %v3228, %v3220
        %v4077 = vpack.c.b16 %v3229, %v3221
        %v4078 = vpack.c.b16 %v3230, %v3222
        %v4079 = vpack.c.b16 %v3239, %v3231
        %v4080 = vpack.c.b16 %v3240, %v3232
        %v4081 = vpack.c.b16 %v3241, %v3233
        %v4082 = vpack.c.b16 %v3242, %v3234
        %v4083 = vpack.c.b16 %v3243, %v3235
        %v4084 = vpack.c.b16 %v3244, %v3236
        %v4085 = vpack.c.b16 %v3245, %v3237
        %v4086 = vpack.c.b16 %v3246, %v3238
        %v4087 = vpack.c.b16 %v3255, %v3247
        %v4088 = vpack.c.b16 %v3256, %v3248
        %v4089 = vpack.c.b16 %v3257, %v3249
        %v4090 = vpack.c.b16 %v3258, %v3250
        %v4091 = vpack.c.b16 %v3259, %v3251
        %v4092 = vpack.c.b16 %v3260, %v3252
        %v4093 = vpack.c.b16 %v3261, %v3253
        %v4094 = vpack.c.b16 %v3262, %v3254
        %v4095 = vpack.c.b16 %v3271, %v3263
        %v4096 = vpack.c.b16 %v3272, %v3264
        %v4097 = vpack.c.b16 %v3273, %v3265
        %v4098 = vpack.c.b16 %v3274, %v3266
        %v4099 = vpack.c.b16 %v3275, %v3267
        %v4100 = vpack.c.b16 %v3276, %v3268
        %v4101 = vpack.c.b16 %v3277, %v3269
        %v4102 = vpack.c.b16 %v3278, %v3270
        %v4103 = vpack.c.b16 %v3287, %v3279
        %v4104 = vpack.c.b16 %v3288, %v3280
        %v4105 = vpack.c.b16 %v3289, %v3281
        %v4106 = vpack.c.b16 %v3290, %v3282
        %v4107 = vpack.c.b16 %v3291, %v3283
        %v4108 = vpack.c.b16 %v3292, %v3284
        %v4109 = vpack.c.b16 %v3293, %v3285
        %v4110 = vpack.c.b16 %v3294, %v3286
        %v4111 = vpack.c.b16 %v3303, %v3295
        %v4112 = vpack.c.b16 %v3304, %v3296
        %v4113 = vpack.c.b16 %v3305, %v3297
        %v4114 = vpack.c.b16 %v3306, %v3298
        %v4115 = vpack.c.b16 %v3307, %v3299
        %v4116 = vpack.c.b16 %v3308, %v3300
        %v4117 = vpack.c.b16 %v3309, %v3301
        %v4118 = vpack.c.b16 %v3310, %v3302
        %v4119 = vpack.c.b16 %v3319, %v3311
        %v4120 = vpack.c.b16 %v3320, %v3312
        %v4121 = vpack.c.b16 %v3321, %v3313
        %v4122 = vpack.c.b16 %v3322, %v3314
        %v4123 = vpack.c.b16 %v3323, %v3315
        %v4124 = vpack.c.b16 %v3324, %v3316
        %v4125 = vpack.c.b16 %v3325, %v3317
        %v4126 = vpack.c.b16 %v3326, %v3318
        %v4127 = vpack.c.b16 %v3335, %v3327
        %v4128 = vpack.c.b16 %v3336, %v3328
        %v4129 = vpack.c.b16 %v3337, %v3329
        %v4130 = vpack.c.b16 %v3338, %v3330
        %v4131 = vpack.c.b16 %v3339, %v3331
        %v4132 = vpack.c.b16 %v3340, %v3332
        %v4133 = vpack.c.b16 %v3341, %v3333
        %v4134 = vpack.c.b16 %v3342, %v3334
        %v4135 = vpack.c.b16 %v3351, %v3343
        %v4136 = vpack.c.b16 %v3352, %v3344
        %v4137 = vpack.c.b16 %v3353, %v3345
        %v4138 = vpack.c.b16 %v3354, %v3346
        %v4139 = vpack.c.b16 %v3355, %v3347
        %v4140 = vpack.c.b16 %v3356, %v3348
        %v4141 = vpack.c.b16 %v3357, %v3349
        %v4142 = vpack.c.b16 %v3358, %v3350
        %v4143 = vpack.c.b16 %v3367, %v3359
        %v4144 = vpack.c.b16 %v3368, %v3360
        %v4145 = vpack.c.b16 %v3369, %v3361
        %v4146 = vpack.c.b16 %v3370, %v3362
        %v4147 = vpack.c.b16 %v3371, %v3363
        %v4148 = vpack.c.b16 %v3372, %v3364
        %v4149 = vpack.c.b16 %v3373, %v3365
        %v4150 = vpack.c.b16 %v3374, %v3366
        %v4151 = vpack.c.b16 %v3383, %v3375
        %v4152 = vpack.c.b16 %v3384, %v3376
        %v4153 = vpack.c.b16 %v3385, %v3377
        %v4154 = vpack.c.b16 %v3386, %v3378
        %v4155 = vpack.c.b16 %v3387, %v3379
        %v4156 = vpack.c.b16 %v3388, %v3380
        %v4157 = vpack.c.b16 %v3389, %v3381
        %v4158 = vpack.c.b16 %v3390, %v3382
        %v4159 = vpack.c.b16 %v3399, %v3391
        %v4160 = vpack.c.b16 %v3400, %v3392
        %v4161 = vpack.c.b16 %v3401, %v3393
        %v4162 = vpack.c.b16 %v3402, %v3394
        %v4163 = vpack.c.b16 %v3403, %v3395
        %v4164 = vpack.c.b16 %v3404, %v3396
        %v4165 = vpack.c.b16 %v3405, %v3397
        %v4166 = vpack.c.b16 %v3406, %v3398
        %v4167 = vpack.c.b16 %v3415, %v3407
        %v4168 = vpack.c.b16 %v3416, %v3408
        %v4169 = vpack.c.b16 %v3417, %v3409
        %v4170 = vpack.c.b16 %v3418, %v3410
        %v4171 = vpack.c.b16 %v3419, %v3411
        %v4172 = vpack.c.b16 %v3420, %v3412
        %v4173 = vpack.c.b16 %v3421, %v3413
        %v4174 = vpack.c.b16 %v3422, %v3414
        %v4175 = vpack.c.b16 %v3431, %v3423
        %v4176 = vpack.c.b16 %v3432, %v3424
        %v4177 = vpack.c.b16 %v3433, %v3425
        %v4178 = vpack.c.b16 %v3434, %v3426
        %v4179 = vpack.c.b16 %v3435, %v3427
        %v4180 = vpack.c.b16 %v3436, %v3428
        %v4181 = vpack.c.b16 %v3437, %v3429
        %v4182 = vpack.c.b16 %v3438, %v3430
        %v4183 = vpack.c.b16 %v3447, %v3439
        %v4184 = vpack.c.b16 %v3448, %v3440
        %v4185 = vpack.c.b16 %v3449, %v3441
        %v4186 = vpack.c.b16 %v3450, %v3442
        %v4187 = vpack.c.b16 %v3451, %v3443
        %v4188 = vpack.c.b16 %v3452, %v3444
        %v4189 = vpack.c.b16 %v3453, %v3445
        %v4190 = vpack.c.b16 %v3454, %v3446
        %v4191 = vpack.c.b16 %v3463, %v3455
        %v4192 = vpack.c.b16 %v3464, %v3456
        %v4193 = vpack.c.b16 %v3465, %v3457
        %v4194 = vpack.c.b16 %v3466, %v3458
        %v4195 = vpack.c.b16 %v3467, %v3459
        %v4196 = vpack.c.b16 %v3468, %v3460
        %v4197 = vpack.c.b16 %v3469, %v3461
        %v4198 = vpack.c.b16 %v3470, %v3462
        %v4199 = vpack.c.b16 %v3479, %v3471
        %v4200 = vpack.c.b16 %v3480, %v3472
        %v4201 = vpack.c.b16 %v3481, %v3473
        %v4202 = vpack.c.b16 %v3482, %v3474
        %v4203 = vpack.c.b16 %v3483, %v3475
        %v4204 = vpack.c.b16 %v3484, %v3476
        %v4205 = vpack.c.b16 %v3485, %v3477
        %v4206 = vpack.c.b16 %v3486, %v3478
        %v4207 = vpack.c.b16 %v3495, %v3487
        %v4208 = vpack.c.b16 %v3496, %v3488
        %v4209 = vpack.c.b16 %v3497, %v3489
        %v4210 = vpack.c.b16 %v3498, %v3490
        %v4211 = vpack.c.b16 %v3499, %v3491
        %v4212 = vpack.c.b16 %v3500, %v3492
        %v4213 = vpack.c.b16 %v3501, %v3493
        %v4214 = vpack.c.b16 %v3502, %v3494
        %v4215 = vpack.c.b16 %v3511, %v3503
        %v4216 = vpack.c.b16 %v3512, %v3504
        %v4217 = vpack.c.b16 %v3513, %v3505
        %v4218 = vpack.c.b16 %v3514, %v3506
        %v4219 = vpack.c.b16 %v3515, %v3507
        %v4220 = vpack.c.b16 %v3516, %v3508
        %v4221 = vpack.c.b16 %v3517, %v3509
        %v4222 = vpack.c.b16 %v3518, %v3510
        %v4223 = vpack.c.b16 %v3527, %v3519
        %v4224 = vpack.c.b16 %v3528, %v3520
        %v4225 = vpack.c.b16 %v3529, %v3521
        %v4226 = vpack.c.b16 %v3530, %v3522
        %v4227 = vpack.c.b16 %v3531, %v3523
        %v4228 = vpack.c.b16 %v3532, %v3524
        %v4229 = vpack.c.b16 %v3533, %v3525
        %v4230 = vpack.c.b16 %v3534, %v3526
        %v4231 = vpack.c.b16 %v3543, %v3535
        %v4232 = vpack.c.b16 %v3544, %v3536
        %v4233 = vpack.c.b16 %v3545, %v3537
        %v4234 = vpack.c.b16 %v3546, %v3538
        %v4235 = vpack.c.b16 %v3547, %v3539
        %v4236 = vpack.c.b16 %v3548, %v3540
        %v4237 = vpack.c.b16 %v3549, %v3541
        %v4238 = vpack.c.b16 %v3550, %v3542
        %v4239 = vpack.c.b16 %v3559, %v3551
        %v4240 = vpack.c.b16 %v3560, %v3552
        %v4241 = vpack.c.b16 %v3561, %v3553
        %v4242 = vpack.c.b16 %v3562, %v3554
        %v4243 = vpack.c.b16 %v3563, %v3555
        %v4244 = vpack.c.b16 %v3564, %v3556
        %v4245 = vpack.c.b16 %v3565, %v3557
        %v4246 = vpack.c.b16 %v3566, %v3558
        %v4247 = vpack.c.b16 %v3575, %v3567
        %v4248 = vpack.c.b16 %v3576, %v3568
        %v4249 = vpack.c.b16 %v3577, %v3569
        %v4250 = vpack.c.b16 %v3578, %v3570
        %v4251 = vpack.c.b16 %v3579, %v3571
        %v4252 = vpack.c.b16 %v3580, %v3572
        %v4253 = vpack.c.b16 %v3581, %v3573
        %v4254 = vpack.c.b16 %v3582, %v3574
        %v4255 = vpack.c.b16 %v3591, %v3583
        %v4256 = vpack.c.b16 %v3592, %v3584
        %v4257 = vpack.c.b16 %v3593, %v3585
        %v4258 = vpack.c.b16 %v3594, %v3586
        %v4259 = vpack.c.b16 %v3595, %v3587
        %v4260 = vpack.c.b16 %v3596, %v3588
        %v4261 = vpack.c.b16 %v3597, %v3589
        %v4262 = vpack.c.b16 %v3598, %v3590
        %v4263 = vpack.c.b16 %v3607, %v3599
        %v4264 = vpack.c.b16 %v3608, %v3600
        %v4265 = vpack.c.b16 %v3609, %v3601
        %v4266 = vpack.c.b16 %v3610, %v3602
        %v4267 = vpack.c.b16 %v3611, %v3603
        %v4268 = vpack.c.b16 %v3612, %v3604
        %v4269 = vpack.c.b16 %v3613, %v3605
        %v4270 = vpack.c.b16 %v3614, %v3606
        %v4271 = vpack.c.b16 %v3623, %v3615
        %v4272 = vpack.c.b16 %v3624, %v3616
        %v4273 = vpack.c.b16 %v3625, %v3617
        %v4274 = vpack.c.b16 %v3626, %v3618
        %v4275 = vpack.c.b16 %v3627, %v3619
        %v4276 = vpack.c.b16 %v3628, %v3620
        %v4277 = vpack.c.b16 %v3629, %v3621
        %v4278 = vpack.c.b16 %v3630, %v3622
        %v4279 = vpack.c.b16 %v3639, %v3631
        %v4280 = vpack.c.b16 %v3640, %v3632
        %v4281 = vpack.c.b16 %v3641, %v3633
        %v4282 = vpack.c.b16 %v3642, %v3634
        %v4283 = vpack.c.b16 %v3643, %v3635
        %v4284 = vpack.c.b16 %v3644, %v3636
        %v4285 = vpack.c.b16 %v3645, %v3637
        %v4286 = vpack.c.b16 %v3646, %v3638
        %v4287 = vpack.c.b16 %v3655, %v3647
        %v4288 = vpack.c.b16 %v3656, %v3648
        %v4289 = vpack.c.b16 %v3657, %v3649
        %v4290 = vpack.c.b16 %v3658, %v3650
        %v4291 = vpack.c.b16 %v3659, %v3651
        %v4292 = vpack.c.b16 %v3660, %v3652
        %v4293 = vpack.c.b16 %v3661, %v3653
        %v4294 = vpack.c.b16 %v3662, %v3654
        %v4295 = vpack.c.b16 %v3671, %v3663
        %v4296 = vpack.c.b16 %v3672, %v3664
        %v4297 = vpack.c.b16 %v3673, %v3665
        %v4298 = vpack.c.b16 %v3674, %v3666
        %v4299 = vpack.c.b16 %v3675, %v3667
        %v4300 = vpack.c.b16 %v3676, %v3668
        %v4301 = vpack.c.b16 %v3677, %v3669
        %v4302 = vpack.c.b16 %v3678, %v3670
        %v4303 = vpack.c.b16 %v3687, %v3679
        %v4304 = vpack.c.b16 %v3688, %v3680
        %v4305 = vpack.c.b16 %v3689, %v3681
        %v4306 = vpack.c.b16 %v3690, %v3682
        %v4307 = vpack.c.b16 %v3691, %v3683
        %v4308 = vpack.c.b16 %v3692, %v3684
        %v4309 = vpack.c.b16 %v3693, %v3685
        %v4310 = vpack.c.b16 %v3694, %v3686
        %v4311 = vpack.c.b16 %v3703, %v3695
        %v4312 = vpack.c.b16 %v3704, %v3696
        %v4313 = vpack.c.b16 %v3705, %v3697
        %v4314 = vpack.c.b16 %v3706, %v3698
        %v4315 = vpack.c.b16 %v3707, %v3699
        %v4316 = vpack.c.b16 %v3708, %v3700
        %v4317 = vpack.c.b16 %v3709, %v3701
        %v4318 = vpack.c.b16 %v3710, %v3702
        %v4319 = vpack.c.b16 %v3719, %v3711
        %v4320 = vpack.c.b16 %v3720, %v3712
        %v4321 = vpack.c.b16 %v3721, %v3713
        %v4322 = vpack.c.b16 %v3722, %v3714
        %v4323 = vpack.c.b16 %v3723, %v3715
        %v4324 = vpack.c.b16 %v3724, %v3716
        %v4325 = vpack.c.b16 %v3725, %v3717
        %v4326 = vpack.c.b16 %v3726, %v3718
        %v4327 = vpack.c.b16 %v3735, %v3727
        %v4328 = vpack.c.b16 %v3736, %v3728
        %v4329 = vpack.c.b16 %v3737, %v3729
        %v4330 = vpack.c.b16 %v3738, %v3730
        %v4331 = vpack.c.b16 %v3739, %v3731
        %v4332 = vpack.c.b16 %v3740, %v3732
        %v4333 = vpack.c.b16 %v3741, %v3733
        %v4334 = vpack.c.b16 %v3742, %v3734
        %v4335 = vpack.c.b16 %v3751, %v3743
        %v4336 = vpack.c.b16 %v3752, %v3744
        %v4337 = vpack.c.b16 %v3753, %v3745
        %v4338 = vpack.c.b16 %v3754, %v3746
        %v4339 = vpack.c.b16 %v3755, %v3747
        %v4340 = vpack.c.b16 %v3756, %v3748
        %v4341 = vpack.c.b16 %v3757, %v3749
        %v4342 = vpack.c.b16 %v3758, %v3750
        %v4343 = vpack.c.b16 %v3767, %v3759
        %v4344 = vpack.c.b16 %v3768, %v3760
        %v4345 = vpack.c.b16 %v3769, %v3761
        %v4346 = vpack.c.b16 %v3770, %v3762
        %v4347 = vpack.c.b16 %v3771, %v3763
        %v4348 = vpack.c.b16 %v3772, %v3764
        %v4349 = vpack.c.b16 %v3773, %v3765
        %v4350 = vpack.c.b16 %v3774, %v3766
        %v4351 = vpack.c.b16 %v3783, %v3775
        %v4352 = vpack.c.b16 %v3784, %v3776
        %v4353 = vpack.c.b16 %v3785, %v3777
        %v4354 = vpack.c.b16 %v3786, %v3778
        %v4355 = vpack.c.b16 %v3787, %v3779
        %v4356 = vpack.c.b16 %v3788, %v3780
        %v4357 = vpack.c.b16 %v3789, %v3781
        %v4358 = vpack.c.b16 %v3790, %v3782
        %v4359 = vpack.c.b16 %v3799, %v3791
        %v4360 = vpack.c.b16 %v3800, %v3792
        %v4361 = vpack.c.b16 %v3801, %v3793
        %v4362 = vpack.c.b16 %v3802, %v3794
        %v4363 = vpack.c.b16 %v3803, %v3795
        %v4364 = vpack.c.b16 %v3804, %v3796
        %v4365 = vpack.c.b16 %v3805, %v3797
        %v4366 = vpack.c.b16 %v3806, %v3798
        %v4367 = vpack.c.b16 %v3815, %v3807
        %v4368 = vpack.c.b16 %v3816, %v3808
        %v4369 = vpack.c.b16 %v3817, %v3809
        %v4370 = vpack.c.b16 %v3818, %v3810
        %v4371 = vpack.c.b16 %v3819, %v3811
        %v4372 = vpack.c.b16 %v3820, %v3812
        %v4373 = vpack.c.b16 %v3821, %v3813
        %v4374 = vpack.c.b16 %v3822, %v3814
        %v4375 = vpack.c.b16 %v3831, %v3823
        %v4376 = vpack.c.b16 %v3832, %v3824
        %v4377 = vpack.c.b16 %v3833, %v3825
        %v4378 = vpack.c.b16 %v3834, %v3826
        %v4379 = vpack.c.b16 %v3835, %v3827
        %v4380 = vpack.c.b16 %v3836, %v3828
        %v4381 = vpack.c.b16 %v3837, %v3829
        %v4382 = vpack.c.b16 %v3838, %v3830
        %v4383 = vpack.c.b16 %v3847, %v3839
        %v4384 = vpack.c.b16 %v3848, %v3840
        %v4385 = vpack.c.b16 %v3849, %v3841
        %v4386 = vpack.c.b16 %v3850, %v3842
        %v4387 = vpack.c.b16 %v3851, %v3843
        %v4388 = vpack.c.b16 %v3852, %v3844
        %v4389 = vpack.c.b16 %v3853, %v3845
        %v4390 = vpack.c.b16 %v3854, %v3846
        %v4391 = vpack.c.b16 %v3863, %v3855
        %v4392 = vpack.c.b16 %v3864, %v3856
        %v4393 = vpack.c.b16 %v3865, %v3857
        %v4394 = vpack.c.b16 %v3866, %v3858
        %v4395 = vpack.c.b16 %v3867, %v3859
        %v4396 = vpack.c.b16 %v3868, %v3860
        %v4397 = vpack.c.b16 %v3869, %v3861
        %v4398 = vpack.c.b16 %v3870, %v3862
        %v4399 = vpack.c.b16 %v3879, %v3871
        %v4400 = vpack.c.b16 %v3880, %v3872
        %v4401 = vpack.c.b16 %v3881, %v3873
        %v4402 = vpack.c.b16 %v3882, %v3874
        %v4403 = vpack.c.b16 %v3883, %v3875
        %v4404 = vpack.c.b16 %v3884, %v3876
        %v4405 = vpack.c.b16 %v3885, %v3877
        %v4406 = vpack.c.b16 %v3886, %v3878
        %v4407 = vpack.c.b16 %v3895, %v3887
        %v4408 = vpack.c.b16 %v3896, %v3888
        %v4409 = vpack.c.b16 %v3897, %v3889
        %v4410 = vpack.c.b16 %v3898, %v3890
        %v4411 = vpack.c.b16 %v3899, %v3891
        %v4412 = vpack.c.b16 %v3900, %v3892
        %v4413 = vpack.c.b16 %v3901, %v3893
        %v4414 = vpack.c.b16 %v3902, %v3894
        %4927 = vmatprep.subr.bf16.mxu0 %v3960
        %4928 = vmatpush1.bf16.msra.mxu0 %v3959
        %4929 = vmatprep.subr.bf16.mxu0 %v3952
        %4930 = vmatpush1.bf16.msra.mxu0 %v3951
        %4931 = vmatprep.subr.bf16.mxu0 %v3944
        %4932 = vmatpush1.bf16.msra.mxu0 %v3943
        %4933 = vmatprep.subr.bf16.mxu0 %v3936
        %4934 = vmatpush1.bf16.msra.mxu0 %v3935
        %4935 = vmatprep.subr.bf16.mxu0 %v3928
        %4936 = vmatpush1.bf16.msra.mxu0 %v3927
        %4937 = vmatprep.subr.bf16.mxu0 %v3920
        %4938 = vmatpush1.bf16.msra.mxu0 %v3919
        %4939 = vmatprep.subr.bf16.mxu0 %v3912
        %4940 = vmatpush1.bf16.msra.mxu0 %v3911
        %4941 = vmatprep.subr.bf16.mxu0 %v3904
        %4942 = vmatpush1.bf16.msra.mxu0 %v3903
        %4943 = vmatprep.subr.bf16.mxu0 %v4024
        %4944 = vmatpush2.bf16.msra.mxu0 %v4023
        %4945 = vmatprep.subr.bf16.mxu0 %v4016
        %4946 = vmatpush2.bf16.msra.mxu0 %v4015
        %4947 = vmatprep.subr.bf16.mxu0 %v4008
        %4948 = vmatpush2.bf16.msra.mxu0 %v4007
        %4949 = vmatprep.subr.bf16.mxu0 %v4000
        %4950 = vmatpush2.bf16.msra.mxu0 %v3999
        %4951 = vmatprep.subr.bf16.mxu0 %v3992
        %4952 = vmatpush2.bf16.msra.mxu0 %v3991
        %4953 = vmatprep.subr.bf16.mxu0 %v3984
        %4954 = vmatpush2.bf16.msra.mxu0 %v3983
        %4955 = vmatprep.subr.bf16.mxu0 %v3976
        %4956 = vmatpush2.bf16.msra.mxu0 %v3975
        %4957 = vmatprep.subr.bf16.mxu0 %v3968
        %4958 = vmatpush2.bf16.msra.mxu0 %v3967
        %4959 = vmatprep.mubr.bf16.mxu0 %v1806
        %4960 = vmatmul.mubr.bf16.gmra.mxu0 %v1805
        %v4961 = vpop.f32.mrf.mxu0
        %v4962 = vadd.f32 %v2330, %v4961
        %v4963 = vpop.f32.mrf.mxu0
        %v4964 = vadd.f32 %v2334, %v4963
        %v4965 = vpop.f32.mrf.mxu0
        %v4966 = vadd.f32 %v2330, %v4965
        %v4967 = vpop.f32.mrf.mxu0
        %v4968 = vadd.f32 %v2334, %v4967
        %4969 = vdwg.mxu0
        %4970 = vmatprep.subr.bf16.mxu0 %v4088
        %4971 = vmatpush1.bf16.msra.mxu0 %v4087
        %4972 = vmatprep.subr.bf16.mxu0 %v4080
        %4973 = vmatpush1.bf16.msra.mxu0 %v4079
        %4974 = vmatprep.subr.bf16.mxu0 %v4072
        %4975 = vmatpush1.bf16.msra.mxu0 %v4071
        %4976 = vmatprep.subr.bf16.mxu0 %v4064
        %4977 = vmatpush1.bf16.msra.mxu0 %v4063
        %4978 = vmatprep.subr.bf16.mxu0 %v4056
        %4979 = vmatpush1.bf16.msra.mxu0 %v4055
        %4980 = vmatprep.subr.bf16.mxu0 %v4048
        %4981 = vmatpush1.bf16.msra.mxu0 %v4047
        %4982 = vmatprep.subr.bf16.mxu0 %v4040
        %4983 = vmatpush1.bf16.msra.mxu0 %v4039
        %4984 = vmatprep.subr.bf16.mxu0 %v4032
        %4985 = vmatpush1.bf16.msra.mxu0 %v4031
        %4986 = vmatprep.subr.bf16.mxu0 %v4152
        %4987 = vmatpush2.bf16.msra.mxu0 %v4151
        %4988 = vmatprep.subr.bf16.mxu0 %v4144
        %4989 = vmatpush2.bf16.msra.mxu0 %v4143
        %4990 = vmatprep.subr.bf16.mxu0 %v4136
        %4991 = vmatpush2.bf16.msra.mxu0 %v4135
        %4992 = vmatprep.subr.bf16.mxu0 %v4128
        %4993 = vmatpush2.bf16.msra.mxu0 %v4127
        %4994 = vmatprep.subr.bf16.mxu0 %v4120
        %4995 = vmatpush2.bf16.msra.mxu0 %v4119
        %4996 = vmatprep.subr.bf16.mxu0 %v4112
        %4997 = vmatpush2.bf16.msra.mxu0 %v4111
        %4998 = vmatprep.subr.bf16.mxu0 %v4104
        %4999 = vmatpush2.bf16.msra.mxu0 %v4103
        %5000 = vmatprep.subr.bf16.mxu0 %v4096
        %5001 = vmatpush2.bf16.msra.mxu0 %v4095
        %5002 = vmatprep.mubr.bf16.mxu0 %v1808
        %5003 = vmatmul.mubr.bf16.gmra.mxu0 %v1807
        %v5004 = vpop.f32.mrf.mxu0
        %v5005 = vadd.f32 %v4962, %v5004
        %v5006 = vpop.f32.mrf.mxu0
        %v5007 = vadd.f32 %v4964, %v5006
        %v5008 = vpop.f32.mrf.mxu0
        %v5009 = vadd.f32 %v4966, %v5008
        %v5010 = vpop.f32.mrf.mxu0
        %v5011 = vadd.f32 %v4968, %v5010
        %5012 = vdwg.mxu0
        %5013 = vmatprep.subr.bf16.mxu0 %v4216
        %5014 = vmatpush1.bf16.msra.mxu0 %v4215
        %5015 = vmatprep.subr.bf16.mxu0 %v4208
        %5016 = vmatpush1.bf16.msra.mxu0 %v4207
        %5017 = vmatprep.subr.bf16.mxu0 %v4200
        %5018 = vmatpush1.bf16.msra.mxu0 %v4199
        %5019 = vmatprep.subr.bf16.mxu0 %v4192
        %5020 = vmatpush1.bf16.msra.mxu0 %v4191
        %5021 = vmatprep.subr.bf16.mxu0 %v4184
        %5022 = vmatpush1.bf16.msra.mxu0 %v4183
        %5023 = vmatprep.subr.bf16.mxu0 %v4176
        %5024 = vmatpush1.bf16.msra.mxu0 %v4175
        %5025 = vmatprep.subr.bf16.mxu0 %v4168
        %5026 = vmatpush1.bf16.msra.mxu0 %v4167
        %5027 = vmatprep.subr.bf16.mxu0 %v4160
        %5028 = vmatpush1.bf16.msra.mxu0 %v4159
        %5029 = vmatprep.subr.bf16.mxu0 %v4280
        %5030 = vmatpush2.bf16.msra.mxu0 %v4279
        %5031 = vmatprep.subr.bf16.mxu0 %v4272
        %5032 = vmatpush2.bf16.msra.mxu0 %v4271
        %5033 = vmatprep.subr.bf16.mxu0 %v4264
        %5034 = vmatpush2.bf16.msra.mxu0 %v4263
        %5035 = vmatprep.subr.bf16.mxu0 %v4256
        %5036 = vmatpush2.bf16.msra.mxu0 %v4255
        %5037 = vmatprep.subr.bf16.mxu0 %v4248
        %5038 = vmatpush2.bf16.msra.mxu0 %v4247
        %5039 = vmatprep.subr.bf16.mxu0 %v4240
        %5040 = vmatpush2.bf16.msra.mxu0 %v4239
        %5041 = vmatprep.subr.bf16.mxu0 %v4232
        %5042 = vmatpush2.bf16.msra.mxu0 %v4231
        %5043 = vmatprep.subr.bf16.mxu0 %v4224
        %5044 = vmatpush2.bf16.msra.mxu0 %v4223
        %5045 = vmatprep.mubr.bf16.mxu0 %v1810
        %5046 = vmatmul.mubr.bf16.gmra.mxu0 %v1809
        %v5047 = vpop.f32.mrf.mxu0
        %v5048 = vadd.f32 %v5005, %v5047
        %v5049 = vpop.f32.mrf.mxu0
        %v5050 = vadd.f32 %v5007, %v5049
        %v5051 = vpop.f32.mrf.mxu0
        %v5052 = vadd.f32 %v5009, %v5051
        %v5053 = vpop.f32.mrf.mxu0
        %v5054 = vadd.f32 %v5011, %v5053
        %5055 = vdwg.mxu0
        %5056 = vmatprep.subr.bf16.mxu0 %v4344
        %5057 = vmatpush1.bf16.msra.mxu0 %v4343
        %5058 = vmatprep.subr.bf16.mxu0 %v4336
        %5059 = vmatpush1.bf16.msra.mxu0 %v4335
        %5060 = vmatprep.subr.bf16.mxu0 %v4328
        %5061 = vmatpush1.bf16.msra.mxu0 %v4327
        %5062 = vmatprep.subr.bf16.mxu0 %v4320
        %5063 = vmatpush1.bf16.msra.mxu0 %v4319
        %5064 = vmatprep.subr.bf16.mxu0 %v4312
        %5065 = vmatpush1.bf16.msra.mxu0 %v4311
        %5066 = vmatprep.subr.bf16.mxu0 %v4304
        %5067 = vmatpush1.bf16.msra.mxu0 %v4303
        %5068 = vmatprep.subr.bf16.mxu0 %v4296
        %5069 = vmatpush1.bf16.msra.mxu0 %v4295
        %5070 = vmatprep.subr.bf16.mxu0 %v4288
        %5071 = vmatpush1.bf16.msra.mxu0 %v4287
        %5072 = vmatprep.subr.bf16.mxu0 %v4408
        %5073 = vmatpush2.bf16.msra.mxu0 %v4407
        %5074 = vmatprep.subr.bf16.mxu0 %v4400
        %5075 = vmatpush2.bf16.msra.mxu0 %v4399
        %5076 = vmatprep.subr.bf16.mxu0 %v4392
        %5077 = vmatpush2.bf16.msra.mxu0 %v4391
        %5078 = vmatprep.subr.bf16.mxu0 %v4384
        %5079 = vmatpush2.bf16.msra.mxu0 %v4383
        %5080 = vmatprep.subr.bf16.mxu0 %v4376
        %5081 = vmatpush2.bf16.msra.mxu0 %v4375
        %5082 = vmatprep.subr.bf16.mxu0 %v4368
        %5083 = vmatpush2.bf16.msra.mxu0 %v4367
        %5084 = vmatprep.subr.bf16.mxu0 %v4360
        %5085 = vmatpush2.bf16.msra.mxu0 %v4359
        %5086 = vmatprep.subr.bf16.mxu0 %v4352
        %5087 = vmatpush2.bf16.msra.mxu0 %v4351
        %5088 = vmatprep.mubr.bf16.mxu0 %v1812
        %5089 = vmatmul.mubr.bf16.gmra.mxu0 %v1811
        %v5090 = vpop.f32.mrf.mxu0
        %v5091 = vadd.f32 %v5048, %v5090
        %v5092 = vpop.f32.mrf.mxu0
        %v5093 = vadd.f32 %v5050, %v5092
        %v5094 = vpop.f32.mrf.mxu0
        %v5095 = vadd.f32 %v5052, %v5094
        %v5096 = vpop.f32.mrf.mxu0
        %v5097 = vadd.f32 %v5054, %v5096
        %5098 = vdwg.mxu0
        %5099 = vmatprep.subr.bf16.mxu0 %v3962
        %5100 = vmatpush1.bf16.msra.mxu0 %v3961
        %5101 = vmatprep.subr.bf16.mxu0 %v3954
        %5102 = vmatpush1.bf16.msra.mxu0 %v3953
        %5103 = vmatprep.subr.bf16.mxu0 %v3946
        %5104 = vmatpush1.bf16.msra.mxu0 %v3945
        %5105 = vmatprep.subr.bf16.mxu0 %v3938
        %5106 = vmatpush1.bf16.msra.mxu0 %v3937
        %5107 = vmatprep.subr.bf16.mxu0 %v3930
        %5108 = vmatpush1.bf16.msra.mxu0 %v3929
        %5109 = vmatprep.subr.bf16.mxu0 %v3922
        %5110 = vmatpush1.bf16.msra.mxu0 %v3921
        %5111 = vmatprep.subr.bf16.mxu0 %v3914
        %5112 = vmatpush1.bf16.msra.mxu0 %v3913
        %5113 = vmatprep.subr.bf16.mxu0 %v3906
        %5114 = vmatpush1.bf16.msra.mxu0 %v3905
        %5115 = vmatprep.subr.bf16.mxu0 %v4026
        %5116 = vmatpush2.bf16.msra.mxu0 %v4025
        %5117 = vmatprep.subr.bf16.mxu0 %v4018
        %5118 = vmatpush2.bf16.msra.mxu0 %v4017
        %5119 = vmatprep.subr.bf16.mxu0 %v4010
        %5120 = vmatpush2.bf16.msra.mxu0 %v4009
        %5121 = vmatprep.subr.bf16.mxu0 %v4002
        %5122 = vmatpush2.bf16.msra.mxu0 %v4001
        %5123 = vmatprep.subr.bf16.mxu0 %v3994
        %5124 = vmatpush2.bf16.msra.mxu0 %v3993
        %5125 = vmatprep.subr.bf16.mxu0 %v3986
        %5126 = vmatpush2.bf16.msra.mxu0 %v3985
        %5127 = vmatprep.subr.bf16.mxu0 %v3978
        %5128 = vmatpush2.bf16.msra.mxu0 %v3977
        %5129 = vmatprep.subr.bf16.mxu0 %v3970
        %5130 = vmatpush2.bf16.msra.mxu0 %v3969
        %5131 = vmatprep.mubr.bf16.mxu0 %v1806
        %5132 = vmatmul.mubr.bf16.gmra.mxu0 %v1805
        %v5133 = vpop.f32.mrf.mxu0
        %v5134 = vadd.f32 %v2338, %v5133
        %v5135 = vpop.f32.mrf.mxu0
        %v5136 = vadd.f32 %v2342, %v5135
        %v5137 = vpop.f32.mrf.mxu0
        %v5138 = vadd.f32 %v2338, %v5137
        %v5139 = vpop.f32.mrf.mxu0
        %v5140 = vadd.f32 %v2342, %v5139
        %5141 = vdwg.mxu0
        %5142 = vmatprep.subr.bf16.mxu0 %v4090
        %5143 = vmatpush1.bf16.msra.mxu0 %v4089
        %5144 = vmatprep.subr.bf16.mxu0 %v4082
        %5145 = vmatpush1.bf16.msra.mxu0 %v4081
        %5146 = vmatprep.subr.bf16.mxu0 %v4074
        %5147 = vmatpush1.bf16.msra.mxu0 %v4073
        %5148 = vmatprep.subr.bf16.mxu0 %v4066
        %5149 = vmatpush1.bf16.msra.mxu0 %v4065
        %5150 = vmatprep.subr.bf16.mxu0 %v4058
        %5151 = vmatpush1.bf16.msra.mxu0 %v4057
        %5152 = vmatprep.subr.bf16.mxu0 %v4050
        %5153 = vmatpush1.bf16.msra.mxu0 %v4049
        %5154 = vmatprep.subr.bf16.mxu0 %v4042
        %5155 = vmatpush1.bf16.msra.mxu0 %v4041
        %5156 = vmatprep.subr.bf16.mxu0 %v4034
        %5157 = vmatpush1.bf16.msra.mxu0 %v4033
        %5158 = vmatprep.subr.bf16.mxu0 %v4154
        %5159 = vmatpush2.bf16.msra.mxu0 %v4153
        %5160 = vmatprep.subr.bf16.mxu0 %v4146
        %5161 = vmatpush2.bf16.msra.mxu0 %v4145
        %5162 = vmatprep.subr.bf16.mxu0 %v4138
        %5163 = vmatpush2.bf16.msra.mxu0 %v4137
        %5164 = vmatprep.subr.bf16.mxu0 %v4130
        %5165 = vmatpush2.bf16.msra.mxu0 %v4129
        %5166 = vmatprep.subr.bf16.mxu0 %v4122
        %5167 = vmatpush2.bf16.msra.mxu0 %v4121
        %5168 = vmatprep.subr.bf16.mxu0 %v4114
        %5169 = vmatpush2.bf16.msra.mxu0 %v4113
        %5170 = vmatprep.subr.bf16.mxu0 %v4106
        %5171 = vmatpush2.bf16.msra.mxu0 %v4105
        %5172 = vmatprep.subr.bf16.mxu0 %v4098
        %5173 = vmatpush2.bf16.msra.mxu0 %v4097
        %5174 = vmatprep.mubr.bf16.mxu0 %v1808
        %5175 = vmatmul.mubr.bf16.gmra.mxu0 %v1807
        %v5176 = vpop.f32.mrf.mxu0
        %v5177 = vadd.f32 %v5134, %v5176
        %v5178 = vpop.f32.mrf.mxu0
        %v5179 = vadd.f32 %v5136, %v5178
        %v5180 = vpop.f32.mrf.mxu0
        %v5181 = vadd.f32 %v5138, %v5180
        %v5182 = vpop.f32.mrf.mxu0
        %v5183 = vadd.f32 %v5140, %v5182
        %5184 = vdwg.mxu0
        %5185 = vmatprep.subr.bf16.mxu0 %v4218
        %5186 = vmatpush1.bf16.msra.mxu0 %v4217
        %5187 = vmatprep.subr.bf16.mxu0 %v4210
        %5188 = vmatpush1.bf16.msra.mxu0 %v4209
        %5189 = vmatprep.subr.bf16.mxu0 %v4202
        %5190 = vmatpush1.bf16.msra.mxu0 %v4201
        %5191 = vmatprep.subr.bf16.mxu0 %v4194
        %5192 = vmatpush1.bf16.msra.mxu0 %v4193
        %5193 = vmatprep.subr.bf16.mxu0 %v4186
        %5194 = vmatpush1.bf16.msra.mxu0 %v4185
        %5195 = vmatprep.subr.bf16.mxu0 %v4178
        %5196 = vmatpush1.bf16.msra.mxu0 %v4177
        %5197 = vmatprep.subr.bf16.mxu0 %v4170
        %5198 = vmatpush1.bf16.msra.mxu0 %v4169
        %5199 = vmatprep.subr.bf16.mxu0 %v4162
        %5200 = vmatpush1.bf16.msra.mxu0 %v4161
        %5201 = vmatprep.subr.bf16.mxu0 %v4282
        %5202 = vmatpush2.bf16.msra.mxu0 %v4281
        %5203 = vmatprep.subr.bf16.mxu0 %v4274
        %5204 = vmatpush2.bf16.msra.mxu0 %v4273
        %5205 = vmatprep.subr.bf16.mxu0 %v4266
        %5206 = vmatpush2.bf16.msra.mxu0 %v4265
        %5207 = vmatprep.subr.bf16.mxu0 %v4258
        %5208 = vmatpush2.bf16.msra.mxu0 %v4257
        %5209 = vmatprep.subr.bf16.mxu0 %v4250
        %5210 = vmatpush2.bf16.msra.mxu0 %v4249
        %5211 = vmatprep.subr.bf16.mxu0 %v4242
        %5212 = vmatpush2.bf16.msra.mxu0 %v4241
        %5213 = vmatprep.subr.bf16.mxu0 %v4234
        %5214 = vmatpush2.bf16.msra.mxu0 %v4233
        %5215 = vmatprep.subr.bf16.mxu0 %v4226
        %5216 = vmatpush2.bf16.msra.mxu0 %v4225
        %5217 = vmatprep.mubr.bf16.mxu0 %v1810
        %5218 = vmatmul.mubr.bf16.gmra.mxu0 %v1809
        %v5219 = vpop.f32.mrf.mxu0
        %v5220 = vadd.f32 %v5177, %v5219
        %v5221 = vpop.f32.mrf.mxu0
        %v5222 = vadd.f32 %v5179, %v5221
        %v5223 = vpop.f32.mrf.mxu0
        %v5224 = vadd.f32 %v5181, %v5223
        %v5225 = vpop.f32.mrf.mxu0
        %v5226 = vadd.f32 %v5183, %v5225
        %5227 = vdwg.mxu0
        %5228 = vmatprep.subr.bf16.mxu0 %v4346
        %5229 = vmatpush1.bf16.msra.mxu0 %v4345
        %5230 = vmatprep.subr.bf16.mxu0 %v4338
        %5231 = vmatpush1.bf16.msra.mxu0 %v4337
        %5232 = vmatprep.subr.bf16.mxu0 %v4330
        %5233 = vmatpush1.bf16.msra.mxu0 %v4329
        %5234 = vmatprep.subr.bf16.mxu0 %v4322
        %5235 = vmatpush1.bf16.msra.mxu0 %v4321
        %5236 = vmatprep.subr.bf16.mxu0 %v4314
        %5237 = vmatpush1.bf16.msra.mxu0 %v4313
        %5238 = vmatprep.subr.bf16.mxu0 %v4306
        %5239 = vmatpush1.bf16.msra.mxu0 %v4305
        %5240 = vmatprep.subr.bf16.mxu0 %v4298
        %5241 = vmatpush1.bf16.msra.mxu0 %v4297
        %5242 = vmatprep.subr.bf16.mxu0 %v4290
        %5243 = vmatpush1.bf16.msra.mxu0 %v4289
        %5244 = vmatprep.subr.bf16.mxu0 %v4410
        %5245 = vmatpush2.bf16.msra.mxu0 %v4409
        %5246 = vmatprep.subr.bf16.mxu0 %v4402
        %5247 = vmatpush2.bf16.msra.mxu0 %v4401
        %5248 = vmatprep.subr.bf16.mxu0 %v4394
        %5249 = vmatpush2.bf16.msra.mxu0 %v4393
        %5250 = vmatprep.subr.bf16.mxu0 %v4386
        %5251 = vmatpush2.bf16.msra.mxu0 %v4385
        %5252 = vmatprep.subr.bf16.mxu0 %v4378
        %5253 = vmatpush2.bf16.msra.mxu0 %v4377
        %5254 = vmatprep.subr.bf16.mxu0 %v4370
        %5255 = vmatpush2.bf16.msra.mxu0 %v4369
        %5256 = vmatprep.subr.bf16.mxu0 %v4362
        %5257 = vmatpush2.bf16.msra.mxu0 %v4361
        %5258 = vmatprep.subr.bf16.mxu0 %v4354
        %5259 = vmatpush2.bf16.msra.mxu0 %v4353
        %5260 = vmatprep.mubr.bf16.mxu0 %v1812
        %5261 = vmatmul.mubr.bf16.gmra.mxu0 %v1811
        %v5262 = vpop.f32.mrf.mxu0
        %v5263 = vadd.f32 %v5220, %v5262
        %v5264 = vpop.f32.mrf.mxu0
        %v5265 = vadd.f32 %v5222, %v5264
        %v5266 = vpop.f32.mrf.mxu0
        %v5267 = vadd.f32 %v5224, %v5266
        %v5268 = vpop.f32.mrf.mxu0
        %v5269 = vadd.f32 %v5226, %v5268
        %5270 = vdwg.mxu0
        %5271 = vmatprep.subr.bf16.mxu0 %v3964
        %5272 = vmatpush1.bf16.msra.mxu0 %v3963
        %5273 = vmatprep.subr.bf16.mxu0 %v3956
        %5274 = vmatpush1.bf16.msra.mxu0 %v3955
        %5275 = vmatprep.subr.bf16.mxu0 %v3948
        %5276 = vmatpush1.bf16.msra.mxu0 %v3947
        %5277 = vmatprep.subr.bf16.mxu0 %v3940
        %5278 = vmatpush1.bf16.msra.mxu0 %v3939
        %5279 = vmatprep.subr.bf16.mxu0 %v3932
        %5280 = vmatpush1.bf16.msra.mxu0 %v3931
        %5281 = vmatprep.subr.bf16.mxu0 %v3924
        %5282 = vmatpush1.bf16.msra.mxu0 %v3923
        %5283 = vmatprep.subr.bf16.mxu0 %v3916
        %5284 = vmatpush1.bf16.msra.mxu0 %v3915
        %5285 = vmatprep.subr.bf16.mxu0 %v3908
        %5286 = vmatpush1.bf16.msra.mxu0 %v3907
        %5287 = vmatprep.subr.bf16.mxu0 %v4028
        %5288 = vmatpush2.bf16.msra.mxu0 %v4027
        %5289 = vmatprep.subr.bf16.mxu0 %v4020
        %5290 = vmatpush2.bf16.msra.mxu0 %v4019
        %5291 = vmatprep.subr.bf16.mxu0 %v4012
        %5292 = vmatpush2.bf16.msra.mxu0 %v4011
        %5293 = vmatprep.subr.bf16.mxu0 %v4004
        %5294 = vmatpush2.bf16.msra.mxu0 %v4003
        %5295 = vmatprep.subr.bf16.mxu0 %v3996
        %5296 = vmatpush2.bf16.msra.mxu0 %v3995
        %5297 = vmatprep.subr.bf16.mxu0 %v3988
        %5298 = vmatpush2.bf16.msra.mxu0 %v3987
        %5299 = vmatprep.subr.bf16.mxu0 %v3980
        %5300 = vmatpush2.bf16.msra.mxu0 %v3979
        %5301 = vmatprep.subr.bf16.mxu0 %v3972
        %5302 = vmatpush2.bf16.msra.mxu0 %v3971
        %5303 = vmatprep.mubr.bf16.mxu0 %v1806
        %5304 = vmatmul.mubr.bf16.gmra.mxu0 %v1805
        %v5305 = vpop.f32.mrf.mxu0
        %v5306 = vadd.f32 %v2346, %v5305
        %v5307 = vpop.f32.mrf.mxu0
        %v5308 = vadd.f32 %v2350, %v5307
        %v5309 = vpop.f32.mrf.mxu0
        %v5310 = vadd.f32 %v2346, %v5309
        %v5311 = vpop.f32.mrf.mxu0
        %v5312 = vadd.f32 %v2350, %v5311
        %5313 = vdwg.mxu0
        %5314 = vmatprep.subr.bf16.mxu0 %v4092
        %5315 = vmatpush1.bf16.msra.mxu0 %v4091
        %5316 = vmatprep.subr.bf16.mxu0 %v4084
        %5317 = vmatpush1.bf16.msra.mxu0 %v4083
        %5318 = vmatprep.subr.bf16.mxu0 %v4076
        %5319 = vmatpush1.bf16.msra.mxu0 %v4075
        %5320 = vmatprep.subr.bf16.mxu0 %v4068
        %5321 = vmatpush1.bf16.msra.mxu0 %v4067
        %5322 = vmatprep.subr.bf16.mxu0 %v4060
        %5323 = vmatpush1.bf16.msra.mxu0 %v4059
        %5324 = vmatprep.subr.bf16.mxu0 %v4052
        %5325 = vmatpush1.bf16.msra.mxu0 %v4051
        %5326 = vmatprep.subr.bf16.mxu0 %v4044
        %5327 = vmatpush1.bf16.msra.mxu0 %v4043
        %5328 = vmatprep.subr.bf16.mxu0 %v4036
        %5329 = vmatpush1.bf16.msra.mxu0 %v4035
        %5330 = vmatprep.subr.bf16.mxu0 %v4156
        %5331 = vmatpush2.bf16.msra.mxu0 %v4155
        %5332 = vmatprep.subr.bf16.mxu0 %v4148
        %5333 = vmatpush2.bf16.msra.mxu0 %v4147
        %5334 = vmatprep.subr.bf16.mxu0 %v4140
        %5335 = vmatpush2.bf16.msra.mxu0 %v4139
        %5336 = vmatprep.subr.bf16.mxu0 %v4132
        %5337 = vmatpush2.bf16.msra.mxu0 %v4131
        %5338 = vmatprep.subr.bf16.mxu0 %v4124
        %5339 = vmatpush2.bf16.msra.mxu0 %v4123
        %5340 = vmatprep.subr.bf16.mxu0 %v4116
        %5341 = vmatpush2.bf16.msra.mxu0 %v4115
        %5342 = vmatprep.subr.bf16.mxu0 %v4108
        %5343 = vmatpush2.bf16.msra.mxu0 %v4107
        %5344 = vmatprep.subr.bf16.mxu0 %v4100
        %5345 = vmatpush2.bf16.msra.mxu0 %v4099
        %5346 = vmatprep.mubr.bf16.mxu0 %v1808
        %5347 = vmatmul.mubr.bf16.gmra.mxu0 %v1807
        %v5348 = vpop.f32.mrf.mxu0
        %v5349 = vadd.f32 %v5306, %v5348
        %v5350 = vpop.f32.mrf.mxu0
        %v5351 = vadd.f32 %v5308, %v5350
        %v5352 = vpop.f32.mrf.mxu0
        %v5353 = vadd.f32 %v5310, %v5352
        %v5354 = vpop.f32.mrf.mxu0
        %v5355 = vadd.f32 %v5312, %v5354
        %5356 = vdwg.mxu0
        %5357 = vmatprep.subr.bf16.mxu0 %v4220
        %5358 = vmatpush1.bf16.msra.mxu0 %v4219
        %5359 = vmatprep.subr.bf16.mxu0 %v4212
        %5360 = vmatpush1.bf16.msra.mxu0 %v4211
        %5361 = vmatprep.subr.bf16.mxu0 %v4204
        %5362 = vmatpush1.bf16.msra.mxu0 %v4203
        %5363 = vmatprep.subr.bf16.mxu0 %v4196
        %5364 = vmatpush1.bf16.msra.mxu0 %v4195
        %5365 = vmatprep.subr.bf16.mxu0 %v4188
        %5366 = vmatpush1.bf16.msra.mxu0 %v4187
        %5367 = vmatprep.subr.bf16.mxu0 %v4180
        %5368 = vmatpush1.bf16.msra.mxu0 %v4179
        %5369 = vmatprep.subr.bf16.mxu0 %v4172
        %5370 = vmatpush1.bf16.msra.mxu0 %v4171
        %5371 = vmatprep.subr.bf16.mxu0 %v4164
        %5372 = vmatpush1.bf16.msra.mxu0 %v4163
        %5373 = vmatprep.subr.bf16.mxu0 %v4284
        %5374 = vmatpush2.bf16.msra.mxu0 %v4283
        %5375 = vmatprep.subr.bf16.mxu0 %v4276
        %5376 = vmatpush2.bf16.msra.mxu0 %v4275
        %5377 = vmatprep.subr.bf16.mxu0 %v4268
        %5378 = vmatpush2.bf16.msra.mxu0 %v4267
        %5379 = vmatprep.subr.bf16.mxu0 %v4260
        %5380 = vmatpush2.bf16.msra.mxu0 %v4259
        %5381 = vmatprep.subr.bf16.mxu0 %v4252
        %5382 = vmatpush2.bf16.msra.mxu0 %v4251
        %5383 = vmatprep.subr.bf16.mxu0 %v4244
        %5384 = vmatpush2.bf16.msra.mxu0 %v4243
        %5385 = vmatprep.subr.bf16.mxu0 %v4236
        %5386 = vmatpush2.bf16.msra.mxu0 %v4235
        %5387 = vmatprep.subr.bf16.mxu0 %v4228
        %5388 = vmatpush2.bf16.msra.mxu0 %v4227
        %5389 = vmatprep.mubr.bf16.mxu0 %v1810
        %5390 = vmatmul.mubr.bf16.gmra.mxu0 %v1809
        %v5391 = vpop.f32.mrf.mxu0
        %v5392 = vadd.f32 %v5349, %v5391
        %v5393 = vpop.f32.mrf.mxu0
        %v5394 = vadd.f32 %v5351, %v5393
        %v5395 = vpop.f32.mrf.mxu0
        %v5396 = vadd.f32 %v5353, %v5395
        %v5397 = vpop.f32.mrf.mxu0
        %v5398 = vadd.f32 %v5355, %v5397
        %5399 = vdwg.mxu0
        %5400 = vmatprep.subr.bf16.mxu0 %v4348
        %5401 = vmatpush1.bf16.msra.mxu0 %v4347
        %5402 = vmatprep.subr.bf16.mxu0 %v4340
        %5403 = vmatpush1.bf16.msra.mxu0 %v4339
        %5404 = vmatprep.subr.bf16.mxu0 %v4332
        %5405 = vmatpush1.bf16.msra.mxu0 %v4331
        %5406 = vmatprep.subr.bf16.mxu0 %v4324
        %5407 = vmatpush1.bf16.msra.mxu0 %v4323
        %5408 = vmatprep.subr.bf16.mxu0 %v4316
        %5409 = vmatpush1.bf16.msra.mxu0 %v4315
        %5410 = vmatprep.subr.bf16.mxu0 %v4308
        %5411 = vmatpush1.bf16.msra.mxu0 %v4307
        %5412 = vmatprep.subr.bf16.mxu0 %v4300
        %5413 = vmatpush1.bf16.msra.mxu0 %v4299
        %5414 = vmatprep.subr.bf16.mxu0 %v4292
        %5415 = vmatpush1.bf16.msra.mxu0 %v4291
        %5416 = vmatprep.subr.bf16.mxu0 %v4412
        %5417 = vmatpush2.bf16.msra.mxu0 %v4411
        %5418 = vmatprep.subr.bf16.mxu0 %v4404
        %5419 = vmatpush2.bf16.msra.mxu0 %v4403
        %5420 = vmatprep.subr.bf16.mxu0 %v4396
        %5421 = vmatpush2.bf16.msra.mxu0 %v4395
        %5422 = vmatprep.subr.bf16.mxu0 %v4388
        %5423 = vmatpush2.bf16.msra.mxu0 %v4387
        %5424 = vmatprep.subr.bf16.mxu0 %v4380
        %5425 = vmatpush2.bf16.msra.mxu0 %v4379
        %5426 = vmatprep.subr.bf16.mxu0 %v4372
        %5427 = vmatpush2.bf16.msra.mxu0 %v4371
        %5428 = vmatprep.subr.bf16.mxu0 %v4364
        %5429 = vmatpush2.bf16.msra.mxu0 %v4363
        %5430 = vmatprep.subr.bf16.mxu0 %v4356
        %5431 = vmatpush2.bf16.msra.mxu0 %v4355
        %5432 = vmatprep.mubr.bf16.mxu0 %v1812
        %5433 = vmatmul.mubr.bf16.gmra.mxu0 %v1811
        %v5434 = vpop.f32.mrf.mxu0
        %v5435 = vadd.f32 %v5392, %v5434
        %v5436 = vpop.f32.mrf.mxu0
        %v5437 = vadd.f32 %v5394, %v5436
        %v5438 = vpop.f32.mrf.mxu0
        %v5439 = vadd.f32 %v5396, %v5438
        %v5440 = vpop.f32.mrf.mxu0
        %v5441 = vadd.f32 %v5398, %v5440
        %5442 = vdwg.mxu0
        %5443 = vmatprep.subr.bf16.mxu0 %v3966
        %5444 = vmatpush1.bf16.msra.mxu0 %v3965
        %5445 = vmatprep.subr.bf16.mxu0 %v3958
        %5446 = vmatpush1.bf16.msra.mxu0 %v3957
        %5447 = vmatprep.subr.bf16.mxu0 %v3950
        %5448 = vmatpush1.bf16.msra.mxu0 %v3949
        %5449 = vmatprep.subr.bf16.mxu0 %v3942
        %5450 = vmatpush1.bf16.msra.mxu0 %v3941
        %5451 = vmatprep.subr.bf16.mxu0 %v3934
        %5452 = vmatpush1.bf16.msra.mxu0 %v3933
        %5453 = vmatprep.subr.bf16.mxu0 %v3926
        %5454 = vmatpush1.bf16.msra.mxu0 %v3925
        %5455 = vmatprep.subr.bf16.mxu0 %v3918
        %5456 = vmatpush1.bf16.msra.mxu0 %v3917
        %5457 = vmatprep.subr.bf16.mxu0 %v3910
        %5458 = vmatpush1.bf16.msra.mxu0 %v3909
        %5459 = vmatprep.subr.bf16.mxu0 %v4030
        %5460 = vmatpush2.bf16.msra.mxu0 %v4029
        %5461 = vmatprep.subr.bf16.mxu0 %v4022
        %5462 = vmatpush2.bf16.msra.mxu0 %v4021
        %5463 = vmatprep.subr.bf16.mxu0 %v4014
        %5464 = vmatpush2.bf16.msra.mxu0 %v4013
        %5465 = vmatprep.subr.bf16.mxu0 %v4006
        %5466 = vmatpush2.bf16.msra.mxu0 %v4005
        %5467 = vmatprep.subr.bf16.mxu0 %v3998
        %5468 = vmatpush2.bf16.msra.mxu0 %v3997
        %5469 = vmatprep.subr.bf16.mxu0 %v3990
        %5470 = vmatpush2.bf16.msra.mxu0 %v3989
        %5471 = vmatprep.subr.bf16.mxu0 %v3982
        %5472 = vmatpush2.bf16.msra.mxu0 %v3981
        %5473 = vmatprep.subr.bf16.mxu0 %v3974
        %5474 = vmatpush2.bf16.msra.mxu0 %v3973
        %5475 = vmatprep.mubr.bf16.mxu0 %v1806
        %5476 = vmatmul.mubr.bf16.gmra.mxu0 %v1805
        %v5477 = vpop.f32.mrf.mxu0
        %v5478 = vadd.f32 %v2354, %v5477
        %v5479 = vpop.f32.mrf.mxu0
        %v5480 = vadd.f32 %v2358, %v5479
        %v5481 = vpop.f32.mrf.mxu0
        %v5482 = vadd.f32 %v2354, %v5481
        %v5483 = vpop.f32.mrf.mxu0
        %v5484 = vadd.f32 %v2358, %v5483
        %5485 = vdwg.mxu0
        %5486 = vmatprep.subr.bf16.mxu0 %v4094
        %5487 = vmatpush1.bf16.msra.mxu0 %v4093
        %5488 = vmatprep.subr.bf16.mxu0 %v4086
        %5489 = vmatpush1.bf16.msra.mxu0 %v4085
        %5490 = vmatprep.subr.bf16.mxu0 %v4078
        %5491 = vmatpush1.bf16.msra.mxu0 %v4077
        %5492 = vmatprep.subr.bf16.mxu0 %v4070
        %5493 = vmatpush1.bf16.msra.mxu0 %v4069
        %5494 = vmatprep.subr.bf16.mxu0 %v4062
        %5495 = vmatpush1.bf16.msra.mxu0 %v4061
        %5496 = vmatprep.subr.bf16.mxu0 %v4054
        %5497 = vmatpush1.bf16.msra.mxu0 %v4053
        %5498 = vmatprep.subr.bf16.mxu0 %v4046
        %5499 = vmatpush1.bf16.msra.mxu0 %v4045
        %5500 = vmatprep.subr.bf16.mxu0 %v4038
        %5501 = vmatpush1.bf16.msra.mxu0 %v4037
        %5502 = vmatprep.subr.bf16.mxu0 %v4158
        %5503 = vmatpush2.bf16.msra.mxu0 %v4157
        %5504 = vmatprep.subr.bf16.mxu0 %v4150
        %5505 = vmatpush2.bf16.msra.mxu0 %v4149
        %5506 = vmatprep.subr.bf16.mxu0 %v4142
        %5507 = vmatpush2.bf16.msra.mxu0 %v4141
        %5508 = vmatprep.subr.bf16.mxu0 %v4134
        %5509 = vmatpush2.bf16.msra.mxu0 %v4133
        %5510 = vmatprep.subr.bf16.mxu0 %v4126
        %5511 = vmatpush2.bf16.msra.mxu0 %v4125
        %5512 = vmatprep.subr.bf16.mxu0 %v4118
        %5513 = vmatpush2.bf16.msra.mxu0 %v4117
        %5514 = vmatprep.subr.bf16.mxu0 %v4110
        %5515 = vmatpush2.bf16.msra.mxu0 %v4109
        %5516 = vmatprep.subr.bf16.mxu0 %v4102
        %5517 = vmatpush2.bf16.msra.mxu0 %v4101
        %5518 = vmatprep.mubr.bf16.mxu0 %v1808
        %5519 = vmatmul.mubr.bf16.gmra.mxu0 %v1807
        %v5520 = vpop.f32.mrf.mxu0
        %v5521 = vadd.f32 %v5478, %v5520
        %v5522 = vpop.f32.mrf.mxu0
        %v5523 = vadd.f32 %v5480, %v5522
        %v5524 = vpop.f32.mrf.mxu0
        %v5525 = vadd.f32 %v5482, %v5524
        %v5526 = vpop.f32.mrf.mxu0
        %v5527 = vadd.f32 %v5484, %v5526
        %5528 = vdwg.mxu0
        %5529 = vmatprep.subr.bf16.mxu0 %v4222
        %5530 = vmatpush1.bf16.msra.mxu0 %v4221
        %5531 = vmatprep.subr.bf16.mxu0 %v4214
        %5532 = vmatpush1.bf16.msra.mxu0 %v4213
        %5533 = vmatprep.subr.bf16.mxu0 %v4206
        %5534 = vmatpush1.bf16.msra.mxu0 %v4205
        %5535 = vmatprep.subr.bf16.mxu0 %v4198
        %5536 = vmatpush1.bf16.msra.mxu0 %v4197
        %5537 = vmatprep.subr.bf16.mxu0 %v4190
        %5538 = vmatpush1.bf16.msra.mxu0 %v4189
        %5539 = vmatprep.subr.bf16.mxu0 %v4182
        %5540 = vmatpush1.bf16.msra.mxu0 %v4181
        %5541 = vmatprep.subr.bf16.mxu0 %v4174
        %5542 = vmatpush1.bf16.msra.mxu0 %v4173
        %5543 = vmatprep.subr.bf16.mxu0 %v4166
        %5544 = vmatpush1.bf16.msra.mxu0 %v4165
        %5545 = vmatprep.subr.bf16.mxu0 %v4286
        %5546 = vmatpush2.bf16.msra.mxu0 %v4285
        %5547 = vmatprep.subr.bf16.mxu0 %v4278
        %5548 = vmatpush2.bf16.msra.mxu0 %v4277
        %5549 = vmatprep.subr.bf16.mxu0 %v4270
        %5550 = vmatpush2.bf16.msra.mxu0 %v4269
        %5551 = vmatprep.subr.bf16.mxu0 %v4262
        %5552 = vmatpush2.bf16.msra.mxu0 %v4261
        %5553 = vmatprep.subr.bf16.mxu0 %v4254
        %5554 = vmatpush2.bf16.msra.mxu0 %v4253
        %5555 = vmatprep.subr.bf16.mxu0 %v4246
        %5556 = vmatpush2.bf16.msra.mxu0 %v4245
        %5557 = vmatprep.subr.bf16.mxu0 %v4238
        %5558 = vmatpush2.bf16.msra.mxu0 %v4237
        %5559 = vmatprep.subr.bf16.mxu0 %v4230
        %5560 = vmatpush2.bf16.msra.mxu0 %v4229
        %5561 = vmatprep.mubr.bf16.mxu0 %v1810
        %5562 = vmatmul.mubr.bf16.gmra.mxu0 %v1809
        %v5563 = vpop.f32.mrf.mxu0
        %v5564 = vadd.f32 %v5521, %v5563
        %v5565 = vpop.f32.mrf.mxu0
        %v5566 = vadd.f32 %v5523, %v5565
        %v5567 = vpop.f32.mrf.mxu0
        %v5568 = vadd.f32 %v5525, %v5567
        %v5569 = vpop.f32.mrf.mxu0
        %v5570 = vadd.f32 %v5527, %v5569
        %5571 = vdwg.mxu0
        %5572 = vmatprep.subr.bf16.mxu0 %v4350
        %5573 = vmatpush1.bf16.msra.mxu0 %v4349
        %5574 = vmatprep.subr.bf16.mxu0 %v4342
        %5575 = vmatpush1.bf16.msra.mxu0 %v4341
        %5576 = vmatprep.subr.bf16.mxu0 %v4334
        %5577 = vmatpush1.bf16.msra.mxu0 %v4333
        %5578 = vmatprep.subr.bf16.mxu0 %v4326
        %5579 = vmatpush1.bf16.msra.mxu0 %v4325
        %5580 = vmatprep.subr.bf16.mxu0 %v4318
        %5581 = vmatpush1.bf16.msra.mxu0 %v4317
        %5582 = vmatprep.subr.bf16.mxu0 %v4310
        %5583 = vmatpush1.bf16.msra.mxu0 %v4309
        %5584 = vmatprep.subr.bf16.mxu0 %v4302
        %5585 = vmatpush1.bf16.msra.mxu0 %v4301
        %5586 = vmatprep.subr.bf16.mxu0 %v4294
        %5587 = vmatpush1.bf16.msra.mxu0 %v4293
        %5588 = vmatprep.subr.bf16.mxu0 %v4414
        %5589 = vmatpush2.bf16.msra.mxu0 %v4413
        %5590 = vmatprep.subr.bf16.mxu0 %v4406
        %5591 = vmatpush2.bf16.msra.mxu0 %v4405
        %5592 = vmatprep.subr.bf16.mxu0 %v4398
        %5593 = vmatpush2.bf16.msra.mxu0 %v4397
        %5594 = vmatprep.subr.bf16.mxu0 %v4390
        %5595 = vmatpush2.bf16.msra.mxu0 %v4389
        %5596 = vmatprep.subr.bf16.mxu0 %v4382
        %5597 = vmatpush2.bf16.msra.mxu0 %v4381
        %5598 = vmatprep.subr.bf16.mxu0 %v4374
        %5599 = vmatpush2.bf16.msra.mxu0 %v4373
        %5600 = vmatprep.subr.bf16.mxu0 %v4366
        %5601 = vmatpush2.bf16.msra.mxu0 %v4365
        %5602 = vmatprep.subr.bf16.mxu0 %v4358
        %5603 = vmatpush2.bf16.msra.mxu0 %v4357
        %5604 = vmatprep.mubr.bf16.mxu0 %v1812
        %5605 = vmatmul.mubr.bf16.gmra.mxu0 %v1811
        %v5606 = vpop.f32.mrf.mxu0
        %v5607 = vadd.f32 %v5564, %v5606
        %v5608 = vpop.f32.mrf.mxu0
        %v5609 = vadd.f32 %v5566, %v5608
        %v5610 = vpop.f32.mrf.mxu0
        %v5611 = vadd.f32 %v5568, %v5610
        %v5612 = vpop.f32.mrf.mxu0
        %v5613 = vadd.f32 %v5570, %v5612
        %5614 = vdwg.mxu0
        %vm5615 = vcmp.gt.f32.partialorder %v5091, 0.0
        %vm5616 = vcmp.gt.f32.partialorder %v5093, 0.0
        %vm5617 = vcmp.gt.f32.partialorder %v5263, 0.0
        %vm5618 = vcmp.gt.f32.partialorder %v5265, 0.0
        %vm5619 = vcmp.gt.f32.partialorder %v5435, 0.0
        %vm5620 = vcmp.gt.f32.partialorder %v5437, 0.0
        %vm5621 = vcmp.gt.f32.partialorder %v5607, 0.0
        %vm5622 = vcmp.gt.f32.partialorder %v5609, 0.0
        %vm5623 = vcmp.gt.f32.partialorder %v5095, 0.0
        %vm5624 = vcmp.gt.f32.partialorder %v5097, 0.0
        %vm5625 = vcmp.gt.f32.partialorder %v5267, 0.0
        %vm5626 = vcmp.gt.f32.partialorder %v5269, 0.0
        %vm5627 = vcmp.gt.f32.partialorder %v5439, 0.0
        %vm5628 = vcmp.gt.f32.partialorder %v5441, 0.0
        %vm5629 = vcmp.gt.f32.partialorder %v5611, 0.0
        %vm5630 = vcmp.gt.f32.partialorder %v5613, 0.0
        %v5631 = vmul.f32 %v5091, 0.2
        %v5632 = vmul.f32 %v5093, 0.2
        %v5633 = vmul.f32 %v5263, 0.2
        %v5634 = vmul.f32 %v5265, 0.2
        %v5635 = vmul.f32 %v5435, 0.2
        %v5636 = vmul.f32 %v5437, 0.2
        %v5637 = vmul.f32 %v5607, 0.2
        %v5638 = vmul.f32 %v5609, 0.2
        %v5639 = vmul.f32 %v5095, 0.2
        %v5640 = vmul.f32 %v5097, 0.2
        %v5641 = vmul.f32 %v5267, 0.2
        %v5642 = vmul.f32 %v5269, 0.2
        %v5643 = vmul.f32 %v5439, 0.2
        %v5644 = vmul.f32 %v5441, 0.2
        %v5645 = vmul.f32 %v5611, 0.2
        %v5646 = vmul.f32 %v5613, 0.2
        %v5647 = vsel %vm5615, %v5091, %v5631
        %v5648 = vsel %vm5616, %v5093, %v5632
        %v5649 = vsel %vm5617, %v5263, %v5633
        %v5650 = vsel %vm5618, %v5265, %v5634
        %v5651 = vsel %vm5619, %v5435, %v5635
        %v5652 = vsel %vm5620, %v5437, %v5636
        %v5653 = vsel %vm5621, %v5607, %v5637
        %v5654 = vsel %vm5622, %v5609, %v5638
        %v5655 = vsel %vm5623, %v5095, %v5639
        %v5656 = vsel %vm5624, %v5097, %v5640
        %v5657 = vsel %vm5625, %v5267, %v5641
        %v5658 = vsel %vm5626, %v5269, %v5642
        %v5659 = vsel %vm5627, %v5439, %v5643
        %v5660 = vsel %vm5628, %v5441, %v5644
        %v5661 = vsel %vm5629, %v5611, %v5645
        %v5662 = vsel %vm5630, %v5613, %v5646
        %v5663 = vpack.c.bf16 %v5655, %v5647
        %v5664 = vpack.c.bf16 %v5656, %v5648
        %v5665 = vpack.c.bf16 %v5657, %v5649
        %v5666 = vpack.c.bf16 %v5658, %v5650
        %v5667 = vpack.c.bf16 %v5659, %v5651
        %v5668 = vpack.c.bf16 %v5660, %v5652
        %v5669 = vpack.c.bf16 %v5661, %v5653
        %v5670 = vpack.c.bf16 %v5662, %v5654
        %v5671 = vld [vmem:[#allocation14] sm:$0xff]
        %v5672 = vld [vmem:[#allocation14 + $0x8] sm:$0xff]
        %v5673 = vld [vmem:[#allocation14 + $0x10] sm:$0xff]
        %v5674 = vld [vmem:[#allocation14 + $0x18] sm:$0xff]
        %v5675 = vld [vmem:[#allocation14 + $0x20] sm:$0xff]
        %v5676 = vld [vmem:[#allocation14 + $0x28] sm:$0xff]
        %v5677 = vld [vmem:[#allocation14 + $0x30] sm:$0xff]
        %v5678 = vld [vmem:[#allocation14 + $0x38] sm:$0xff]
        %v5679 = vld [vmem:[#allocation14 + $0x40] sm:$0xff]
        %v5680 = vld [vmem:[#allocation14 + $0x48] sm:$0xff]
        %v5681 = vld [vmem:[#allocation14 + $0x50] sm:$0xff]
        %v5682 = vld [vmem:[#allocation14 + $0x58] sm:$0xff]
        %v5683 = vld [vmem:[#allocation14 + $0x60] sm:$0xff]
        %v5684 = vld [vmem:[#allocation14 + $0x68] sm:$0xff]
        %v5685 = vld [vmem:[#allocation14 + $0x70] sm:$0xff]
        %v5686 = vld [vmem:[#allocation14 + $0x78] sm:$0xff]
        %v5687 = vld [vmem:[#allocation14 + $0x80] sm:$0xff]
        %v5688 = vld [vmem:[#allocation14 + $0x88] sm:$0xff]
        %v5689 = vld [vmem:[#allocation14 + $0x90] sm:$0xff]
        %v5690 = vld [vmem:[#allocation14 + $0x98] sm:$0xff]
        %v5691 = vld [vmem:[#allocation14 + $0xa0] sm:$0xff]
        %v5692 = vld [vmem:[#allocation14 + $0xa8] sm:$0xff]
        %v5693 = vld [vmem:[#allocation14 + $0xb0] sm:$0xff]
        %v5694 = vld [vmem:[#allocation14 + $0xb8] sm:$0xff]
        %v5695 = vld [vmem:[#allocation14 + $0xc0] sm:$0xff]
        %v5696 = vld [vmem:[#allocation14 + $0xc8] sm:$0xff]
        %v5697 = vld [vmem:[#allocation14 + $0xd0] sm:$0xff]
        %v5698 = vld [vmem:[#allocation14 + $0xd8] sm:$0xff]
        %v5699 = vld [vmem:[#allocation14 + $0xe0] sm:$0xff]
        %v5700 = vld [vmem:[#allocation14 + $0xe8] sm:$0xff]
        %v5701 = vld [vmem:[#allocation14 + $0xf0] sm:$0xff]
        %v5702 = vld [vmem:[#allocation14 + $0xf8] sm:$0xff]
        %v5703 = vld [vmem:[#allocation14 + $0x100] sm:$0xff]
        %v5704 = vld [vmem:[#allocation14 + $0x108] sm:$0xff]
        %v5705 = vld [vmem:[#allocation14 + $0x110] sm:$0xff]
        %v5706 = vld [vmem:[#allocation14 + $0x118] sm:$0xff]
        %v5707 = vld [vmem:[#allocation14 + $0x120] sm:$0xff]
        %v5708 = vld [vmem:[#allocation14 + $0x128] sm:$0xff]
        %v5709 = vld [vmem:[#allocation14 + $0x130] sm:$0xff]
        %v5710 = vld [vmem:[#allocation14 + $0x138] sm:$0xff]
        %v5711 = vld [vmem:[#allocation14 + $0x140] sm:$0xff]
        %v5712 = vld [vmem:[#allocation14 + $0x148] sm:$0xff]
        %v5713 = vld [vmem:[#allocation14 + $0x150] sm:$0xff]
        %v5714 = vld [vmem:[#allocation14 + $0x158] sm:$0xff]
        %v5715 = vld [vmem:[#allocation14 + $0x160] sm:$0xff]
        %v5716 = vld [vmem:[#allocation14 + $0x168] sm:$0xff]
        %v5717 = vld [vmem:[#allocation14 + $0x170] sm:$0xff]
        %v5718 = vld [vmem:[#allocation14 + $0x178] sm:$0xff]
        %v5719 = vld [vmem:[#allocation14 + $0x180] sm:$0xff]
        %v5720 = vld [vmem:[#allocation14 + $0x188] sm:$0xff]
        %v5721 = vld [vmem:[#allocation14 + $0x190] sm:$0xff]
        %v5722 = vld [vmem:[#allocation14 + $0x198] sm:$0xff]
        %v5723 = vld [vmem:[#allocation14 + $0x1a0] sm:$0xff]
        %v5724 = vld [vmem:[#allocation14 + $0x1a8] sm:$0xff]
        %v5725 = vld [vmem:[#allocation14 + $0x1b0] sm:$0xff]
        %v5726 = vld [vmem:[#allocation14 + $0x1b8] sm:$0xff]
        %v5727 = vld [vmem:[#allocation14 + $0x1c0] sm:$0xff]
        %v5728 = vld [vmem:[#allocation14 + $0x1c8] sm:$0xff]
        %v5729 = vld [vmem:[#allocation14 + $0x1d0] sm:$0xff]
        %v5730 = vld [vmem:[#allocation14 + $0x1d8] sm:$0xff]
        %v5731 = vld [vmem:[#allocation14 + $0x1e0] sm:$0xff]
        %v5732 = vld [vmem:[#allocation14 + $0x1e8] sm:$0xff]
        %v5733 = vld [vmem:[#allocation14 + $0x1f0] sm:$0xff]
        %v5734 = vld [vmem:[#allocation14 + $0x1f8] sm:$0xff]
        %v5735 = vld [vmem:[#allocation14 + $0x200] sm:$0xff]
        %v5736 = vld [vmem:[#allocation14 + $0x208] sm:$0xff]
        %v5737 = vld [vmem:[#allocation14 + $0x210] sm:$0xff]
        %v5738 = vld [vmem:[#allocation14 + $0x218] sm:$0xff]
        %v5739 = vld [vmem:[#allocation14 + $0x220] sm:$0xff]
        %v5740 = vld [vmem:[#allocation14 + $0x228] sm:$0xff]
        %v5741 = vld [vmem:[#allocation14 + $0x230] sm:$0xff]
        %v5742 = vld [vmem:[#allocation14 + $0x238] sm:$0xff]
        %v5743 = vld [vmem:[#allocation14 + $0x240] sm:$0xff]
        %v5744 = vld [vmem:[#allocation14 + $0x248] sm:$0xff]
        %v5745 = vld [vmem:[#allocation14 + $0x250] sm:$0xff]
        %v5746 = vld [vmem:[#allocation14 + $0x258] sm:$0xff]
        %v5747 = vld [vmem:[#allocation14 + $0x260] sm:$0xff]
        %v5748 = vld [vmem:[#allocation14 + $0x268] sm:$0xff]
        %v5749 = vld [vmem:[#allocation14 + $0x270] sm:$0xff]
        %v5750 = vld [vmem:[#allocation14 + $0x278] sm:$0xff]
        %v5751 = vld [vmem:[#allocation14 + $0x280] sm:$0xff]
        %v5752 = vld [vmem:[#allocation14 + $0x288] sm:$0xff]
        %v5753 = vld [vmem:[#allocation14 + $0x290] sm:$0xff]
        %v5754 = vld [vmem:[#allocation14 + $0x298] sm:$0xff]
        %v5755 = vld [vmem:[#allocation14 + $0x2a0] sm:$0xff]
        %v5756 = vld [vmem:[#allocation14 + $0x2a8] sm:$0xff]
        %v5757 = vld [vmem:[#allocation14 + $0x2b0] sm:$0xff]
        %v5758 = vld [vmem:[#allocation14 + $0x2b8] sm:$0xff]
        %v5759 = vld [vmem:[#allocation14 + $0x2c0] sm:$0xff]
        %v5760 = vld [vmem:[#allocation14 + $0x2c8] sm:$0xff]
        %v5761 = vld [vmem:[#allocation14 + $0x2d0] sm:$0xff]
        %v5762 = vld [vmem:[#allocation14 + $0x2d8] sm:$0xff]
        %v5763 = vld [vmem:[#allocation14 + $0x2e0] sm:$0xff]
        %v5764 = vld [vmem:[#allocation14 + $0x2e8] sm:$0xff]
        %v5765 = vld [vmem:[#allocation14 + $0x2f0] sm:$0xff]
        %v5766 = vld [vmem:[#allocation14 + $0x2f8] sm:$0xff]
        %v5767 = vld [vmem:[#allocation14 + $0x300] sm:$0xff]
        %v5768 = vld [vmem:[#allocation14 + $0x308] sm:$0xff]
        %v5769 = vld [vmem:[#allocation14 + $0x310] sm:$0xff]
        %v5770 = vld [vmem:[#allocation14 + $0x318] sm:$0xff]
        %v5771 = vld [vmem:[#allocation14 + $0x320] sm:$0xff]
        %v5772 = vld [vmem:[#allocation14 + $0x328] sm:$0xff]
        %v5773 = vld [vmem:[#allocation14 + $0x330] sm:$0xff]
        %v5774 = vld [vmem:[#allocation14 + $0x338] sm:$0xff]
        %v5775 = vld [vmem:[#allocation14 + $0x340] sm:$0xff]
        %v5776 = vld [vmem:[#allocation14 + $0x348] sm:$0xff]
        %v5777 = vld [vmem:[#allocation14 + $0x350] sm:$0xff]
        %v5778 = vld [vmem:[#allocation14 + $0x358] sm:$0xff]
        %v5779 = vld [vmem:[#allocation14 + $0x360] sm:$0xff]
        %v5780 = vld [vmem:[#allocation14 + $0x368] sm:$0xff]
        %v5781 = vld [vmem:[#allocation14 + $0x370] sm:$0xff]
        %v5782 = vld [vmem:[#allocation14 + $0x378] sm:$0xff]
        %v5783 = vld [vmem:[#allocation14 + $0x380] sm:$0xff]
        %v5784 = vld [vmem:[#allocation14 + $0x388] sm:$0xff]
        %v5785 = vld [vmem:[#allocation14 + $0x390] sm:$0xff]
        %v5786 = vld [vmem:[#allocation14 + $0x398] sm:$0xff]
        %v5787 = vld [vmem:[#allocation14 + $0x3a0] sm:$0xff]
        %v5788 = vld [vmem:[#allocation14 + $0x3a8] sm:$0xff]
        %v5789 = vld [vmem:[#allocation14 + $0x3b0] sm:$0xff]
        %v5790 = vld [vmem:[#allocation14 + $0x3b8] sm:$0xff]
        %v5791 = vld [vmem:[#allocation14 + $0x3c0] sm:$0xff]
        %v5792 = vld [vmem:[#allocation14 + $0x3c8] sm:$0xff]
        %v5793 = vld [vmem:[#allocation14 + $0x3d0] sm:$0xff]
        %v5794 = vld [vmem:[#allocation14 + $0x3d8] sm:$0xff]
        %v5795 = vld [vmem:[#allocation14 + $0x3e0] sm:$0xff]
        %v5796 = vld [vmem:[#allocation14 + $0x3e8] sm:$0xff]
        %v5797 = vld [vmem:[#allocation14 + $0x3f0] sm:$0xff]
        %v5798 = vld [vmem:[#allocation14 + $0x3f8] sm:$0xff]
        %v5799 = vld [vmem:[#allocation14 + $0x400] sm:$0xff]
        %v5800 = vld [vmem:[#allocation14 + $0x408] sm:$0xff]
        %v5801 = vld [vmem:[#allocation14 + $0x410] sm:$0xff]
        %v5802 = vld [vmem:[#allocation14 + $0x418] sm:$0xff]
        %v5803 = vld [vmem:[#allocation14 + $0x420] sm:$0xff]
        %v5804 = vld [vmem:[#allocation14 + $0x428] sm:$0xff]
        %v5805 = vld [vmem:[#allocation14 + $0x430] sm:$0xff]
        %v5806 = vld [vmem:[#allocation14 + $0x438] sm:$0xff]
        %v5807 = vld [vmem:[#allocation14 + $0x440] sm:$0xff]
        %v5808 = vld [vmem:[#allocation14 + $0x448] sm:$0xff]
        %v5809 = vld [vmem:[#allocation14 + $0x450] sm:$0xff]
        %v5810 = vld [vmem:[#allocation14 + $0x458] sm:$0xff]
        %v5811 = vld [vmem:[#allocation14 + $0x460] sm:$0xff]
        %v5812 = vld [vmem:[#allocation14 + $0x468] sm:$0xff]
        %v5813 = vld [vmem:[#allocation14 + $0x470] sm:$0xff]
        %v5814 = vld [vmem:[#allocation14 + $0x478] sm:$0xff]
        %v5815 = vld [vmem:[#allocation14 + $0x480] sm:$0xff]
        %v5816 = vld [vmem:[#allocation14 + $0x488] sm:$0xff]
        %v5817 = vld [vmem:[#allocation14 + $0x490] sm:$0xff]
        %v5818 = vld [vmem:[#allocation14 + $0x498] sm:$0xff]
        %v5819 = vld [vmem:[#allocation14 + $0x4a0] sm:$0xff]
        %v5820 = vld [vmem:[#allocation14 + $0x4a8] sm:$0xff]
        %v5821 = vld [vmem:[#allocation14 + $0x4b0] sm:$0xff]
        %v5822 = vld [vmem:[#allocation14 + $0x4b8] sm:$0xff]
        %v5823 = vld [vmem:[#allocation14 + $0x4c0] sm:$0xff]
        %v5824 = vld [vmem:[#allocation14 + $0x4c8] sm:$0xff]
        %v5825 = vld [vmem:[#allocation14 + $0x4d0] sm:$0xff]
        %v5826 = vld [vmem:[#allocation14 + $0x4d8] sm:$0xff]
        %v5827 = vld [vmem:[#allocation14 + $0x4e0] sm:$0xff]
        %v5828 = vld [vmem:[#allocation14 + $0x4e8] sm:$0xff]
        %v5829 = vld [vmem:[#allocation14 + $0x4f0] sm:$0xff]
        %v5830 = vld [vmem:[#allocation14 + $0x4f8] sm:$0xff]
        %v5831 = vld [vmem:[#allocation14 + $0x500] sm:$0xff]
        %v5832 = vld [vmem:[#allocation14 + $0x508] sm:$0xff]
        %v5833 = vld [vmem:[#allocation14 + $0x510] sm:$0xff]
        %v5834 = vld [vmem:[#allocation14 + $0x518] sm:$0xff]
        %v5835 = vld [vmem:[#allocation14 + $0x520] sm:$0xff]
        %v5836 = vld [vmem:[#allocation14 + $0x528] sm:$0xff]
        %v5837 = vld [vmem:[#allocation14 + $0x530] sm:$0xff]
        %v5838 = vld [vmem:[#allocation14 + $0x538] sm:$0xff]
        %v5839 = vld [vmem:[#allocation14 + $0x540] sm:$0xff]
        %v5840 = vld [vmem:[#allocation14 + $0x548] sm:$0xff]
        %v5841 = vld [vmem:[#allocation14 + $0x550] sm:$0xff]
        %v5842 = vld [vmem:[#allocation14 + $0x558] sm:$0xff]
        %v5843 = vld [vmem:[#allocation14 + $0x560] sm:$0xff]
        %v5844 = vld [vmem:[#allocation14 + $0x568] sm:$0xff]
        %v5845 = vld [vmem:[#allocation14 + $0x570] sm:$0xff]
        %v5846 = vld [vmem:[#allocation14 + $0x578] sm:$0xff]
        %v5847 = vld [vmem:[#allocation14 + $0x580] sm:$0xff]
        %v5848 = vld [vmem:[#allocation14 + $0x588] sm:$0xff]
        %v5849 = vld [vmem:[#allocation14 + $0x590] sm:$0xff]
        %v5850 = vld [vmem:[#allocation14 + $0x598] sm:$0xff]
        %v5851 = vld [vmem:[#allocation14 + $0x5a0] sm:$0xff]
        %v5852 = vld [vmem:[#allocation14 + $0x5a8] sm:$0xff]
        %v5853 = vld [vmem:[#allocation14 + $0x5b0] sm:$0xff]
        %v5854 = vld [vmem:[#allocation14 + $0x5b8] sm:$0xff]
        %v5855 = vld [vmem:[#allocation14 + $0x5c0] sm:$0xff]
        %v5856 = vld [vmem:[#allocation14 + $0x5c8] sm:$0xff]
        %v5857 = vld [vmem:[#allocation14 + $0x5d0] sm:$0xff]
        %v5858 = vld [vmem:[#allocation14 + $0x5d8] sm:$0xff]
        %v5859 = vld [vmem:[#allocation14 + $0x5e0] sm:$0xff]
        %v5860 = vld [vmem:[#allocation14 + $0x5e8] sm:$0xff]
        %v5861 = vld [vmem:[#allocation14 + $0x5f0] sm:$0xff]
        %v5862 = vld [vmem:[#allocation14 + $0x5f8] sm:$0xff]
        %v5863 = vld [vmem:[#allocation14 + $0x600] sm:$0xff]
        %v5864 = vld [vmem:[#allocation14 + $0x608] sm:$0xff]
        %v5865 = vld [vmem:[#allocation14 + $0x610] sm:$0xff]
        %v5866 = vld [vmem:[#allocation14 + $0x618] sm:$0xff]
        %v5867 = vld [vmem:[#allocation14 + $0x620] sm:$0xff]
        %v5868 = vld [vmem:[#allocation14 + $0x628] sm:$0xff]
        %v5869 = vld [vmem:[#allocation14 + $0x630] sm:$0xff]
        %v5870 = vld [vmem:[#allocation14 + $0x638] sm:$0xff]
        %v5871 = vld [vmem:[#allocation14 + $0x640] sm:$0xff]
        %v5872 = vld [vmem:[#allocation14 + $0x648] sm:$0xff]
        %v5873 = vld [vmem:[#allocation14 + $0x650] sm:$0xff]
        %v5874 = vld [vmem:[#allocation14 + $0x658] sm:$0xff]
        %v5875 = vld [vmem:[#allocation14 + $0x660] sm:$0xff]
        %v5876 = vld [vmem:[#allocation14 + $0x668] sm:$0xff]
        %v5877 = vld [vmem:[#allocation14 + $0x670] sm:$0xff]
        %v5878 = vld [vmem:[#allocation14 + $0x678] sm:$0xff]
        %v5879 = vld [vmem:[#allocation14 + $0x680] sm:$0xff]
        %v5880 = vld [vmem:[#allocation14 + $0x688] sm:$0xff]
        %v5881 = vld [vmem:[#allocation14 + $0x690] sm:$0xff]
        %v5882 = vld [vmem:[#allocation14 + $0x698] sm:$0xff]
        %v5883 = vld [vmem:[#allocation14 + $0x6a0] sm:$0xff]
        %v5884 = vld [vmem:[#allocation14 + $0x6a8] sm:$0xff]
        %v5885 = vld [vmem:[#allocation14 + $0x6b0] sm:$0xff]
        %v5886 = vld [vmem:[#allocation14 + $0x6b8] sm:$0xff]
        %v5887 = vld [vmem:[#allocation14 + $0x6c0] sm:$0xff]
        %v5888 = vld [vmem:[#allocation14 + $0x6c8] sm:$0xff]
        %v5889 = vld [vmem:[#allocation14 + $0x6d0] sm:$0xff]
        %v5890 = vld [vmem:[#allocation14 + $0x6d8] sm:$0xff]
        %v5891 = vld [vmem:[#allocation14 + $0x6e0] sm:$0xff]
        %v5892 = vld [vmem:[#allocation14 + $0x6e8] sm:$0xff]
        %v5893 = vld [vmem:[#allocation14 + $0x6f0] sm:$0xff]
        %v5894 = vld [vmem:[#allocation14 + $0x6f8] sm:$0xff]
        %v5895 = vld [vmem:[#allocation14 + $0x700] sm:$0xff]
        %v5896 = vld [vmem:[#allocation14 + $0x708] sm:$0xff]
        %v5897 = vld [vmem:[#allocation14 + $0x710] sm:$0xff]
        %v5898 = vld [vmem:[#allocation14 + $0x718] sm:$0xff]
        %v5899 = vld [vmem:[#allocation14 + $0x720] sm:$0xff]
        %v5900 = vld [vmem:[#allocation14 + $0x728] sm:$0xff]
        %v5901 = vld [vmem:[#allocation14 + $0x730] sm:$0xff]
        %v5902 = vld [vmem:[#allocation14 + $0x738] sm:$0xff]
        %v5903 = vld [vmem:[#allocation14 + $0x740] sm:$0xff]
        %v5904 = vld [vmem:[#allocation14 + $0x748] sm:$0xff]
        %v5905 = vld [vmem:[#allocation14 + $0x750] sm:$0xff]
        %v5906 = vld [vmem:[#allocation14 + $0x758] sm:$0xff]
        %v5907 = vld [vmem:[#allocation14 + $0x760] sm:$0xff]
        %v5908 = vld [vmem:[#allocation14 + $0x768] sm:$0xff]
        %v5909 = vld [vmem:[#allocation14 + $0x770] sm:$0xff]
        %v5910 = vld [vmem:[#allocation14 + $0x778] sm:$0xff]
        %v5911 = vld [vmem:[#allocation14 + $0x780] sm:$0xff]
        %v5912 = vld [vmem:[#allocation14 + $0x788] sm:$0xff]
        %v5913 = vld [vmem:[#allocation14 + $0x790] sm:$0xff]
        %v5914 = vld [vmem:[#allocation14 + $0x798] sm:$0xff]
        %v5915 = vld [vmem:[#allocation14 + $0x7a0] sm:$0xff]
        %v5916 = vld [vmem:[#allocation14 + $0x7a8] sm:$0xff]
        %v5917 = vld [vmem:[#allocation14 + $0x7b0] sm:$0xff]
        %v5918 = vld [vmem:[#allocation14 + $0x7b8] sm:$0xff]
        %v5919 = vld [vmem:[#allocation14 + $0x7c0] sm:$0xff]
        %v5920 = vld [vmem:[#allocation14 + $0x7c8] sm:$0xff]
        %v5921 = vld [vmem:[#allocation14 + $0x7d0] sm:$0xff]
        %v5922 = vld [vmem:[#allocation14 + $0x7d8] sm:$0xff]
        %v5923 = vld [vmem:[#allocation14 + $0x7e0] sm:$0xff]
        %v5924 = vld [vmem:[#allocation14 + $0x7e8] sm:$0xff]
        %v5925 = vld [vmem:[#allocation14 + $0x7f0] sm:$0xff]
        %v5926 = vld [vmem:[#allocation14 + $0x7f8] sm:$0xff]
        %v5927 = vld [vmem:[#allocation14 + $0x800] sm:$0xff]
        %v5928 = vld [vmem:[#allocation14 + $0x808] sm:$0xff]
        %v5929 = vld [vmem:[#allocation14 + $0x810] sm:$0xff]
        %v5930 = vld [vmem:[#allocation14 + $0x818] sm:$0xff]
        %v5931 = vld [vmem:[#allocation14 + $0x820] sm:$0xff]
        %v5932 = vld [vmem:[#allocation14 + $0x828] sm:$0xff]
        %v5933 = vld [vmem:[#allocation14 + $0x830] sm:$0xff]
        %v5934 = vld [vmem:[#allocation14 + $0x838] sm:$0xff]
        %v5935 = vld [vmem:[#allocation14 + $0x840] sm:$0xff]
        %v5936 = vld [vmem:[#allocation14 + $0x848] sm:$0xff]
        %v5937 = vld [vmem:[#allocation14 + $0x850] sm:$0xff]
        %v5938 = vld [vmem:[#allocation14 + $0x858] sm:$0xff]
        %v5939 = vld [vmem:[#allocation14 + $0x860] sm:$0xff]
        %v5940 = vld [vmem:[#allocation14 + $0x868] sm:$0xff]
        %v5941 = vld [vmem:[#allocation14 + $0x870] sm:$0xff]
        %v5942 = vld [vmem:[#allocation14 + $0x878] sm:$0xff]
        %v5943 = vld [vmem:[#allocation14 + $0x880] sm:$0xff]
        %v5944 = vld [vmem:[#allocation14 + $0x888] sm:$0xff]
        %v5945 = vld [vmem:[#allocation14 + $0x890] sm:$0xff]
        %v5946 = vld [vmem:[#allocation14 + $0x898] sm:$0xff]
        %v5947 = vld [vmem:[#allocation14 + $0x8a0] sm:$0xff]
        %v5948 = vld [vmem:[#allocation14 + $0x8a8] sm:$0xff]
        %v5949 = vld [vmem:[#allocation14 + $0x8b0] sm:$0xff]
        %v5950 = vld [vmem:[#allocation14 + $0x8b8] sm:$0xff]
        %v5951 = vld [vmem:[#allocation14 + $0x8c0] sm:$0xff]
        %v5952 = vld [vmem:[#allocation14 + $0x8c8] sm:$0xff]
        %v5953 = vld [vmem:[#allocation14 + $0x8d0] sm:$0xff]
        %v5954 = vld [vmem:[#allocation14 + $0x8d8] sm:$0xff]
        %v5955 = vld [vmem:[#allocation14 + $0x8e0] sm:$0xff]
        %v5956 = vld [vmem:[#allocation14 + $0x8e8] sm:$0xff]
        %v5957 = vld [vmem:[#allocation14 + $0x8f0] sm:$0xff]
        %v5958 = vld [vmem:[#allocation14 + $0x8f8] sm:$0xff]
        %v5959 = vld [vmem:[#allocation14 + $0x900] sm:$0xff]
        %v5960 = vld [vmem:[#allocation14 + $0x908] sm:$0xff]
        %v5961 = vld [vmem:[#allocation14 + $0x910] sm:$0xff]
        %v5962 = vld [vmem:[#allocation14 + $0x918] sm:$0xff]
        %v5963 = vld [vmem:[#allocation14 + $0x920] sm:$0xff]
        %v5964 = vld [vmem:[#allocation14 + $0x928] sm:$0xff]
        %v5965 = vld [vmem:[#allocation14 + $0x930] sm:$0xff]
        %v5966 = vld [vmem:[#allocation14 + $0x938] sm:$0xff]
        %v5967 = vld [vmem:[#allocation14 + $0x940] sm:$0xff]
        %v5968 = vld [vmem:[#allocation14 + $0x948] sm:$0xff]
        %v5969 = vld [vmem:[#allocation14 + $0x950] sm:$0xff]
        %v5970 = vld [vmem:[#allocation14 + $0x958] sm:$0xff]
        %v5971 = vld [vmem:[#allocation14 + $0x960] sm:$0xff]
        %v5972 = vld [vmem:[#allocation14 + $0x968] sm:$0xff]
        %v5973 = vld [vmem:[#allocation14 + $0x970] sm:$0xff]
        %v5974 = vld [vmem:[#allocation14 + $0x978] sm:$0xff]
        %v5975 = vld [vmem:[#allocation14 + $0x980] sm:$0xff]
        %v5976 = vld [vmem:[#allocation14 + $0x988] sm:$0xff]
        %v5977 = vld [vmem:[#allocation14 + $0x990] sm:$0xff]
        %v5978 = vld [vmem:[#allocation14 + $0x998] sm:$0xff]
        %v5979 = vld [vmem:[#allocation14 + $0x9a0] sm:$0xff]
        %v5980 = vld [vmem:[#allocation14 + $0x9a8] sm:$0xff]
        %v5981 = vld [vmem:[#allocation14 + $0x9b0] sm:$0xff]
        %v5982 = vld [vmem:[#allocation14 + $0x9b8] sm:$0xff]
        %v5983 = vld [vmem:[#allocation14 + $0x9c0] sm:$0xff]
        %v5984 = vld [vmem:[#allocation14 + $0x9c8] sm:$0xff]
        %v5985 = vld [vmem:[#allocation14 + $0x9d0] sm:$0xff]
        %v5986 = vld [vmem:[#allocation14 + $0x9d8] sm:$0xff]
        %v5987 = vld [vmem:[#allocation14 + $0x9e0] sm:$0xff]
        %v5988 = vld [vmem:[#allocation14 + $0x9e8] sm:$0xff]
        %v5989 = vld [vmem:[#allocation14 + $0x9f0] sm:$0xff]
        %v5990 = vld [vmem:[#allocation14 + $0x9f8] sm:$0xff]
        %v5991 = vld [vmem:[#allocation14 + $0xa00] sm:$0xff]
        %v5992 = vld [vmem:[#allocation14 + $0xa08] sm:$0xff]
        %v5993 = vld [vmem:[#allocation14 + $0xa10] sm:$0xff]
        %v5994 = vld [vmem:[#allocation14 + $0xa18] sm:$0xff]
        %v5995 = vld [vmem:[#allocation14 + $0xa20] sm:$0xff]
        %v5996 = vld [vmem:[#allocation14 + $0xa28] sm:$0xff]
        %v5997 = vld [vmem:[#allocation14 + $0xa30] sm:$0xff]
        %v5998 = vld [vmem:[#allocation14 + $0xa38] sm:$0xff]
        %v5999 = vld [vmem:[#allocation14 + $0xa40] sm:$0xff]
        %v6000 = vld [vmem:[#allocation14 + $0xa48] sm:$0xff]
        %v6001 = vld [vmem:[#allocation14 + $0xa50] sm:$0xff]
        %v6002 = vld [vmem:[#allocation14 + $0xa58] sm:$0xff]
        %v6003 = vld [vmem:[#allocation14 + $0xa60] sm:$0xff]
        %v6004 = vld [vmem:[#allocation14 + $0xa68] sm:$0xff]
        %v6005 = vld [vmem:[#allocation14 + $0xa70] sm:$0xff]
        %v6006 = vld [vmem:[#allocation14 + $0xa78] sm:$0xff]
        %v6007 = vld [vmem:[#allocation14 + $0xa80] sm:$0xff]
        %v6008 = vld [vmem:[#allocation14 + $0xa88] sm:$0xff]
        %v6009 = vld [vmem:[#allocation14 + $0xa90] sm:$0xff]
        %v6010 = vld [vmem:[#allocation14 + $0xa98] sm:$0xff]
        %v6011 = vld [vmem:[#allocation14 + $0xaa0] sm:$0xff]
        %v6012 = vld [vmem:[#allocation14 + $0xaa8] sm:$0xff]
        %v6013 = vld [vmem:[#allocation14 + $0xab0] sm:$0xff]
        %v6014 = vld [vmem:[#allocation14 + $0xab8] sm:$0xff]
        %v6015 = vld [vmem:[#allocation14 + $0xac0] sm:$0xff]
        %v6016 = vld [vmem:[#allocation14 + $0xac8] sm:$0xff]
        %v6017 = vld [vmem:[#allocation14 + $0xad0] sm:$0xff]
        %v6018 = vld [vmem:[#allocation14 + $0xad8] sm:$0xff]
        %v6019 = vld [vmem:[#allocation14 + $0xae0] sm:$0xff]
        %v6020 = vld [vmem:[#allocation14 + $0xae8] sm:$0xff]
        %v6021 = vld [vmem:[#allocation14 + $0xaf0] sm:$0xff]
        %v6022 = vld [vmem:[#allocation14 + $0xaf8] sm:$0xff]
        %v6023 = vld [vmem:[#allocation14 + $0xb00] sm:$0xff]
        %v6024 = vld [vmem:[#allocation14 + $0xb08] sm:$0xff]
        %v6025 = vld [vmem:[#allocation14 + $0xb10] sm:$0xff]
        %v6026 = vld [vmem:[#allocation14 + $0xb18] sm:$0xff]
        %v6027 = vld [vmem:[#allocation14 + $0xb20] sm:$0xff]
        %v6028 = vld [vmem:[#allocation14 + $0xb28] sm:$0xff]
        %v6029 = vld [vmem:[#allocation14 + $0xb30] sm:$0xff]
        %v6030 = vld [vmem:[#allocation14 + $0xb38] sm:$0xff]
        %v6031 = vld [vmem:[#allocation14 + $0xb40] sm:$0xff]
        %v6032 = vld [vmem:[#allocation14 + $0xb48] sm:$0xff]
        %v6033 = vld [vmem:[#allocation14 + $0xb50] sm:$0xff]
        %v6034 = vld [vmem:[#allocation14 + $0xb58] sm:$0xff]
        %v6035 = vld [vmem:[#allocation14 + $0xb60] sm:$0xff]
        %v6036 = vld [vmem:[#allocation14 + $0xb68] sm:$0xff]
        %v6037 = vld [vmem:[#allocation14 + $0xb70] sm:$0xff]
        %v6038 = vld [vmem:[#allocation14 + $0xb78] sm:$0xff]
        %v6039 = vld [vmem:[#allocation14 + $0xb80] sm:$0xff]
        %v6040 = vld [vmem:[#allocation14 + $0xb88] sm:$0xff]
        %v6041 = vld [vmem:[#allocation14 + $0xb90] sm:$0xff]
        %v6042 = vld [vmem:[#allocation14 + $0xb98] sm:$0xff]
        %v6043 = vld [vmem:[#allocation14 + $0xba0] sm:$0xff]
        %v6044 = vld [vmem:[#allocation14 + $0xba8] sm:$0xff]
        %v6045 = vld [vmem:[#allocation14 + $0xbb0] sm:$0xff]
        %v6046 = vld [vmem:[#allocation14 + $0xbb8] sm:$0xff]
        %v6047 = vld [vmem:[#allocation14 + $0xbc0] sm:$0xff]
        %v6048 = vld [vmem:[#allocation14 + $0xbc8] sm:$0xff]
        %v6049 = vld [vmem:[#allocation14 + $0xbd0] sm:$0xff]
        %v6050 = vld [vmem:[#allocation14 + $0xbd8] sm:$0xff]
        %v6051 = vld [vmem:[#allocation14 + $0xbe0] sm:$0xff]
        %v6052 = vld [vmem:[#allocation14 + $0xbe8] sm:$0xff]
        %v6053 = vld [vmem:[#allocation14 + $0xbf0] sm:$0xff]
        %v6054 = vld [vmem:[#allocation14 + $0xbf8] sm:$0xff]
        %v6055 = vld [vmem:[#allocation14 + $0xc00] sm:$0xff]
        %v6056 = vld [vmem:[#allocation14 + $0xc08] sm:$0xff]
        %v6057 = vld [vmem:[#allocation14 + $0xc10] sm:$0xff]
        %v6058 = vld [vmem:[#allocation14 + $0xc18] sm:$0xff]
        %v6059 = vld [vmem:[#allocation14 + $0xc20] sm:$0xff]
        %v6060 = vld [vmem:[#allocation14 + $0xc28] sm:$0xff]
        %v6061 = vld [vmem:[#allocation14 + $0xc30] sm:$0xff]
        %v6062 = vld [vmem:[#allocation14 + $0xc38] sm:$0xff]
        %v6063 = vld [vmem:[#allocation14 + $0xc40] sm:$0xff]
        %v6064 = vld [vmem:[#allocation14 + $0xc48] sm:$0xff]
        %v6065 = vld [vmem:[#allocation14 + $0xc50] sm:$0xff]
        %v6066 = vld [vmem:[#allocation14 + $0xc58] sm:$0xff]
        %v6067 = vld [vmem:[#allocation14 + $0xc60] sm:$0xff]
        %v6068 = vld [vmem:[#allocation14 + $0xc68] sm:$0xff]
        %v6069 = vld [vmem:[#allocation14 + $0xc70] sm:$0xff]
        %v6070 = vld [vmem:[#allocation14 + $0xc78] sm:$0xff]
        %v6071 = vld [vmem:[#allocation14 + $0xc80] sm:$0xff]
        %v6072 = vld [vmem:[#allocation14 + $0xc88] sm:$0xff]
        %v6073 = vld [vmem:[#allocation14 + $0xc90] sm:$0xff]
        %v6074 = vld [vmem:[#allocation14 + $0xc98] sm:$0xff]
        %v6075 = vld [vmem:[#allocation14 + $0xca0] sm:$0xff]
        %v6076 = vld [vmem:[#allocation14 + $0xca8] sm:$0xff]
        %v6077 = vld [vmem:[#allocation14 + $0xcb0] sm:$0xff]
        %v6078 = vld [vmem:[#allocation14 + $0xcb8] sm:$0xff]
        %v6079 = vld [vmem:[#allocation14 + $0xcc0] sm:$0xff]
        %v6080 = vld [vmem:[#allocation14 + $0xcc8] sm:$0xff]
        %v6081 = vld [vmem:[#allocation14 + $0xcd0] sm:$0xff]
        %v6082 = vld [vmem:[#allocation14 + $0xcd8] sm:$0xff]
        %v6083 = vld [vmem:[#allocation14 + $0xce0] sm:$0xff]
        %v6084 = vld [vmem:[#allocation14 + $0xce8] sm:$0xff]
        %v6085 = vld [vmem:[#allocation14 + $0xcf0] sm:$0xff]
        %v6086 = vld [vmem:[#allocation14 + $0xcf8] sm:$0xff]
        %v6087 = vld [vmem:[#allocation14 + $0xd00] sm:$0xff]
        %v6088 = vld [vmem:[#allocation14 + $0xd08] sm:$0xff]
        %v6089 = vld [vmem:[#allocation14 + $0xd10] sm:$0xff]
        %v6090 = vld [vmem:[#allocation14 + $0xd18] sm:$0xff]
        %v6091 = vld [vmem:[#allocation14 + $0xd20] sm:$0xff]
        %v6092 = vld [vmem:[#allocation14 + $0xd28] sm:$0xff]
        %v6093 = vld [vmem:[#allocation14 + $0xd30] sm:$0xff]
        %v6094 = vld [vmem:[#allocation14 + $0xd38] sm:$0xff]
        %v6095 = vld [vmem:[#allocation14 + $0xd40] sm:$0xff]
        %v6096 = vld [vmem:[#allocation14 + $0xd48] sm:$0xff]
        %v6097 = vld [vmem:[#allocation14 + $0xd50] sm:$0xff]
        %v6098 = vld [vmem:[#allocation14 + $0xd58] sm:$0xff]
        %v6099 = vld [vmem:[#allocation14 + $0xd60] sm:$0xff]
        %v6100 = vld [vmem:[#allocation14 + $0xd68] sm:$0xff]
        %v6101 = vld [vmem:[#allocation14 + $0xd70] sm:$0xff]
        %v6102 = vld [vmem:[#allocation14 + $0xd78] sm:$0xff]
        %v6103 = vld [vmem:[#allocation14 + $0xd80] sm:$0xff]
        %v6104 = vld [vmem:[#allocation14 + $0xd88] sm:$0xff]
        %v6105 = vld [vmem:[#allocation14 + $0xd90] sm:$0xff]
        %v6106 = vld [vmem:[#allocation14 + $0xd98] sm:$0xff]
        %v6107 = vld [vmem:[#allocation14 + $0xda0] sm:$0xff]
        %v6108 = vld [vmem:[#allocation14 + $0xda8] sm:$0xff]
        %v6109 = vld [vmem:[#allocation14 + $0xdb0] sm:$0xff]
        %v6110 = vld [vmem:[#allocation14 + $0xdb8] sm:$0xff]
        %v6111 = vld [vmem:[#allocation14 + $0xdc0] sm:$0xff]
        %v6112 = vld [vmem:[#allocation14 + $0xdc8] sm:$0xff]
        %v6113 = vld [vmem:[#allocation14 + $0xdd0] sm:$0xff]
        %v6114 = vld [vmem:[#allocation14 + $0xdd8] sm:$0xff]
        %v6115 = vld [vmem:[#allocation14 + $0xde0] sm:$0xff]
        %v6116 = vld [vmem:[#allocation14 + $0xde8] sm:$0xff]
        %v6117 = vld [vmem:[#allocation14 + $0xdf0] sm:$0xff]
        %v6118 = vld [vmem:[#allocation14 + $0xdf8] sm:$0xff]
        %v6119 = vld [vmem:[#allocation14 + $0xe00] sm:$0xff]
        %v6120 = vld [vmem:[#allocation14 + $0xe08] sm:$0xff]
        %v6121 = vld [vmem:[#allocation14 + $0xe10] sm:$0xff]
        %v6122 = vld [vmem:[#allocation14 + $0xe18] sm:$0xff]
        %v6123 = vld [vmem:[#allocation14 + $0xe20] sm:$0xff]
        %v6124 = vld [vmem:[#allocation14 + $0xe28] sm:$0xff]
        %v6125 = vld [vmem:[#allocation14 + $0xe30] sm:$0xff]
        %v6126 = vld [vmem:[#allocation14 + $0xe38] sm:$0xff]
        %v6127 = vld [vmem:[#allocation14 + $0xe40] sm:$0xff]
        %v6128 = vld [vmem:[#allocation14 + $0xe48] sm:$0xff]
        %v6129 = vld [vmem:[#allocation14 + $0xe50] sm:$0xff]
        %v6130 = vld [vmem:[#allocation14 + $0xe58] sm:$0xff]
        %v6131 = vld [vmem:[#allocation14 + $0xe60] sm:$0xff]
        %v6132 = vld [vmem:[#allocation14 + $0xe68] sm:$0xff]
        %v6133 = vld [vmem:[#allocation14 + $0xe70] sm:$0xff]
        %v6134 = vld [vmem:[#allocation14 + $0xe78] sm:$0xff]
        %v6135 = vld [vmem:[#allocation14 + $0xe80] sm:$0xff]
        %v6136 = vld [vmem:[#allocation14 + $0xe88] sm:$0xff]
        %v6137 = vld [vmem:[#allocation14 + $0xe90] sm:$0xff]
        %v6138 = vld [vmem:[#allocation14 + $0xe98] sm:$0xff]
        %v6139 = vld [vmem:[#allocation14 + $0xea0] sm:$0xff]
        %v6140 = vld [vmem:[#allocation14 + $0xea8] sm:$0xff]
        %v6141 = vld [vmem:[#allocation14 + $0xeb0] sm:$0xff]
        %v6142 = vld [vmem:[#allocation14 + $0xeb8] sm:$0xff]
        %v6143 = vld [vmem:[#allocation14 + $0xec0] sm:$0xff]
        %v6144 = vld [vmem:[#allocation14 + $0xec8] sm:$0xff]
        %v6145 = vld [vmem:[#allocation14 + $0xed0] sm:$0xff]
        %v6146 = vld [vmem:[#allocation14 + $0xed8] sm:$0xff]
        %v6147 = vld [vmem:[#allocation14 + $0xee0] sm:$0xff]
        %v6148 = vld [vmem:[#allocation14 + $0xee8] sm:$0xff]
        %v6149 = vld [vmem:[#allocation14 + $0xef0] sm:$0xff]
        %v6150 = vld [vmem:[#allocation14 + $0xef8] sm:$0xff]
        %v6151 = vld [vmem:[#allocation14 + $0xf00] sm:$0xff]
        %v6152 = vld [vmem:[#allocation14 + $0xf08] sm:$0xff]
        %v6153 = vld [vmem:[#allocation14 + $0xf10] sm:$0xff]
        %v6154 = vld [vmem:[#allocation14 + $0xf18] sm:$0xff]
        %v6155 = vld [vmem:[#allocation14 + $0xf20] sm:$0xff]
        %v6156 = vld [vmem:[#allocation14 + $0xf28] sm:$0xff]
        %v6157 = vld [vmem:[#allocation14 + $0xf30] sm:$0xff]
        %v6158 = vld [vmem:[#allocation14 + $0xf38] sm:$0xff]
        %v6159 = vld [vmem:[#allocation14 + $0xf40] sm:$0xff]
        %v6160 = vld [vmem:[#allocation14 + $0xf48] sm:$0xff]
        %v6161 = vld [vmem:[#allocation14 + $0xf50] sm:$0xff]
        %v6162 = vld [vmem:[#allocation14 + $0xf58] sm:$0xff]
        %v6163 = vld [vmem:[#allocation14 + $0xf60] sm:$0xff]
        %v6164 = vld [vmem:[#allocation14 + $0xf68] sm:$0xff]
        %v6165 = vld [vmem:[#allocation14 + $0xf70] sm:$0xff]
        %v6166 = vld [vmem:[#allocation14 + $0xf78] sm:$0xff]
        %v6167 = vld [vmem:[#allocation14 + $0xf80] sm:$0xff]
        %v6168 = vld [vmem:[#allocation14 + $0xf88] sm:$0xff]
        %v6169 = vld [vmem:[#allocation14 + $0xf90] sm:$0xff]
        %v6170 = vld [vmem:[#allocation14 + $0xf98] sm:$0xff]
        %v6171 = vld [vmem:[#allocation14 + $0xfa0] sm:$0xff]
        %v6172 = vld [vmem:[#allocation14 + $0xfa8] sm:$0xff]
        %v6173 = vld [vmem:[#allocation14 + $0xfb0] sm:$0xff]
        %v6174 = vld [vmem:[#allocation14 + $0xfb8] sm:$0xff]
        %v6175 = vld [vmem:[#allocation14 + $0xfc0] sm:$0xff]
        %v6176 = vld [vmem:[#allocation14 + $0xfc8] sm:$0xff]
        %v6177 = vld [vmem:[#allocation14 + $0xfd0] sm:$0xff]
        %v6178 = vld [vmem:[#allocation14 + $0xfd8] sm:$0xff]
        %v6179 = vld [vmem:[#allocation14 + $0xfe0] sm:$0xff]
        %v6180 = vld [vmem:[#allocation14 + $0xfe8] sm:$0xff]
        %v6181 = vld [vmem:[#allocation14 + $0xff0] sm:$0xff]
        %v6182 = vld [vmem:[#allocation14 + $0xff8] sm:$0xff]
        %v6183 = vld [vmem:[#allocation16] sm:$0xff]
        %v6185 = vlaneseq
        %v6186 = vshrl.u32 %v6185, 7
        %v6187 = vsub.s32 0, %v6186
        %v6188 = vrot.slane %v6183, %v6187
        %v6189 = vlaneseq
        %v6190 = vshrl.u32 %v6189, 7
        %v6191 = vsub.s32 1, %v6190
        %v6192 = vrot.slane %v6183, %v6191
        %v6193 = vlaneseq
        %v6194 = vshrl.u32 %v6193, 7
        %v6195 = vsub.s32 2, %v6194
        %v6196 = vrot.slane %v6183, %v6195
        %v6197 = vlaneseq
        %v6198 = vshrl.u32 %v6197, 7
        %v6199 = vsub.s32 3, %v6198
        %v6200 = vrot.slane %v6183, %v6199
        %v6201 = vlaneseq
        %v6202 = vshrl.u32 %v6201, 7
        %v6203 = vsub.s32 4, %v6202
        %v6204 = vrot.slane %v6183, %v6203
        %v6205 = vlaneseq
        %v6206 = vshrl.u32 %v6205, 7
        %v6207 = vsub.s32 5, %v6206
        %v6208 = vrot.slane %v6183, %v6207
        %v6209 = vlaneseq
        %v6210 = vshrl.u32 %v6209, 7
        %v6211 = vsub.s32 6, %v6210
        %v6212 = vrot.slane %v6183, %v6211
        %v6213 = vlaneseq
        %v6214 = vshrl.u32 %v6213, 7
        %v6215 = vsub.s32 7, %v6214
        %v6216 = vrot.slane %v6183, %v6215
        %v6737 = vunpack.c.l.b16 %v5671
        %v6738 = vunpack.c.h.b16 %v5671
        %v6739 = vunpack.c.l.b16 %v5672
        %v6740 = vunpack.c.h.b16 %v5672
        %v6741 = vunpack.c.l.b16 %v5673
        %v6742 = vunpack.c.h.b16 %v5673
        %v6743 = vunpack.c.l.b16 %v5674
        %v6744 = vunpack.c.h.b16 %v5674
        %v6745 = vunpack.c.l.b16 %v5675
        %v6746 = vunpack.c.h.b16 %v5675
        %v6747 = vunpack.c.l.b16 %v5676
        %v6748 = vunpack.c.h.b16 %v5676
        %v6749 = vunpack.c.l.b16 %v5677
        %v6750 = vunpack.c.h.b16 %v5677
        %v6751 = vunpack.c.l.b16 %v5678
        %v6752 = vunpack.c.h.b16 %v5678
        %v6753 = vunpack.c.l.b16 %v5679
        %v6754 = vunpack.c.h.b16 %v5679
        %v6755 = vunpack.c.l.b16 %v5680
        %v6756 = vunpack.c.h.b16 %v5680
        %v6757 = vunpack.c.l.b16 %v5681
        %v6758 = vunpack.c.h.b16 %v5681
        %v6759 = vunpack.c.l.b16 %v5682
        %v6760 = vunpack.c.h.b16 %v5682
        %v6761 = vunpack.c.l.b16 %v5683
        %v6762 = vunpack.c.h.b16 %v5683
        %v6763 = vunpack.c.l.b16 %v5684
        %v6764 = vunpack.c.h.b16 %v5684
        %v6765 = vunpack.c.l.b16 %v5685
        %v6766 = vunpack.c.h.b16 %v5685
        %v6767 = vunpack.c.l.b16 %v5686
        %v6768 = vunpack.c.h.b16 %v5686
        %v6769 = vunpack.c.l.b16 %v5687
        %v6770 = vunpack.c.h.b16 %v5687
        %v6771 = vunpack.c.l.b16 %v5688
        %v6772 = vunpack.c.h.b16 %v5688
        %v6773 = vunpack.c.l.b16 %v5689
        %v6774 = vunpack.c.h.b16 %v5689
        %v6775 = vunpack.c.l.b16 %v5690
        %v6776 = vunpack.c.h.b16 %v5690
        %v6777 = vunpack.c.l.b16 %v5691
        %v6778 = vunpack.c.h.b16 %v5691
        %v6779 = vunpack.c.l.b16 %v5692
        %v6780 = vunpack.c.h.b16 %v5692
        %v6781 = vunpack.c.l.b16 %v5693
        %v6782 = vunpack.c.h.b16 %v5693
        %v6783 = vunpack.c.l.b16 %v5694
        %v6784 = vunpack.c.h.b16 %v5694
        %v6785 = vunpack.c.l.b16 %v5695
        %v6786 = vunpack.c.h.b16 %v5695
        %v6787 = vunpack.c.l.b16 %v5696
        %v6788 = vunpack.c.h.b16 %v5696
        %v6789 = vunpack.c.l.b16 %v5697
        %v6790 = vunpack.c.h.b16 %v5697
        %v6791 = vunpack.c.l.b16 %v5698
        %v6792 = vunpack.c.h.b16 %v5698
        %v6793 = vunpack.c.l.b16 %v5699
        %v6794 = vunpack.c.h.b16 %v5699
        %v6795 = vunpack.c.l.b16 %v5700
        %v6796 = vunpack.c.h.b16 %v5700
        %v6797 = vunpack.c.l.b16 %v5701
        %v6798 = vunpack.c.h.b16 %v5701
        %v6799 = vunpack.c.l.b16 %v5702
        %v6800 = vunpack.c.h.b16 %v5702
        %v6801 = vunpack.c.l.b16 %v5703
        %v6802 = vunpack.c.h.b16 %v5703
        %v6803 = vunpack.c.l.b16 %v5704
        %v6804 = vunpack.c.h.b16 %v5704
        %v6805 = vunpack.c.l.b16 %v5705
        %v6806 = vunpack.c.h.b16 %v5705
        %v6807 = vunpack.c.l.b16 %v5706
        %v6808 = vunpack.c.h.b16 %v5706
        %v6809 = vunpack.c.l.b16 %v5707
        %v6810 = vunpack.c.h.b16 %v5707
        %v6811 = vunpack.c.l.b16 %v5708
        %v6812 = vunpack.c.h.b16 %v5708
        %v6813 = vunpack.c.l.b16 %v5709
        %v6814 = vunpack.c.h.b16 %v5709
        %v6815 = vunpack.c.l.b16 %v5710
        %v6816 = vunpack.c.h.b16 %v5710
        %v6817 = vunpack.c.l.b16 %v5711
        %v6818 = vunpack.c.h.b16 %v5711
        %v6819 = vunpack.c.l.b16 %v5712
        %v6820 = vunpack.c.h.b16 %v5712
        %v6821 = vunpack.c.l.b16 %v5713
        %v6822 = vunpack.c.h.b16 %v5713
        %v6823 = vunpack.c.l.b16 %v5714
        %v6824 = vunpack.c.h.b16 %v5714
        %v6825 = vunpack.c.l.b16 %v5715
        %v6826 = vunpack.c.h.b16 %v5715
        %v6827 = vunpack.c.l.b16 %v5716
        %v6828 = vunpack.c.h.b16 %v5716
        %v6829 = vunpack.c.l.b16 %v5717
        %v6830 = vunpack.c.h.b16 %v5717
        %v6831 = vunpack.c.l.b16 %v5718
        %v6832 = vunpack.c.h.b16 %v5718
        %v6833 = vunpack.c.l.b16 %v5719
        %v6834 = vunpack.c.h.b16 %v5719
        %v6835 = vunpack.c.l.b16 %v5720
        %v6836 = vunpack.c.h.b16 %v5720
        %v6837 = vunpack.c.l.b16 %v5721
        %v6838 = vunpack.c.h.b16 %v5721
        %v6839 = vunpack.c.l.b16 %v5722
        %v6840 = vunpack.c.h.b16 %v5722
        %v6841 = vunpack.c.l.b16 %v5723
        %v6842 = vunpack.c.h.b16 %v5723
        %v6843 = vunpack.c.l.b16 %v5724
        %v6844 = vunpack.c.h.b16 %v5724
        %v6845 = vunpack.c.l.b16 %v5725
        %v6846 = vunpack.c.h.b16 %v5725
        %v6847 = vunpack.c.l.b16 %v5726
        %v6848 = vunpack.c.h.b16 %v5726
        %v6849 = vunpack.c.l.b16 %v5727
        %v6850 = vunpack.c.h.b16 %v5727
        %v6851 = vunpack.c.l.b16 %v5728
        %v6852 = vunpack.c.h.b16 %v5728
        %v6853 = vunpack.c.l.b16 %v5729
        %v6854 = vunpack.c.h.b16 %v5729
        %v6855 = vunpack.c.l.b16 %v5730
        %v6856 = vunpack.c.h.b16 %v5730
        %v6857 = vunpack.c.l.b16 %v5731
        %v6858 = vunpack.c.h.b16 %v5731
        %v6859 = vunpack.c.l.b16 %v5732
        %v6860 = vunpack.c.h.b16 %v5732
        %v6861 = vunpack.c.l.b16 %v5733
        %v6862 = vunpack.c.h.b16 %v5733
        %v6863 = vunpack.c.l.b16 %v5734
        %v6864 = vunpack.c.h.b16 %v5734
        %v6865 = vunpack.c.l.b16 %v5735
        %v6866 = vunpack.c.h.b16 %v5735
        %v6867 = vunpack.c.l.b16 %v5736
        %v6868 = vunpack.c.h.b16 %v5736
        %v6869 = vunpack.c.l.b16 %v5737
        %v6870 = vunpack.c.h.b16 %v5737
        %v6871 = vunpack.c.l.b16 %v5738
        %v6872 = vunpack.c.h.b16 %v5738
        %v6873 = vunpack.c.l.b16 %v5739
        %v6874 = vunpack.c.h.b16 %v5739
        %v6875 = vunpack.c.l.b16 %v5740
        %v6876 = vunpack.c.h.b16 %v5740
        %v6877 = vunpack.c.l.b16 %v5741
        %v6878 = vunpack.c.h.b16 %v5741
        %v6879 = vunpack.c.l.b16 %v5742
        %v6880 = vunpack.c.h.b16 %v5742
        %v6881 = vunpack.c.l.b16 %v5743
        %v6882 = vunpack.c.h.b16 %v5743
        %v6883 = vunpack.c.l.b16 %v5744
        %v6884 = vunpack.c.h.b16 %v5744
        %v6885 = vunpack.c.l.b16 %v5745
        %v6886 = vunpack.c.h.b16 %v5745
        %v6887 = vunpack.c.l.b16 %v5746
        %v6888 = vunpack.c.h.b16 %v5746
        %v6889 = vunpack.c.l.b16 %v5747
        %v6890 = vunpack.c.h.b16 %v5747
        %v6891 = vunpack.c.l.b16 %v5748
        %v6892 = vunpack.c.h.b16 %v5748
        %v6893 = vunpack.c.l.b16 %v5749
        %v6894 = vunpack.c.h.b16 %v5749
        %v6895 = vunpack.c.l.b16 %v5750
        %v6896 = vunpack.c.h.b16 %v5750
        %v6897 = vunpack.c.l.b16 %v5751
        %v6898 = vunpack.c.h.b16 %v5751
        %v6899 = vunpack.c.l.b16 %v5752
        %v6900 = vunpack.c.h.b16 %v5752
        %v6901 = vunpack.c.l.b16 %v5753
        %v6902 = vunpack.c.h.b16 %v5753
        %v6903 = vunpack.c.l.b16 %v5754
        %v6904 = vunpack.c.h.b16 %v5754
        %v6905 = vunpack.c.l.b16 %v5755
        %v6906 = vunpack.c.h.b16 %v5755
        %v6907 = vunpack.c.l.b16 %v5756
        %v6908 = vunpack.c.h.b16 %v5756
        %v6909 = vunpack.c.l.b16 %v5757
        %v6910 = vunpack.c.h.b16 %v5757
        %v6911 = vunpack.c.l.b16 %v5758
        %v6912 = vunpack.c.h.b16 %v5758
        %v6913 = vunpack.c.l.b16 %v5759
        %v6914 = vunpack.c.h.b16 %v5759
        %v6915 = vunpack.c.l.b16 %v5760
        %v6916 = vunpack.c.h.b16 %v5760
        %v6917 = vunpack.c.l.b16 %v5761
        %v6918 = vunpack.c.h.b16 %v5761
        %v6919 = vunpack.c.l.b16 %v5762
        %v6920 = vunpack.c.h.b16 %v5762
        %v6921 = vunpack.c.l.b16 %v5763
        %v6922 = vunpack.c.h.b16 %v5763
        %v6923 = vunpack.c.l.b16 %v5764
        %v6924 = vunpack.c.h.b16 %v5764
        %v6925 = vunpack.c.l.b16 %v5765
        %v6926 = vunpack.c.h.b16 %v5765
        %v6927 = vunpack.c.l.b16 %v5766
        %v6928 = vunpack.c.h.b16 %v5766
        %v6929 = vunpack.c.l.b16 %v5767
        %v6930 = vunpack.c.h.b16 %v5767
        %v6931 = vunpack.c.l.b16 %v5768
        %v6932 = vunpack.c.h.b16 %v5768
        %v6933 = vunpack.c.l.b16 %v5769
        %v6934 = vunpack.c.h.b16 %v5769
        %v6935 = vunpack.c.l.b16 %v5770
        %v6936 = vunpack.c.h.b16 %v5770
        %v6937 = vunpack.c.l.b16 %v5771
        %v6938 = vunpack.c.h.b16 %v5771
        %v6939 = vunpack.c.l.b16 %v5772
        %v6940 = vunpack.c.h.b16 %v5772
        %v6941 = vunpack.c.l.b16 %v5773
        %v6942 = vunpack.c.h.b16 %v5773
        %v6943 = vunpack.c.l.b16 %v5774
        %v6944 = vunpack.c.h.b16 %v5774
        %v6945 = vunpack.c.l.b16 %v5775
        %v6946 = vunpack.c.h.b16 %v5775
        %v6947 = vunpack.c.l.b16 %v5776
        %v6948 = vunpack.c.h.b16 %v5776
        %v6949 = vunpack.c.l.b16 %v5777
        %v6950 = vunpack.c.h.b16 %v5777
        %v6951 = vunpack.c.l.b16 %v5778
        %v6952 = vunpack.c.h.b16 %v5778
        %v6953 = vunpack.c.l.b16 %v5779
        %v6954 = vunpack.c.h.b16 %v5779
        %v6955 = vunpack.c.l.b16 %v5780
        %v6956 = vunpack.c.h.b16 %v5780
        %v6957 = vunpack.c.l.b16 %v5781
        %v6958 = vunpack.c.h.b16 %v5781
        %v6959 = vunpack.c.l.b16 %v5782
        %v6960 = vunpack.c.h.b16 %v5782
        %v6961 = vunpack.c.l.b16 %v5783
        %v6962 = vunpack.c.h.b16 %v5783
        %v6963 = vunpack.c.l.b16 %v5784
        %v6964 = vunpack.c.h.b16 %v5784
        %v6965 = vunpack.c.l.b16 %v5785
        %v6966 = vunpack.c.h.b16 %v5785
        %v6967 = vunpack.c.l.b16 %v5786
        %v6968 = vunpack.c.h.b16 %v5786
        %v6969 = vunpack.c.l.b16 %v5787
        %v6970 = vunpack.c.h.b16 %v5787
        %v6971 = vunpack.c.l.b16 %v5788
        %v6972 = vunpack.c.h.b16 %v5788
        %v6973 = vunpack.c.l.b16 %v5789
        %v6974 = vunpack.c.h.b16 %v5789
        %v6975 = vunpack.c.l.b16 %v5790
        %v6976 = vunpack.c.h.b16 %v5790
        %v6977 = vunpack.c.l.b16 %v5791
        %v6978 = vunpack.c.h.b16 %v5791
        %v6979 = vunpack.c.l.b16 %v5792
        %v6980 = vunpack.c.h.b16 %v5792
        %v6981 = vunpack.c.l.b16 %v5793
        %v6982 = vunpack.c.h.b16 %v5793
        %v6983 = vunpack.c.l.b16 %v5794
        %v6984 = vunpack.c.h.b16 %v5794
        %v6985 = vunpack.c.l.b16 %v5795
        %v6986 = vunpack.c.h.b16 %v5795
        %v6987 = vunpack.c.l.b16 %v5796
        %v6988 = vunpack.c.h.b16 %v5796
        %v6989 = vunpack.c.l.b16 %v5797
        %v6990 = vunpack.c.h.b16 %v5797
        %v6991 = vunpack.c.l.b16 %v5798
        %v6992 = vunpack.c.h.b16 %v5798
        %v6993 = vunpack.c.l.b16 %v5799
        %v6994 = vunpack.c.h.b16 %v5799
        %v6995 = vunpack.c.l.b16 %v5800
        %v6996 = vunpack.c.h.b16 %v5800
        %v6997 = vunpack.c.l.b16 %v5801
        %v6998 = vunpack.c.h.b16 %v5801
        %v6999 = vunpack.c.l.b16 %v5802
        %v7000 = vunpack.c.h.b16 %v5802
        %v7001 = vunpack.c.l.b16 %v5803
        %v7002 = vunpack.c.h.b16 %v5803
        %v7003 = vunpack.c.l.b16 %v5804
        %v7004 = vunpack.c.h.b16 %v5804
        %v7005 = vunpack.c.l.b16 %v5805
        %v7006 = vunpack.c.h.b16 %v5805
        %v7007 = vunpack.c.l.b16 %v5806
        %v7008 = vunpack.c.h.b16 %v5806
        %v7009 = vunpack.c.l.b16 %v5807
        %v7010 = vunpack.c.h.b16 %v5807
        %v7011 = vunpack.c.l.b16 %v5808
        %v7012 = vunpack.c.h.b16 %v5808
        %v7013 = vunpack.c.l.b16 %v5809
        %v7014 = vunpack.c.h.b16 %v5809
        %v7015 = vunpack.c.l.b16 %v5810
        %v7016 = vunpack.c.h.b16 %v5810
        %v7017 = vunpack.c.l.b16 %v5811
        %v7018 = vunpack.c.h.b16 %v5811
        %v7019 = vunpack.c.l.b16 %v5812
        %v7020 = vunpack.c.h.b16 %v5812
        %v7021 = vunpack.c.l.b16 %v5813
        %v7022 = vunpack.c.h.b16 %v5813
        %v7023 = vunpack.c.l.b16 %v5814
        %v7024 = vunpack.c.h.b16 %v5814
        %v7025 = vunpack.c.l.b16 %v5815
        %v7026 = vunpack.c.h.b16 %v5815
        %v7027 = vunpack.c.l.b16 %v5816
        %v7028 = vunpack.c.h.b16 %v5816
        %v7029 = vunpack.c.l.b16 %v5817
        %v7030 = vunpack.c.h.b16 %v5817
        %v7031 = vunpack.c.l.b16 %v5818
        %v7032 = vunpack.c.h.b16 %v5818
        %v7033 = vunpack.c.l.b16 %v5819
        %v7034 = vunpack.c.h.b16 %v5819
        %v7035 = vunpack.c.l.b16 %v5820
        %v7036 = vunpack.c.h.b16 %v5820
        %v7037 = vunpack.c.l.b16 %v5821
        %v7038 = vunpack.c.h.b16 %v5821
        %v7039 = vunpack.c.l.b16 %v5822
        %v7040 = vunpack.c.h.b16 %v5822
        %v7041 = vunpack.c.l.b16 %v5823
        %v7042 = vunpack.c.h.b16 %v5823
        %v7043 = vunpack.c.l.b16 %v5824
        %v7044 = vunpack.c.h.b16 %v5824
        %v7045 = vunpack.c.l.b16 %v5825
        %v7046 = vunpack.c.h.b16 %v5825
        %v7047 = vunpack.c.l.b16 %v5826
        %v7048 = vunpack.c.h.b16 %v5826
        %v7049 = vunpack.c.l.b16 %v5827
        %v7050 = vunpack.c.h.b16 %v5827
        %v7051 = vunpack.c.l.b16 %v5828
        %v7052 = vunpack.c.h.b16 %v5828
        %v7053 = vunpack.c.l.b16 %v5829
        %v7054 = vunpack.c.h.b16 %v5829
        %v7055 = vunpack.c.l.b16 %v5830
        %v7056 = vunpack.c.h.b16 %v5830
        %v7057 = vunpack.c.l.b16 %v5831
        %v7058 = vunpack.c.h.b16 %v5831
        %v7059 = vunpack.c.l.b16 %v5832
        %v7060 = vunpack.c.h.b16 %v5832
        %v7061 = vunpack.c.l.b16 %v5833
        %v7062 = vunpack.c.h.b16 %v5833
        %v7063 = vunpack.c.l.b16 %v5834
        %v7064 = vunpack.c.h.b16 %v5834
        %v7065 = vunpack.c.l.b16 %v5835
        %v7066 = vunpack.c.h.b16 %v5835
        %v7067 = vunpack.c.l.b16 %v5836
        %v7068 = vunpack.c.h.b16 %v5836
        %v7069 = vunpack.c.l.b16 %v5837
        %v7070 = vunpack.c.h.b16 %v5837
        %v7071 = vunpack.c.l.b16 %v5838
        %v7072 = vunpack.c.h.b16 %v5838
        %v7073 = vunpack.c.l.b16 %v5839
        %v7074 = vunpack.c.h.b16 %v5839
        %v7075 = vunpack.c.l.b16 %v5840
        %v7076 = vunpack.c.h.b16 %v5840
        %v7077 = vunpack.c.l.b16 %v5841
        %v7078 = vunpack.c.h.b16 %v5841
        %v7079 = vunpack.c.l.b16 %v5842
        %v7080 = vunpack.c.h.b16 %v5842
        %v7081 = vunpack.c.l.b16 %v5843
        %v7082 = vunpack.c.h.b16 %v5843
        %v7083 = vunpack.c.l.b16 %v5844
        %v7084 = vunpack.c.h.b16 %v5844
        %v7085 = vunpack.c.l.b16 %v5845
        %v7086 = vunpack.c.h.b16 %v5845
        %v7087 = vunpack.c.l.b16 %v5846
        %v7088 = vunpack.c.h.b16 %v5846
        %v7089 = vunpack.c.l.b16 %v5847
        %v7090 = vunpack.c.h.b16 %v5847
        %v7091 = vunpack.c.l.b16 %v5848
        %v7092 = vunpack.c.h.b16 %v5848
        %v7093 = vunpack.c.l.b16 %v5849
        %v7094 = vunpack.c.h.b16 %v5849
        %v7095 = vunpack.c.l.b16 %v5850
        %v7096 = vunpack.c.h.b16 %v5850
        %v7097 = vunpack.c.l.b16 %v5851
        %v7098 = vunpack.c.h.b16 %v5851
        %v7099 = vunpack.c.l.b16 %v5852
        %v7100 = vunpack.c.h.b16 %v5852
        %v7101 = vunpack.c.l.b16 %v5853
        %v7102 = vunpack.c.h.b16 %v5853
        %v7103 = vunpack.c.l.b16 %v5854
        %v7104 = vunpack.c.h.b16 %v5854
        %v7105 = vunpack.c.l.b16 %v5855
        %v7106 = vunpack.c.h.b16 %v5855
        %v7107 = vunpack.c.l.b16 %v5856
        %v7108 = vunpack.c.h.b16 %v5856
        %v7109 = vunpack.c.l.b16 %v5857
        %v7110 = vunpack.c.h.b16 %v5857
        %v7111 = vunpack.c.l.b16 %v5858
        %v7112 = vunpack.c.h.b16 %v5858
        %v7113 = vunpack.c.l.b16 %v5859
        %v7114 = vunpack.c.h.b16 %v5859
        %v7115 = vunpack.c.l.b16 %v5860
        %v7116 = vunpack.c.h.b16 %v5860
        %v7117 = vunpack.c.l.b16 %v5861
        %v7118 = vunpack.c.h.b16 %v5861
        %v7119 = vunpack.c.l.b16 %v5862
        %v7120 = vunpack.c.h.b16 %v5862
        %v7121 = vunpack.c.l.b16 %v5863
        %v7122 = vunpack.c.h.b16 %v5863
        %v7123 = vunpack.c.l.b16 %v5864
        %v7124 = vunpack.c.h.b16 %v5864
        %v7125 = vunpack.c.l.b16 %v5865
        %v7126 = vunpack.c.h.b16 %v5865
        %v7127 = vunpack.c.l.b16 %v5866
        %v7128 = vunpack.c.h.b16 %v5866
        %v7129 = vunpack.c.l.b16 %v5867
        %v7130 = vunpack.c.h.b16 %v5867
        %v7131 = vunpack.c.l.b16 %v5868
        %v7132 = vunpack.c.h.b16 %v5868
        %v7133 = vunpack.c.l.b16 %v5869
        %v7134 = vunpack.c.h.b16 %v5869
        %v7135 = vunpack.c.l.b16 %v5870
        %v7136 = vunpack.c.h.b16 %v5870
        %v7137 = vunpack.c.l.b16 %v5871
        %v7138 = vunpack.c.h.b16 %v5871
        %v7139 = vunpack.c.l.b16 %v5872
        %v7140 = vunpack.c.h.b16 %v5872
        %v7141 = vunpack.c.l.b16 %v5873
        %v7142 = vunpack.c.h.b16 %v5873
        %v7143 = vunpack.c.l.b16 %v5874
        %v7144 = vunpack.c.h.b16 %v5874
        %v7145 = vunpack.c.l.b16 %v5875
        %v7146 = vunpack.c.h.b16 %v5875
        %v7147 = vunpack.c.l.b16 %v5876
        %v7148 = vunpack.c.h.b16 %v5876
        %v7149 = vunpack.c.l.b16 %v5877
        %v7150 = vunpack.c.h.b16 %v5877
        %v7151 = vunpack.c.l.b16 %v5878
        %v7152 = vunpack.c.h.b16 %v5878
        %v7153 = vunpack.c.l.b16 %v5879
        %v7154 = vunpack.c.h.b16 %v5879
        %v7155 = vunpack.c.l.b16 %v5880
        %v7156 = vunpack.c.h.b16 %v5880
        %v7157 = vunpack.c.l.b16 %v5881
        %v7158 = vunpack.c.h.b16 %v5881
        %v7159 = vunpack.c.l.b16 %v5882
        %v7160 = vunpack.c.h.b16 %v5882
        %v7161 = vunpack.c.l.b16 %v5883
        %v7162 = vunpack.c.h.b16 %v5883
        %v7163 = vunpack.c.l.b16 %v5884
        %v7164 = vunpack.c.h.b16 %v5884
        %v7165 = vunpack.c.l.b16 %v5885
        %v7166 = vunpack.c.h.b16 %v5885
        %v7167 = vunpack.c.l.b16 %v5886
        %v7168 = vunpack.c.h.b16 %v5886
        %v7169 = vunpack.c.l.b16 %v5887
        %v7170 = vunpack.c.h.b16 %v5887
        %v7171 = vunpack.c.l.b16 %v5888
        %v7172 = vunpack.c.h.b16 %v5888
        %v7173 = vunpack.c.l.b16 %v5889
        %v7174 = vunpack.c.h.b16 %v5889
        %v7175 = vunpack.c.l.b16 %v5890
        %v7176 = vunpack.c.h.b16 %v5890
        %v7177 = vunpack.c.l.b16 %v5891
        %v7178 = vunpack.c.h.b16 %v5891
        %v7179 = vunpack.c.l.b16 %v5892
        %v7180 = vunpack.c.h.b16 %v5892
        %v7181 = vunpack.c.l.b16 %v5893
        %v7182 = vunpack.c.h.b16 %v5893
        %v7183 = vunpack.c.l.b16 %v5894
        %v7184 = vunpack.c.h.b16 %v5894
        %v7185 = vunpack.c.l.b16 %v5895
        %v7186 = vunpack.c.h.b16 %v5895
        %v7187 = vunpack.c.l.b16 %v5896
        %v7188 = vunpack.c.h.b16 %v5896
        %v7189 = vunpack.c.l.b16 %v5897
        %v7190 = vunpack.c.h.b16 %v5897
        %v7191 = vunpack.c.l.b16 %v5898
        %v7192 = vunpack.c.h.b16 %v5898
        %v7193 = vunpack.c.l.b16 %v5899
        %v7194 = vunpack.c.h.b16 %v5899
        %v7195 = vunpack.c.l.b16 %v5900
        %v7196 = vunpack.c.h.b16 %v5900
        %v7197 = vunpack.c.l.b16 %v5901
        %v7198 = vunpack.c.h.b16 %v5901
        %v7199 = vunpack.c.l.b16 %v5902
        %v7200 = vunpack.c.h.b16 %v5902
        %v7201 = vunpack.c.l.b16 %v5903
        %v7202 = vunpack.c.h.b16 %v5903
        %v7203 = vunpack.c.l.b16 %v5904
        %v7204 = vunpack.c.h.b16 %v5904
        %v7205 = vunpack.c.l.b16 %v5905
        %v7206 = vunpack.c.h.b16 %v5905
        %v7207 = vunpack.c.l.b16 %v5906
        %v7208 = vunpack.c.h.b16 %v5906
        %v7209 = vunpack.c.l.b16 %v5907
        %v7210 = vunpack.c.h.b16 %v5907
        %v7211 = vunpack.c.l.b16 %v5908
        %v7212 = vunpack.c.h.b16 %v5908
        %v7213 = vunpack.c.l.b16 %v5909
        %v7214 = vunpack.c.h.b16 %v5909
        %v7215 = vunpack.c.l.b16 %v5910
        %v7216 = vunpack.c.h.b16 %v5910
        %v7217 = vunpack.c.l.b16 %v5911
        %v7218 = vunpack.c.h.b16 %v5911
        %v7219 = vunpack.c.l.b16 %v5912
        %v7220 = vunpack.c.h.b16 %v5912
        %v7221 = vunpack.c.l.b16 %v5913
        %v7222 = vunpack.c.h.b16 %v5913
        %v7223 = vunpack.c.l.b16 %v5914
        %v7224 = vunpack.c.h.b16 %v5914
        %v7225 = vunpack.c.l.b16 %v5915
        %v7226 = vunpack.c.h.b16 %v5915
        %v7227 = vunpack.c.l.b16 %v5916
        %v7228 = vunpack.c.h.b16 %v5916
        %v7229 = vunpack.c.l.b16 %v5917
        %v7230 = vunpack.c.h.b16 %v5917
        %v7231 = vunpack.c.l.b16 %v5918
        %v7232 = vunpack.c.h.b16 %v5918
        %v7233 = vunpack.c.l.b16 %v5919
        %v7234 = vunpack.c.h.b16 %v5919
        %v7235 = vunpack.c.l.b16 %v5920
        %v7236 = vunpack.c.h.b16 %v5920
        %v7237 = vunpack.c.l.b16 %v5921
        %v7238 = vunpack.c.h.b16 %v5921
        %v7239 = vunpack.c.l.b16 %v5922
        %v7240 = vunpack.c.h.b16 %v5922
        %v7241 = vunpack.c.l.b16 %v5923
        %v7242 = vunpack.c.h.b16 %v5923
        %v7243 = vunpack.c.l.b16 %v5924
        %v7244 = vunpack.c.h.b16 %v5924
        %v7245 = vunpack.c.l.b16 %v5925
        %v7246 = vunpack.c.h.b16 %v5925
        %v7247 = vunpack.c.l.b16 %v5926
        %v7248 = vunpack.c.h.b16 %v5926
        %v7249 = vunpack.c.l.b16 %v5927
        %v7250 = vunpack.c.h.b16 %v5927
        %v7251 = vunpack.c.l.b16 %v5928
        %v7252 = vunpack.c.h.b16 %v5928
        %v7253 = vunpack.c.l.b16 %v5929
        %v7254 = vunpack.c.h.b16 %v5929
        %v7255 = vunpack.c.l.b16 %v5930
        %v7256 = vunpack.c.h.b16 %v5930
        %v7257 = vunpack.c.l.b16 %v5931
        %v7258 = vunpack.c.h.b16 %v5931
        %v7259 = vunpack.c.l.b16 %v5932
        %v7260 = vunpack.c.h.b16 %v5932
        %v7261 = vunpack.c.l.b16 %v5933
        %v7262 = vunpack.c.h.b16 %v5933
        %v7263 = vunpack.c.l.b16 %v5934
        %v7264 = vunpack.c.h.b16 %v5934
        %v7265 = vunpack.c.l.b16 %v5935
        %v7266 = vunpack.c.h.b16 %v5935
        %v7267 = vunpack.c.l.b16 %v5936
        %v7268 = vunpack.c.h.b16 %v5936
        %v7269 = vunpack.c.l.b16 %v5937
        %v7270 = vunpack.c.h.b16 %v5937
        %v7271 = vunpack.c.l.b16 %v5938
        %v7272 = vunpack.c.h.b16 %v5938
        %v7273 = vunpack.c.l.b16 %v5939
        %v7274 = vunpack.c.h.b16 %v5939
        %v7275 = vunpack.c.l.b16 %v5940
        %v7276 = vunpack.c.h.b16 %v5940
        %v7277 = vunpack.c.l.b16 %v5941
        %v7278 = vunpack.c.h.b16 %v5941
        %v7279 = vunpack.c.l.b16 %v5942
        %v7280 = vunpack.c.h.b16 %v5942
        %v7281 = vunpack.c.l.b16 %v5943
        %v7282 = vunpack.c.h.b16 %v5943
        %v7283 = vunpack.c.l.b16 %v5944
        %v7284 = vunpack.c.h.b16 %v5944
        %v7285 = vunpack.c.l.b16 %v5945
        %v7286 = vunpack.c.h.b16 %v5945
        %v7287 = vunpack.c.l.b16 %v5946
        %v7288 = vunpack.c.h.b16 %v5946
        %v7289 = vunpack.c.l.b16 %v5947
        %v7290 = vunpack.c.h.b16 %v5947
        %v7291 = vunpack.c.l.b16 %v5948
        %v7292 = vunpack.c.h.b16 %v5948
        %v7293 = vunpack.c.l.b16 %v5949
        %v7294 = vunpack.c.h.b16 %v5949
        %v7295 = vunpack.c.l.b16 %v5950
        %v7296 = vunpack.c.h.b16 %v5950
        %v7297 = vunpack.c.l.b16 %v5951
        %v7298 = vunpack.c.h.b16 %v5951
        %v7299 = vunpack.c.l.b16 %v5952
        %v7300 = vunpack.c.h.b16 %v5952
        %v7301 = vunpack.c.l.b16 %v5953
        %v7302 = vunpack.c.h.b16 %v5953
        %v7303 = vunpack.c.l.b16 %v5954
        %v7304 = vunpack.c.h.b16 %v5954
        %v7305 = vunpack.c.l.b16 %v5955
        %v7306 = vunpack.c.h.b16 %v5955
        %v7307 = vunpack.c.l.b16 %v5956
        %v7308 = vunpack.c.h.b16 %v5956
        %v7309 = vunpack.c.l.b16 %v5957
        %v7310 = vunpack.c.h.b16 %v5957
        %v7311 = vunpack.c.l.b16 %v5958
        %v7312 = vunpack.c.h.b16 %v5958
        %v7313 = vunpack.c.l.b16 %v5959
        %v7314 = vunpack.c.h.b16 %v5959
        %v7315 = vunpack.c.l.b16 %v5960
        %v7316 = vunpack.c.h.b16 %v5960
        %v7317 = vunpack.c.l.b16 %v5961
        %v7318 = vunpack.c.h.b16 %v5961
        %v7319 = vunpack.c.l.b16 %v5962
        %v7320 = vunpack.c.h.b16 %v5962
        %v7321 = vunpack.c.l.b16 %v5963
        %v7322 = vunpack.c.h.b16 %v5963
        %v7323 = vunpack.c.l.b16 %v5964
        %v7324 = vunpack.c.h.b16 %v5964
        %v7325 = vunpack.c.l.b16 %v5965
        %v7326 = vunpack.c.h.b16 %v5965
        %v7327 = vunpack.c.l.b16 %v5966
        %v7328 = vunpack.c.h.b16 %v5966
        %v7329 = vunpack.c.l.b16 %v5967
        %v7330 = vunpack.c.h.b16 %v5967
        %v7331 = vunpack.c.l.b16 %v5968
        %v7332 = vunpack.c.h.b16 %v5968
        %v7333 = vunpack.c.l.b16 %v5969
        %v7334 = vunpack.c.h.b16 %v5969
        %v7335 = vunpack.c.l.b16 %v5970
        %v7336 = vunpack.c.h.b16 %v5970
        %v7337 = vunpack.c.l.b16 %v5971
        %v7338 = vunpack.c.h.b16 %v5971
        %v7339 = vunpack.c.l.b16 %v5972
        %v7340 = vunpack.c.h.b16 %v5972
        %v7341 = vunpack.c.l.b16 %v5973
        %v7342 = vunpack.c.h.b16 %v5973
        %v7343 = vunpack.c.l.b16 %v5974
        %v7344 = vunpack.c.h.b16 %v5974
        %v7345 = vunpack.c.l.b16 %v5975
        %v7346 = vunpack.c.h.b16 %v5975
        %v7347 = vunpack.c.l.b16 %v5976
        %v7348 = vunpack.c.h.b16 %v5976
        %v7349 = vunpack.c.l.b16 %v5977
        %v7350 = vunpack.c.h.b16 %v5977
        %v7351 = vunpack.c.l.b16 %v5978
        %v7352 = vunpack.c.h.b16 %v5978
        %v7353 = vunpack.c.l.b16 %v5979
        %v7354 = vunpack.c.h.b16 %v5979
        %v7355 = vunpack.c.l.b16 %v5980
        %v7356 = vunpack.c.h.b16 %v5980
        %v7357 = vunpack.c.l.b16 %v5981
        %v7358 = vunpack.c.h.b16 %v5981
        %v7359 = vunpack.c.l.b16 %v5982
        %v7360 = vunpack.c.h.b16 %v5982
        %v7361 = vunpack.c.l.b16 %v5983
        %v7362 = vunpack.c.h.b16 %v5983
        %v7363 = vunpack.c.l.b16 %v5984
        %v7364 = vunpack.c.h.b16 %v5984
        %v7365 = vunpack.c.l.b16 %v5985
        %v7366 = vunpack.c.h.b16 %v5985
        %v7367 = vunpack.c.l.b16 %v5986
        %v7368 = vunpack.c.h.b16 %v5986
        %v7369 = vunpack.c.l.b16 %v5987
        %v7370 = vunpack.c.h.b16 %v5987
        %v7371 = vunpack.c.l.b16 %v5988
        %v7372 = vunpack.c.h.b16 %v5988
        %v7373 = vunpack.c.l.b16 %v5989
        %v7374 = vunpack.c.h.b16 %v5989
        %v7375 = vunpack.c.l.b16 %v5990
        %v7376 = vunpack.c.h.b16 %v5990
        %v7377 = vunpack.c.l.b16 %v5991
        %v7378 = vunpack.c.h.b16 %v5991
        %v7379 = vunpack.c.l.b16 %v5992
        %v7380 = vunpack.c.h.b16 %v5992
        %v7381 = vunpack.c.l.b16 %v5993
        %v7382 = vunpack.c.h.b16 %v5993
        %v7383 = vunpack.c.l.b16 %v5994
        %v7384 = vunpack.c.h.b16 %v5994
        %v7385 = vunpack.c.l.b16 %v5995
        %v7386 = vunpack.c.h.b16 %v5995
        %v7387 = vunpack.c.l.b16 %v5996
        %v7388 = vunpack.c.h.b16 %v5996
        %v7389 = vunpack.c.l.b16 %v5997
        %v7390 = vunpack.c.h.b16 %v5997
        %v7391 = vunpack.c.l.b16 %v5998
        %v7392 = vunpack.c.h.b16 %v5998
        %v7393 = vunpack.c.l.b16 %v5999
        %v7394 = vunpack.c.h.b16 %v5999
        %v7395 = vunpack.c.l.b16 %v6000
        %v7396 = vunpack.c.h.b16 %v6000
        %v7397 = vunpack.c.l.b16 %v6001
        %v7398 = vunpack.c.h.b16 %v6001
        %v7399 = vunpack.c.l.b16 %v6002
        %v7400 = vunpack.c.h.b16 %v6002
        %v7401 = vunpack.c.l.b16 %v6003
        %v7402 = vunpack.c.h.b16 %v6003
        %v7403 = vunpack.c.l.b16 %v6004
        %v7404 = vunpack.c.h.b16 %v6004
        %v7405 = vunpack.c.l.b16 %v6005
        %v7406 = vunpack.c.h.b16 %v6005
        %v7407 = vunpack.c.l.b16 %v6006
        %v7408 = vunpack.c.h.b16 %v6006
        %v7409 = vunpack.c.l.b16 %v6007
        %v7410 = vunpack.c.h.b16 %v6007
        %v7411 = vunpack.c.l.b16 %v6008
        %v7412 = vunpack.c.h.b16 %v6008
        %v7413 = vunpack.c.l.b16 %v6009
        %v7414 = vunpack.c.h.b16 %v6009
        %v7415 = vunpack.c.l.b16 %v6010
        %v7416 = vunpack.c.h.b16 %v6010
        %v7417 = vunpack.c.l.b16 %v6011
        %v7418 = vunpack.c.h.b16 %v6011
        %v7419 = vunpack.c.l.b16 %v6012
        %v7420 = vunpack.c.h.b16 %v6012
        %v7421 = vunpack.c.l.b16 %v6013
        %v7422 = vunpack.c.h.b16 %v6013
        %v7423 = vunpack.c.l.b16 %v6014
        %v7424 = vunpack.c.h.b16 %v6014
        %v7425 = vunpack.c.l.b16 %v6015
        %v7426 = vunpack.c.h.b16 %v6015
        %v7427 = vunpack.c.l.b16 %v6016
        %v7428 = vunpack.c.h.b16 %v6016
        %v7429 = vunpack.c.l.b16 %v6017
        %v7430 = vunpack.c.h.b16 %v6017
        %v7431 = vunpack.c.l.b16 %v6018
        %v7432 = vunpack.c.h.b16 %v6018
        %v7433 = vunpack.c.l.b16 %v6019
        %v7434 = vunpack.c.h.b16 %v6019
        %v7435 = vunpack.c.l.b16 %v6020
        %v7436 = vunpack.c.h.b16 %v6020
        %v7437 = vunpack.c.l.b16 %v6021
        %v7438 = vunpack.c.h.b16 %v6021
        %v7439 = vunpack.c.l.b16 %v6022
        %v7440 = vunpack.c.h.b16 %v6022
        %v7441 = vunpack.c.l.b16 %v6023
        %v7442 = vunpack.c.h.b16 %v6023
        %v7443 = vunpack.c.l.b16 %v6024
        %v7444 = vunpack.c.h.b16 %v6024
        %v7445 = vunpack.c.l.b16 %v6025
        %v7446 = vunpack.c.h.b16 %v6025
        %v7447 = vunpack.c.l.b16 %v6026
        %v7448 = vunpack.c.h.b16 %v6026
        %v7449 = vunpack.c.l.b16 %v6027
        %v7450 = vunpack.c.h.b16 %v6027
        %v7451 = vunpack.c.l.b16 %v6028
        %v7452 = vunpack.c.h.b16 %v6028
        %v7453 = vunpack.c.l.b16 %v6029
        %v7454 = vunpack.c.h.b16 %v6029
        %v7455 = vunpack.c.l.b16 %v6030
        %v7456 = vunpack.c.h.b16 %v6030
        %v7457 = vunpack.c.l.b16 %v6031
        %v7458 = vunpack.c.h.b16 %v6031
        %v7459 = vunpack.c.l.b16 %v6032
        %v7460 = vunpack.c.h.b16 %v6032
        %v7461 = vunpack.c.l.b16 %v6033
        %v7462 = vunpack.c.h.b16 %v6033
        %v7463 = vunpack.c.l.b16 %v6034
        %v7464 = vunpack.c.h.b16 %v6034
        %v7465 = vunpack.c.l.b16 %v6035
        %v7466 = vunpack.c.h.b16 %v6035
        %v7467 = vunpack.c.l.b16 %v6036
        %v7468 = vunpack.c.h.b16 %v6036
        %v7469 = vunpack.c.l.b16 %v6037
        %v7470 = vunpack.c.h.b16 %v6037
        %v7471 = vunpack.c.l.b16 %v6038
        %v7472 = vunpack.c.h.b16 %v6038
        %v7473 = vunpack.c.l.b16 %v6039
        %v7474 = vunpack.c.h.b16 %v6039
        %v7475 = vunpack.c.l.b16 %v6040
        %v7476 = vunpack.c.h.b16 %v6040
        %v7477 = vunpack.c.l.b16 %v6041
        %v7478 = vunpack.c.h.b16 %v6041
        %v7479 = vunpack.c.l.b16 %v6042
        %v7480 = vunpack.c.h.b16 %v6042
        %v7481 = vunpack.c.l.b16 %v6043
        %v7482 = vunpack.c.h.b16 %v6043
        %v7483 = vunpack.c.l.b16 %v6044
        %v7484 = vunpack.c.h.b16 %v6044
        %v7485 = vunpack.c.l.b16 %v6045
        %v7486 = vunpack.c.h.b16 %v6045
        %v7487 = vunpack.c.l.b16 %v6046
        %v7488 = vunpack.c.h.b16 %v6046
        %v7489 = vunpack.c.l.b16 %v6047
        %v7490 = vunpack.c.h.b16 %v6047
        %v7491 = vunpack.c.l.b16 %v6048
        %v7492 = vunpack.c.h.b16 %v6048
        %v7493 = vunpack.c.l.b16 %v6049
        %v7494 = vunpack.c.h.b16 %v6049
        %v7495 = vunpack.c.l.b16 %v6050
        %v7496 = vunpack.c.h.b16 %v6050
        %v7497 = vunpack.c.l.b16 %v6051
        %v7498 = vunpack.c.h.b16 %v6051
        %v7499 = vunpack.c.l.b16 %v6052
        %v7500 = vunpack.c.h.b16 %v6052
        %v7501 = vunpack.c.l.b16 %v6053
        %v7502 = vunpack.c.h.b16 %v6053
        %v7503 = vunpack.c.l.b16 %v6054
        %v7504 = vunpack.c.h.b16 %v6054
        %v7505 = vunpack.c.l.b16 %v6055
        %v7506 = vunpack.c.h.b16 %v6055
        %v7507 = vunpack.c.l.b16 %v6056
        %v7508 = vunpack.c.h.b16 %v6056
        %v7509 = vunpack.c.l.b16 %v6057
        %v7510 = vunpack.c.h.b16 %v6057
        %v7511 = vunpack.c.l.b16 %v6058
        %v7512 = vunpack.c.h.b16 %v6058
        %v7513 = vunpack.c.l.b16 %v6059
        %v7514 = vunpack.c.h.b16 %v6059
        %v7515 = vunpack.c.l.b16 %v6060
        %v7516 = vunpack.c.h.b16 %v6060
        %v7517 = vunpack.c.l.b16 %v6061
        %v7518 = vunpack.c.h.b16 %v6061
        %v7519 = vunpack.c.l.b16 %v6062
        %v7520 = vunpack.c.h.b16 %v6062
        %v7521 = vunpack.c.l.b16 %v6063
        %v7522 = vunpack.c.h.b16 %v6063
        %v7523 = vunpack.c.l.b16 %v6064
        %v7524 = vunpack.c.h.b16 %v6064
        %v7525 = vunpack.c.l.b16 %v6065
        %v7526 = vunpack.c.h.b16 %v6065
        %v7527 = vunpack.c.l.b16 %v6066
        %v7528 = vunpack.c.h.b16 %v6066
        %v7529 = vunpack.c.l.b16 %v6067
        %v7530 = vunpack.c.h.b16 %v6067
        %v7531 = vunpack.c.l.b16 %v6068
        %v7532 = vunpack.c.h.b16 %v6068
        %v7533 = vunpack.c.l.b16 %v6069
        %v7534 = vunpack.c.h.b16 %v6069
        %v7535 = vunpack.c.l.b16 %v6070
        %v7536 = vunpack.c.h.b16 %v6070
        %v7537 = vunpack.c.l.b16 %v6071
        %v7538 = vunpack.c.h.b16 %v6071
        %v7539 = vunpack.c.l.b16 %v6072
        %v7540 = vunpack.c.h.b16 %v6072
        %v7541 = vunpack.c.l.b16 %v6073
        %v7542 = vunpack.c.h.b16 %v6073
        %v7543 = vunpack.c.l.b16 %v6074
        %v7544 = vunpack.c.h.b16 %v6074
        %v7545 = vunpack.c.l.b16 %v6075
        %v7546 = vunpack.c.h.b16 %v6075
        %v7547 = vunpack.c.l.b16 %v6076
        %v7548 = vunpack.c.h.b16 %v6076
        %v7549 = vunpack.c.l.b16 %v6077
        %v7550 = vunpack.c.h.b16 %v6077
        %v7551 = vunpack.c.l.b16 %v6078
        %v7552 = vunpack.c.h.b16 %v6078
        %v7553 = vunpack.c.l.b16 %v6079
        %v7554 = vunpack.c.h.b16 %v6079
        %v7555 = vunpack.c.l.b16 %v6080
        %v7556 = vunpack.c.h.b16 %v6080
        %v7557 = vunpack.c.l.b16 %v6081
        %v7558 = vunpack.c.h.b16 %v6081
        %v7559 = vunpack.c.l.b16 %v6082
        %v7560 = vunpack.c.h.b16 %v6082
        %v7561 = vunpack.c.l.b16 %v6083
        %v7562 = vunpack.c.h.b16 %v6083
        %v7563 = vunpack.c.l.b16 %v6084
        %v7564 = vunpack.c.h.b16 %v6084
        %v7565 = vunpack.c.l.b16 %v6085
        %v7566 = vunpack.c.h.b16 %v6085
        %v7567 = vunpack.c.l.b16 %v6086
        %v7568 = vunpack.c.h.b16 %v6086
        %v7569 = vunpack.c.l.b16 %v6087
        %v7570 = vunpack.c.h.b16 %v6087
        %v7571 = vunpack.c.l.b16 %v6088
        %v7572 = vunpack.c.h.b16 %v6088
        %v7573 = vunpack.c.l.b16 %v6089
        %v7574 = vunpack.c.h.b16 %v6089
        %v7575 = vunpack.c.l.b16 %v6090
        %v7576 = vunpack.c.h.b16 %v6090
        %v7577 = vunpack.c.l.b16 %v6091
        %v7578 = vunpack.c.h.b16 %v6091
        %v7579 = vunpack.c.l.b16 %v6092
        %v7580 = vunpack.c.h.b16 %v6092
        %v7581 = vunpack.c.l.b16 %v6093
        %v7582 = vunpack.c.h.b16 %v6093
        %v7583 = vunpack.c.l.b16 %v6094
        %v7584 = vunpack.c.h.b16 %v6094
        %v7585 = vunpack.c.l.b16 %v6095
        %v7586 = vunpack.c.h.b16 %v6095
        %v7587 = vunpack.c.l.b16 %v6096
        %v7588 = vunpack.c.h.b16 %v6096
        %v7589 = vunpack.c.l.b16 %v6097
        %v7590 = vunpack.c.h.b16 %v6097
        %v7591 = vunpack.c.l.b16 %v6098
        %v7592 = vunpack.c.h.b16 %v6098
        %v7593 = vunpack.c.l.b16 %v6099
        %v7594 = vunpack.c.h.b16 %v6099
        %v7595 = vunpack.c.l.b16 %v6100
        %v7596 = vunpack.c.h.b16 %v6100
        %v7597 = vunpack.c.l.b16 %v6101
        %v7598 = vunpack.c.h.b16 %v6101
        %v7599 = vunpack.c.l.b16 %v6102
        %v7600 = vunpack.c.h.b16 %v6102
        %v7601 = vunpack.c.l.b16 %v6103
        %v7602 = vunpack.c.h.b16 %v6103
        %v7603 = vunpack.c.l.b16 %v6104
        %v7604 = vunpack.c.h.b16 %v6104
        %v7605 = vunpack.c.l.b16 %v6105
        %v7606 = vunpack.c.h.b16 %v6105
        %v7607 = vunpack.c.l.b16 %v6106
        %v7608 = vunpack.c.h.b16 %v6106
        %v7609 = vunpack.c.l.b16 %v6107
        %v7610 = vunpack.c.h.b16 %v6107
        %v7611 = vunpack.c.l.b16 %v6108
        %v7612 = vunpack.c.h.b16 %v6108
        %v7613 = vunpack.c.l.b16 %v6109
        %v7614 = vunpack.c.h.b16 %v6109
        %v7615 = vunpack.c.l.b16 %v6110
        %v7616 = vunpack.c.h.b16 %v6110
        %v7617 = vunpack.c.l.b16 %v6111
        %v7618 = vunpack.c.h.b16 %v6111
        %v7619 = vunpack.c.l.b16 %v6112
        %v7620 = vunpack.c.h.b16 %v6112
        %v7621 = vunpack.c.l.b16 %v6113
        %v7622 = vunpack.c.h.b16 %v6113
        %v7623 = vunpack.c.l.b16 %v6114
        %v7624 = vunpack.c.h.b16 %v6114
        %v7625 = vunpack.c.l.b16 %v6115
        %v7626 = vunpack.c.h.b16 %v6115
        %v7627 = vunpack.c.l.b16 %v6116
        %v7628 = vunpack.c.h.b16 %v6116
        %v7629 = vunpack.c.l.b16 %v6117
        %v7630 = vunpack.c.h.b16 %v6117
        %v7631 = vunpack.c.l.b16 %v6118
        %v7632 = vunpack.c.h.b16 %v6118
        %v7633 = vunpack.c.l.b16 %v6119
        %v7634 = vunpack.c.h.b16 %v6119
        %v7635 = vunpack.c.l.b16 %v6120
        %v7636 = vunpack.c.h.b16 %v6120
        %v7637 = vunpack.c.l.b16 %v6121
        %v7638 = vunpack.c.h.b16 %v6121
        %v7639 = vunpack.c.l.b16 %v6122
        %v7640 = vunpack.c.h.b16 %v6122
        %v7641 = vunpack.c.l.b16 %v6123
        %v7642 = vunpack.c.h.b16 %v6123
        %v7643 = vunpack.c.l.b16 %v6124
        %v7644 = vunpack.c.h.b16 %v6124
        %v7645 = vunpack.c.l.b16 %v6125
        %v7646 = vunpack.c.h.b16 %v6125
        %v7647 = vunpack.c.l.b16 %v6126
        %v7648 = vunpack.c.h.b16 %v6126
        %v7649 = vunpack.c.l.b16 %v6127
        %v7650 = vunpack.c.h.b16 %v6127
        %v7651 = vunpack.c.l.b16 %v6128
        %v7652 = vunpack.c.h.b16 %v6128
        %v7653 = vunpack.c.l.b16 %v6129
        %v7654 = vunpack.c.h.b16 %v6129
        %v7655 = vunpack.c.l.b16 %v6130
        %v7656 = vunpack.c.h.b16 %v6130
        %v7657 = vunpack.c.l.b16 %v6131
        %v7658 = vunpack.c.h.b16 %v6131
        %v7659 = vunpack.c.l.b16 %v6132
        %v7660 = vunpack.c.h.b16 %v6132
        %v7661 = vunpack.c.l.b16 %v6133
        %v7662 = vunpack.c.h.b16 %v6133
        %v7663 = vunpack.c.l.b16 %v6134
        %v7664 = vunpack.c.h.b16 %v6134
        %v7665 = vunpack.c.l.b16 %v6135
        %v7666 = vunpack.c.h.b16 %v6135
        %v7667 = vunpack.c.l.b16 %v6136
        %v7668 = vunpack.c.h.b16 %v6136
        %v7669 = vunpack.c.l.b16 %v6137
        %v7670 = vunpack.c.h.b16 %v6137
        %v7671 = vunpack.c.l.b16 %v6138
        %v7672 = vunpack.c.h.b16 %v6138
        %v7673 = vunpack.c.l.b16 %v6139
        %v7674 = vunpack.c.h.b16 %v6139
        %v7675 = vunpack.c.l.b16 %v6140
        %v7676 = vunpack.c.h.b16 %v6140
        %v7677 = vunpack.c.l.b16 %v6141
        %v7678 = vunpack.c.h.b16 %v6141
        %v7679 = vunpack.c.l.b16 %v6142
        %v7680 = vunpack.c.h.b16 %v6142
        %v7681 = vunpack.c.l.b16 %v6143
        %v7682 = vunpack.c.h.b16 %v6143
        %v7683 = vunpack.c.l.b16 %v6144
        %v7684 = vunpack.c.h.b16 %v6144
        %v7685 = vunpack.c.l.b16 %v6145
        %v7686 = vunpack.c.h.b16 %v6145
        %v7687 = vunpack.c.l.b16 %v6146
        %v7688 = vunpack.c.h.b16 %v6146
        %v7689 = vunpack.c.l.b16 %v6147
        %v7690 = vunpack.c.h.b16 %v6147
        %v7691 = vunpack.c.l.b16 %v6148
        %v7692 = vunpack.c.h.b16 %v6148
        %v7693 = vunpack.c.l.b16 %v6149
        %v7694 = vunpack.c.h.b16 %v6149
        %v7695 = vunpack.c.l.b16 %v6150
        %v7696 = vunpack.c.h.b16 %v6150
        %v7697 = vunpack.c.l.b16 %v6151
        %v7698 = vunpack.c.h.b16 %v6151
        %v7699 = vunpack.c.l.b16 %v6152
        %v7700 = vunpack.c.h.b16 %v6152
        %v7701 = vunpack.c.l.b16 %v6153
        %v7702 = vunpack.c.h.b16 %v6153
        %v7703 = vunpack.c.l.b16 %v6154
        %v7704 = vunpack.c.h.b16 %v6154
        %v7705 = vunpack.c.l.b16 %v6155
        %v7706 = vunpack.c.h.b16 %v6155
        %v7707 = vunpack.c.l.b16 %v6156
        %v7708 = vunpack.c.h.b16 %v6156
        %v7709 = vunpack.c.l.b16 %v6157
        %v7710 = vunpack.c.h.b16 %v6157
        %v7711 = vunpack.c.l.b16 %v6158
        %v7712 = vunpack.c.h.b16 %v6158
        %v7713 = vunpack.c.l.b16 %v6159
        %v7714 = vunpack.c.h.b16 %v6159
        %v7715 = vunpack.c.l.b16 %v6160
        %v7716 = vunpack.c.h.b16 %v6160
        %v7717 = vunpack.c.l.b16 %v6161
        %v7718 = vunpack.c.h.b16 %v6161
        %v7719 = vunpack.c.l.b16 %v6162
        %v7720 = vunpack.c.h.b16 %v6162
        %v7721 = vunpack.c.l.b16 %v6163
        %v7722 = vunpack.c.h.b16 %v6163
        %v7723 = vunpack.c.l.b16 %v6164
        %v7724 = vunpack.c.h.b16 %v6164
        %v7725 = vunpack.c.l.b16 %v6165
        %v7726 = vunpack.c.h.b16 %v6165
        %v7727 = vunpack.c.l.b16 %v6166
        %v7728 = vunpack.c.h.b16 %v6166
        %v7729 = vunpack.c.l.b16 %v6167
        %v7730 = vunpack.c.h.b16 %v6167
        %v7731 = vunpack.c.l.b16 %v6168
        %v7732 = vunpack.c.h.b16 %v6168
        %v7733 = vunpack.c.l.b16 %v6169
        %v7734 = vunpack.c.h.b16 %v6169
        %v7735 = vunpack.c.l.b16 %v6170
        %v7736 = vunpack.c.h.b16 %v6170
        %v7737 = vunpack.c.l.b16 %v6171
        %v7738 = vunpack.c.h.b16 %v6171
        %v7739 = vunpack.c.l.b16 %v6172
        %v7740 = vunpack.c.h.b16 %v6172
        %v7741 = vunpack.c.l.b16 %v6173
        %v7742 = vunpack.c.h.b16 %v6173
        %v7743 = vunpack.c.l.b16 %v6174
        %v7744 = vunpack.c.h.b16 %v6174
        %v7745 = vunpack.c.l.b16 %v6175
        %v7746 = vunpack.c.h.b16 %v6175
        %v7747 = vunpack.c.l.b16 %v6176
        %v7748 = vunpack.c.h.b16 %v6176
        %v7749 = vunpack.c.l.b16 %v6177
        %v7750 = vunpack.c.h.b16 %v6177
        %v7751 = vunpack.c.l.b16 %v6178
        %v7752 = vunpack.c.h.b16 %v6178
        %v7753 = vunpack.c.l.b16 %v6179
        %v7754 = vunpack.c.h.b16 %v6179
        %v7755 = vunpack.c.l.b16 %v6180
        %v7756 = vunpack.c.h.b16 %v6180
        %v7757 = vunpack.c.l.b16 %v6181
        %v7758 = vunpack.c.h.b16 %v6181
        %v7759 = vunpack.c.l.b16 %v6182
        %v7760 = vunpack.c.h.b16 %v6182
        %v7761 = vpack.c.b16 %v6745, %v6737
        %v7762 = vpack.c.b16 %v6746, %v6738
        %v7763 = vpack.c.b16 %v6747, %v6739
        %v7764 = vpack.c.b16 %v6748, %v6740
        %v7765 = vpack.c.b16 %v6749, %v6741
        %v7766 = vpack.c.b16 %v6750, %v6742
        %v7767 = vpack.c.b16 %v6751, %v6743
        %v7768 = vpack.c.b16 %v6752, %v6744
        %v7769 = vpack.c.b16 %v6761, %v6753
        %v7770 = vpack.c.b16 %v6762, %v6754
        %v7771 = vpack.c.b16 %v6763, %v6755
        %v7772 = vpack.c.b16 %v6764, %v6756
        %v7773 = vpack.c.b16 %v6765, %v6757
        %v7774 = vpack.c.b16 %v6766, %v6758
        %v7775 = vpack.c.b16 %v6767, %v6759
        %v7776 = vpack.c.b16 %v6768, %v6760
        %v7777 = vpack.c.b16 %v6777, %v6769
        %v7778 = vpack.c.b16 %v6778, %v6770
        %v7779 = vpack.c.b16 %v6779, %v6771
        %v7780 = vpack.c.b16 %v6780, %v6772
        %v7781 = vpack.c.b16 %v6781, %v6773
        %v7782 = vpack.c.b16 %v6782, %v6774
        %v7783 = vpack.c.b16 %v6783, %v6775
        %v7784 = vpack.c.b16 %v6784, %v6776
        %v7785 = vpack.c.b16 %v6793, %v6785
        %v7786 = vpack.c.b16 %v6794, %v6786
        %v7787 = vpack.c.b16 %v6795, %v6787
        %v7788 = vpack.c.b16 %v6796, %v6788
        %v7789 = vpack.c.b16 %v6797, %v6789
        %v7790 = vpack.c.b16 %v6798, %v6790
        %v7791 = vpack.c.b16 %v6799, %v6791
        %v7792 = vpack.c.b16 %v6800, %v6792
        %v7793 = vpack.c.b16 %v6809, %v6801
        %v7794 = vpack.c.b16 %v6810, %v6802
        %v7795 = vpack.c.b16 %v6811, %v6803
        %v7796 = vpack.c.b16 %v6812, %v6804
        %v7797 = vpack.c.b16 %v6813, %v6805
        %v7798 = vpack.c.b16 %v6814, %v6806
        %v7799 = vpack.c.b16 %v6815, %v6807
        %v7800 = vpack.c.b16 %v6816, %v6808
        %v7801 = vpack.c.b16 %v6825, %v6817
        %v7802 = vpack.c.b16 %v6826, %v6818
        %v7803 = vpack.c.b16 %v6827, %v6819
        %v7804 = vpack.c.b16 %v6828, %v6820
        %v7805 = vpack.c.b16 %v6829, %v6821
        %v7806 = vpack.c.b16 %v6830, %v6822
        %v7807 = vpack.c.b16 %v6831, %v6823
        %v7808 = vpack.c.b16 %v6832, %v6824
        %v7809 = vpack.c.b16 %v6841, %v6833
        %v7810 = vpack.c.b16 %v6842, %v6834
        %v7811 = vpack.c.b16 %v6843, %v6835
        %v7812 = vpack.c.b16 %v6844, %v6836
        %v7813 = vpack.c.b16 %v6845, %v6837
        %v7814 = vpack.c.b16 %v6846, %v6838
        %v7815 = vpack.c.b16 %v6847, %v6839
        %v7816 = vpack.c.b16 %v6848, %v6840
        %v7817 = vpack.c.b16 %v6857, %v6849
        %v7818 = vpack.c.b16 %v6858, %v6850
        %v7819 = vpack.c.b16 %v6859, %v6851
        %v7820 = vpack.c.b16 %v6860, %v6852
        %v7821 = vpack.c.b16 %v6861, %v6853
        %v7822 = vpack.c.b16 %v6862, %v6854
        %v7823 = vpack.c.b16 %v6863, %v6855
        %v7824 = vpack.c.b16 %v6864, %v6856
        %v7825 = vpack.c.b16 %v6873, %v6865
        %v7826 = vpack.c.b16 %v6874, %v6866
        %v7827 = vpack.c.b16 %v6875, %v6867
        %v7828 = vpack.c.b16 %v6876, %v6868
        %v7829 = vpack.c.b16 %v6877, %v6869
        %v7830 = vpack.c.b16 %v6878, %v6870
        %v7831 = vpack.c.b16 %v6879, %v6871
        %v7832 = vpack.c.b16 %v6880, %v6872
        %v7833 = vpack.c.b16 %v6889, %v6881
        %v7834 = vpack.c.b16 %v6890, %v6882
        %v7835 = vpack.c.b16 %v6891, %v6883
        %v7836 = vpack.c.b16 %v6892, %v6884
        %v7837 = vpack.c.b16 %v6893, %v6885
        %v7838 = vpack.c.b16 %v6894, %v6886
        %v7839 = vpack.c.b16 %v6895, %v6887
        %v7840 = vpack.c.b16 %v6896, %v6888
        %v7841 = vpack.c.b16 %v6905, %v6897
        %v7842 = vpack.c.b16 %v6906, %v6898
        %v7843 = vpack.c.b16 %v6907, %v6899
        %v7844 = vpack.c.b16 %v6908, %v6900
        %v7845 = vpack.c.b16 %v6909, %v6901
        %v7846 = vpack.c.b16 %v6910, %v6902
        %v7847 = vpack.c.b16 %v6911, %v6903
        %v7848 = vpack.c.b16 %v6912, %v6904
        %v7849 = vpack.c.b16 %v6921, %v6913
        %v7850 = vpack.c.b16 %v6922, %v6914
        %v7851 = vpack.c.b16 %v6923, %v6915
        %v7852 = vpack.c.b16 %v6924, %v6916
        %v7853 = vpack.c.b16 %v6925, %v6917
        %v7854 = vpack.c.b16 %v6926, %v6918
        %v7855 = vpack.c.b16 %v6927, %v6919
        %v7856 = vpack.c.b16 %v6928, %v6920
        %v7857 = vpack.c.b16 %v6937, %v6929
        %v7858 = vpack.c.b16 %v6938, %v6930
        %v7859 = vpack.c.b16 %v6939, %v6931
        %v7860 = vpack.c.b16 %v6940, %v6932
        %v7861 = vpack.c.b16 %v6941, %v6933
        %v7862 = vpack.c.b16 %v6942, %v6934
        %v7863 = vpack.c.b16 %v6943, %v6935
        %v7864 = vpack.c.b16 %v6944, %v6936
        %v7865 = vpack.c.b16 %v6953, %v6945
        %v7866 = vpack.c.b16 %v6954, %v6946
        %v7867 = vpack.c.b16 %v6955, %v6947
        %v7868 = vpack.c.b16 %v6956, %v6948
        %v7869 = vpack.c.b16 %v6957, %v6949
        %v7870 = vpack.c.b16 %v6958, %v6950
        %v7871 = vpack.c.b16 %v6959, %v6951
        %v7872 = vpack.c.b16 %v6960, %v6952
        %v7873 = vpack.c.b16 %v6969, %v6961
        %v7874 = vpack.c.b16 %v6970, %v6962
        %v7875 = vpack.c.b16 %v6971, %v6963
        %v7876 = vpack.c.b16 %v6972, %v6964
        %v7877 = vpack.c.b16 %v6973, %v6965
        %v7878 = vpack.c.b16 %v6974, %v6966
        %v7879 = vpack.c.b16 %v6975, %v6967
        %v7880 = vpack.c.b16 %v6976, %v6968
        %v7881 = vpack.c.b16 %v6985, %v6977
        %v7882 = vpack.c.b16 %v6986, %v6978
        %v7883 = vpack.c.b16 %v6987, %v6979
        %v7884 = vpack.c.b16 %v6988, %v6980
        %v7885 = vpack.c.b16 %v6989, %v6981
        %v7886 = vpack.c.b16 %v6990, %v6982
        %v7887 = vpack.c.b16 %v6991, %v6983
        %v7888 = vpack.c.b16 %v6992, %v6984
        %v7889 = vpack.c.b16 %v7001, %v6993
        %v7890 = vpack.c.b16 %v7002, %v6994
        %v7891 = vpack.c.b16 %v7003, %v6995
        %v7892 = vpack.c.b16 %v7004, %v6996
        %v7893 = vpack.c.b16 %v7005, %v6997
        %v7894 = vpack.c.b16 %v7006, %v6998
        %v7895 = vpack.c.b16 %v7007, %v6999
        %v7896 = vpack.c.b16 %v7008, %v7000
        %v7897 = vpack.c.b16 %v7017, %v7009
        %v7898 = vpack.c.b16 %v7018, %v7010
        %v7899 = vpack.c.b16 %v7019, %v7011
        %v7900 = vpack.c.b16 %v7020, %v7012
        %v7901 = vpack.c.b16 %v7021, %v7013
        %v7902 = vpack.c.b16 %v7022, %v7014
        %v7903 = vpack.c.b16 %v7023, %v7015
        %v7904 = vpack.c.b16 %v7024, %v7016
        %v7905 = vpack.c.b16 %v7033, %v7025
        %v7906 = vpack.c.b16 %v7034, %v7026
        %v7907 = vpack.c.b16 %v7035, %v7027
        %v7908 = vpack.c.b16 %v7036, %v7028
        %v7909 = vpack.c.b16 %v7037, %v7029
        %v7910 = vpack.c.b16 %v7038, %v7030
        %v7911 = vpack.c.b16 %v7039, %v7031
        %v7912 = vpack.c.b16 %v7040, %v7032
        %v7913 = vpack.c.b16 %v7049, %v7041
        %v7914 = vpack.c.b16 %v7050, %v7042
        %v7915 = vpack.c.b16 %v7051, %v7043
        %v7916 = vpack.c.b16 %v7052, %v7044
        %v7917 = vpack.c.b16 %v7053, %v7045
        %v7918 = vpack.c.b16 %v7054, %v7046
        %v7919 = vpack.c.b16 %v7055, %v7047
        %v7920 = vpack.c.b16 %v7056, %v7048
        %v7921 = vpack.c.b16 %v7065, %v7057
        %v7922 = vpack.c.b16 %v7066, %v7058
        %v7923 = vpack.c.b16 %v7067, %v7059
        %v7924 = vpack.c.b16 %v7068, %v7060
        %v7925 = vpack.c.b16 %v7069, %v7061
        %v7926 = vpack.c.b16 %v7070, %v7062
        %v7927 = vpack.c.b16 %v7071, %v7063
        %v7928 = vpack.c.b16 %v7072, %v7064
        %v7929 = vpack.c.b16 %v7081, %v7073
        %v7930 = vpack.c.b16 %v7082, %v7074
        %v7931 = vpack.c.b16 %v7083, %v7075
        %v7932 = vpack.c.b16 %v7084, %v7076
        %v7933 = vpack.c.b16 %v7085, %v7077
        %v7934 = vpack.c.b16 %v7086, %v7078
        %v7935 = vpack.c.b16 %v7087, %v7079
        %v7936 = vpack.c.b16 %v7088, %v7080
        %v7937 = vpack.c.b16 %v7097, %v7089
        %v7938 = vpack.c.b16 %v7098, %v7090
        %v7939 = vpack.c.b16 %v7099, %v7091
        %v7940 = vpack.c.b16 %v7100, %v7092
        %v7941 = vpack.c.b16 %v7101, %v7093
        %v7942 = vpack.c.b16 %v7102, %v7094
        %v7943 = vpack.c.b16 %v7103, %v7095
        %v7944 = vpack.c.b16 %v7104, %v7096
        %v7945 = vpack.c.b16 %v7113, %v7105
        %v7946 = vpack.c.b16 %v7114, %v7106
        %v7947 = vpack.c.b16 %v7115, %v7107
        %v7948 = vpack.c.b16 %v7116, %v7108
        %v7949 = vpack.c.b16 %v7117, %v7109
        %v7950 = vpack.c.b16 %v7118, %v7110
        %v7951 = vpack.c.b16 %v7119, %v7111
        %v7952 = vpack.c.b16 %v7120, %v7112
        %v7953 = vpack.c.b16 %v7129, %v7121
        %v7954 = vpack.c.b16 %v7130, %v7122
        %v7955 = vpack.c.b16 %v7131, %v7123
        %v7956 = vpack.c.b16 %v7132, %v7124
        %v7957 = vpack.c.b16 %v7133, %v7125
        %v7958 = vpack.c.b16 %v7134, %v7126
        %v7959 = vpack.c.b16 %v7135, %v7127
        %v7960 = vpack.c.b16 %v7136, %v7128
        %v7961 = vpack.c.b16 %v7145, %v7137
        %v7962 = vpack.c.b16 %v7146, %v7138
        %v7963 = vpack.c.b16 %v7147, %v7139
        %v7964 = vpack.c.b16 %v7148, %v7140
        %v7965 = vpack.c.b16 %v7149, %v7141
        %v7966 = vpack.c.b16 %v7150, %v7142
        %v7967 = vpack.c.b16 %v7151, %v7143
        %v7968 = vpack.c.b16 %v7152, %v7144
        %v7969 = vpack.c.b16 %v7161, %v7153
        %v7970 = vpack.c.b16 %v7162, %v7154
        %v7971 = vpack.c.b16 %v7163, %v7155
        %v7972 = vpack.c.b16 %v7164, %v7156
        %v7973 = vpack.c.b16 %v7165, %v7157
        %v7974 = vpack.c.b16 %v7166, %v7158
        %v7975 = vpack.c.b16 %v7167, %v7159
        %v7976 = vpack.c.b16 %v7168, %v7160
        %v7977 = vpack.c.b16 %v7177, %v7169
        %v7978 = vpack.c.b16 %v7178, %v7170
        %v7979 = vpack.c.b16 %v7179, %v7171
        %v7980 = vpack.c.b16 %v7180, %v7172
        %v7981 = vpack.c.b16 %v7181, %v7173
        %v7982 = vpack.c.b16 %v7182, %v7174
        %v7983 = vpack.c.b16 %v7183, %v7175
        %v7984 = vpack.c.b16 %v7184, %v7176
        %v7985 = vpack.c.b16 %v7193, %v7185
        %v7986 = vpack.c.b16 %v7194, %v7186
        %v7987 = vpack.c.b16 %v7195, %v7187
        %v7988 = vpack.c.b16 %v7196, %v7188
        %v7989 = vpack.c.b16 %v7197, %v7189
        %v7990 = vpack.c.b16 %v7198, %v7190
        %v7991 = vpack.c.b16 %v7199, %v7191
        %v7992 = vpack.c.b16 %v7200, %v7192
        %v7993 = vpack.c.b16 %v7209, %v7201
        %v7994 = vpack.c.b16 %v7210, %v7202
        %v7995 = vpack.c.b16 %v7211, %v7203
        %v7996 = vpack.c.b16 %v7212, %v7204
        %v7997 = vpack.c.b16 %v7213, %v7205
        %v7998 = vpack.c.b16 %v7214, %v7206
        %v7999 = vpack.c.b16 %v7215, %v7207
        %v8000 = vpack.c.b16 %v7216, %v7208
        %v8001 = vpack.c.b16 %v7225, %v7217
        %v8002 = vpack.c.b16 %v7226, %v7218
        %v8003 = vpack.c.b16 %v7227, %v7219
        %v8004 = vpack.c.b16 %v7228, %v7220
        %v8005 = vpack.c.b16 %v7229, %v7221
        %v8006 = vpack.c.b16 %v7230, %v7222
        %v8007 = vpack.c.b16 %v7231, %v7223
        %v8008 = vpack.c.b16 %v7232, %v7224
        %v8009 = vpack.c.b16 %v7241, %v7233
        %v8010 = vpack.c.b16 %v7242, %v7234
        %v8011 = vpack.c.b16 %v7243, %v7235
        %v8012 = vpack.c.b16 %v7244, %v7236
        %v8013 = vpack.c.b16 %v7245, %v7237
        %v8014 = vpack.c.b16 %v7246, %v7238
        %v8015 = vpack.c.b16 %v7247, %v7239
        %v8016 = vpack.c.b16 %v7248, %v7240
        %v8017 = vpack.c.b16 %v7257, %v7249
        %v8018 = vpack.c.b16 %v7258, %v7250
        %v8019 = vpack.c.b16 %v7259, %v7251
        %v8020 = vpack.c.b16 %v7260, %v7252
        %v8021 = vpack.c.b16 %v7261, %v7253
        %v8022 = vpack.c.b16 %v7262, %v7254
        %v8023 = vpack.c.b16 %v7263, %v7255
        %v8024 = vpack.c.b16 %v7264, %v7256
        %v8025 = vpack.c.b16 %v7273, %v7265
        %v8026 = vpack.c.b16 %v7274, %v7266
        %v8027 = vpack.c.b16 %v7275, %v7267
        %v8028 = vpack.c.b16 %v7276, %v7268
        %v8029 = vpack.c.b16 %v7277, %v7269
        %v8030 = vpack.c.b16 %v7278, %v7270
        %v8031 = vpack.c.b16 %v7279, %v7271
        %v8032 = vpack.c.b16 %v7280, %v7272
        %v8033 = vpack.c.b16 %v7289, %v7281
        %v8034 = vpack.c.b16 %v7290, %v7282
        %v8035 = vpack.c.b16 %v7291, %v7283
        %v8036 = vpack.c.b16 %v7292, %v7284
        %v8037 = vpack.c.b16 %v7293, %v7285
        %v8038 = vpack.c.b16 %v7294, %v7286
        %v8039 = vpack.c.b16 %v7295, %v7287
        %v8040 = vpack.c.b16 %v7296, %v7288
        %v8041 = vpack.c.b16 %v7305, %v7297
        %v8042 = vpack.c.b16 %v7306, %v7298
        %v8043 = vpack.c.b16 %v7307, %v7299
        %v8044 = vpack.c.b16 %v7308, %v7300
        %v8045 = vpack.c.b16 %v7309, %v7301
        %v8046 = vpack.c.b16 %v7310, %v7302
        %v8047 = vpack.c.b16 %v7311, %v7303
        %v8048 = vpack.c.b16 %v7312, %v7304
        %v8049 = vpack.c.b16 %v7321, %v7313
        %v8050 = vpack.c.b16 %v7322, %v7314
        %v8051 = vpack.c.b16 %v7323, %v7315
        %v8052 = vpack.c.b16 %v7324, %v7316
        %v8053 = vpack.c.b16 %v7325, %v7317
        %v8054 = vpack.c.b16 %v7326, %v7318
        %v8055 = vpack.c.b16 %v7327, %v7319
        %v8056 = vpack.c.b16 %v7328, %v7320
        %v8057 = vpack.c.b16 %v7337, %v7329
        %v8058 = vpack.c.b16 %v7338, %v7330
        %v8059 = vpack.c.b16 %v7339, %v7331
        %v8060 = vpack.c.b16 %v7340, %v7332
        %v8061 = vpack.c.b16 %v7341, %v7333
        %v8062 = vpack.c.b16 %v7342, %v7334
        %v8063 = vpack.c.b16 %v7343, %v7335
        %v8064 = vpack.c.b16 %v7344, %v7336
        %v8065 = vpack.c.b16 %v7353, %v7345
        %v8066 = vpack.c.b16 %v7354, %v7346
        %v8067 = vpack.c.b16 %v7355, %v7347
        %v8068 = vpack.c.b16 %v7356, %v7348
        %v8069 = vpack.c.b16 %v7357, %v7349
        %v8070 = vpack.c.b16 %v7358, %v7350
        %v8071 = vpack.c.b16 %v7359, %v7351
        %v8072 = vpack.c.b16 %v7360, %v7352
        %v8073 = vpack.c.b16 %v7369, %v7361
        %v8074 = vpack.c.b16 %v7370, %v7362
        %v8075 = vpack.c.b16 %v7371, %v7363
        %v8076 = vpack.c.b16 %v7372, %v7364
        %v8077 = vpack.c.b16 %v7373, %v7365
        %v8078 = vpack.c.b16 %v7374, %v7366
        %v8079 = vpack.c.b16 %v7375, %v7367
        %v8080 = vpack.c.b16 %v7376, %v7368
        %v8081 = vpack.c.b16 %v7385, %v7377
        %v8082 = vpack.c.b16 %v7386, %v7378
        %v8083 = vpack.c.b16 %v7387, %v7379
        %v8084 = vpack.c.b16 %v7388, %v7380
        %v8085 = vpack.c.b16 %v7389, %v7381
        %v8086 = vpack.c.b16 %v7390, %v7382
        %v8087 = vpack.c.b16 %v7391, %v7383
        %v8088 = vpack.c.b16 %v7392, %v7384
        %v8089 = vpack.c.b16 %v7401, %v7393
        %v8090 = vpack.c.b16 %v7402, %v7394
        %v8091 = vpack.c.b16 %v7403, %v7395
        %v8092 = vpack.c.b16 %v7404, %v7396
        %v8093 = vpack.c.b16 %v7405, %v7397
        %v8094 = vpack.c.b16 %v7406, %v7398
        %v8095 = vpack.c.b16 %v7407, %v7399
        %v8096 = vpack.c.b16 %v7408, %v7400
        %v8097 = vpack.c.b16 %v7417, %v7409
        %v8098 = vpack.c.b16 %v7418, %v7410
        %v8099 = vpack.c.b16 %v7419, %v7411
        %v8100 = vpack.c.b16 %v7420, %v7412
        %v8101 = vpack.c.b16 %v7421, %v7413
        %v8102 = vpack.c.b16 %v7422, %v7414
        %v8103 = vpack.c.b16 %v7423, %v7415
        %v8104 = vpack.c.b16 %v7424, %v7416
        %v8105 = vpack.c.b16 %v7433, %v7425
        %v8106 = vpack.c.b16 %v7434, %v7426
        %v8107 = vpack.c.b16 %v7435, %v7427
        %v8108 = vpack.c.b16 %v7436, %v7428
        %v8109 = vpack.c.b16 %v7437, %v7429
        %v8110 = vpack.c.b16 %v7438, %v7430
        %v8111 = vpack.c.b16 %v7439, %v7431
        %v8112 = vpack.c.b16 %v7440, %v7432
        %v8113 = vpack.c.b16 %v7449, %v7441
        %v8114 = vpack.c.b16 %v7450, %v7442
        %v8115 = vpack.c.b16 %v7451, %v7443
        %v8116 = vpack.c.b16 %v7452, %v7444
        %v8117 = vpack.c.b16 %v7453, %v7445
        %v8118 = vpack.c.b16 %v7454, %v7446
        %v8119 = vpack.c.b16 %v7455, %v7447
        %v8120 = vpack.c.b16 %v7456, %v7448
        %v8121 = vpack.c.b16 %v7465, %v7457
        %v8122 = vpack.c.b16 %v7466, %v7458
        %v8123 = vpack.c.b16 %v7467, %v7459
        %v8124 = vpack.c.b16 %v7468, %v7460
        %v8125 = vpack.c.b16 %v7469, %v7461
        %v8126 = vpack.c.b16 %v7470, %v7462
        %v8127 = vpack.c.b16 %v7471, %v7463
        %v8128 = vpack.c.b16 %v7472, %v7464
        %v8129 = vpack.c.b16 %v7481, %v7473
        %v8130 = vpack.c.b16 %v7482, %v7474
        %v8131 = vpack.c.b16 %v7483, %v7475
        %v8132 = vpack.c.b16 %v7484, %v7476
        %v8133 = vpack.c.b16 %v7485, %v7477
        %v8134 = vpack.c.b16 %v7486, %v7478
        %v8135 = vpack.c.b16 %v7487, %v7479
        %v8136 = vpack.c.b16 %v7488, %v7480
        %v8137 = vpack.c.b16 %v7497, %v7489
        %v8138 = vpack.c.b16 %v7498, %v7490
        %v8139 = vpack.c.b16 %v7499, %v7491
        %v8140 = vpack.c.b16 %v7500, %v7492
        %v8141 = vpack.c.b16 %v7501, %v7493
        %v8142 = vpack.c.b16 %v7502, %v7494
        %v8143 = vpack.c.b16 %v7503, %v7495
        %v8144 = vpack.c.b16 %v7504, %v7496
        %v8145 = vpack.c.b16 %v7513, %v7505
        %v8146 = vpack.c.b16 %v7514, %v7506
        %v8147 = vpack.c.b16 %v7515, %v7507
        %v8148 = vpack.c.b16 %v7516, %v7508
        %v8149 = vpack.c.b16 %v7517, %v7509
        %v8150 = vpack.c.b16 %v7518, %v7510
        %v8151 = vpack.c.b16 %v7519, %v7511
        %v8152 = vpack.c.b16 %v7520, %v7512
        %v8153 = vpack.c.b16 %v7529, %v7521
        %v8154 = vpack.c.b16 %v7530, %v7522
        %v8155 = vpack.c.b16 %v7531, %v7523
        %v8156 = vpack.c.b16 %v7532, %v7524
        %v8157 = vpack.c.b16 %v7533, %v7525
        %v8158 = vpack.c.b16 %v7534, %v7526
        %v8159 = vpack.c.b16 %v7535, %v7527
        %v8160 = vpack.c.b16 %v7536, %v7528
        %v8161 = vpack.c.b16 %v7545, %v7537
        %v8162 = vpack.c.b16 %v7546, %v7538
        %v8163 = vpack.c.b16 %v7547, %v7539
        %v8164 = vpack.c.b16 %v7548, %v7540
        %v8165 = vpack.c.b16 %v7549, %v7541
        %v8166 = vpack.c.b16 %v7550, %v7542
        %v8167 = vpack.c.b16 %v7551, %v7543
        %v8168 = vpack.c.b16 %v7552, %v7544
        %v8169 = vpack.c.b16 %v7561, %v7553
        %v8170 = vpack.c.b16 %v7562, %v7554
        %v8171 = vpack.c.b16 %v7563, %v7555
        %v8172 = vpack.c.b16 %v7564, %v7556
        %v8173 = vpack.c.b16 %v7565, %v7557
        %v8174 = vpack.c.b16 %v7566, %v7558
        %v8175 = vpack.c.b16 %v7567, %v7559
        %v8176 = vpack.c.b16 %v7568, %v7560
        %v8177 = vpack.c.b16 %v7577, %v7569
        %v8178 = vpack.c.b16 %v7578, %v7570
        %v8179 = vpack.c.b16 %v7579, %v7571
        %v8180 = vpack.c.b16 %v7580, %v7572
        %v8181 = vpack.c.b16 %v7581, %v7573
        %v8182 = vpack.c.b16 %v7582, %v7574
        %v8183 = vpack.c.b16 %v7583, %v7575
        %v8184 = vpack.c.b16 %v7584, %v7576
        %v8185 = vpack.c.b16 %v7593, %v7585
        %v8186 = vpack.c.b16 %v7594, %v7586
        %v8187 = vpack.c.b16 %v7595, %v7587
        %v8188 = vpack.c.b16 %v7596, %v7588
        %v8189 = vpack.c.b16 %v7597, %v7589
        %v8190 = vpack.c.b16 %v7598, %v7590
        %v8191 = vpack.c.b16 %v7599, %v7591
        %v8192 = vpack.c.b16 %v7600, %v7592
        %v8193 = vpack.c.b16 %v7609, %v7601
        %v8194 = vpack.c.b16 %v7610, %v7602
        %v8195 = vpack.c.b16 %v7611, %v7603
        %v8196 = vpack.c.b16 %v7612, %v7604
        %v8197 = vpack.c.b16 %v7613, %v7605
        %v8198 = vpack.c.b16 %v7614, %v7606
        %v8199 = vpack.c.b16 %v7615, %v7607
        %v8200 = vpack.c.b16 %v7616, %v7608
        %v8201 = vpack.c.b16 %v7625, %v7617
        %v8202 = vpack.c.b16 %v7626, %v7618
        %v8203 = vpack.c.b16 %v7627, %v7619
        %v8204 = vpack.c.b16 %v7628, %v7620
        %v8205 = vpack.c.b16 %v7629, %v7621
        %v8206 = vpack.c.b16 %v7630, %v7622
        %v8207 = vpack.c.b16 %v7631, %v7623
        %v8208 = vpack.c.b16 %v7632, %v7624
        %v8209 = vpack.c.b16 %v7641, %v7633
        %v8210 = vpack.c.b16 %v7642, %v7634
        %v8211 = vpack.c.b16 %v7643, %v7635
        %v8212 = vpack.c.b16 %v7644, %v7636
        %v8213 = vpack.c.b16 %v7645, %v7637
        %v8214 = vpack.c.b16 %v7646, %v7638
        %v8215 = vpack.c.b16 %v7647, %v7639
        %v8216 = vpack.c.b16 %v7648, %v7640
        %v8217 = vpack.c.b16 %v7657, %v7649
        %v8218 = vpack.c.b16 %v7658, %v7650
        %v8219 = vpack.c.b16 %v7659, %v7651
        %v8220 = vpack.c.b16 %v7660, %v7652
        %v8221 = vpack.c.b16 %v7661, %v7653
        %v8222 = vpack.c.b16 %v7662, %v7654
        %v8223 = vpack.c.b16 %v7663, %v7655
        %v8224 = vpack.c.b16 %v7664, %v7656
        %v8225 = vpack.c.b16 %v7673, %v7665
        %v8226 = vpack.c.b16 %v7674, %v7666
        %v8227 = vpack.c.b16 %v7675, %v7667
        %v8228 = vpack.c.b16 %v7676, %v7668
        %v8229 = vpack.c.b16 %v7677, %v7669
        %v8230 = vpack.c.b16 %v7678, %v7670
        %v8231 = vpack.c.b16 %v7679, %v7671
        %v8232 = vpack.c.b16 %v7680, %v7672
        %v8233 = vpack.c.b16 %v7689, %v7681
        %v8234 = vpack.c.b16 %v7690, %v7682
        %v8235 = vpack.c.b16 %v7691, %v7683
        %v8236 = vpack.c.b16 %v7692, %v7684
        %v8237 = vpack.c.b16 %v7693, %v7685
        %v8238 = vpack.c.b16 %v7694, %v7686
        %v8239 = vpack.c.b16 %v7695, %v7687
        %v8240 = vpack.c.b16 %v7696, %v7688
        %v8241 = vpack.c.b16 %v7705, %v7697
        %v8242 = vpack.c.b16 %v7706, %v7698
        %v8243 = vpack.c.b16 %v7707, %v7699
        %v8244 = vpack.c.b16 %v7708, %v7700
        %v8245 = vpack.c.b16 %v7709, %v7701
        %v8246 = vpack.c.b16 %v7710, %v7702
        %v8247 = vpack.c.b16 %v7711, %v7703
        %v8248 = vpack.c.b16 %v7712, %v7704
        %v8249 = vpack.c.b16 %v7721, %v7713
        %v8250 = vpack.c.b16 %v7722, %v7714
        %v8251 = vpack.c.b16 %v7723, %v7715
        %v8252 = vpack.c.b16 %v7724, %v7716
        %v8253 = vpack.c.b16 %v7725, %v7717
        %v8254 = vpack.c.b16 %v7726, %v7718
        %v8255 = vpack.c.b16 %v7727, %v7719
        %v8256 = vpack.c.b16 %v7728, %v7720
        %v8257 = vpack.c.b16 %v7737, %v7729
        %v8258 = vpack.c.b16 %v7738, %v7730
        %v8259 = vpack.c.b16 %v7739, %v7731
        %v8260 = vpack.c.b16 %v7740, %v7732
        %v8261 = vpack.c.b16 %v7741, %v7733
        %v8262 = vpack.c.b16 %v7742, %v7734
        %v8263 = vpack.c.b16 %v7743, %v7735
        %v8264 = vpack.c.b16 %v7744, %v7736
        %v8265 = vpack.c.b16 %v7753, %v7745
        %v8266 = vpack.c.b16 %v7754, %v7746
        %v8267 = vpack.c.b16 %v7755, %v7747
        %v8268 = vpack.c.b16 %v7756, %v7748
        %v8269 = vpack.c.b16 %v7757, %v7749
        %v8270 = vpack.c.b16 %v7758, %v7750
        %v8271 = vpack.c.b16 %v7759, %v7751
        %v8272 = vpack.c.b16 %v7760, %v7752
        %8785 = vmatprep.subr.bf16.mxu0 %v7818
        %8786 = vmatpush1.bf16.msra.mxu0 %v7817
        %8787 = vmatprep.subr.bf16.mxu0 %v7810
        %8788 = vmatpush1.bf16.msra.mxu0 %v7809
        %8789 = vmatprep.subr.bf16.mxu0 %v7802
        %8790 = vmatpush1.bf16.msra.mxu0 %v7801
        %8791 = vmatprep.subr.bf16.mxu0 %v7794
        %8792 = vmatpush1.bf16.msra.mxu0 %v7793
        %8793 = vmatprep.subr.bf16.mxu0 %v7786
        %8794 = vmatpush1.bf16.msra.mxu0 %v7785
        %8795 = vmatprep.subr.bf16.mxu0 %v7778
        %8796 = vmatpush1.bf16.msra.mxu0 %v7777
        %8797 = vmatprep.subr.bf16.mxu0 %v7770
        %8798 = vmatpush1.bf16.msra.mxu0 %v7769
        %8799 = vmatprep.subr.bf16.mxu0 %v7762
        %8800 = vmatpush1.bf16.msra.mxu0 %v7761
        %8801 = vmatprep.subr.bf16.mxu0 %v7882
        %8802 = vmatpush2.bf16.msra.mxu0 %v7881
        %8803 = vmatprep.subr.bf16.mxu0 %v7874
        %8804 = vmatpush2.bf16.msra.mxu0 %v7873
        %8805 = vmatprep.subr.bf16.mxu0 %v7866
        %8806 = vmatpush2.bf16.msra.mxu0 %v7865
        %8807 = vmatprep.subr.bf16.mxu0 %v7858
        %8808 = vmatpush2.bf16.msra.mxu0 %v7857
        %8809 = vmatprep.subr.bf16.mxu0 %v7850
        %8810 = vmatpush2.bf16.msra.mxu0 %v7849
        %8811 = vmatprep.subr.bf16.mxu0 %v7842
        %8812 = vmatpush2.bf16.msra.mxu0 %v7841
        %8813 = vmatprep.subr.bf16.mxu0 %v7834
        %8814 = vmatpush2.bf16.msra.mxu0 %v7833
        %8815 = vmatprep.subr.bf16.mxu0 %v7826
        %8816 = vmatpush2.bf16.msra.mxu0 %v7825
        %8817 = vmatprep.mubr.bf16.mxu0 %v5664
        %8818 = vmatmul.mubr.bf16.gmra.mxu0 %v5663
        %v8819 = vpop.f32.mrf.mxu0
        %v8820 = vadd.f32 %v6188, %v8819
        %v8821 = vpop.f32.mrf.mxu0
        %v8822 = vadd.f32 %v6192, %v8821
        %v8823 = vpop.f32.mrf.mxu0
        %v8824 = vadd.f32 %v6188, %v8823
        %v8825 = vpop.f32.mrf.mxu0
        %v8826 = vadd.f32 %v6192, %v8825
        %8827 = vdwg.mxu0
        %8828 = vmatprep.subr.bf16.mxu0 %v7946
        %8829 = vmatpush1.bf16.msra.mxu0 %v7945
        %8830 = vmatprep.subr.bf16.mxu0 %v7938
        %8831 = vmatpush1.bf16.msra.mxu0 %v7937
        %8832 = vmatprep.subr.bf16.mxu0 %v7930
        %8833 = vmatpush1.bf16.msra.mxu0 %v7929
        %8834 = vmatprep.subr.bf16.mxu0 %v7922
        %8835 = vmatpush1.bf16.msra.mxu0 %v7921
        %8836 = vmatprep.subr.bf16.mxu0 %v7914
        %8837 = vmatpush1.bf16.msra.mxu0 %v7913
        %8838 = vmatprep.subr.bf16.mxu0 %v7906
        %8839 = vmatpush1.bf16.msra.mxu0 %v7905
        %8840 = vmatprep.subr.bf16.mxu0 %v7898
        %8841 = vmatpush1.bf16.msra.mxu0 %v7897
        %8842 = vmatprep.subr.bf16.mxu0 %v7890
        %8843 = vmatpush1.bf16.msra.mxu0 %v7889
        %8844 = vmatprep.subr.bf16.mxu0 %v8010
        %8845 = vmatpush2.bf16.msra.mxu0 %v8009
        %8846 = vmatprep.subr.bf16.mxu0 %v8002
        %8847 = vmatpush2.bf16.msra.mxu0 %v8001
        %8848 = vmatprep.subr.bf16.mxu0 %v7994
        %8849 = vmatpush2.bf16.msra.mxu0 %v7993
        %8850 = vmatprep.subr.bf16.mxu0 %v7986
        %8851 = vmatpush2.bf16.msra.mxu0 %v7985
        %8852 = vmatprep.subr.bf16.mxu0 %v7978
        %8853 = vmatpush2.bf16.msra.mxu0 %v7977
        %8854 = vmatprep.subr.bf16.mxu0 %v7970
        %8855 = vmatpush2.bf16.msra.mxu0 %v7969
        %8856 = vmatprep.subr.bf16.mxu0 %v7962
        %8857 = vmatpush2.bf16.msra.mxu0 %v7961
        %8858 = vmatprep.subr.bf16.mxu0 %v7954
        %8859 = vmatpush2.bf16.msra.mxu0 %v7953
        %8860 = vmatprep.mubr.bf16.mxu0 %v5666
        %8861 = vmatmul.mubr.bf16.gmra.mxu0 %v5665
        %v8862 = vpop.f32.mrf.mxu0
        %v8863 = vadd.f32 %v8820, %v8862
        %v8864 = vpop.f32.mrf.mxu0
        %v8865 = vadd.f32 %v8822, %v8864
        %v8866 = vpop.f32.mrf.mxu0
        %v8867 = vadd.f32 %v8824, %v8866
        %v8868 = vpop.f32.mrf.mxu0
        %v8869 = vadd.f32 %v8826, %v8868
        %8870 = vdwg.mxu0
        %8871 = vmatprep.subr.bf16.mxu0 %v8074
        %8872 = vmatpush1.bf16.msra.mxu0 %v8073
        %8873 = vmatprep.subr.bf16.mxu0 %v8066
        %8874 = vmatpush1.bf16.msra.mxu0 %v8065
        %8875 = vmatprep.subr.bf16.mxu0 %v8058
        %8876 = vmatpush1.bf16.msra.mxu0 %v8057
        %8877 = vmatprep.subr.bf16.mxu0 %v8050
        %8878 = vmatpush1.bf16.msra.mxu0 %v8049
        %8879 = vmatprep.subr.bf16.mxu0 %v8042
        %8880 = vmatpush1.bf16.msra.mxu0 %v8041
        %8881 = vmatprep.subr.bf16.mxu0 %v8034
        %8882 = vmatpush1.bf16.msra.mxu0 %v8033
        %8883 = vmatprep.subr.bf16.mxu0 %v8026
        %8884 = vmatpush1.bf16.msra.mxu0 %v8025
        %8885 = vmatprep.subr.bf16.mxu0 %v8018
        %8886 = vmatpush1.bf16.msra.mxu0 %v8017
        %8887 = vmatprep.subr.bf16.mxu0 %v8138
        %8888 = vmatpush2.bf16.msra.mxu0 %v8137
        %8889 = vmatprep.subr.bf16.mxu0 %v8130
        %8890 = vmatpush2.bf16.msra.mxu0 %v8129
        %8891 = vmatprep.subr.bf16.mxu0 %v8122
        %8892 = vmatpush2.bf16.msra.mxu0 %v8121
        %8893 = vmatprep.subr.bf16.mxu0 %v8114
        %8894 = vmatpush2.bf16.msra.mxu0 %v8113
        %8895 = vmatprep.subr.bf16.mxu0 %v8106
        %8896 = vmatpush2.bf16.msra.mxu0 %v8105
        %8897 = vmatprep.subr.bf16.mxu0 %v8098
        %8898 = vmatpush2.bf16.msra.mxu0 %v8097
        %8899 = vmatprep.subr.bf16.mxu0 %v8090
        %8900 = vmatpush2.bf16.msra.mxu0 %v8089
        %8901 = vmatprep.subr.bf16.mxu0 %v8082
        %8902 = vmatpush2.bf16.msra.mxu0 %v8081
        %8903 = vmatprep.mubr.bf16.mxu0 %v5668
        %8904 = vmatmul.mubr.bf16.gmra.mxu0 %v5667
        %v8905 = vpop.f32.mrf.mxu0
        %v8906 = vadd.f32 %v8863, %v8905
        %v8907 = vpop.f32.mrf.mxu0
        %v8908 = vadd.f32 %v8865, %v8907
        %v8909 = vpop.f32.mrf.mxu0
        %v8910 = vadd.f32 %v8867, %v8909
        %v8911 = vpop.f32.mrf.mxu0
        %v8912 = vadd.f32 %v8869, %v8911
        %8913 = vdwg.mxu0
        %8914 = vmatprep.subr.bf16.mxu0 %v8202
        %8915 = vmatpush1.bf16.msra.mxu0 %v8201
        %8916 = vmatprep.subr.bf16.mxu0 %v8194
        %8917 = vmatpush1.bf16.msra.mxu0 %v8193
        %8918 = vmatprep.subr.bf16.mxu0 %v8186
        %8919 = vmatpush1.bf16.msra.mxu0 %v8185
        %8920 = vmatprep.subr.bf16.mxu0 %v8178
        %8921 = vmatpush1.bf16.msra.mxu0 %v8177
        %8922 = vmatprep.subr.bf16.mxu0 %v8170
        %8923 = vmatpush1.bf16.msra.mxu0 %v8169
        %8924 = vmatprep.subr.bf16.mxu0 %v8162
        %8925 = vmatpush1.bf16.msra.mxu0 %v8161
        %8926 = vmatprep.subr.bf16.mxu0 %v8154
        %8927 = vmatpush1.bf16.msra.mxu0 %v8153
        %8928 = vmatprep.subr.bf16.mxu0 %v8146
        %8929 = vmatpush1.bf16.msra.mxu0 %v8145
        %8930 = vmatprep.subr.bf16.mxu0 %v8266
        %8931 = vmatpush2.bf16.msra.mxu0 %v8265
        %8932 = vmatprep.subr.bf16.mxu0 %v8258
        %8933 = vmatpush2.bf16.msra.mxu0 %v8257
        %8934 = vmatprep.subr.bf16.mxu0 %v8250
        %8935 = vmatpush2.bf16.msra.mxu0 %v8249
        %8936 = vmatprep.subr.bf16.mxu0 %v8242
        %8937 = vmatpush2.bf16.msra.mxu0 %v8241
        %8938 = vmatprep.subr.bf16.mxu0 %v8234
        %8939 = vmatpush2.bf16.msra.mxu0 %v8233
        %8940 = vmatprep.subr.bf16.mxu0 %v8226
        %8941 = vmatpush2.bf16.msra.mxu0 %v8225
        %8942 = vmatprep.subr.bf16.mxu0 %v8218
        %8943 = vmatpush2.bf16.msra.mxu0 %v8217
        %8944 = vmatprep.subr.bf16.mxu0 %v8210
        %8945 = vmatpush2.bf16.msra.mxu0 %v8209
        %8946 = vmatprep.mubr.bf16.mxu0 %v5670
        %8947 = vmatmul.mubr.bf16.gmra.mxu0 %v5669
        %v8948 = vpop.f32.mrf.mxu0
        %v8949 = vadd.f32 %v8906, %v8948
        %v8950 = vpop.f32.mrf.mxu0
        %v8951 = vadd.f32 %v8908, %v8950
        %v8952 = vpop.f32.mrf.mxu0
        %v8953 = vadd.f32 %v8910, %v8952
        %v8954 = vpop.f32.mrf.mxu0
        %v8955 = vadd.f32 %v8912, %v8954
        %8956 = vdwg.mxu0
        %8957 = vmatprep.subr.bf16.mxu0 %v7820
        %8958 = vmatpush1.bf16.msra.mxu0 %v7819
        %8959 = vmatprep.subr.bf16.mxu0 %v7812
        %8960 = vmatpush1.bf16.msra.mxu0 %v7811
        %8961 = vmatprep.subr.bf16.mxu0 %v7804
        %8962 = vmatpush1.bf16.msra.mxu0 %v7803
        %8963 = vmatprep.subr.bf16.mxu0 %v7796
        %8964 = vmatpush1.bf16.msra.mxu0 %v7795
        %8965 = vmatprep.subr.bf16.mxu0 %v7788
        %8966 = vmatpush1.bf16.msra.mxu0 %v7787
        %8967 = vmatprep.subr.bf16.mxu0 %v7780
        %8968 = vmatpush1.bf16.msra.mxu0 %v7779
        %8969 = vmatprep.subr.bf16.mxu0 %v7772
        %8970 = vmatpush1.bf16.msra.mxu0 %v7771
        %8971 = vmatprep.subr.bf16.mxu0 %v7764
        %8972 = vmatpush1.bf16.msra.mxu0 %v7763
        %8973 = vmatprep.subr.bf16.mxu0 %v7884
        %8974 = vmatpush2.bf16.msra.mxu0 %v7883
        %8975 = vmatprep.subr.bf16.mxu0 %v7876
        %8976 = vmatpush2.bf16.msra.mxu0 %v7875
        %8977 = vmatprep.subr.bf16.mxu0 %v7868
        %8978 = vmatpush2.bf16.msra.mxu0 %v7867
        %8979 = vmatprep.subr.bf16.mxu0 %v7860
        %8980 = vmatpush2.bf16.msra.mxu0 %v7859
        %8981 = vmatprep.subr.bf16.mxu0 %v7852
        %8982 = vmatpush2.bf16.msra.mxu0 %v7851
        %8983 = vmatprep.subr.bf16.mxu0 %v7844
        %8984 = vmatpush2.bf16.msra.mxu0 %v7843
        %8985 = vmatprep.subr.bf16.mxu0 %v7836
        %8986 = vmatpush2.bf16.msra.mxu0 %v7835
        %8987 = vmatprep.subr.bf16.mxu0 %v7828
        %8988 = vmatpush2.bf16.msra.mxu0 %v7827
        %8989 = vmatprep.mubr.bf16.mxu0 %v5664
        %8990 = vmatmul.mubr.bf16.gmra.mxu0 %v5663
        %v8991 = vpop.f32.mrf.mxu0
        %v8992 = vadd.f32 %v6196, %v8991
        %v8993 = vpop.f32.mrf.mxu0
        %v8994 = vadd.f32 %v6200, %v8993
        %v8995 = vpop.f32.mrf.mxu0
        %v8996 = vadd.f32 %v6196, %v8995
        %v8997 = vpop.f32.mrf.mxu0
        %v8998 = vadd.f32 %v6200, %v8997
        %8999 = vdwg.mxu0
        %9000 = vmatprep.subr.bf16.mxu0 %v7948
        %9001 = vmatpush1.bf16.msra.mxu0 %v7947
        %9002 = vmatprep.subr.bf16.mxu0 %v7940
        %9003 = vmatpush1.bf16.msra.mxu0 %v7939
        %9004 = vmatprep.subr.bf16.mxu0 %v7932
        %9005 = vmatpush1.bf16.msra.mxu0 %v7931
        %9006 = vmatprep.subr.bf16.mxu0 %v7924
        %9007 = vmatpush1.bf16.msra.mxu0 %v7923
        %9008 = vmatprep.subr.bf16.mxu0 %v7916
        %9009 = vmatpush1.bf16.msra.mxu0 %v7915
        %9010 = vmatprep.subr.bf16.mxu0 %v7908
        %9011 = vmatpush1.bf16.msra.mxu0 %v7907
        %9012 = vmatprep.subr.bf16.mxu0 %v7900
        %9013 = vmatpush1.bf16.msra.mxu0 %v7899
        %9014 = vmatprep.subr.bf16.mxu0 %v7892
        %9015 = vmatpush1.bf16.msra.mxu0 %v7891
        %9016 = vmatprep.subr.bf16.mxu0 %v8012
        %9017 = vmatpush2.bf16.msra.mxu0 %v8011
        %9018 = vmatprep.subr.bf16.mxu0 %v8004
        %9019 = vmatpush2.bf16.msra.mxu0 %v8003
        %9020 = vmatprep.subr.bf16.mxu0 %v7996
        %9021 = vmatpush2.bf16.msra.mxu0 %v7995
        %9022 = vmatprep.subr.bf16.mxu0 %v7988
        %9023 = vmatpush2.bf16.msra.mxu0 %v7987
        %9024 = vmatprep.subr.bf16.mxu0 %v7980
        %9025 = vmatpush2.bf16.msra.mxu0 %v7979
        %9026 = vmatprep.subr.bf16.mxu0 %v7972
        %9027 = vmatpush2.bf16.msra.mxu0 %v7971
        %9028 = vmatprep.subr.bf16.mxu0 %v7964
        %9029 = vmatpush2.bf16.msra.mxu0 %v7963
        %9030 = vmatprep.subr.bf16.mxu0 %v7956
        %9031 = vmatpush2.bf16.msra.mxu0 %v7955
        %9032 = vmatprep.mubr.bf16.mxu0 %v5666
        %9033 = vmatmul.mubr.bf16.gmra.mxu0 %v5665
        %v9034 = vpop.f32.mrf.mxu0
        %v9035 = vadd.f32 %v8992, %v9034
        %v9036 = vpop.f32.mrf.mxu0
        %v9037 = vadd.f32 %v8994, %v9036
        %v9038 = vpop.f32.mrf.mxu0
        %v9039 = vadd.f32 %v8996, %v9038
        %v9040 = vpop.f32.mrf.mxu0
        %v9041 = vadd.f32 %v8998, %v9040
        %9042 = vdwg.mxu0
        %9043 = vmatprep.subr.bf16.mxu0 %v8076
        %9044 = vmatpush1.bf16.msra.mxu0 %v8075
        %9045 = vmatprep.subr.bf16.mxu0 %v8068
        %9046 = vmatpush1.bf16.msra.mxu0 %v8067
        %9047 = vmatprep.subr.bf16.mxu0 %v8060
        %9048 = vmatpush1.bf16.msra.mxu0 %v8059
        %9049 = vmatprep.subr.bf16.mxu0 %v8052
        %9050 = vmatpush1.bf16.msra.mxu0 %v8051
        %9051 = vmatprep.subr.bf16.mxu0 %v8044
        %9052 = vmatpush1.bf16.msra.mxu0 %v8043
        %9053 = vmatprep.subr.bf16.mxu0 %v8036
        %9054 = vmatpush1.bf16.msra.mxu0 %v8035
        %9055 = vmatprep.subr.bf16.mxu0 %v8028
        %9056 = vmatpush1.bf16.msra.mxu0 %v8027
        %9057 = vmatprep.subr.bf16.mxu0 %v8020
        %9058 = vmatpush1.bf16.msra.mxu0 %v8019
        %9059 = vmatprep.subr.bf16.mxu0 %v8140
        %9060 = vmatpush2.bf16.msra.mxu0 %v8139
        %9061 = vmatprep.subr.bf16.mxu0 %v8132
        %9062 = vmatpush2.bf16.msra.mxu0 %v8131
        %9063 = vmatprep.subr.bf16.mxu0 %v8124
        %9064 = vmatpush2.bf16.msra.mxu0 %v8123
        %9065 = vmatprep.subr.bf16.mxu0 %v8116
        %9066 = vmatpush2.bf16.msra.mxu0 %v8115
        %9067 = vmatprep.subr.bf16.mxu0 %v8108
        %9068 = vmatpush2.bf16.msra.mxu0 %v8107
        %9069 = vmatprep.subr.bf16.mxu0 %v8100
        %9070 = vmatpush2.bf16.msra.mxu0 %v8099
        %9071 = vmatprep.subr.bf16.mxu0 %v8092
        %9072 = vmatpush2.bf16.msra.mxu0 %v8091
        %9073 = vmatprep.subr.bf16.mxu0 %v8084
        %9074 = vmatpush2.bf16.msra.mxu0 %v8083
        %9075 = vmatprep.mubr.bf16.mxu0 %v5668
        %9076 = vmatmul.mubr.bf16.gmra.mxu0 %v5667
        %v9077 = vpop.f32.mrf.mxu0
        %v9078 = vadd.f32 %v9035, %v9077
        %v9079 = vpop.f32.mrf.mxu0
        %v9080 = vadd.f32 %v9037, %v9079
        %v9081 = vpop.f32.mrf.mxu0
        %v9082 = vadd.f32 %v9039, %v9081
        %v9083 = vpop.f32.mrf.mxu0
        %v9084 = vadd.f32 %v9041, %v9083
        %9085 = vdwg.mxu0
        %9086 = vmatprep.subr.bf16.mxu0 %v8204
        %9087 = vmatpush1.bf16.msra.mxu0 %v8203
        %9088 = vmatprep.subr.bf16.mxu0 %v8196
        %9089 = vmatpush1.bf16.msra.mxu0 %v8195
        %9090 = vmatprep.subr.bf16.mxu0 %v8188
        %9091 = vmatpush1.bf16.msra.mxu0 %v8187
        %9092 = vmatprep.subr.bf16.mxu0 %v8180
        %9093 = vmatpush1.bf16.msra.mxu0 %v8179
        %9094 = vmatprep.subr.bf16.mxu0 %v8172
        %9095 = vmatpush1.bf16.msra.mxu0 %v8171
        %9096 = vmatprep.subr.bf16.mxu0 %v8164
        %9097 = vmatpush1.bf16.msra.mxu0 %v8163
        %9098 = vmatprep.subr.bf16.mxu0 %v8156
        %9099 = vmatpush1.bf16.msra.mxu0 %v8155
        %9100 = vmatprep.subr.bf16.mxu0 %v8148
        %9101 = vmatpush1.bf16.msra.mxu0 %v8147
        %9102 = vmatprep.subr.bf16.mxu0 %v8268
        %9103 = vmatpush2.bf16.msra.mxu0 %v8267
        %9104 = vmatprep.subr.bf16.mxu0 %v8260
        %9105 = vmatpush2.bf16.msra.mxu0 %v8259
        %9106 = vmatprep.subr.bf16.mxu0 %v8252
        %9107 = vmatpush2.bf16.msra.mxu0 %v8251
        %9108 = vmatprep.subr.bf16.mxu0 %v8244
        %9109 = vmatpush2.bf16.msra.mxu0 %v8243
        %9110 = vmatprep.subr.bf16.mxu0 %v8236
        %9111 = vmatpush2.bf16.msra.mxu0 %v8235
        %9112 = vmatprep.subr.bf16.mxu0 %v8228
        %9113 = vmatpush2.bf16.msra.mxu0 %v8227
        %9114 = vmatprep.subr.bf16.mxu0 %v8220
        %9115 = vmatpush2.bf16.msra.mxu0 %v8219
        %9116 = vmatprep.subr.bf16.mxu0 %v8212
        %9117 = vmatpush2.bf16.msra.mxu0 %v8211
        %9118 = vmatprep.mubr.bf16.mxu0 %v5670
        %9119 = vmatmul.mubr.bf16.gmra.mxu0 %v5669
        %v9120 = vpop.f32.mrf.mxu0
        %v9121 = vadd.f32 %v9078, %v9120
        %v9122 = vpop.f32.mrf.mxu0
        %v9123 = vadd.f32 %v9080, %v9122
        %v9124 = vpop.f32.mrf.mxu0
        %v9125 = vadd.f32 %v9082, %v9124
        %v9126 = vpop.f32.mrf.mxu0
        %v9127 = vadd.f32 %v9084, %v9126
        %9128 = vdwg.mxu0
        %9129 = vmatprep.subr.bf16.mxu0 %v7822
        %9130 = vmatpush1.bf16.msra.mxu0 %v7821
        %9131 = vmatprep.subr.bf16.mxu0 %v7814
        %9132 = vmatpush1.bf16.msra.mxu0 %v7813
        %9133 = vmatprep.subr.bf16.mxu0 %v7806
        %9134 = vmatpush1.bf16.msra.mxu0 %v7805
        %9135 = vmatprep.subr.bf16.mxu0 %v7798
        %9136 = vmatpush1.bf16.msra.mxu0 %v7797
        %9137 = vmatprep.subr.bf16.mxu0 %v7790
        %9138 = vmatpush1.bf16.msra.mxu0 %v7789
        %9139 = vmatprep.subr.bf16.mxu0 %v7782
        %9140 = vmatpush1.bf16.msra.mxu0 %v7781
        %9141 = vmatprep.subr.bf16.mxu0 %v7774
        %9142 = vmatpush1.bf16.msra.mxu0 %v7773
        %9143 = vmatprep.subr.bf16.mxu0 %v7766
        %9144 = vmatpush1.bf16.msra.mxu0 %v7765
        %9145 = vmatprep.subr.bf16.mxu0 %v7886
        %9146 = vmatpush2.bf16.msra.mxu0 %v7885
        %9147 = vmatprep.subr.bf16.mxu0 %v7878
        %9148 = vmatpush2.bf16.msra.mxu0 %v7877
        %9149 = vmatprep.subr.bf16.mxu0 %v7870
        %9150 = vmatpush2.bf16.msra.mxu0 %v7869
        %9151 = vmatprep.subr.bf16.mxu0 %v7862
        %9152 = vmatpush2.bf16.msra.mxu0 %v7861
        %9153 = vmatprep.subr.bf16.mxu0 %v7854
        %9154 = vmatpush2.bf16.msra.mxu0 %v7853
        %9155 = vmatprep.subr.bf16.mxu0 %v7846
        %9156 = vmatpush2.bf16.msra.mxu0 %v7845
        %9157 = vmatprep.subr.bf16.mxu0 %v7838
        %9158 = vmatpush2.bf16.msra.mxu0 %v7837
        %9159 = vmatprep.subr.bf16.mxu0 %v7830
        %9160 = vmatpush2.bf16.msra.mxu0 %v7829
        %9161 = vmatprep.mubr.bf16.mxu0 %v5664
        %9162 = vmatmul.mubr.bf16.gmra.mxu0 %v5663
        %v9163 = vpop.f32.mrf.mxu0
        %v9164 = vadd.f32 %v6204, %v9163
        %v9165 = vpop.f32.mrf.mxu0
        %v9166 = vadd.f32 %v6208, %v9165
        %v9167 = vpop.f32.mrf.mxu0
        %v9168 = vadd.f32 %v6204, %v9167
        %v9169 = vpop.f32.mrf.mxu0
        %v9170 = vadd.f32 %v6208, %v9169
        %9171 = vdwg.mxu0
        %9172 = vmatprep.subr.bf16.mxu0 %v7950
        %9173 = vmatpush1.bf16.msra.mxu0 %v7949
        %9174 = vmatprep.subr.bf16.mxu0 %v7942
        %9175 = vmatpush1.bf16.msra.mxu0 %v7941
        %9176 = vmatprep.subr.bf16.mxu0 %v7934
        %9177 = vmatpush1.bf16.msra.mxu0 %v7933
        %9178 = vmatprep.subr.bf16.mxu0 %v7926
        %9179 = vmatpush1.bf16.msra.mxu0 %v7925
        %9180 = vmatprep.subr.bf16.mxu0 %v7918
        %9181 = vmatpush1.bf16.msra.mxu0 %v7917
        %9182 = vmatprep.subr.bf16.mxu0 %v7910
        %9183 = vmatpush1.bf16.msra.mxu0 %v7909
        %9184 = vmatprep.subr.bf16.mxu0 %v7902
        %9185 = vmatpush1.bf16.msra.mxu0 %v7901
        %9186 = vmatprep.subr.bf16.mxu0 %v7894
        %9187 = vmatpush1.bf16.msra.mxu0 %v7893
        %9188 = vmatprep.subr.bf16.mxu0 %v8014
        %9189 = vmatpush2.bf16.msra.mxu0 %v8013
        %9190 = vmatprep.subr.bf16.mxu0 %v8006
        %9191 = vmatpush2.bf16.msra.mxu0 %v8005
        %9192 = vmatprep.subr.bf16.mxu0 %v7998
        %9193 = vmatpush2.bf16.msra.mxu0 %v7997
        %9194 = vmatprep.subr.bf16.mxu0 %v7990
        %9195 = vmatpush2.bf16.msra.mxu0 %v7989
        %9196 = vmatprep.subr.bf16.mxu0 %v7982
        %9197 = vmatpush2.bf16.msra.mxu0 %v7981
        %9198 = vmatprep.subr.bf16.mxu0 %v7974
        %9199 = vmatpush2.bf16.msra.mxu0 %v7973
        %9200 = vmatprep.subr.bf16.mxu0 %v7966
        %9201 = vmatpush2.bf16.msra.mxu0 %v7965
        %9202 = vmatprep.subr.bf16.mxu0 %v7958
        %9203 = vmatpush2.bf16.msra.mxu0 %v7957
        %9204 = vmatprep.mubr.bf16.mxu0 %v5666
        %9205 = vmatmul.mubr.bf16.gmra.mxu0 %v5665
        %v9206 = vpop.f32.mrf.mxu0
        %v9207 = vadd.f32 %v9164, %v9206
        %v9208 = vpop.f32.mrf.mxu0
        %v9209 = vadd.f32 %v9166, %v9208
        %v9210 = vpop.f32.mrf.mxu0
        %v9211 = vadd.f32 %v9168, %v9210
        %v9212 = vpop.f32.mrf.mxu0
        %v9213 = vadd.f32 %v9170, %v9212
        %9214 = vdwg.mxu0
        %9215 = vmatprep.subr.bf16.mxu0 %v8078
        %9216 = vmatpush1.bf16.msra.mxu0 %v8077
        %9217 = vmatprep.subr.bf16.mxu0 %v8070
        %9218 = vmatpush1.bf16.msra.mxu0 %v8069
        %9219 = vmatprep.subr.bf16.mxu0 %v8062
        %9220 = vmatpush1.bf16.msra.mxu0 %v8061
        %9221 = vmatprep.subr.bf16.mxu0 %v8054
        %9222 = vmatpush1.bf16.msra.mxu0 %v8053
        %9223 = vmatprep.subr.bf16.mxu0 %v8046
        %9224 = vmatpush1.bf16.msra.mxu0 %v8045
        %9225 = vmatprep.subr.bf16.mxu0 %v8038
        %9226 = vmatpush1.bf16.msra.mxu0 %v8037
        %9227 = vmatprep.subr.bf16.mxu0 %v8030
        %9228 = vmatpush1.bf16.msra.mxu0 %v8029
        %9229 = vmatprep.subr.bf16.mxu0 %v8022
        %9230 = vmatpush1.bf16.msra.mxu0 %v8021
        %9231 = vmatprep.subr.bf16.mxu0 %v8142
        %9232 = vmatpush2.bf16.msra.mxu0 %v8141
        %9233 = vmatprep.subr.bf16.mxu0 %v8134
        %9234 = vmatpush2.bf16.msra.mxu0 %v8133
        %9235 = vmatprep.subr.bf16.mxu0 %v8126
        %9236 = vmatpush2.bf16.msra.mxu0 %v8125
        %9237 = vmatprep.subr.bf16.mxu0 %v8118
        %9238 = vmatpush2.bf16.msra.mxu0 %v8117
        %9239 = vmatprep.subr.bf16.mxu0 %v8110
        %9240 = vmatpush2.bf16.msra.mxu0 %v8109
        %9241 = vmatprep.subr.bf16.mxu0 %v8102
        %9242 = vmatpush2.bf16.msra.mxu0 %v8101
        %9243 = vmatprep.subr.bf16.mxu0 %v8094
        %9244 = vmatpush2.bf16.msra.mxu0 %v8093
        %9245 = vmatprep.subr.bf16.mxu0 %v8086
        %9246 = vmatpush2.bf16.msra.mxu0 %v8085
        %9247 = vmatprep.mubr.bf16.mxu0 %v5668
        %9248 = vmatmul.mubr.bf16.gmra.mxu0 %v5667
        %v9249 = vpop.f32.mrf.mxu0
        %v9250 = vadd.f32 %v9207, %v9249
        %v9251 = vpop.f32.mrf.mxu0
        %v9252 = vadd.f32 %v9209, %v9251
        %v9253 = vpop.f32.mrf.mxu0
        %v9254 = vadd.f32 %v9211, %v9253
        %v9255 = vpop.f32.mrf.mxu0
        %v9256 = vadd.f32 %v9213, %v9255
        %9257 = vdwg.mxu0
        %9258 = vmatprep.subr.bf16.mxu0 %v8206
        %9259 = vmatpush1.bf16.msra.mxu0 %v8205
        %9260 = vmatprep.subr.bf16.mxu0 %v8198
        %9261 = vmatpush1.bf16.msra.mxu0 %v8197
        %9262 = vmatprep.subr.bf16.mxu0 %v8190
        %9263 = vmatpush1.bf16.msra.mxu0 %v8189
        %9264 = vmatprep.subr.bf16.mxu0 %v8182
        %9265 = vmatpush1.bf16.msra.mxu0 %v8181
        %9266 = vmatprep.subr.bf16.mxu0 %v8174
        %9267 = vmatpush1.bf16.msra.mxu0 %v8173
        %9268 = vmatprep.subr.bf16.mxu0 %v8166
        %9269 = vmatpush1.bf16.msra.mxu0 %v8165
        %9270 = vmatprep.subr.bf16.mxu0 %v8158
        %9271 = vmatpush1.bf16.msra.mxu0 %v8157
        %9272 = vmatprep.subr.bf16.mxu0 %v8150
        %9273 = vmatpush1.bf16.msra.mxu0 %v8149
        %9274 = vmatprep.subr.bf16.mxu0 %v8270
        %9275 = vmatpush2.bf16.msra.mxu0 %v8269
        %9276 = vmatprep.subr.bf16.mxu0 %v8262
        %9277 = vmatpush2.bf16.msra.mxu0 %v8261
        %9278 = vmatprep.subr.bf16.mxu0 %v8254
        %9279 = vmatpush2.bf16.msra.mxu0 %v8253
        %9280 = vmatprep.subr.bf16.mxu0 %v8246
        %9281 = vmatpush2.bf16.msra.mxu0 %v8245
        %9282 = vmatprep.subr.bf16.mxu0 %v8238
        %9283 = vmatpush2.bf16.msra.mxu0 %v8237
        %9284 = vmatprep.subr.bf16.mxu0 %v8230
        %9285 = vmatpush2.bf16.msra.mxu0 %v8229
        %9286 = vmatprep.subr.bf16.mxu0 %v8222
        %9287 = vmatpush2.bf16.msra.mxu0 %v8221
        %9288 = vmatprep.subr.bf16.mxu0 %v8214
        %9289 = vmatpush2.bf16.msra.mxu0 %v8213
        %9290 = vmatprep.mubr.bf16.mxu0 %v5670
        %9291 = vmatmul.mubr.bf16.gmra.mxu0 %v5669
        %v9292 = vpop.f32.mrf.mxu0
        %v9293 = vadd.f32 %v9250, %v9292
        %v9294 = vpop.f32.mrf.mxu0
        %v9295 = vadd.f32 %v9252, %v9294
        %v9296 = vpop.f32.mrf.mxu0
        %v9297 = vadd.f32 %v9254, %v9296
        %v9298 = vpop.f32.mrf.mxu0
        %v9299 = vadd.f32 %v9256, %v9298
        %9300 = vdwg.mxu0
        %9301 = vmatprep.subr.bf16.mxu0 %v7824
        %9302 = vmatpush1.bf16.msra.mxu0 %v7823
        %9303 = vmatprep.subr.bf16.mxu0 %v7816
        %9304 = vmatpush1.bf16.msra.mxu0 %v7815
        %9305 = vmatprep.subr.bf16.mxu0 %v7808
        %9306 = vmatpush1.bf16.msra.mxu0 %v7807
        %9307 = vmatprep.subr.bf16.mxu0 %v7800
        %9308 = vmatpush1.bf16.msra.mxu0 %v7799
        %9309 = vmatprep.subr.bf16.mxu0 %v7792
        %9310 = vmatpush1.bf16.msra.mxu0 %v7791
        %9311 = vmatprep.subr.bf16.mxu0 %v7784
        %9312 = vmatpush1.bf16.msra.mxu0 %v7783
        %9313 = vmatprep.subr.bf16.mxu0 %v7776
        %9314 = vmatpush1.bf16.msra.mxu0 %v7775
        %9315 = vmatprep.subr.bf16.mxu0 %v7768
        %9316 = vmatpush1.bf16.msra.mxu0 %v7767
        %9317 = vmatprep.subr.bf16.mxu0 %v7888
        %9318 = vmatpush2.bf16.msra.mxu0 %v7887
        %9319 = vmatprep.subr.bf16.mxu0 %v7880
        %9320 = vmatpush2.bf16.msra.mxu0 %v7879
        %9321 = vmatprep.subr.bf16.mxu0 %v7872
        %9322 = vmatpush2.bf16.msra.mxu0 %v7871
        %9323 = vmatprep.subr.bf16.mxu0 %v7864
        %9324 = vmatpush2.bf16.msra.mxu0 %v7863
        %9325 = vmatprep.subr.bf16.mxu0 %v7856
        %9326 = vmatpush2.bf16.msra.mxu0 %v7855
        %9327 = vmatprep.subr.bf16.mxu0 %v7848
        %9328 = vmatpush2.bf16.msra.mxu0 %v7847
        %9329 = vmatprep.subr.bf16.mxu0 %v7840
        %9330 = vmatpush2.bf16.msra.mxu0 %v7839
        %9331 = vmatprep.subr.bf16.mxu0 %v7832
        %9332 = vmatpush2.bf16.msra.mxu0 %v7831
        %9333 = vmatprep.mubr.bf16.mxu0 %v5664
        %9334 = vmatmul.mubr.bf16.gmra.mxu0 %v5663
        %v9335 = vpop.f32.mrf.mxu0
        %v9336 = vadd.f32 %v6212, %v9335
        %v9337 = vpop.f32.mrf.mxu0
        %v9338 = vadd.f32 %v6216, %v9337
        %v9339 = vpop.f32.mrf.mxu0
        %v9340 = vadd.f32 %v6212, %v9339
        %v9341 = vpop.f32.mrf.mxu0
        %v9342 = vadd.f32 %v6216, %v9341
        %9343 = vdwg.mxu0
        %9344 = vmatprep.subr.bf16.mxu0 %v7952
        %9345 = vmatpush1.bf16.msra.mxu0 %v7951
        %9346 = vmatprep.subr.bf16.mxu0 %v7944
        %9347 = vmatpush1.bf16.msra.mxu0 %v7943
        %9348 = vmatprep.subr.bf16.mxu0 %v7936
        %9349 = vmatpush1.bf16.msra.mxu0 %v7935
        %9350 = vmatprep.subr.bf16.mxu0 %v7928
        %9351 = vmatpush1.bf16.msra.mxu0 %v7927
        %9352 = vmatprep.subr.bf16.mxu0 %v7920
        %9353 = vmatpush1.bf16.msra.mxu0 %v7919
        %9354 = vmatprep.subr.bf16.mxu0 %v7912
        %9355 = vmatpush1.bf16.msra.mxu0 %v7911
        %9356 = vmatprep.subr.bf16.mxu0 %v7904
        %9357 = vmatpush1.bf16.msra.mxu0 %v7903
        %9358 = vmatprep.subr.bf16.mxu0 %v7896
        %9359 = vmatpush1.bf16.msra.mxu0 %v7895
        %9360 = vmatprep.subr.bf16.mxu0 %v8016
        %9361 = vmatpush2.bf16.msra.mxu0 %v8015
        %9362 = vmatprep.subr.bf16.mxu0 %v8008
        %9363 = vmatpush2.bf16.msra.mxu0 %v8007
        %9364 = vmatprep.subr.bf16.mxu0 %v8000
        %9365 = vmatpush2.bf16.msra.mxu0 %v7999
        %9366 = vmatprep.subr.bf16.mxu0 %v7992
        %9367 = vmatpush2.bf16.msra.mxu0 %v7991
        %9368 = vmatprep.subr.bf16.mxu0 %v7984
        %9369 = vmatpush2.bf16.msra.mxu0 %v7983
        %9370 = vmatprep.subr.bf16.mxu0 %v7976
        %9371 = vmatpush2.bf16.msra.mxu0 %v7975
        %9372 = vmatprep.subr.bf16.mxu0 %v7968
        %9373 = vmatpush2.bf16.msra.mxu0 %v7967
        %9374 = vmatprep.subr.bf16.mxu0 %v7960
        %9375 = vmatpush2.bf16.msra.mxu0 %v7959
        %9376 = vmatprep.mubr.bf16.mxu0 %v5666
        %9377 = vmatmul.mubr.bf16.gmra.mxu0 %v5665
        %v9378 = vpop.f32.mrf.mxu0
        %v9379 = vadd.f32 %v9336, %v9378
        %v9380 = vpop.f32.mrf.mxu0
        %v9381 = vadd.f32 %v9338, %v9380
        %v9382 = vpop.f32.mrf.mxu0
        %v9383 = vadd.f32 %v9340, %v9382
        %v9384 = vpop.f32.mrf.mxu0
        %v9385 = vadd.f32 %v9342, %v9384
        %9386 = vdwg.mxu0
        %9387 = vmatprep.subr.bf16.mxu0 %v8080
        %9388 = vmatpush1.bf16.msra.mxu0 %v8079
        %9389 = vmatprep.subr.bf16.mxu0 %v8072
        %9390 = vmatpush1.bf16.msra.mxu0 %v8071
        %9391 = vmatprep.subr.bf16.mxu0 %v8064
        %9392 = vmatpush1.bf16.msra.mxu0 %v8063
        %9393 = vmatprep.subr.bf16.mxu0 %v8056
        %9394 = vmatpush1.bf16.msra.mxu0 %v8055
        %9395 = vmatprep.subr.bf16.mxu0 %v8048
        %9396 = vmatpush1.bf16.msra.mxu0 %v8047
        %9397 = vmatprep.subr.bf16.mxu0 %v8040
        %9398 = vmatpush1.bf16.msra.mxu0 %v8039
        %9399 = vmatprep.subr.bf16.mxu0 %v8032
        %9400 = vmatpush1.bf16.msra.mxu0 %v8031
        %9401 = vmatprep.subr.bf16.mxu0 %v8024
        %9402 = vmatpush1.bf16.msra.mxu0 %v8023
        %9403 = vmatprep.subr.bf16.mxu0 %v8144
        %9404 = vmatpush2.bf16.msra.mxu0 %v8143
        %9405 = vmatprep.subr.bf16.mxu0 %v8136
        %9406 = vmatpush2.bf16.msra.mxu0 %v8135
        %9407 = vmatprep.subr.bf16.mxu0 %v8128
        %9408 = vmatpush2.bf16.msra.mxu0 %v8127
        %9409 = vmatprep.subr.bf16.mxu0 %v8120
        %9410 = vmatpush2.bf16.msra.mxu0 %v8119
        %9411 = vmatprep.subr.bf16.mxu0 %v8112
        %9412 = vmatpush2.bf16.msra.mxu0 %v8111
        %9413 = vmatprep.subr.bf16.mxu0 %v8104
        %9414 = vmatpush2.bf16.msra.mxu0 %v8103
        %9415 = vmatprep.subr.bf16.mxu0 %v8096
        %9416 = vmatpush2.bf16.msra.mxu0 %v8095
        %9417 = vmatprep.subr.bf16.mxu0 %v8088
        %9418 = vmatpush2.bf16.msra.mxu0 %v8087
        %9419 = vmatprep.mubr.bf16.mxu0 %v5668
        %9420 = vmatmul.mubr.bf16.gmra.mxu0 %v5667
        %v9421 = vpop.f32.mrf.mxu0
        %v9422 = vadd.f32 %v9379, %v9421
        %v9423 = vpop.f32.mrf.mxu0
        %v9424 = vadd.f32 %v9381, %v9423
        %v9425 = vpop.f32.mrf.mxu0
        %v9426 = vadd.f32 %v9383, %v9425
        %v9427 = vpop.f32.mrf.mxu0
        %v9428 = vadd.f32 %v9385, %v9427
        %9429 = vdwg.mxu0
        %9430 = vmatprep.subr.bf16.mxu0 %v8208
        %9431 = vmatpush1.bf16.msra.mxu0 %v8207
        %9432 = vmatprep.subr.bf16.mxu0 %v8200
        %9433 = vmatpush1.bf16.msra.mxu0 %v8199
        %9434 = vmatprep.subr.bf16.mxu0 %v8192
        %9435 = vmatpush1.bf16.msra.mxu0 %v8191
        %9436 = vmatprep.subr.bf16.mxu0 %v8184
        %9437 = vmatpush1.bf16.msra.mxu0 %v8183
        %9438 = vmatprep.subr.bf16.mxu0 %v8176
        %9439 = vmatpush1.bf16.msra.mxu0 %v8175
        %9440 = vmatprep.subr.bf16.mxu0 %v8168
        %9441 = vmatpush1.bf16.msra.mxu0 %v8167
        %9442 = vmatprep.subr.bf16.mxu0 %v8160
        %9443 = vmatpush1.bf16.msra.mxu0 %v8159
        %9444 = vmatprep.subr.bf16.mxu0 %v8152
        %9445 = vmatpush1.bf16.msra.mxu0 %v8151
        %9446 = vmatprep.subr.bf16.mxu0 %v8272
        %9447 = vmatpush2.bf16.msra.mxu0 %v8271
        %9448 = vmatprep.subr.bf16.mxu0 %v8264
        %9449 = vmatpush2.bf16.msra.mxu0 %v8263
        %9450 = vmatprep.subr.bf16.mxu0 %v8256
        %9451 = vmatpush2.bf16.msra.mxu0 %v8255
        %9452 = vmatprep.subr.bf16.mxu0 %v8248
        %9453 = vmatpush2.bf16.msra.mxu0 %v8247
        %9454 = vmatprep.subr.bf16.mxu0 %v8240
        %9455 = vmatpush2.bf16.msra.mxu0 %v8239
        %9456 = vmatprep.subr.bf16.mxu0 %v8232
        %9457 = vmatpush2.bf16.msra.mxu0 %v8231
        %9458 = vmatprep.subr.bf16.mxu0 %v8224
        %9459 = vmatpush2.bf16.msra.mxu0 %v8223
        %9460 = vmatprep.subr.bf16.mxu0 %v8216
        %9461 = vmatpush2.bf16.msra.mxu0 %v8215
        %9462 = vmatprep.mubr.bf16.mxu0 %v5670
        %9463 = vmatmul.mubr.bf16.gmra.mxu0 %v5669
        %v9464 = vpop.f32.mrf.mxu0
        %v9465 = vadd.f32 %v9422, %v9464
        %v9466 = vpop.f32.mrf.mxu0
        %v9467 = vadd.f32 %v9424, %v9466
        %v9468 = vpop.f32.mrf.mxu0
        %v9469 = vadd.f32 %v9426, %v9468
        %v9470 = vpop.f32.mrf.mxu0
        %v9471 = vadd.f32 %v9428, %v9470
        %9472 = vdwg.mxu0
        %vm9473 = vcmp.gt.f32.partialorder %v8949, 0.0
        %vm9474 = vcmp.gt.f32.partialorder %v8951, 0.0
        %vm9475 = vcmp.gt.f32.partialorder %v9121, 0.0
        %vm9476 = vcmp.gt.f32.partialorder %v9123, 0.0
        %vm9477 = vcmp.gt.f32.partialorder %v9293, 0.0
        %vm9478 = vcmp.gt.f32.partialorder %v9295, 0.0
        %vm9479 = vcmp.gt.f32.partialorder %v9465, 0.0
        %vm9480 = vcmp.gt.f32.partialorder %v9467, 0.0
        %vm9481 = vcmp.gt.f32.partialorder %v8953, 0.0
        %vm9482 = vcmp.gt.f32.partialorder %v8955, 0.0
        %vm9483 = vcmp.gt.f32.partialorder %v9125, 0.0
        %vm9484 = vcmp.gt.f32.partialorder %v9127, 0.0
        %vm9485 = vcmp.gt.f32.partialorder %v9297, 0.0
        %vm9486 = vcmp.gt.f32.partialorder %v9299, 0.0
        %vm9487 = vcmp.gt.f32.partialorder %v9469, 0.0
        %vm9488 = vcmp.gt.f32.partialorder %v9471, 0.0
        %v9489 = vmul.f32 %v8949, 0.2
        %v9490 = vmul.f32 %v8951, 0.2
        %v9491 = vmul.f32 %v9121, 0.2
        %v9492 = vmul.f32 %v9123, 0.2
        %v9493 = vmul.f32 %v9293, 0.2
        %v9494 = vmul.f32 %v9295, 0.2
        %v9495 = vmul.f32 %v9465, 0.2
        %v9496 = vmul.f32 %v9467, 0.2
        %v9497 = vmul.f32 %v8953, 0.2
        %v9498 = vmul.f32 %v8955, 0.2
        %v9499 = vmul.f32 %v9125, 0.2
        %v9500 = vmul.f32 %v9127, 0.2
        %v9501 = vmul.f32 %v9297, 0.2
        %v9502 = vmul.f32 %v9299, 0.2
        %v9503 = vmul.f32 %v9469, 0.2
        %v9504 = vmul.f32 %v9471, 0.2
        %v9505 = vsel %vm9473, %v8949, %v9489
        %v9506 = vsel %vm9474, %v8951, %v9490
        %v9507 = vsel %vm9475, %v9121, %v9491
        %v9508 = vsel %vm9476, %v9123, %v9492
        %v9509 = vsel %vm9477, %v9293, %v9493
        %v9510 = vsel %vm9478, %v9295, %v9494
        %v9511 = vsel %vm9479, %v9465, %v9495
        %v9512 = vsel %vm9480, %v9467, %v9496
        %v9513 = vsel %vm9481, %v8953, %v9497
        %v9514 = vsel %vm9482, %v8955, %v9498
        %v9515 = vsel %vm9483, %v9125, %v9499
        %v9516 = vsel %vm9484, %v9127, %v9500
        %v9517 = vsel %vm9485, %v9297, %v9501
        %v9518 = vsel %vm9486, %v9299, %v9502
        %v9519 = vsel %vm9487, %v9469, %v9503
        %v9520 = vsel %vm9488, %v9471, %v9504
        %v9521 = vpack.c.bf16 %v9513, %v9505
        %v9522 = vpack.c.bf16 %v9514, %v9506
        %v9523 = vpack.c.bf16 %v9515, %v9507
        %v9524 = vpack.c.bf16 %v9516, %v9508
        %v9525 = vpack.c.bf16 %v9517, %v9509
        %v9526 = vpack.c.bf16 %v9518, %v9510
        %v9527 = vpack.c.bf16 %v9519, %v9511
        %v9528 = vpack.c.bf16 %v9520, %v9512
        %v9529 = vld [vmem:[#allocation17] sm:$0xf]
        %v9530 = vld [vmem:[#allocation17 + $0x4] sm:$0xf]
        %v9531 = vld [vmem:[#allocation17 + $0x8] sm:$0xf]
        %v9532 = vld [vmem:[#allocation17 + $0xc] sm:$0xf]
        %v9533 = vld [vmem:[#allocation17 + $0x10] sm:$0xf]
        %v9534 = vld [vmem:[#allocation17 + $0x14] sm:$0xf]
        %v9535 = vld [vmem:[#allocation17 + $0x18] sm:$0xf]
        %v9536 = vld [vmem:[#allocation17 + $0x1c] sm:$0xf]
        %v9537 = vld [vmem:[#allocation17 + $0x20] sm:$0xf]
        %v9538 = vld [vmem:[#allocation17 + $0x24] sm:$0xf]
        %v9539 = vld [vmem:[#allocation17 + $0x28] sm:$0xf]
        %v9540 = vld [vmem:[#allocation17 + $0x2c] sm:$0xf]
        %v9541 = vld [vmem:[#allocation17 + $0x30] sm:$0xf]
        %v9542 = vld [vmem:[#allocation17 + $0x34] sm:$0xf]
        %v9543 = vld [vmem:[#allocation17 + $0x38] sm:$0xf]
        %v9544 = vld [vmem:[#allocation17 + $0x3c] sm:$0xf]
        %v9545 = vld [vmem:[#allocation17 + $0x40] sm:$0xf]
        %v9546 = vld [vmem:[#allocation17 + $0x44] sm:$0xf]
        %v9547 = vld [vmem:[#allocation17 + $0x48] sm:$0xf]
        %v9548 = vld [vmem:[#allocation17 + $0x4c] sm:$0xf]
        %v9549 = vld [vmem:[#allocation17 + $0x50] sm:$0xf]
        %v9550 = vld [vmem:[#allocation17 + $0x54] sm:$0xf]
        %v9551 = vld [vmem:[#allocation17 + $0x58] sm:$0xf]
        %v9552 = vld [vmem:[#allocation17 + $0x5c] sm:$0xf]
        %v9553 = vld [vmem:[#allocation17 + $0x60] sm:$0xf]
        %v9554 = vld [vmem:[#allocation17 + $0x64] sm:$0xf]
        %v9555 = vld [vmem:[#allocation17 + $0x68] sm:$0xf]
        %v9556 = vld [vmem:[#allocation17 + $0x6c] sm:$0xf]
        %v9557 = vld [vmem:[#allocation17 + $0x70] sm:$0xf]
        %v9558 = vld [vmem:[#allocation17 + $0x74] sm:$0xf]
        %v9559 = vld [vmem:[#allocation17 + $0x78] sm:$0xf]
        %v9560 = vld [vmem:[#allocation17 + $0x7c] sm:$0xf]
        %v9561 = vld [vmem:[#allocation17 + $0x80] sm:$0xf]
        %v9562 = vld [vmem:[#allocation17 + $0x84] sm:$0xf]
        %v9563 = vld [vmem:[#allocation17 + $0x88] sm:$0xf]
        %v9564 = vld [vmem:[#allocation17 + $0x8c] sm:$0xf]
        %v9565 = vld [vmem:[#allocation17 + $0x90] sm:$0xf]
        %v9566 = vld [vmem:[#allocation17 + $0x94] sm:$0xf]
        %v9567 = vld [vmem:[#allocation17 + $0x98] sm:$0xf]
        %v9568 = vld [vmem:[#allocation17 + $0x9c] sm:$0xf]
        %v9569 = vld [vmem:[#allocation17 + $0xa0] sm:$0xf]
        %v9570 = vld [vmem:[#allocation17 + $0xa4] sm:$0xf]
        %v9571 = vld [vmem:[#allocation17 + $0xa8] sm:$0xf]
        %v9572 = vld [vmem:[#allocation17 + $0xac] sm:$0xf]
        %v9573 = vld [vmem:[#allocation17 + $0xb0] sm:$0xf]
        %v9574 = vld [vmem:[#allocation17 + $0xb4] sm:$0xf]
        %v9575 = vld [vmem:[#allocation17 + $0xb8] sm:$0xf]
        %v9576 = vld [vmem:[#allocation17 + $0xbc] sm:$0xf]
        %v9577 = vld [vmem:[#allocation17 + $0xc0] sm:$0xf]
        %v9578 = vld [vmem:[#allocation17 + $0xc4] sm:$0xf]
        %v9579 = vld [vmem:[#allocation17 + $0xc8] sm:$0xf]
        %v9580 = vld [vmem:[#allocation17 + $0xcc] sm:$0xf]
        %v9581 = vld [vmem:[#allocation17 + $0xd0] sm:$0xf]
        %v9582 = vld [vmem:[#allocation17 + $0xd4] sm:$0xf]
        %v9583 = vld [vmem:[#allocation17 + $0xd8] sm:$0xf]
        %v9584 = vld [vmem:[#allocation17 + $0xdc] sm:$0xf]
        %v9585 = vld [vmem:[#allocation17 + $0xe0] sm:$0xf]
        %v9586 = vld [vmem:[#allocation17 + $0xe4] sm:$0xf]
        %v9587 = vld [vmem:[#allocation17 + $0xe8] sm:$0xf]
        %v9588 = vld [vmem:[#allocation17 + $0xec] sm:$0xf]
        %v9589 = vld [vmem:[#allocation17 + $0xf0] sm:$0xf]
        %v9590 = vld [vmem:[#allocation17 + $0xf4] sm:$0xf]
        %v9591 = vld [vmem:[#allocation17 + $0xf8] sm:$0xf]
        %v9592 = vld [vmem:[#allocation17 + $0xfc] sm:$0xf]
        %v9593 = vld [vmem:[#allocation17 + $0x100] sm:$0xf]
        %v9594 = vld [vmem:[#allocation17 + $0x104] sm:$0xf]
        %v9595 = vld [vmem:[#allocation17 + $0x108] sm:$0xf]
        %v9596 = vld [vmem:[#allocation17 + $0x10c] sm:$0xf]
        %v9597 = vld [vmem:[#allocation17 + $0x110] sm:$0xf]
        %v9598 = vld [vmem:[#allocation17 + $0x114] sm:$0xf]
        %v9599 = vld [vmem:[#allocation17 + $0x118] sm:$0xf]
        %v9600 = vld [vmem:[#allocation17 + $0x11c] sm:$0xf]
        %v9601 = vld [vmem:[#allocation17 + $0x120] sm:$0xf]
        %v9602 = vld [vmem:[#allocation17 + $0x124] sm:$0xf]
        %v9603 = vld [vmem:[#allocation17 + $0x128] sm:$0xf]
        %v9604 = vld [vmem:[#allocation17 + $0x12c] sm:$0xf]
        %v9605 = vld [vmem:[#allocation17 + $0x130] sm:$0xf]
        %v9606 = vld [vmem:[#allocation17 + $0x134] sm:$0xf]
        %v9607 = vld [vmem:[#allocation17 + $0x138] sm:$0xf]
        %v9608 = vld [vmem:[#allocation17 + $0x13c] sm:$0xf]
        %v9609 = vld [vmem:[#allocation17 + $0x140] sm:$0xf]
        %v9610 = vld [vmem:[#allocation17 + $0x144] sm:$0xf]
        %v9611 = vld [vmem:[#allocation17 + $0x148] sm:$0xf]
        %v9612 = vld [vmem:[#allocation17 + $0x14c] sm:$0xf]
        %v9613 = vld [vmem:[#allocation17 + $0x150] sm:$0xf]
        %v9614 = vld [vmem:[#allocation17 + $0x154] sm:$0xf]
        %v9615 = vld [vmem:[#allocation17 + $0x158] sm:$0xf]
        %v9616 = vld [vmem:[#allocation17 + $0x15c] sm:$0xf]
        %v9617 = vld [vmem:[#allocation17 + $0x160] sm:$0xf]
        %v9618 = vld [vmem:[#allocation17 + $0x164] sm:$0xf]
        %v9619 = vld [vmem:[#allocation17 + $0x168] sm:$0xf]
        %v9620 = vld [vmem:[#allocation17 + $0x16c] sm:$0xf]
        %v9621 = vld [vmem:[#allocation17 + $0x170] sm:$0xf]
        %v9622 = vld [vmem:[#allocation17 + $0x174] sm:$0xf]
        %v9623 = vld [vmem:[#allocation17 + $0x178] sm:$0xf]
        %v9624 = vld [vmem:[#allocation17 + $0x17c] sm:$0xf]
        %v9625 = vld [vmem:[#allocation17 + $0x180] sm:$0xf]
        %v9626 = vld [vmem:[#allocation17 + $0x184] sm:$0xf]
        %v9627 = vld [vmem:[#allocation17 + $0x188] sm:$0xf]
        %v9628 = vld [vmem:[#allocation17 + $0x18c] sm:$0xf]
        %v9629 = vld [vmem:[#allocation17 + $0x190] sm:$0xf]
        %v9630 = vld [vmem:[#allocation17 + $0x194] sm:$0xf]
        %v9631 = vld [vmem:[#allocation17 + $0x198] sm:$0xf]
        %v9632 = vld [vmem:[#allocation17 + $0x19c] sm:$0xf]
        %v9633 = vld [vmem:[#allocation17 + $0x1a0] sm:$0xf]
        %v9634 = vld [vmem:[#allocation17 + $0x1a4] sm:$0xf]
        %v9635 = vld [vmem:[#allocation17 + $0x1a8] sm:$0xf]
        %v9636 = vld [vmem:[#allocation17 + $0x1ac] sm:$0xf]
        %v9637 = vld [vmem:[#allocation17 + $0x1b0] sm:$0xf]
        %v9638 = vld [vmem:[#allocation17 + $0x1b4] sm:$0xf]
        %v9639 = vld [vmem:[#allocation17 + $0x1b8] sm:$0xf]
        %v9640 = vld [vmem:[#allocation17 + $0x1bc] sm:$0xf]
        %v9641 = vld [vmem:[#allocation17 + $0x1c0] sm:$0xf]
        %v9642 = vld [vmem:[#allocation17 + $0x1c4] sm:$0xf]
        %v9643 = vld [vmem:[#allocation17 + $0x1c8] sm:$0xf]
        %v9644 = vld [vmem:[#allocation17 + $0x1cc] sm:$0xf]
        %v9645 = vld [vmem:[#allocation17 + $0x1d0] sm:$0xf]
        %v9646 = vld [vmem:[#allocation17 + $0x1d4] sm:$0xf]
        %v9647 = vld [vmem:[#allocation17 + $0x1d8] sm:$0xf]
        %v9648 = vld [vmem:[#allocation17 + $0x1dc] sm:$0xf]
        %v9649 = vld [vmem:[#allocation17 + $0x1e0] sm:$0xf]
        %v9650 = vld [vmem:[#allocation17 + $0x1e4] sm:$0xf]
        %v9651 = vld [vmem:[#allocation17 + $0x1e8] sm:$0xf]
        %v9652 = vld [vmem:[#allocation17 + $0x1ec] sm:$0xf]
        %v9653 = vld [vmem:[#allocation17 + $0x1f0] sm:$0xf]
        %v9654 = vld [vmem:[#allocation17 + $0x1f4] sm:$0xf]
        %v9655 = vld [vmem:[#allocation17 + $0x1f8] sm:$0xf]
        %v9656 = vld [vmem:[#allocation17 + $0x1fc] sm:$0xf]
        %v9657 = vld [vmem:[#allocation19] sm:$0x1]
        %v9659 = vlaneseq
        %v9660 = vshrl.u32 %v9659, 7
        %v9661 = vsub.s32 0, %v9660
        %v9662 = vrot.slane %v9657, %v9661
        %v9792 = vunpack.c.l.b16 %v9529
        %v9793 = vunpack.c.l.b16 %v9530
        %v9794 = vunpack.c.l.b16 %v9531
        %v9795 = vunpack.c.l.b16 %v9532
        %v9796 = vunpack.c.l.b16 %v9533
        %v9797 = vunpack.c.l.b16 %v9534
        %v9798 = vunpack.c.l.b16 %v9535
        %v9799 = vunpack.c.l.b16 %v9536
        %v9800 = vunpack.c.l.b16 %v9537
        %v9801 = vunpack.c.l.b16 %v9538
        %v9802 = vunpack.c.l.b16 %v9539
        %v9803 = vunpack.c.l.b16 %v9540
        %v9804 = vunpack.c.l.b16 %v9541
        %v9805 = vunpack.c.l.b16 %v9542
        %v9806 = vunpack.c.l.b16 %v9543
        %v9807 = vunpack.c.l.b16 %v9544
        %v9808 = vunpack.c.l.b16 %v9545
        %v9809 = vunpack.c.l.b16 %v9546
        %v9810 = vunpack.c.l.b16 %v9547
        %v9811 = vunpack.c.l.b16 %v9548
        %v9812 = vunpack.c.l.b16 %v9549
        %v9813 = vunpack.c.l.b16 %v9550
        %v9814 = vunpack.c.l.b16 %v9551
        %v9815 = vunpack.c.l.b16 %v9552
        %v9816 = vunpack.c.l.b16 %v9553
        %v9817 = vunpack.c.l.b16 %v9554
        %v9818 = vunpack.c.l.b16 %v9555
        %v9819 = vunpack.c.l.b16 %v9556
        %v9820 = vunpack.c.l.b16 %v9557
        %v9821 = vunpack.c.l.b16 %v9558
        %v9822 = vunpack.c.l.b16 %v9559
        %v9823 = vunpack.c.l.b16 %v9560
        %v9824 = vunpack.c.l.b16 %v9561
        %v9825 = vunpack.c.l.b16 %v9562
        %v9826 = vunpack.c.l.b16 %v9563
        %v9827 = vunpack.c.l.b16 %v9564
        %v9828 = vunpack.c.l.b16 %v9565
        %v9829 = vunpack.c.l.b16 %v9566
        %v9830 = vunpack.c.l.b16 %v9567
        %v9831 = vunpack.c.l.b16 %v9568
        %v9832 = vunpack.c.l.b16 %v9569
        %v9833 = vunpack.c.l.b16 %v9570
        %v9834 = vunpack.c.l.b16 %v9571
        %v9835 = vunpack.c.l.b16 %v9572
        %v9836 = vunpack.c.l.b16 %v9573
        %v9837 = vunpack.c.l.b16 %v9574
        %v9838 = vunpack.c.l.b16 %v9575
        %v9839 = vunpack.c.l.b16 %v9576
        %v9840 = vunpack.c.l.b16 %v9577
        %v9841 = vunpack.c.l.b16 %v9578
        %v9842 = vunpack.c.l.b16 %v9579
        %v9843 = vunpack.c.l.b16 %v9580
        %v9844 = vunpack.c.l.b16 %v9581
        %v9845 = vunpack.c.l.b16 %v9582
        %v9846 = vunpack.c.l.b16 %v9583
        %v9847 = vunpack.c.l.b16 %v9584
        %v9848 = vunpack.c.l.b16 %v9585
        %v9849 = vunpack.c.l.b16 %v9586
        %v9850 = vunpack.c.l.b16 %v9587
        %v9851 = vunpack.c.l.b16 %v9588
        %v9852 = vunpack.c.l.b16 %v9589
        %v9853 = vunpack.c.l.b16 %v9590
        %v9854 = vunpack.c.l.b16 %v9591
        %v9855 = vunpack.c.l.b16 %v9592
        %v9856 = vunpack.c.l.b16 %v9593
        %v9857 = vunpack.c.l.b16 %v9594
        %v9858 = vunpack.c.l.b16 %v9595
        %v9859 = vunpack.c.l.b16 %v9596
        %v9860 = vunpack.c.l.b16 %v9597
        %v9861 = vunpack.c.l.b16 %v9598
        %v9862 = vunpack.c.l.b16 %v9599
        %v9863 = vunpack.c.l.b16 %v9600
        %v9864 = vunpack.c.l.b16 %v9601
        %v9865 = vunpack.c.l.b16 %v9602
        %v9866 = vunpack.c.l.b16 %v9603
        %v9867 = vunpack.c.l.b16 %v9604
        %v9868 = vunpack.c.l.b16 %v9605
        %v9869 = vunpack.c.l.b16 %v9606
        %v9870 = vunpack.c.l.b16 %v9607
        %v9871 = vunpack.c.l.b16 %v9608
        %v9872 = vunpack.c.l.b16 %v9609
        %v9873 = vunpack.c.l.b16 %v9610
        %v9874 = vunpack.c.l.b16 %v9611
        %v9875 = vunpack.c.l.b16 %v9612
        %v9876 = vunpack.c.l.b16 %v9613
        %v9877 = vunpack.c.l.b16 %v9614
        %v9878 = vunpack.c.l.b16 %v9615
        %v9879 = vunpack.c.l.b16 %v9616
        %v9880 = vunpack.c.l.b16 %v9617
        %v9881 = vunpack.c.l.b16 %v9618
        %v9882 = vunpack.c.l.b16 %v9619
        %v9883 = vunpack.c.l.b16 %v9620
        %v9884 = vunpack.c.l.b16 %v9621
        %v9885 = vunpack.c.l.b16 %v9622
        %v9886 = vunpack.c.l.b16 %v9623
        %v9887 = vunpack.c.l.b16 %v9624
        %v9888 = vunpack.c.l.b16 %v9625
        %v9889 = vunpack.c.l.b16 %v9626
        %v9890 = vunpack.c.l.b16 %v9627
        %v9891 = vunpack.c.l.b16 %v9628
        %v9892 = vunpack.c.l.b16 %v9629
        %v9893 = vunpack.c.l.b16 %v9630
        %v9894 = vunpack.c.l.b16 %v9631
        %v9895 = vunpack.c.l.b16 %v9632
        %v9896 = vunpack.c.l.b16 %v9633
        %v9897 = vunpack.c.l.b16 %v9634
        %v9898 = vunpack.c.l.b16 %v9635
        %v9899 = vunpack.c.l.b16 %v9636
        %v9900 = vunpack.c.l.b16 %v9637
        %v9901 = vunpack.c.l.b16 %v9638
        %v9902 = vunpack.c.l.b16 %v9639
        %v9903 = vunpack.c.l.b16 %v9640
        %v9904 = vunpack.c.l.b16 %v9641
        %v9905 = vunpack.c.l.b16 %v9642
        %v9906 = vunpack.c.l.b16 %v9643
        %v9907 = vunpack.c.l.b16 %v9644
        %v9908 = vunpack.c.l.b16 %v9645
        %v9909 = vunpack.c.l.b16 %v9646
        %v9910 = vunpack.c.l.b16 %v9647
        %v9911 = vunpack.c.l.b16 %v9648
        %v9912 = vunpack.c.l.b16 %v9649
        %v9913 = vunpack.c.l.b16 %v9650
        %v9914 = vunpack.c.l.b16 %v9651
        %v9915 = vunpack.c.l.b16 %v9652
        %v9916 = vunpack.c.l.b16 %v9653
        %v9917 = vunpack.c.l.b16 %v9654
        %v9918 = vunpack.c.l.b16 %v9655
        %v9919 = vunpack.c.l.b16 %v9656
        %v9920 = vpack.c.b16 %v9793, %v9792
        %v9921 = vpack.c.b16 %v9795, %v9794
        %v9922 = vpack.c.b16 %v9797, %v9796
        %v9923 = vpack.c.b16 %v9799, %v9798
        %v9924 = vpack.c.b16 %v9801, %v9800
        %v9925 = vpack.c.b16 %v9803, %v9802
        %v9926 = vpack.c.b16 %v9805, %v9804
        %v9927 = vpack.c.b16 %v9807, %v9806
        %v9928 = vpack.c.b16 %v9809, %v9808
        %v9929 = vpack.c.b16 %v9811, %v9810
        %v9930 = vpack.c.b16 %v9813, %v9812
        %v9931 = vpack.c.b16 %v9815, %v9814
        %v9932 = vpack.c.b16 %v9817, %v9816
        %v9933 = vpack.c.b16 %v9819, %v9818
        %v9934 = vpack.c.b16 %v9821, %v9820
        %v9935 = vpack.c.b16 %v9823, %v9822
        %v9936 = vpack.c.b16 %v9825, %v9824
        %v9937 = vpack.c.b16 %v9827, %v9826
        %v9938 = vpack.c.b16 %v9829, %v9828
        %v9939 = vpack.c.b16 %v9831, %v9830
        %v9940 = vpack.c.b16 %v9833, %v9832
        %v9941 = vpack.c.b16 %v9835, %v9834
        %v9942 = vpack.c.b16 %v9837, %v9836
        %v9943 = vpack.c.b16 %v9839, %v9838
        %v9944 = vpack.c.b16 %v9841, %v9840
        %v9945 = vpack.c.b16 %v9843, %v9842
        %v9946 = vpack.c.b16 %v9845, %v9844
        %v9947 = vpack.c.b16 %v9847, %v9846
        %v9948 = vpack.c.b16 %v9849, %v9848
        %v9949 = vpack.c.b16 %v9851, %v9850
        %v9950 = vpack.c.b16 %v9853, %v9852
        %v9951 = vpack.c.b16 %v9855, %v9854
        %v9952 = vpack.c.b16 %v9857, %v9856
        %v9953 = vpack.c.b16 %v9859, %v9858
        %v9954 = vpack.c.b16 %v9861, %v9860
        %v9955 = vpack.c.b16 %v9863, %v9862
        %v9956 = vpack.c.b16 %v9865, %v9864
        %v9957 = vpack.c.b16 %v9867, %v9866
        %v9958 = vpack.c.b16 %v9869, %v9868
        %v9959 = vpack.c.b16 %v9871, %v9870
        %v9960 = vpack.c.b16 %v9873, %v9872
        %v9961 = vpack.c.b16 %v9875, %v9874
        %v9962 = vpack.c.b16 %v9877, %v9876
        %v9963 = vpack.c.b16 %v9879, %v9878
        %v9964 = vpack.c.b16 %v9881, %v9880
        %v9965 = vpack.c.b16 %v9883, %v9882
        %v9966 = vpack.c.b16 %v9885, %v9884
        %v9967 = vpack.c.b16 %v9887, %v9886
        %v9968 = vpack.c.b16 %v9889, %v9888
        %v9969 = vpack.c.b16 %v9891, %v9890
        %v9970 = vpack.c.b16 %v9893, %v9892
        %v9971 = vpack.c.b16 %v9895, %v9894
        %v9972 = vpack.c.b16 %v9897, %v9896
        %v9973 = vpack.c.b16 %v9899, %v9898
        %v9974 = vpack.c.b16 %v9901, %v9900
        %v9975 = vpack.c.b16 %v9903, %v9902
        %v9976 = vpack.c.b16 %v9905, %v9904
        %v9977 = vpack.c.b16 %v9907, %v9906
        %v9978 = vpack.c.b16 %v9909, %v9908
        %v9979 = vpack.c.b16 %v9911, %v9910
        %v9980 = vpack.c.b16 %v9913, %v9912
        %v9981 = vpack.c.b16 %v9915, %v9914
        %v9982 = vpack.c.b16 %v9917, %v9916
        %v9983 = vpack.c.b16 %v9919, %v9918
        %10048 = vmatprep.subr.bf16.mxu0 0
        %10049 = vmatpush1.bf16.msra.mxu0 %v9927
        %10050 = vmatprep.subr.bf16.mxu0 0
        %10051 = vmatpush1.bf16.msra.mxu0 %v9926
        %10052 = vmatprep.subr.bf16.mxu0 0
        %10053 = vmatpush1.bf16.msra.mxu0 %v9925
        %10054 = vmatprep.subr.bf16.mxu0 0
        %10055 = vmatpush1.bf16.msra.mxu0 %v9924
        %10056 = vmatprep.subr.bf16.mxu0 0
        %10057 = vmatpush1.bf16.msra.mxu0 %v9923
        %10058 = vmatprep.subr.bf16.mxu0 0
        %10059 = vmatpush1.bf16.msra.mxu0 %v9922
        %10060 = vmatprep.subr.bf16.mxu0 0
        %10061 = vmatpush1.bf16.msra.mxu0 %v9921
        %10062 = vmatprep.subr.bf16.mxu0 0
        %10063 = vmatpush1.bf16.msra.mxu0 %v9920
        %10064 = vmatprep.subr.bf16.mxu0 0
        %10065 = vmatpush2.bf16.msra.mxu0 %v9935
        %10066 = vmatprep.subr.bf16.mxu0 0
        %10067 = vmatpush2.bf16.msra.mxu0 %v9934
        %10068 = vmatprep.subr.bf16.mxu0 0
        %10069 = vmatpush2.bf16.msra.mxu0 %v9933
        %10070 = vmatprep.subr.bf16.mxu0 0
        %10071 = vmatpush2.bf16.msra.mxu0 %v9932
        %10072 = vmatprep.subr.bf16.mxu0 0
        %10073 = vmatpush2.bf16.msra.mxu0 %v9931
        %10074 = vmatprep.subr.bf16.mxu0 0
        %10075 = vmatpush2.bf16.msra.mxu0 %v9930
        %10076 = vmatprep.subr.bf16.mxu0 0
        %10077 = vmatpush2.bf16.msra.mxu0 %v9929
        %10078 = vmatprep.subr.bf16.mxu0 0
        %10079 = vmatpush2.bf16.msra.mxu0 %v9928
        %10080 = vmatprep.mubr.bf16.mxu0 %v9522
        %10081 = vmatmul.mubr.bf16.gmra.mxu0 %v9521
        %v10082 = vpop.f32.mrf.mxu0
        %v10083 = vadd.f32 %v9662, %v10082
        %v10084 = vpop.f32.mrf.mxu0
        %v10085 = vpop.f32.mrf.mxu0
        %v10086 = vadd.f32 %v9662, %v10085
        %v10087 = vpop.f32.mrf.mxu0
        %10088 = vdwg.mxu0
        %10089 = vmatprep.subr.bf16.mxu0 0
        %10090 = vmatpush1.bf16.msra.mxu0 %v9943
        %10091 = vmatprep.subr.bf16.mxu0 0
        %10092 = vmatpush1.bf16.msra.mxu0 %v9942
        %10093 = vmatprep.subr.bf16.mxu0 0
        %10094 = vmatpush1.bf16.msra.mxu0 %v9941
        %10095 = vmatprep.subr.bf16.mxu0 0
        %10096 = vmatpush1.bf16.msra.mxu0 %v9940
        %10097 = vmatprep.subr.bf16.mxu0 0
        %10098 = vmatpush1.bf16.msra.mxu0 %v9939
        %10099 = vmatprep.subr.bf16.mxu0 0
        %10100 = vmatpush1.bf16.msra.mxu0 %v9938
        %10101 = vmatprep.subr.bf16.mxu0 0
        %10102 = vmatpush1.bf16.msra.mxu0 %v9937
        %10103 = vmatprep.subr.bf16.mxu0 0
        %10104 = vmatpush1.bf16.msra.mxu0 %v9936
        %10105 = vmatprep.subr.bf16.mxu0 0
        %10106 = vmatpush2.bf16.msra.mxu0 %v9951
        %10107 = vmatprep.subr.bf16.mxu0 0
        %10108 = vmatpush2.bf16.msra.mxu0 %v9950
        %10109 = vmatprep.subr.bf16.mxu0 0
        %10110 = vmatpush2.bf16.msra.mxu0 %v9949
        %10111 = vmatprep.subr.bf16.mxu0 0
        %10112 = vmatpush2.bf16.msra.mxu0 %v9948
        %10113 = vmatprep.subr.bf16.mxu0 0
        %10114 = vmatpush2.bf16.msra.mxu0 %v9947
        %10115 = vmatprep.subr.bf16.mxu0 0
        %10116 = vmatpush2.bf16.msra.mxu0 %v9946
        %10117 = vmatprep.subr.bf16.mxu0 0
        %10118 = vmatpush2.bf16.msra.mxu0 %v9945
        %10119 = vmatprep.subr.bf16.mxu0 0
        %10120 = vmatpush2.bf16.msra.mxu0 %v9944
        %10121 = vmatprep.mubr.bf16.mxu0 %v9524
        %10122 = vmatmul.mubr.bf16.gmra.mxu0 %v9523
        %v10123 = vpop.f32.mrf.mxu0
        %v10124 = vadd.f32 %v10083, %v10123
        %v10125 = vpop.f32.mrf.mxu0
        %v10126 = vpop.f32.mrf.mxu0
        %v10127 = vadd.f32 %v10086, %v10126
        %v10128 = vpop.f32.mrf.mxu0
        %10129 = vdwg.mxu0
        %10130 = vmatprep.subr.bf16.mxu0 0
        %10131 = vmatpush1.bf16.msra.mxu0 %v9959
        %10132 = vmatprep.subr.bf16.mxu0 0
        %10133 = vmatpush1.bf16.msra.mxu0 %v9958
        %10134 = vmatprep.subr.bf16.mxu0 0
        %10135 = vmatpush1.bf16.msra.mxu0 %v9957
        %10136 = vmatprep.subr.bf16.mxu0 0
        %10137 = vmatpush1.bf16.msra.mxu0 %v9956
        %10138 = vmatprep.subr.bf16.mxu0 0
        %10139 = vmatpush1.bf16.msra.mxu0 %v9955
        %10140 = vmatprep.subr.bf16.mxu0 0
        %10141 = vmatpush1.bf16.msra.mxu0 %v9954
        %10142 = vmatprep.subr.bf16.mxu0 0
        %10143 = vmatpush1.bf16.msra.mxu0 %v9953
        %10144 = vmatprep.subr.bf16.mxu0 0
        %10145 = vmatpush1.bf16.msra.mxu0 %v9952
        %10146 = vmatprep.subr.bf16.mxu0 0
        %10147 = vmatpush2.bf16.msra.mxu0 %v9967
        %10148 = vmatprep.subr.bf16.mxu0 0
        %10149 = vmatpush2.bf16.msra.mxu0 %v9966
        %10150 = vmatprep.subr.bf16.mxu0 0
        %10151 = vmatpush2.bf16.msra.mxu0 %v9965
        %10152 = vmatprep.subr.bf16.mxu0 0
        %10153 = vmatpush2.bf16.msra.mxu0 %v9964
        %10154 = vmatprep.subr.bf16.mxu0 0
        %10155 = vmatpush2.bf16.msra.mxu0 %v9963
        %10156 = vmatprep.subr.bf16.mxu0 0
        %10157 = vmatpush2.bf16.msra.mxu0 %v9962
        %10158 = vmatprep.subr.bf16.mxu0 0
        %10159 = vmatpush2.bf16.msra.mxu0 %v9961
        %10160 = vmatprep.subr.bf16.mxu0 0
        %10161 = vmatpush2.bf16.msra.mxu0 %v9960
        %10162 = vmatprep.mubr.bf16.mxu0 %v9526
        %10163 = vmatmul.mubr.bf16.gmra.mxu0 %v9525
        %v10164 = vpop.f32.mrf.mxu0
        %v10165 = vadd.f32 %v10124, %v10164
        %v10166 = vpop.f32.mrf.mxu0
        %v10167 = vpop.f32.mrf.mxu0
        %v10168 = vadd.f32 %v10127, %v10167
        %v10169 = vpop.f32.mrf.mxu0
        %10170 = vdwg.mxu0
        %10171 = vmatprep.subr.bf16.mxu0 0
        %10172 = vmatpush1.bf16.msra.mxu0 %v9975
        %10173 = vmatprep.subr.bf16.mxu0 0
        %10174 = vmatpush1.bf16.msra.mxu0 %v9974
        %10175 = vmatprep.subr.bf16.mxu0 0
        %10176 = vmatpush1.bf16.msra.mxu0 %v9973
        %10177 = vmatprep.subr.bf16.mxu0 0
        %10178 = vmatpush1.bf16.msra.mxu0 %v9972
        %10179 = vmatprep.subr.bf16.mxu0 0
        %10180 = vmatpush1.bf16.msra.mxu0 %v9971
        %10181 = vmatprep.subr.bf16.mxu0 0
        %10182 = vmatpush1.bf16.msra.mxu0 %v9970
        %10183 = vmatprep.subr.bf16.mxu0 0
        %10184 = vmatpush1.bf16.msra.mxu0 %v9969
        %10185 = vmatprep.subr.bf16.mxu0 0
        %10186 = vmatpush1.bf16.msra.mxu0 %v9968
        %10187 = vmatprep.subr.bf16.mxu0 0
        %10188 = vmatpush2.bf16.msra.mxu0 %v9983
        %10189 = vmatprep.subr.bf16.mxu0 0
        %10190 = vmatpush2.bf16.msra.mxu0 %v9982
        %10191 = vmatprep.subr.bf16.mxu0 0
        %10192 = vmatpush2.bf16.msra.mxu0 %v9981
        %10193 = vmatprep.subr.bf16.mxu0 0
        %10194 = vmatpush2.bf16.msra.mxu0 %v9980
        %10195 = vmatprep.subr.bf16.mxu0 0
        %10196 = vmatpush2.bf16.msra.mxu0 %v9979
        %10197 = vmatprep.subr.bf16.mxu0 0
        %10198 = vmatpush2.bf16.msra.mxu0 %v9978
        %10199 = vmatprep.subr.bf16.mxu0 0
        %10200 = vmatpush2.bf16.msra.mxu0 %v9977
        %10201 = vmatprep.subr.bf16.mxu0 0
        %10202 = vmatpush2.bf16.msra.mxu0 %v9976
        %10203 = vmatprep.mubr.bf16.mxu0 %v9528
        %10204 = vmatmul.mubr.bf16.gmra.mxu0 %v9527
        %v10205 = vpop.f32.mrf.mxu0
        %v10206 = vadd.f32 %v10165, %v10205
        %v10207 = vpop.f32.mrf.mxu0
        %v10208 = vpop.f32.mrf.mxu0
        %v10209 = vadd.f32 %v10168, %v10208
        %v10210 = vpop.f32.mrf.mxu0
        %10211 = vdwg.mxu0
        %10212 = vst [vmem:[%s566] sm:$0xff] %v10206
        %10213 = vst [vmem:[%s566 + $0x8] sm:$0xff] %v10209
        %s10214 = sand.u32 %s284, 1
        %s10215 = scalar_lea.sflag [#allocation4], %s10214
        %s10216 = sand.u32 %s284, 1
        %s10217 = smul.addr %s10216, 16
        %s10218 = scalar_lea.vmem [#allocation20], %s10217
        // Predicated region
        $region109: #{tpu_custom_call.1} parent=63 // pred_check
          %p10219 = pneg %p294
        $region110: #{tpu_custom_call.1} parent=63 // pred_check_branch
          %10221 = sbr.rel (%p10219) target = $region112
        $region111: #{tpu_custom_call.1} parent=63 // pred_region
          %s10222 = smul.u32 2, %s35
          %s10224 = ssub.s32 256, 256
          %10225 = vsyncadd %s10215, %s10224
          %s10226 = smul.addr %s10222, 128
          %s10227 = scalar_lea.hbm %s11, %s10226
          %s10228 = sshll.u32 %s10218, 4
          %s10229 = int_to_ptr.vmem [resolvable:$true] %s10228
          %10234 = dma.vmem_to_hbm [thread:$0]  %s10229, 256, %s10227, %s10215, 128, 128, 8
        $region112: #{tpu_custom_call.1} parent=63 // pred_fallthru
          _
      $region64: #{tpu_custom_call.1} parent=5 // pred_fallthru
        _
      %p10235 = scmp.le.s32.totalorder 2, %s30
      // Predicated region
      $region113: #{tpu_custom_call.1} parent=5 // pred_check
        %p10236 = pneg %p10235
      $region114: #{tpu_custom_call.1} parent=5 // pred_check_branch
        %10238 = sbr.rel (%p10236) target = $region116
      $region115: #{tpu_custom_call.1} parent=5 // pred_region
        %s10239 = ssub.s32 %s30, 2
        // Predicated region
        $region117: #{tpu_custom_call.1} parent=115 // pred_check
          %p10240 = pneg %p300
        $region118: #{tpu_custom_call.1} parent=115 // pred_check_branch
          %10242 = sbr.rel (%p10240) target = $region120
        $region119: #{tpu_custom_call.1} parent=115 // pred_region
          %s10243 = sand.u32 %s285, 1
          %s10244 = scalar_lea.sflag [#allocation4], %s10243
          %s10245 = sand.u32 %s285, 1
          %s10246 = smul.addr %s10245, 16
          %s10247 = scalar_lea.vmem [#allocation20], %s10246
          %10248 = dma.done %s10244, 256
        $region120: #{tpu_custom_call.1} parent=115 // pred_fallthru
          _
      $region116: #{tpu_custom_call.1} parent=5 // pred_fallthru
        _
    $region6: #{tpu_custom_call.1} parent=1 // loop_footer
      %s34 = sadd.s32 1, %s30
    $region7: #{tpu_custom_call.1} parent=1 // loop_footer_branch
      %29 = sbr.rel target = $region3
    $region8: #{tpu_custom_call.1} parent=1 // loop_exit
      _
    %10249 = vsyncpa [#allocation3], 1
    %s10250 = scalar_lea.sflag [#allocation3], 1
    %10251 = vsyncpa %s10250, 1
    %10252 = vsyncpa [#allocation6], 1
    %s10253 = scalar_lea.sflag [#allocation6], 1
    %10254 = vsyncpa %s10253, 1
    %10255 = vsyncpa [#allocation9], 1
    %10256 = vsyncpa [#allocation12], 1
    %10257 = vsyncpa [#allocation15], 1
    %10258 = vsyncpa [#allocation18], 1
    %10259 = vsyncpa [#allocation4], 1
    %s10260 = scalar_lea.sflag [#allocation4], 1
    %10261 = vsyncpa %s10260, 1

</llo_original>
